<compile_context>
chip_gen: v6e
topology: v6e:2x2x1
jax: 0.10.0
libtpu: 0.0.40
codegen_flags: <defaults>
</compile_context>

<pallas_src>
import functools
import numpy as np

import jax
import jax.numpy as jnp
from jax import lax
from jax.experimental import pallas as pl
from jax.experimental.pallas import tpu as pltpu


# ----------------------------- hyper parameters ------------------------------
HP = dict(
    vocab_size=20, max_seq_len=32,
    encoder_dim=32, decoder_dim=32, n_layers=2, n_head=2, d_k=16,
    fft_filter=64, fft_kernel=(3, 1), fft_padding=(1, 0),
    dp_filter=32, dp_kernel=3,
    num_mels=16, cbhg_K=8, cbhg_proj=(32, 16),
    dropout=0.0, postnet_type="CBHG",
)

_NEG = -1e9
_EPS = 1e-5
# bf16 MXU operands with f32 accumulation (native MXU path on v5e/v6e/v7x);
# all elementwise / normalization / softmax math stays f32.
_MXU_DT = jnp.bfloat16


# ------------------------------ pallas helpers -------------------------------
def _vmem():
    return pl.BlockSpec(memory_space=pltpu.MemorySpace.VMEM)


def _pcall(kernel, out_shape, n_in, scratch_shapes=()):
    if isinstance(out_shape, (tuple, list)):
        out_specs = tuple(_vmem() for _ in out_shape)
    else:
        out_specs = _vmem()
    return pl.pallas_call(
        kernel,
        out_shape=out_shape,
        in_specs=[_vmem() for _ in range(n_in)],
        out_specs=out_specs,
        scratch_shapes=list(scratch_shapes),
    )


# --------------------------- in-kernel math helpers ---------------------------
def _mm(a, b):
    """MXU matmul: bf16 operands, f32 accumulation."""
    return jnp.dot(a.astype(_MXU_DT), b.astype(_MXU_DT),
                   preferred_element_type=jnp.float32)


def _bmm(eq, a, b):
    """Batched MXU einsum: bf16 operands, f32 accumulation."""
    return jnp.einsum(eq, a.astype(_MXU_DT), b.astype(_MXU_DT),
                      preferred_element_type=jnp.float32)


def _layernorm(x, g, b):
    mean = jnp.mean(x, axis=-1, keepdims=True)
    var = jnp.mean((x - mean) ** 2, axis=-1, keepdims=True)
    return (x - mean) * lax.rsqrt(var + _EPS) * g + b


def _batchnorm(x, g, b):
    # training-mode batch statistics over (batch*time) rows, per channel
    mean = jnp.mean(x, axis=0, keepdims=True)
    var = jnp.mean((x - mean) ** 2, axis=0, keepdims=True)
    return (x - mean) * lax.rsqrt(var + _EPS) * g + b


def _conv1d_rows(x, w, b, k, pad_front, pad_back, time_axis):
    """Tap-unfolded 1-D conv: one (rows, k*Cin) @ (k*Cin, Cout) MXU matmul.
    TODO(synk): at production lengths replace the pad/tap concatenates with
    pltpu.roll-shifted accumulation to keep the copy work on the XLU."""
    if time_axis == 1:                       # x: (B, T, C) batch-major
        B, T, C = x.shape
        if pad_front or pad_back:
            x = jnp.concatenate(
                [jnp.zeros((B, pad_front, C), jnp.float32), x,
                 jnp.zeros((B, pad_back, C), jnp.float32)], axis=1)
        taps = [x[:, i:i + T, :] for i in range(k)]
        rows = B * T
    else:                                    # x: (T, B, C) time-major
        T, B, C = x.shape
        if pad_front or pad_back:
            x = jnp.concatenate(
                [jnp.zeros((pad_front, B, C), jnp.float32), x,
                 jnp.zeros((pad_back, B, C), jnp.float32)], axis=0)
        taps = [x[i:i + T, :, :] for i in range(k)]
        rows = T * B
    xu = taps[0] if k == 1 else jnp.concatenate(taps, axis=-1)
    xu = xu.reshape(rows, k * C)
    y = _mm(xu, w)
    if b is not None:
        y = y + b
    return y


# ------------------------- fused FFT transformer layer ------------------------
# packed per-layer vector rows (n_layers, 8, 96):
#   0: qkv bias (3H)   1: fc bias (D)   2: ln1 gamma (D)  3: ln1 beta (D)
#   4: ffn conv1 bias (d_inner)   5: ffn conv2 bias (D)
#   6: ln2 gamma (D)   7: ln2 beta (D)
def _fft_layer(x, bias, npad, qkv_w, fc_w, w1, w2, vec, *, n_head, d_k, k1, pad1):
    B, L, D = x.shape
    H = n_head * d_k
    d_inner = w1.shape[-1]
    x2 = x.reshape(B * L, D)

    # fused QKV projection (single MXU matmul)
    qkv = _mm(x2, qkv_w) + vec[0:1, :3 * H]
    q = qkv[:, 0:H].reshape(B, L, H)
    kk = qkv[:, H:2 * H].reshape(B, L, H)
    v = qkv[:, 2 * H:3 * H].reshape(B, L, H)

    inv_temp = 1.0 / float(np.sqrt(d_k))
    attn = jnp.zeros((B * L, D), jnp.float32)
    # per-head attention; output concat folded into per-head slices of the
    # output projection -> no in-kernel concatenates, fewer live vregs.
    for h in range(n_head):
        sl = slice(h * d_k, (h + 1) * d_k)
        s = _bmm('bqd,bkd->bqk', q[:, :, sl], kk[:, :, sl]) * inv_temp + bias
        s = s - jnp.max(s, axis=-1, keepdims=True)
        p = jnp.exp(s)
        p = p * pl.reciprocal(jnp.sum(p, axis=-1, keepdims=True), approx=True)
        ctx = _bmm('bqk,bkd->bqd', p, v[:, :, sl]).reshape(B * L, d_k)
        attn = attn + _mm(ctx, fc_w[sl, :])
    attn = attn + vec[1:2, :D]

    y = _layernorm(attn + x2, vec[2:3, :D], vec[3:4, :D]) * npad

    # position-wise FFN: conv(k=3,pad=1) -> relu -> conv(k=1) -> add & LN
    h1 = _conv1d_rows(y.reshape(B, L, D), w1, vec[4:5, :d_inner],
                      k1, pad1, pad1, time_axis=1)
    h1 = jnp.maximum(h1, 0.0)
    h2 = _mm(h1, w2) + vec[5:6, :D]
    z = _layernorm(h2 + y, vec[6:7, :D], vec[7:8, :D]) * npad
    return z.reshape(B, L, D)


# -------------------------------- fused kernels -------------------------------
def _encoder_kernel(x_ref, bias_ref, npad_ref,
                    qkvw_ref, fcw_ref, w1_ref, w2_ref, vec_ref,
                    dpcw_ref, dplin_ref, dpvec_ref,
                    enc_ref, dur_ref,
                    *, n_layers, n_head, d_k, k1, pad1, dp_k, dp_pad):
    B, L, D = x_ref.shape
    x = x_ref[...]
    bias = bias_ref[...]                               # (B, 1, L) additive key-pad
    npad = npad_ref[...].reshape(B * L, 1)

    for l in range(n_layers):
        x = _fft_layer(x, bias, npad, qkvw_ref[l], fcw_ref[l], w1_ref[l],
                       w2_ref[l], vec_ref[l],
                       n_head=n_head, d_k=d_k, k1=k1, pad1=pad1)
    enc_ref[...] = x

    # duration predictor fused in (encoder output already resident in VMEM)
    # Conv -> ReLU -> LayerNorm (x2), Linear -> ReLU
    dpv = dpvec_ref[...]
    F = dpcw_ref.shape[-1]
    y = _conv1d_rows(x, dpcw_ref[0], dpv[0:1, :F], dp_k, dp_pad, dp_pad, time_axis=1)
    y = _layernorm(jnp.maximum(y, 0.0), dpv[1:2, :F], dpv[2:3, :F])
    y = _conv1d_rows(y.reshape(B, L, F), dpcw_ref[1], dpv[3:4, :F],
                     dp_k, dp_pad, dp_pad, time_axis=1)
    y = _layernorm(jnp.maximum(y, 0.0), dpv[4:5, :F], dpv[5:6, :F])
    # single lane-row store (1, B*L) instead of (B*L, 1) per-row masked stores
    dur = _mm(dplin_ref[...], y.T) + dpv[6:7, 0:1]
    dur_ref[...] = jnp.maximum(dur, 0.0)


def _decoder_kernel(align_ref, enc_ref, pos_ref, bias_ref, npad_ref,
                    qkvw_ref, fcw_ref, w1_ref, w2_ref, vec_ref, out_ref,
                    *, n_layers, n_head, d_k, k1, pad1):
    B, M, L = align_ref.shape
    # length-regulator bmm fused in: expand encoder states via alignment matrix
    x = _bmm('bml,bld->bmd', align_ref[...], enc_ref[...]) + pos_ref[...]
    bias = bias_ref[...]                               # (B, 1, M)
    npad = npad_ref[...].reshape(B * M, 1)
    for l in range(n_layers):
        x = _fft_layer(x, bias, npad, qkvw_ref[l], fcw_ref[l], w1_ref[l],
                       w2_ref[l], vec_ref[l],
                       n_head=n_head, d_k=d_k, k1=k1, pad1=pad1)
    out_ref[...] = x


# packed CBHG vector rows (14, 128):
#  0 mel_linear bias(C)  1 bank BN gamma(KC)  2 bank BN beta(KC)
#  3 proj1 gamma  4 proj1 beta  5 proj2 gamma  6 proj2 beta
#  7..10 highway [h|t] biases (2C)  11 gru b_ih (6H)  12 gru b_hh [f|b] (6H)
#  13 last_linear bias (C)
def _tail_kernel(dec_ref, keep_ref, linw_ref,
                 bank_w_ref, p1_w_ref, p2_w_ref, hw_w_ref,
                 wih_ref, whh_ref, vec_ref,
                 mel_ref, post_ref,
                 xg_scr, of_scr, ob_scr, *, K, n_highway):
    T, B, D = dec_ref.shape
    C = mel_ref.shape[-1]                              # num_mels
    H = C                                              # GRU hidden = num_mels
    vec = vec_ref[...]
    keep = keep_ref[...]                               # (T*B, 1) time-major rows

    # --- mel_linear + mask ---
    dec = dec_ref[...].reshape(T * B, D)
    mel = (_mm(dec, linw_ref[0]) + vec[0:1, :C]) * keep
    mel_ref[...] = mel

    # --- conv bank: K convs (kernel 1..K) fused into ONE lane-dense matmul + BN + relu
    x3 = mel.reshape(T, B, C)
    pad_f, pad_b = K // 2, K - 1 - K // 2
    y = _conv1d_rows(x3, bank_w_ref[...], None, K, pad_f, pad_b, time_axis=0)
    y = jnp.maximum(_batchnorm(y, vec[1:2, :K * C], vec[2:3, :K * C]), 0.0)

    # MaxPool1d(kernel=2, stride=1, pad=1)[:T]  (post-relu, so 0-pad == -inf pad)
    y3 = y.reshape(T, B, K * C)
    yp = jnp.concatenate([jnp.zeros((1, B, K * C), jnp.float32), y3], axis=0)
    pooled = jnp.maximum(yp[0:T], yp[1:T + 1])

    # projection convs (k=3) + BN (+relu on the first), residual with input mel
    P1 = p1_w_ref.shape[-1]
    y = _conv1d_rows(pooled, p1_w_ref[...], None, 3, 1, 1, time_axis=0)
    y = jnp.maximum(_batchnorm(y, vec[3:4, :P1], vec[4:5, :P1]), 0.0)
    y = _conv1d_rows(y.reshape(T, B, P1), p2_w_ref[...], None, 3, 1, 1, time_axis=0)
    y = _batchnorm(y, vec[5:6, :C], vec[6:7, :C])
    y = y + mel

    # highway x n: pre-concatenated [H|T] weights -> one matmul per layer
    for i in range(n_highway):
        ht = _mm(y, hw_w_ref[i]) + vec[7 + i:8 + i, :2 * C]
        hch = jnp.maximum(ht[:, 0:C], 0.0)
        tch = jax.nn.sigmoid(ht[:, C:2 * C])
        y = hch * tch + y * (1.0 - tch)

    # bidirectional GRU: all input-gate projections in one up-front matmul
    xg = _mm(y, wih_ref[...]) + vec[11:12, :6 * H]
    xg_scr[...] = xg.reshape(T, B, 6 * H)
    whh_f = whh_ref[0]
    whh_b = whh_ref[1]
    bhh_f = vec[12:13, 0:3 * H]
    bhh_b = vec[12:13, 3 * H:6 * H]

    def step(t, carry):
        hf, hb = carry
        xf = xg_scr[t][:, 0:3 * H]                     # forward gates at time t
        xb = xg_scr[T - 1 - t][:, 3 * H:6 * H]         # backward gates at time T-1-t
        gf = _mm(hf, whh_f) + bhh_f
        gb = _mm(hb, whh_b) + bhh_b
        rf = jax.nn.sigmoid(xf[:, 0:H] + gf[:, 0:H])
        zf = jax.nn.sigmoid(xf[:, H:2 * H] + gf[:, H:2 * H])
        nf = jnp.tanh(xf[:, 2 * H:3 * H] + rf * gf[:, 2 * H:3 * H])
        rb = jax.nn.sigmoid(xb[:, 0:H] + gb[:, 0:H])
        zb = jax.nn.sigmoid(xb[:, H:2 * H] + gb[:, H:2 * H])
        nb = jnp.tanh(xb[:, 2 * H:3 * H] + rb * gb[:, 2 * H:3 * H])
        hf = (1.0 - zf) * nf + zf * hf
        hb = (1.0 - zb) * nb + zb * hb
        of_scr[t] = hf
        ob_scr[T - 1 - t] = hb
        return (hf, hb)

    h0 = jnp.zeros((B, H), jnp.float32)
    lax.fori_loop(0, T, step, (h0, h0))

    # last_linear on [fwd|bwd] (concat folded into two sliced matmuls) + residual
    last_w = linw_ref[1]
    res = (_mm(of_scr[...].reshape(T * B, H), last_w[0:H]) +
           _mm(ob_scr[...].reshape(T * B, H), last_w[H:2 * H]) + vec[13:14, :C])
    post_ref[...] = (mel + res) * keep


# ------------------------------ op wrappers ----------------------------------
def run_encoder(params, src_seq, src_pos):
    B, L = src_seq.shape
    D = HP["encoder_dim"]
    x = params["src_word_emb"][src_seq] + params["pos_table"][src_pos]
    bias = jnp.where(src_seq == 0, _NEG, 0.0).astype(jnp.float32)[:, None, :]
    nonpad = (src_seq != 0).astype(jnp.float32)[:, :, None]
    ep, dpp = params["encoder"], params["duration_predictor"]
    kern = functools.partial(
        _encoder_kernel, n_layers=HP["n_layers"], n_head=HP["n_head"],
        d_k=HP["d_k"], k1=HP["fft_kernel"][0], pad1=HP["fft_padding"][0],
        dp_k=HP["dp_kernel"], dp_pad=HP["dp_kernel"] // 2)
    enc, dur = _pcall(kern,
                      (jax.ShapeDtypeStruct((B, L, D), jnp.float32),
                       jax.ShapeDtypeStruct((1, B * L), jnp.float32)), 11)(
        x, bias, nonpad, ep["qkv_w"], ep["fc_w"], ep["w1"], ep["w2"], ep["vec"],
        dpp["conv_w"], dpp["lin_w"], dpp["vec"])
    return enc, dur.reshape(B, L)


def run_decoder(params, alignment, enc, mel_pos):
    B, M, _ = alignment.shape
    D = HP["decoder_dim"]
    pos_emb = params["pos_table"][mel_pos]
    bias = jnp.where(mel_pos == 0, _NEG, 0.0).astype(jnp.float32)[:, None, :]
    nonpad = (mel_pos != 0).astype(jnp.float32)[:, :, None]
    dp = params["decoder"]
    kern = functools.partial(
        _decoder_kernel, n_layers=HP["n_layers"], n_head=HP["n_head"],
        d_k=HP["d_k"], k1=HP["fft_kernel"][0], pad1=HP["fft_padding"][0])
    return _pcall(kern, jax.ShapeDtypeStruct((B, M, D), jnp.float32), 10)(
        alignment, enc, pos_emb, bias, nonpad,
        dp["qkv_w"], dp["fc_w"], dp["w1"], dp["w2"], dp["vec"])


def run_postnet(params, dec_out, mel_pos):
    # mel_linear + mask + CBHG + last_linear + residual + mask, all in one kernel.
    B, M, _ = dec_out.shape
    C = HP["num_mels"]
    lengths = jnp.max(mel_pos, axis=-1)
    keep = (jnp.arange(M)[None, :] < lengths[:, None]).astype(jnp.float32)
    keep_rows = jnp.transpose(keep, (1, 0)).reshape(M * B, 1)      # time-major rows
    dec_t = jnp.transpose(dec_out, (1, 0, 2))                      # (T, B, D)
    cb = params["cbhg"]
    kern = functools.partial(_tail_kernel, K=HP["cbhg_K"], n_highway=4)
    mel_rows, post_rows = _pcall(
        kern,
        (jax.ShapeDtypeStruct((M * B, C), jnp.float32),
         jax.ShapeDtypeStruct((M * B, C), jnp.float32)),
        10,
        scratch_shapes=[pltpu.VMEM((M, B, 6 * C), jnp.float32),
                        pltpu.VMEM((M, B, C), jnp.float32),
                        pltpu.VMEM((M, B, C), jnp.float32)],
    )(dec_t, keep_rows, cb["lin_w"], cb["bank_w"], cb["p1_w"], cb["p2_w"],
      cb["hw_w"], cb["gru_wih"], cb["gru_whh"], cb["vec"])
    mel = jnp.transpose(mel_rows.reshape(M, B, C), (1, 0, 2))
    post = jnp.transpose(post_rows.reshape(M, B, C), (1, 0, 2))
    return mel, post


def fastspeech_forward(params, src_seq, src_pos, mel_pos, mel_max_length, length_target):
    # training-mode branch of FastSpeech.forward
    enc_out, dur_pred = run_encoder(params, src_seq, src_pos)

    # alignment matrix construction = pure indexing glue (stays in XLA)
    cum = jnp.cumsum(length_target, axis=1)
    start = (cum - length_target)[:, None, :]
    end = cum[:, None, :]
    t_idx = jnp.arange(mel_max_length, dtype=length_target.dtype)[None, :, None]
    alignment = ((t_idx >= start) & (t_idx < end)).astype(jnp.float32)   # (B, M, L)

    dec_out = run_decoder(params, alignment, enc_out, mel_pos)
    mel, mel_postnet = run_postnet(params, dec_out, mel_pos)
    return mel, mel_postnet, dur_pred


# ----------------------------- parameter init --------------------------------
class ParamGen:
    def __init__(self, seed=0):
        self.key = jax.random.PRNGKey(seed)

    def normal(self, shape, scale=0.1):
        self.key, sub = jax.random.split(self.key)
        return scale * jax.random.normal(sub, shape, jnp.float32)


def sinusoid_table(n_position, d_hid):
    pos = np.arange(n_position)[:, None].astype(np.float64)
    i = np.arange(d_hid)[None, :]
    angle = pos / np.power(10000.0, 2 * (i // 2) / d_hid)
    table = np.zeros((n_position, d_hid), np.float32)
    table[:, 0::2] = np.sin(angle[:, 0::2])
    table[:, 1::2] = np.cos(angle[:, 1::2])
    table[0, :] = 0.0                                   # padding_idx = 0
    return jnp.asarray(table)


def init_params(seed=0):
    pg = ParamGen(seed)
    D, n_head, d_k = HP["encoder_dim"], HP["n_head"], HP["d_k"]
    H = n_head * d_k
    d_inner, k1 = HP["fft_filter"], HP["fft_kernel"][0]

    def fft_stack(n_layers):
        qkvw, fcw, w1s, w2s, vecs = [], [], [], [], []
        vw = max(3 * H, d_inner)
        for _ in range(n_layers):
            qkvw.append(jnp.concatenate([pg.normal((D, H)) for _ in range(3)], axis=1))
            fcw.append(pg.normal((H, D)))
            w1s.append(pg.normal((k1, D, d_inner)).reshape(k1 * D, d_inner))
            w2s.append(pg.normal((d_inner, D)))          # kernel size 1
            v = np.zeros((8, vw), np.float32)
            v[2, :D] = 1.0                                # ln1 gamma
            v[6, :D] = 1.0                                # ln2 gamma
            vecs.append(v)
        return {"qkv_w": jnp.stack(qkvw), "fc_w": jnp.stack(fcw),
                "w1": jnp.stack(w1s), "w2": jnp.stack(w2s),
                "vec": jnp.asarray(np.stack(vecs))}

    emb = pg.normal((HP["vocab_size"], D)).at[0].set(0.0)

    F, kd = HP["dp_filter"], HP["dp_kernel"]
    dp_vec = np.zeros((7, F), np.float32)
    dp_vec[1, :] = 1.0                                    # ln1 gamma
    dp_vec[4, :] = 1.0                                    # ln2 gamma
    dp_p = {
        "conv_w": jnp.stack([pg.normal((kd, D, F)).reshape(kd * D, F),
                             pg.normal((kd, F, F)).reshape(kd * F, F)]),
        "lin_w": pg.normal((1, F)),                       # stored as a row: row @ y.T
        "vec": jnp.asarray(dp_vec),
    }

    C, K, proj = HP["num_mels"], HP["cbhg_K"], HP["cbhg_proj"]
    # fused conv-bank weight: K convs (kernel 1..K, pad k//2, output trimmed to T)
    # packed into a single (K*C, K*C) matmul over K unfolded time taps
    bank_np = np.zeros((K * C, K * C), np.float32)
    pad_f = K // 2
    for i in range(K):
        ksz = i + 1
        w = np.asarray(pg.normal((ksz, C, C)))
        for tap in range(ksz):
            j = tap - ksz // 2 + pad_f
            bank_np[j * C:(j + 1) * C, i * C:(i + 1) * C] = w[tap]

    hw_w = jnp.stack([jnp.concatenate([pg.normal((C, C)), pg.normal((C, C))], axis=1)
                      for _ in range(4)])                 # (4, C, 2C): [H | T]

    vec = np.zeros((14, 128), np.float32)
    vec[1, :K * C] = 1.0                                  # bank BN gamma
    vec[3, :proj[0]] = 1.0                                # proj1 BN gamma
    vec[5, :proj[1]] = 1.0                                # proj2 BN gamma
    for i in range(4):
        vec[7 + i, C:2 * C] = -1.0                        # highway T-gate bias = -1

    cbhg_p = {
        # mel_linear (decoder_dim, num_mels) and last_linear (2*num_mels, num_mels):
        # both (32, 16) at these hyperparams -> stacked into one array.
        "lin_w": jnp.stack([pg.normal((D, C)), pg.normal((2 * C, C))]),
        "bank_w": jnp.asarray(bank_np),
        "p1_w": pg.normal((3, K * C, proj[0])).reshape(3 * K * C, proj[0]),
        "p2_w": pg.normal((3, proj[0], proj[1])).reshape(3 * proj[0], proj[1]),
        "hw_w": hw_w,
        "gru_wih": jnp.concatenate([pg.normal((C, 3 * C)),
                                    pg.normal((C, 3 * C))], axis=1),   # (C, 6C) [f|b]
        "gru_whh": jnp.stack([pg.normal((C, 3 * C)), pg.normal((C, 3 * C))]),
        "vec": jnp.asarray(vec),
    }

    return {
        "src_word_emb": emb,
        "pos_table": sinusoid_table(HP["max_seq_len"] + 1, D),
        "encoder": fft_stack(HP["n_layers"]),
        "decoder": fft_stack(HP["n_layers"]),
        "duration_predictor": dp_p,
        "cbhg": cbhg_p,
    }


# ---------------------------------- main --------------------------------------
if __name__ == "__main__":
    params = init_params(0)

    B, L = 2, 8
    mel_max_length = 16
    key = jax.random.PRNGKey(0)
    key, k_tok = jax.random.split(key)

    src_lens = jnp.array([8, 6], dtype=jnp.int32)
    arange_l = jnp.arange(L, dtype=jnp.int32)
    valid = arange_l[None, :] < src_lens[:, None]
    tokens = jax.random.randint(k_tok, (B, L), 1, HP["vocab_size"], dtype=jnp.int32)
    src_seq = jnp.where(valid, tokens, 0)
    src_pos = jnp.where(valid, arange_l[None, :] + 1, 0)
    length_target = jnp.where(valid, 2, 0).astype(jnp.int32)          # 2 frames / token

    mel_lens = jnp.sum(length_target, axis=1)                         # [16, 12]
    arange_m = jnp.arange(mel_max_length, dtype=jnp.int32)
    mel_pos = jnp.where(arange_m[None, :] < mel_lens[:, None], arange_m[None, :] + 1, 0)

    fastspeech = jax.jit(fastspeech_forward, static_argnums=(4,))
    mel, mel_postnet, dur = fastspeech(params, src_seq, src_pos, mel_pos,
                                       mel_max_length, length_target)
    jax.block_until_ready((mel, mel_postnet, dur))

    assert mel.shape == (B, mel_max_length, HP["num_mels"])
    assert mel_postnet.shape == (B, mel_max_length, HP["num_mels"])
    assert dur.shape == (B, L)
    assert bool(jnp.all(jnp.isfinite(mel))) and bool(jnp.all(jnp.isfinite(mel_postnet)))
    assert bool(jnp.all(jnp.isfinite(dur)))
    print("KERNEL_OK")
</pallas_src>

<mosaic_0001>
module attributes {stable_mosaic.version = 11 : i64} {
  func.func @_encoder_kernel(%arg0: memref<2x8x32xf32, #tpu.memory_space<vmem>>, %arg1: memref<2x1x8xf32, #tpu.memory_space<vmem>>, %arg2: memref<2x8x1xf32, #tpu.memory_space<vmem>>, %arg3: memref<2x32x96xf32, #tpu.memory_space<vmem>>, %arg4: memref<2x32x32xf32, #tpu.memory_space<vmem>>, %arg5: memref<2x96x64xf32, #tpu.memory_space<vmem>>, %arg6: memref<2x64x32xf32, #tpu.memory_space<vmem>>, %arg7: memref<2x8x96xf32, #tpu.memory_space<vmem>>, %arg8: memref<2x96x32xf32, #tpu.memory_space<vmem>>, %arg9: memref<1x32xf32, #tpu.memory_space<vmem>>, %arg10: memref<7x32xf32, #tpu.memory_space<vmem>>, %arg11: memref<2x8x32xf32, #tpu.memory_space<vmem>>, %arg12: memref<1x16xf32, #tpu.memory_space<vmem>>) attributes {dimension_semantics = [], scalar_prefetch = 0 : i64, scratch_operands = 0 : i64, tpu.core_type = #tpu.core_type<tc>} {
    %c0 = arith.constant 0 : index
    %c0_0 = arith.constant 0 : index
    %c0_1 = arith.constant 0 : index
    %0 = vector.load %arg0[%c0, %c0_0, %c0_1] : memref<2x8x32xf32, #tpu.memory_space<vmem>>, vector<2x8x32xf32>
    %c0_2 = arith.constant 0 : index
    %c0_3 = arith.constant 0 : index
    %c0_4 = arith.constant 0 : index
    %1 = vector.load %arg1[%c0_2, %c0_3, %c0_4] : memref<2x1x8xf32, #tpu.memory_space<vmem>>, vector<2x1x8xf32>
    %c0_5 = arith.constant 0 : index
    %c0_6 = arith.constant 0 : index
    %c0_7 = arith.constant 0 : index
    %2 = vector.load %arg2[%c0_5, %c0_6, %c0_7] : memref<2x8x1xf32, #tpu.memory_space<vmem>>, vector<2x8x1xf32>
    %3 = vector.shape_cast %2 : vector<2x8x1xf32> to vector<16x1xf32>
    %c0_8 = arith.constant 0 : index
    %c0_9 = arith.constant 0 : index
    %c0_10 = arith.constant 0 : index
    %4 = vector.load %arg3[%c0_8, %c0_9, %c0_10] : memref<2x32x96xf32, #tpu.memory_space<vmem>>, vector<1x32x96xf32>
    %5 = vector.shape_cast %4 : vector<1x32x96xf32> to vector<32x96xf32>
    %c0_11 = arith.constant 0 : index
    %c0_12 = arith.constant 0 : index
    %c0_13 = arith.constant 0 : index
    %6 = vector.load %arg4[%c0_11, %c0_12, %c0_13] : memref<2x32x32xf32, #tpu.memory_space<vmem>>, vector<1x32x32xf32>
    %7 = vector.shape_cast %6 : vector<1x32x32xf32> to vector<32x32xf32>
    %c0_14 = arith.constant 0 : index
    %c0_15 = arith.constant 0 : index
    %c0_16 = arith.constant 0 : index
    %8 = vector.load %arg5[%c0_14, %c0_15, %c0_16] : memref<2x96x64xf32, #tpu.memory_space<vmem>>, vector<1x96x64xf32>
    %9 = vector.shape_cast %8 : vector<1x96x64xf32> to vector<96x64xf32>
    %c0_17 = arith.constant 0 : index
    %c0_18 = arith.constant 0 : index
    %c0_19 = arith.constant 0 : index
    %10 = vector.load %arg6[%c0_17, %c0_18, %c0_19] : memref<2x64x32xf32, #tpu.memory_space<vmem>>, vector<1x64x32xf32>
    %11 = vector.shape_cast %10 : vector<1x64x32xf32> to vector<64x32xf32>
    %c0_20 = arith.constant 0 : index
    %c0_21 = arith.constant 0 : index
    %c0_22 = arith.constant 0 : index
    %12 = vector.load %arg7[%c0_20, %c0_21, %c0_22] : memref<2x8x96xf32, #tpu.memory_space<vmem>>, vector<1x8x96xf32>
    %13 = vector.shape_cast %12 : vector<1x8x96xf32> to vector<8x96xf32>
    %14 = vector.shape_cast %0 : vector<2x8x32xf32> to vector<16x32xf32>
    %15 = arith.truncf %14 : vector<16x32xf32> to vector<16x32xbf16>
    %16 = arith.truncf %5 : vector<32x96xf32> to vector<32x96xbf16>
    %cst = arith.constant dense<0.000000e+00> : vector<16x96xf32>
    %17 = tpu.matmul %15, %16, %cst {dimension_numbers = #tpu.dot_dimension_numbers<[1], [0], [0], [1], [0, 0, 1, 1], [], []>} : vector<16x32xbf16>, vector<32x96xbf16>, vector<16x96xf32> -> vector<16x96xf32>
    %18 = vector.extract_strided_slice %13 {offsets = [0, 0], sizes = [1, 96], strides = [1, 1]} : vector<8x96xf32> to vector<1x96xf32>
    %19 = vector.broadcast %18 : vector<1x96xf32> to vector<16x96xf32>
    %20 = arith.addf %17, %19 : vector<16x96xf32>
    %21 = vector.extract_strided_slice %20 {offsets = [0, 0], sizes = [16, 32], strides = [1, 1]} : vector<16x96xf32> to vector<16x32xf32>
    %22 = vector.shape_cast %21 : vector<16x32xf32> to vector<2x8x32xf32>
    %23 = vector.extract_strided_slice %20 {offsets = [0, 32], sizes = [16, 32], strides = [1, 1]} : vector<16x96xf32> to vector<16x32xf32>
    %24 = vector.shape_cast %23 : vector<16x32xf32> to vector<2x8x32xf32>
    %25 = vector.extract_strided_slice %20 {offsets = [0, 64], sizes = [16, 32], strides = [1, 1]} : vector<16x96xf32> to vector<16x32xf32>
    %26 = vector.shape_cast %25 : vector<16x32xf32> to vector<2x8x32xf32>
    %cst_23 = arith.constant 0.000000e+00 : f32
    %27 = vector.broadcast %cst_23 : f32 to vector<16x32xf32>
    %28 = vector.extract_strided_slice %22 {offsets = [0, 0, 0], sizes = [2, 8, 16], strides = [1, 1, 1]} : vector<2x8x32xf32> to vector<2x8x16xf32>
    %29 = vector.extract_strided_slice %24 {offsets = [0, 0, 0], sizes = [2, 8, 16], strides = [1, 1, 1]} : vector<2x8x32xf32> to vector<2x8x16xf32>
    %30 = arith.truncf %28 : vector<2x8x16xf32> to vector<2x8x16xbf16>
    %31 = arith.truncf %29 : vector<2x8x16xf32> to vector<2x8x16xbf16>
    "tpu.trace_start"() <{level = 10 : i32, message = "bqd,bkd->bqk"}> : () -> ()
    %cst_24 = arith.constant dense<0.000000e+00> : vector<2x8x8xf32>
    %32 = tpu.matmul %30, %31, %cst_24 {dimension_numbers = #tpu.dot_dimension_numbers<[2], [2], [1], [1], [0, 0, 0, 1, 1, 1], [0], [0]>} : vector<2x8x16xbf16>, vector<2x8x16xbf16>, vector<2x8x8xf32> -> vector<2x8x8xf32>
    "tpu.trace_stop"() : () -> ()
    %cst_25 = arith.constant 2.500000e-01 : f32
    %33 = vector.broadcast %cst_25 : f32 to vector<2x8x8xf32>
    %34 = arith.mulf %32, %33 : vector<2x8x8xf32>
    %35 = vector.broadcast %1 : vector<2x1x8xf32> to vector<2x8x8xf32>
    %36 = arith.addf %34, %35 : vector<2x8x8xf32>
    %cst_26 = arith.constant dense<0xFF800000> : vector<2x8xf32>
    %37 = vector.multi_reduction <maximumf>, %36, %cst_26 [2] : vector<2x8x8xf32> to vector<2x8xf32>
    %38 = vector.shape_cast %37 : vector<2x8xf32> to vector<2x8x1xf32>
    %39 = vector.broadcast %38 : vector<2x8x1xf32> to vector<2x8x8xf32>
    %40 = arith.subf %36, %39 : vector<2x8x8xf32>
    %41 = math.exp %40 : vector<2x8x8xf32>
    %cst_27 = arith.constant dense<0.000000e+00> : vector<2x8xf32>
    %42 = vector.multi_reduction <add>, %41, %cst_27 [2] : vector<2x8x8xf32> to vector<2x8xf32>
    %43 = vector.shape_cast %42 : vector<2x8xf32> to vector<2x8x1xf32>
    %44 = tpu.reciprocal %43 {approx = true} : vector<2x8x1xf32> -> vector<2x8x1xf32>
    %45 = vector.broadcast %44 : vector<2x8x1xf32> to vector<2x8x8xf32>
    %46 = arith.mulf %41, %45 : vector<2x8x8xf32>
    %47 = vector.extract_strided_slice %26 {offsets = [0, 0, 0], sizes = [2, 8, 16], strides = [1, 1, 1]} : vector<2x8x32xf32> to vector<2x8x16xf32>
    %48 = arith.truncf %46 : vector<2x8x8xf32> to vector<2x8x8xbf16>
    %49 = arith.truncf %47 : vector<2x8x16xf32> to vector<2x8x16xbf16>
    "tpu.trace_start"() <{level = 10 : i32, message = "bqk,bkd->bqd"}> : () -> ()
    %cst_28 = arith.constant dense<0.000000e+00> : vector<2x8x16xf32>
    %50 = tpu.matmul %48, %49, %cst_28 {dimension_numbers = #tpu.dot_dimension_numbers<[2], [1], [1], [2], [0, 0, 0, 1, 1, 2], [0], [0]>} : vector<2x8x8xbf16>, vector<2x8x16xbf16>, vector<2x8x16xf32> -> vector<2x8x16xf32>
    "tpu.trace_stop"() : () -> ()
    %51 = vector.shape_cast %50 : vector<2x8x16xf32> to vector<16x16xf32>
    %52 = vector.extract_strided_slice %7 {offsets = [0, 0], sizes = [16, 32], strides = [1, 1]} : vector<32x32xf32> to vector<16x32xf32>
    %53 = arith.truncf %51 : vector<16x16xf32> to vector<16x16xbf16>
    %54 = arith.truncf %52 : vector<16x32xf32> to vector<16x32xbf16>
    %cst_29 = arith.constant dense<0.000000e+00> : vector<16x32xf32>
    %55 = tpu.matmul %53, %54, %cst_29 {dimension_numbers = #tpu.dot_dimension_numbers<[1], [0], [0], [1], [0, 0, 1, 1], [], []>} : vector<16x16xbf16>, vector<16x32xbf16>, vector<16x32xf32> -> vector<16x32xf32>
    %56 = arith.addf %27, %55 : vector<16x32xf32>
    %57 = vector.extract_strided_slice %22 {offsets = [0, 0, 16], sizes = [2, 8, 16], strides = [1, 1, 1]} : vector<2x8x32xf32> to vector<2x8x16xf32>
    %58 = vector.extract_strided_slice %24 {offsets = [0, 0, 16], sizes = [2, 8, 16], strides = [1, 1, 1]} : vector<2x8x32xf32> to vector<2x8x16xf32>
    %59 = arith.truncf %57 : vector<2x8x16xf32> to vector<2x8x16xbf16>
    %60 = arith.truncf %58 : vector<2x8x16xf32> to vector<2x8x16xbf16>
    "tpu.trace_start"() <{level = 10 : i32, message = "bqd,bkd->bqk"}> : () -> ()
    %cst_30 = arith.constant dense<0.000000e+00> : vector<2x8x8xf32>
    %61 = tpu.matmul %59, %60, %cst_30 {dimension_numbers = #tpu.dot_dimension_numbers<[2], [2], [1], [1], [0, 0, 0, 1, 1, 1], [0], [0]>} : vector<2x8x16xbf16>, vector<2x8x16xbf16>, vector<2x8x8xf32> -> vector<2x8x8xf32>
    "tpu.trace_stop"() : () -> ()
    %cst_31 = arith.constant 2.500000e-01 : f32
    %62 = vector.broadcast %cst_31 : f32 to vector<2x8x8xf32>
    %63 = arith.mulf %61, %62 : vector<2x8x8xf32>
    %64 = vector.broadcast %1 : vector<2x1x8xf32> to vector<2x8x8xf32>
    %65 = arith.addf %63, %64 : vector<2x8x8xf32>
    %cst_32 = arith.constant dense<0xFF800000> : vector<2x8xf32>
    %66 = vector.multi_reduction <maximumf>, %65, %cst_32 [2] : vector<2x8x8xf32> to vector<2x8xf32>
    %67 = vector.shape_cast %66 : vector<2x8xf32> to vector<2x8x1xf32>
    %68 = vector.broadcast %67 : vector<2x8x1xf32> to vector<2x8x8xf32>
    %69 = arith.subf %65, %68 : vector<2x8x8xf32>
    %70 = math.exp %69 : vector<2x8x8xf32>
    %cst_33 = arith.constant dense<0.000000e+00> : vector<2x8xf32>
    %71 = vector.multi_reduction <add>, %70, %cst_33 [2] : vector<2x8x8xf32> to vector<2x8xf32>
    %72 = vector.shape_cast %71 : vector<2x8xf32> to vector<2x8x1xf32>
    %73 = tpu.reciprocal %72 {approx = true} : vector<2x8x1xf32> -> vector<2x8x1xf32>
    %74 = vector.broadcast %73 : vector<2x8x1xf32> to vector<2x8x8xf32>
    %75 = arith.mulf %70, %74 : vector<2x8x8xf32>
    %76 = vector.extract_strided_slice %26 {offsets = [0, 0, 16], sizes = [2, 8, 16], strides = [1, 1, 1]} : vector<2x8x32xf32> to vector<2x8x16xf32>
    %77 = arith.truncf %75 : vector<2x8x8xf32> to vector<2x8x8xbf16>
    %78 = arith.truncf %76 : vector<2x8x16xf32> to vector<2x8x16xbf16>
    "tpu.trace_start"() <{level = 10 : i32, message = "bqk,bkd->bqd"}> : () -> ()
    %cst_34 = arith.constant dense<0.000000e+00> : vector<2x8x16xf32>
    %79 = tpu.matmul %77, %78, %cst_34 {dimension_numbers = #tpu.dot_dimension_numbers<[2], [1], [1], [2], [0, 0, 0, 1, 1, 2], [0], [0]>} : vector<2x8x8xbf16>, vector<2x8x16xbf16>, vector<2x8x16xf32> -> vector<2x8x16xf32>
    "tpu.trace_stop"() : () -> ()
    %80 = vector.shape_cast %79 : vector<2x8x16xf32> to vector<16x16xf32>
    %81 = vector.extract_strided_slice %7 {offsets = [16, 0], sizes = [16, 32], strides = [1, 1]} : vector<32x32xf32> to vector<16x32xf32>
    %82 = arith.truncf %80 : vector<16x16xf32> to vector<16x16xbf16>
    %83 = arith.truncf %81 : vector<16x32xf32> to vector<16x32xbf16>
    %cst_35 = arith.constant dense<0.000000e+00> : vector<16x32xf32>
    %84 = tpu.matmul %82, %83, %cst_35 {dimension_numbers = #tpu.dot_dimension_numbers<[1], [0], [0], [1], [0, 0, 1, 1], [], []>} : vector<16x16xbf16>, vector<16x32xbf16>, vector<16x32xf32> -> vector<16x32xf32>
    %85 = arith.addf %56, %84 : vector<16x32xf32>
    %86 = vector.extract_strided_slice %13 {offsets = [1, 0], sizes = [1, 32], strides = [1, 1]} : vector<8x96xf32> to vector<1x32xf32>
    %87 = vector.broadcast %86 : vector<1x32xf32> to vector<16x32xf32>
    %88 = arith.addf %85, %87 : vector<16x32xf32>
    %89 = arith.addf %88, %14 : vector<16x32xf32>
    %90 = vector.extract_strided_slice %13 {offsets = [2, 0], sizes = [1, 32], strides = [1, 1]} : vector<8x96xf32> to vector<1x32xf32>
    %91 = vector.extract_strided_slice %13 {offsets = [3, 0], sizes = [1, 32], strides = [1, 1]} : vector<8x96xf32> to vector<1x32xf32>
    %cst_36 = arith.constant dense<0.000000e+00> : vector<16xf32>
    %92 = vector.multi_reduction <add>, %89, %cst_36 [1] : vector<16x32xf32> to vector<16xf32>
    %93 = vector.shape_cast %92 : vector<16xf32> to vector<16x1xf32>
    %cst_37 = arith.constant 3.200000e+01 : f32
    %94 = vector.broadcast %cst_37 : f32 to vector<16x1xf32>
    %95 = arith.divf %93, %94 : vector<16x1xf32>
    %96 = vector.broadcast %95 : vector<16x1xf32> to vector<16x32xf32>
    %97 = arith.subf %89, %96 : vector<16x32xf32>
    %98 = arith.mulf %97, %97 : vector<16x32xf32>
    %cst_38 = arith.constant dense<0.000000e+00> : vector<16xf32>
    %99 = vector.multi_reduction <add>, %98, %cst_38 [1] : vector<16x32xf32> to vector<16xf32>
    %100 = vector.shape_cast %99 : vector<16xf32> to vector<16x1xf32>
    %cst_39 = arith.constant 3.200000e+01 : f32
    %101 = vector.broadcast %cst_39 : f32 to vector<16x1xf32>
    %102 = arith.divf %100, %101 : vector<16x1xf32>
    %103 = vector.broadcast %95 : vector<16x1xf32> to vector<16x32xf32>
    %104 = arith.subf %89, %103 : vector<16x32xf32>
    %cst_40 = arith.constant 9.99999974E-6 : f32
    %105 = vector.broadcast %cst_40 : f32 to vector<16x1xf32>
    %106 = arith.addf %102, %105 : vector<16x1xf32>
    %107 = math.rsqrt %106 : vector<16x1xf32>
    %108 = vector.broadcast %107 : vector<16x1xf32> to vector<16x32xf32>
    %109 = arith.mulf %104, %108 : vector<16x32xf32>
    %110 = vector.broadcast %90 : vector<1x32xf32> to vector<16x32xf32>
    %111 = arith.mulf %109, %110 : vector<16x32xf32>
    %112 = vector.broadcast %91 : vector<1x32xf32> to vector<16x32xf32>
    %113 = arith.addf %111, %112 : vector<16x32xf32>
    %114 = vector.broadcast %3 : vector<16x1xf32> to vector<16x32xf32>
    %115 = arith.mulf %113, %114 : vector<16x32xf32>
    %116 = vector.shape_cast %115 : vector<16x32xf32> to vector<2x8x32xf32>
    %117 = vector.extract_strided_slice %13 {offsets = [4, 0], sizes = [1, 64], strides = [1, 1]} : vector<8x96xf32> to vector<1x64xf32>
    %cst_41 = arith.constant 0.000000e+00 : f32
    %118 = vector.broadcast %cst_41 : f32 to vector<2x1x32xf32>
    %cst_42 = arith.constant 0.000000e+00 : f32
    %119 = vector.broadcast %cst_42 : f32 to vector<2x1x32xf32>
    %120 = tpu.concatenate %118, %116, %119 in 1 : vector<2x1x32xf32>, vector<2x8x32xf32>, vector<2x1x32xf32> -> vector<2x10x32xf32>
    %121 = vector.extract_strided_slice %120 {offsets = [0, 0, 0], sizes = [2, 8, 32], strides = [1, 1, 1]} : vector<2x10x32xf32> to vector<2x8x32xf32>
    %122 = vector.extract_strided_slice %120 {offsets = [0, 1, 0], sizes = [2, 8, 32], strides = [1, 1, 1]} : vector<2x10x32xf32> to vector<2x8x32xf32>
    %123 = vector.extract_strided_slice %120 {offsets = [0, 2, 0], sizes = [2, 8, 32], strides = [1, 1, 1]} : vector<2x10x32xf32> to vector<2x8x32xf32>
    %124 = tpu.concatenate %121, %122, %123 in 2 : vector<2x8x32xf32>, vector<2x8x32xf32>, vector<2x8x32xf32> -> vector<2x8x96xf32>
    %125 = vector.shape_cast %124 : vector<2x8x96xf32> to vector<16x96xf32>
    %126 = arith.truncf %125 : vector<16x96xf32> to vector<16x96xbf16>
    %127 = arith.truncf %9 : vector<96x64xf32> to vector<96x64xbf16>
    %cst_43 = arith.constant dense<0.000000e+00> : vector<16x64xf32>
    %128 = tpu.matmul %126, %127, %cst_43 {dimension_numbers = #tpu.dot_dimension_numbers<[1], [0], [0], [1], [0, 0, 1, 1], [], []>} : vector<16x96xbf16>, vector<96x64xbf16>, vector<16x64xf32> -> vector<16x64xf32>
    %129 = vector.broadcast %117 : vector<1x64xf32> to vector<16x64xf32>
    %130 = arith.addf %128, %129 : vector<16x64xf32>
    %cst_44 = arith.constant 0.000000e+00 : f32
    %131 = vector.broadcast %cst_44 : f32 to vector<16x64xf32>
    %132 = arith.maximumf %130, %131 : vector<16x64xf32>
    %133 = arith.truncf %132 : vector<16x64xf32> to vector<16x64xbf16>
    %134 = arith.truncf %11 : vector<64x32xf32> to vector<64x32xbf16>
    %cst_45 = arith.constant dense<0.000000e+00> : vector<16x32xf32>
    %135 = tpu.matmul %133, %134, %cst_45 {dimension_numbers = #tpu.dot_dimension_numbers<[1], [0], [0], [1], [0, 0, 1, 1], [], []>} : vector<16x64xbf16>, vector<64x32xbf16>, vector<16x32xf32> -> vector<16x32xf32>
    %136 = vector.extract_strided_slice %13 {offsets = [5, 0], sizes = [1, 32], strides = [1, 1]} : vector<8x96xf32> to vector<1x32xf32>
    %137 = vector.broadcast %136 : vector<1x32xf32> to vector<16x32xf32>
    %138 = arith.addf %135, %137 : vector<16x32xf32>
    %139 = arith.addf %138, %115 : vector<16x32xf32>
    %140 = vector.extract_strided_slice %13 {offsets = [6, 0], sizes = [1, 32], strides = [1, 1]} : vector<8x96xf32> to vector<1x32xf32>
    %141 = vector.extract_strided_slice %13 {offsets = [7, 0], sizes = [1, 32], strides = [1, 1]} : vector<8x96xf32> to vector<1x32xf32>
    %cst_46 = arith.constant dense<0.000000e+00> : vector<16xf32>
    %142 = vector.multi_reduction <add>, %139, %cst_46 [1] : vector<16x32xf32> to vector<16xf32>
    %143 = vector.shape_cast %142 : vector<16xf32> to vector<16x1xf32>
    %cst_47 = arith.constant 3.200000e+01 : f32
    %144 = vector.broadcast %cst_47 : f32 to vector<16x1xf32>
    %145 = arith.divf %143, %144 : vector<16x1xf32>
    %146 = vector.broadcast %145 : vector<16x1xf32> to vector<16x32xf32>
    %147 = arith.subf %139, %146 : vector<16x32xf32>
    %148 = arith.mulf %147, %147 : vector<16x32xf32>
    %cst_48 = arith.constant dense<0.000000e+00> : vector<16xf32>
    %149 = vector.multi_reduction <add>, %148, %cst_48 [1] : vector<16x32xf32> to vector<16xf32>
    %150 = vector.shape_cast %149 : vector<16xf32> to vector<16x1xf32>
    %cst_49 = arith.constant 3.200000e+01 : f32
    %151 = vector.broadcast %cst_49 : f32 to vector<16x1xf32>
    %152 = arith.divf %150, %151 : vector<16x1xf32>
    %153 = vector.broadcast %145 : vector<16x1xf32> to vector<16x32xf32>
    %154 = arith.subf %139, %153 : vector<16x32xf32>
    %cst_50 = arith.constant 9.99999974E-6 : f32
    %155 = vector.broadcast %cst_50 : f32 to vector<16x1xf32>
    %156 = arith.addf %152, %155 : vector<16x1xf32>
    %157 = math.rsqrt %156 : vector<16x1xf32>
    %158 = vector.broadcast %157 : vector<16x1xf32> to vector<16x32xf32>
    %159 = arith.mulf %154, %158 : vector<16x32xf32>
    %160 = vector.broadcast %140 : vector<1x32xf32> to vector<16x32xf32>
    %161 = arith.mulf %159, %160 : vector<16x32xf32>
    %162 = vector.broadcast %141 : vector<1x32xf32> to vector<16x32xf32>
    %163 = arith.addf %161, %162 : vector<16x32xf32>
    %164 = vector.broadcast %3 : vector<16x1xf32> to vector<16x32xf32>
    %165 = arith.mulf %163, %164 : vector<16x32xf32>
    %166 = vector.shape_cast %165 : vector<16x32xf32> to vector<2x8x32xf32>
    %c1 = arith.constant 1 : index
    %c0_51 = arith.constant 0 : index
    %c0_52 = arith.constant 0 : index
    %167 = vector.load %arg3[%c1, %c0_51, %c0_52] : memref<2x32x96xf32, #tpu.memory_space<vmem>>, vector<1x32x96xf32>
    %168 = vector.shape_cast %167 : vector<1x32x96xf32> to vector<32x96xf32>
    %c1_53 = arith.constant 1 : index
    %c0_54 = arith.constant 0 : index
    %c0_55 = arith.constant 0 : index
    %169 = vector.load %arg4[%c1_53, %c0_54, %c0_55] : memref<2x32x32xf32, #tpu.memory_space<vmem>>, vector<1x32x32xf32>
    %170 = vector.shape_cast %169 : vector<1x32x32xf32> to vector<32x32xf32>
    %c1_56 = arith.constant 1 : index
    %c0_57 = arith.constant 0 : index
    %c0_58 = arith.constant 0 : index
    %171 = vector.load %arg5[%c1_56, %c0_57, %c0_58] : memref<2x96x64xf32, #tpu.memory_space<vmem>>, vector<1x96x64xf32>
    %172 = vector.shape_cast %171 : vector<1x96x64xf32> to vector<96x64xf32>
    %c1_59 = arith.constant 1 : index
    %c0_60 = arith.constant 0 : index
    %c0_61 = arith.constant 0 : index
    %173 = vector.load %arg6[%c1_59, %c0_60, %c0_61] : memref<2x64x32xf32, #tpu.memory_space<vmem>>, vector<1x64x32xf32>
    %174 = vector.shape_cast %173 : vector<1x64x32xf32> to vector<64x32xf32>
    %c1_62 = arith.constant 1 : index
    %c0_63 = arith.constant 0 : index
    %c0_64 = arith.constant 0 : index
    %175 = vector.load %arg7[%c1_62, %c0_63, %c0_64] : memref<2x8x96xf32, #tpu.memory_space<vmem>>, vector<1x8x96xf32>
    %176 = vector.shape_cast %175 : vector<1x8x96xf32> to vector<8x96xf32>
    %177 = vector.shape_cast %166 : vector<2x8x32xf32> to vector<16x32xf32>
    %178 = arith.truncf %177 : vector<16x32xf32> to vector<16x32xbf16>
    %179 = arith.truncf %168 : vector<32x96xf32> to vector<32x96xbf16>
    %cst_65 = arith.constant dense<0.000000e+00> : vector<16x96xf32>
    %180 = tpu.matmul %178, %179, %cst_65 {dimension_numbers = #tpu.dot_dimension_numbers<[1], [0], [0], [1], [0, 0, 1, 1], [], []>} : vector<16x32xbf16>, vector<32x96xbf16>, vector<16x96xf32> -> vector<16x96xf32>
    %181 = vector.extract_strided_slice %176 {offsets = [0, 0], sizes = [1, 96], strides = [1, 1]} : vector<8x96xf32> to vector<1x96xf32>
    %182 = vector.broadcast %181 : vector<1x96xf32> to vector<16x96xf32>
    %183 = arith.addf %180, %182 : vector<16x96xf32>
    %184 = vector.extract_strided_slice %183 {offsets = [0, 0], sizes = [16, 32], strides = [1, 1]} : vector<16x96xf32> to vector<16x32xf32>
    %185 = vector.shape_cast %184 : vector<16x32xf32> to vector<2x8x32xf32>
    %186 = vector.extract_strided_slice %183 {offsets = [0, 32], sizes = [16, 32], strides = [1, 1]} : vector<16x96xf32> to vector<16x32xf32>
    %187 = vector.shape_cast %186 : vector<16x32xf32> to vector<2x8x32xf32>
    %188 = vector.extract_strided_slice %183 {offsets = [0, 64], sizes = [16, 32], strides = [1, 1]} : vector<16x96xf32> to vector<16x32xf32>
    %189 = vector.shape_cast %188 : vector<16x32xf32> to vector<2x8x32xf32>
    %cst_66 = arith.constant 0.000000e+00 : f32
    %190 = vector.broadcast %cst_66 : f32 to vector<16x32xf32>
    %191 = vector.extract_strided_slice %185 {offsets = [0, 0, 0], sizes = [2, 8, 16], strides = [1, 1, 1]} : vector<2x8x32xf32> to vector<2x8x16xf32>
    %192 = vector.extract_strided_slice %187 {offsets = [0, 0, 0], sizes = [2, 8, 16], strides = [1, 1, 1]} : vector<2x8x32xf32> to vector<2x8x16xf32>
    %193 = arith.truncf %191 : vector<2x8x16xf32> to vector<2x8x16xbf16>
    %194 = arith.truncf %192 : vector<2x8x16xf32> to vector<2x8x16xbf16>
    "tpu.trace_start"() <{level = 10 : i32, message = "bqd,bkd->bqk"}> : () -> ()
    %cst_67 = arith.constant dense<0.000000e+00> : vector<2x8x8xf32>
    %195 = tpu.matmul %193, %194, %cst_67 {dimension_numbers = #tpu.dot_dimension_numbers<[2], [2], [1], [1], [0, 0, 0, 1, 1, 1], [0], [0]>} : vector<2x8x16xbf16>, vector<2x8x16xbf16>, vector<2x8x8xf32> -> vector<2x8x8xf32>
    "tpu.trace_stop"() : () -> ()
    %cst_68 = arith.constant 2.500000e-01 : f32
    %196 = vector.broadcast %cst_68 : f32 to vector<2x8x8xf32>
    %197 = arith.mulf %195, %196 : vector<2x8x8xf32>
    %198 = vector.broadcast %1 : vector<2x1x8xf32> to vector<2x8x8xf32>
    %199 = arith.addf %197, %198 : vector<2x8x8xf32>
    %cst_69 = arith.constant dense<0xFF800000> : vector<2x8xf32>
    %200 = vector.multi_reduction <maximumf>, %199, %cst_69 [2] : vector<2x8x8xf32> to vector<2x8xf32>
    %201 = vector.shape_cast %200 : vector<2x8xf32> to vector<2x8x1xf32>
    %202 = vector.broadcast %201 : vector<2x8x1xf32> to vector<2x8x8xf32>
    %203 = arith.subf %199, %202 : vector<2x8x8xf32>
    %204 = math.exp %203 : vector<2x8x8xf32>
    %cst_70 = arith.constant dense<0.000000e+00> : vector<2x8xf32>
    %205 = vector.multi_reduction <add>, %204, %cst_70 [2] : vector<2x8x8xf32> to vector<2x8xf32>
    %206 = vector.shape_cast %205 : vector<2x8xf32> to vector<2x8x1xf32>
    %207 = tpu.reciprocal %206 {approx = true} : vector<2x8x1xf32> -> vector<2x8x1xf32>
    %208 = vector.broadcast %207 : vector<2x8x1xf32> to vector<2x8x8xf32>
    %209 = arith.mulf %204, %208 : vector<2x8x8xf32>
    %210 = vector.extract_strided_slice %189 {offsets = [0, 0, 0], sizes = [2, 8, 16], strides = [1, 1, 1]} : vector<2x8x32xf32> to vector<2x8x16xf32>
    %211 = arith.truncf %209 : vector<2x8x8xf32> to vector<2x8x8xbf16>
    %212 = arith.truncf %210 : vector<2x8x16xf32> to vector<2x8x16xbf16>
    "tpu.trace_start"() <{level = 10 : i32, message = "bqk,bkd->bqd"}> : () -> ()
    %cst_71 = arith.constant dense<0.000000e+00> : vector<2x8x16xf32>
    %213 = tpu.matmul %211, %212, %cst_71 {dimension_numbers = #tpu.dot_dimension_numbers<[2], [1], [1], [2], [0, 0, 0, 1, 1, 2], [0], [0]>} : vector<2x8x8xbf16>, vector<2x8x16xbf16>, vector<2x8x16xf32> -> vector<2x8x16xf32>
    "tpu.trace_stop"() : () -> ()
    %214 = vector.shape_cast %213 : vector<2x8x16xf32> to vector<16x16xf32>
    %215 = vector.extract_strided_slice %170 {offsets = [0, 0], sizes = [16, 32], strides = [1, 1]} : vector<32x32xf32> to vector<16x32xf32>
    %216 = arith.truncf %214 : vector<16x16xf32> to vector<16x16xbf16>
    %217 = arith.truncf %215 : vector<16x32xf32> to vector<16x32xbf16>
    %cst_72 = arith.constant dense<0.000000e+00> : vector<16x32xf32>
    %218 = tpu.matmul %216, %217, %cst_72 {dimension_numbers = #tpu.dot_dimension_numbers<[1], [0], [0], [1], [0, 0, 1, 1], [], []>} : vector<16x16xbf16>, vector<16x32xbf16>, vector<16x32xf32> -> vector<16x32xf32>
    %219 = arith.addf %190, %218 : vector<16x32xf32>
    %220 = vector.extract_strided_slice %185 {offsets = [0, 0, 16], sizes = [2, 8, 16], strides = [1, 1, 1]} : vector<2x8x32xf32> to vector<2x8x16xf32>
    %221 = vector.extract_strided_slice %187 {offsets = [0, 0, 16], sizes = [2, 8, 16], strides = [1, 1, 1]} : vector<2x8x32xf32> to vector<2x8x16xf32>
    %222 = arith.truncf %220 : vector<2x8x16xf32> to vector<2x8x16xbf16>
    %223 = arith.truncf %221 : vector<2x8x16xf32> to vector<2x8x16xbf16>
    "tpu.trace_start"() <{level = 10 : i32, message = "bqd,bkd->bqk"}> : () -> ()
    %cst_73 = arith.constant dense<0.000000e+00> : vector<2x8x8xf32>
    %224 = tpu.matmul %222, %223, %cst_73 {dimension_numbers = #tpu.dot_dimension_numbers<[2], [2], [1], [1], [0, 0, 0, 1, 1, 1], [0], [0]>} : vector<2x8x16xbf16>, vector<2x8x16xbf16>, vector<2x8x8xf32> -> vector<2x8x8xf32>
    "tpu.trace_stop"() : () -> ()
    %cst_74 = arith.constant 2.500000e-01 : f32
    %225 = vector.broadcast %cst_74 : f32 to vector<2x8x8xf32>
    %226 = arith.mulf %224, %225 : vector<2x8x8xf32>
    %227 = vector.broadcast %1 : vector<2x1x8xf32> to vector<2x8x8xf32>
    %228 = arith.addf %226, %227 : vector<2x8x8xf32>
    %cst_75 = arith.constant dense<0xFF800000> : vector<2x8xf32>
    %229 = vector.multi_reduction <maximumf>, %228, %cst_75 [2] : vector<2x8x8xf32> to vector<2x8xf32>
    %230 = vector.shape_cast %229 : vector<2x8xf32> to vector<2x8x1xf32>
    %231 = vector.broadcast %230 : vector<2x8x1xf32> to vector<2x8x8xf32>
    %232 = arith.subf %228, %231 : vector<2x8x8xf32>
    %233 = math.exp %232 : vector<2x8x8xf32>
    %cst_76 = arith.constant dense<0.000000e+00> : vector<2x8xf32>
    %234 = vector.multi_reduction <add>, %233, %cst_76 [2] : vector<2x8x8xf32> to vector<2x8xf32>
    %235 = vector.shape_cast %234 : vector<2x8xf32> to vector<2x8x1xf32>
    %236 = tpu.reciprocal %235 {approx = true} : vector<2x8x1xf32> -> vector<2x8x1xf32>
    %237 = vector.broadcast %236 : vector<2x8x1xf32> to vector<2x8x8xf32>
    %238 = arith.mulf %233, %237 : vector<2x8x8xf32>
    %239 = vector.extract_strided_slice %189 {offsets = [0, 0, 16], sizes = [2, 8, 16], strides = [1, 1, 1]} : vector<2x8x32xf32> to vector<2x8x16xf32>
    %240 = arith.truncf %238 : vector<2x8x8xf32> to vector<2x8x8xbf16>
    %241 = arith.truncf %239 : vector<2x8x16xf32> to vector<2x8x16xbf16>
    "tpu.trace_start"() <{level = 10 : i32, message = "bqk,bkd->bqd"}> : () -> ()
    %cst_77 = arith.constant dense<0.000000e+00> : vector<2x8x16xf32>
    %242 = tpu.matmul %240, %241, %cst_77 {dimension_numbers = #tpu.dot_dimension_numbers<[2], [1], [1], [2], [0, 0, 0, 1, 1, 2], [0], [0]>} : vector<2x8x8xbf16>, vector<2x8x16xbf16>, vector<2x8x16xf32> -> vector<2x8x16xf32>
    "tpu.trace_stop"() : () -> ()
    %243 = vector.shape_cast %242 : vector<2x8x16xf32> to vector<16x16xf32>
    %244 = vector.extract_strided_slice %170 {offsets = [16, 0], sizes = [16, 32], strides = [1, 1]} : vector<32x32xf32> to vector<16x32xf32>
    %245 = arith.truncf %243 : vector<16x16xf32> to vector<16x16xbf16>
    %246 = arith.truncf %244 : vector<16x32xf32> to vector<16x32xbf16>
    %cst_78 = arith.constant dense<0.000000e+00> : vector<16x32xf32>
    %247 = tpu.matmul %245, %246, %cst_78 {dimension_numbers = #tpu.dot_dimension_numbers<[1], [0], [0], [1], [0, 0, 1, 1], [], []>} : vector<16x16xbf16>, vector<16x32xbf16>, vector<16x32xf32> -> vector<16x32xf32>
    %248 = arith.addf %219, %247 : vector<16x32xf32>
    %249 = vector.extract_strided_slice %176 {offsets = [1, 0], sizes = [1, 32], strides = [1, 1]} : vector<8x96xf32> to vector<1x32xf32>
    %250 = vector.broadcast %249 : vector<1x32xf32> to vector<16x32xf32>
    %251 = arith.addf %248, %250 : vector<16x32xf32>
    %252 = arith.addf %251, %177 : vector<16x32xf32>
    %253 = vector.extract_strided_slice %176 {offsets = [2, 0], sizes = [1, 32], strides = [1, 1]} : vector<8x96xf32> to vector<1x32xf32>
    %254 = vector.extract_strided_slice %176 {offsets = [3, 0], sizes = [1, 32], strides = [1, 1]} : vector<8x96xf32> to vector<1x32xf32>
    %cst_79 = arith.constant dense<0.000000e+00> : vector<16xf32>
    %255 = vector.multi_reduction <add>, %252, %cst_79 [1] : vector<16x32xf32> to vector<16xf32>
    %256 = vector.shape_cast %255 : vector<16xf32> to vector<16x1xf32>
    %cst_80 = arith.constant 3.200000e+01 : f32
    %257 = vector.broadcast %cst_80 : f32 to vector<16x1xf32>
    %258 = arith.divf %256, %257 : vector<16x1xf32>
    %259 = vector.broadcast %258 : vector<16x1xf32> to vector<16x32xf32>
    %260 = arith.subf %252, %259 : vector<16x32xf32>
    %261 = arith.mulf %260, %260 : vector<16x32xf32>
    %cst_81 = arith.constant dense<0.000000e+00> : vector<16xf32>
    %262 = vector.multi_reduction <add>, %261, %cst_81 [1] : vector<16x32xf32> to vector<16xf32>
    %263 = vector.shape_cast %262 : vector<16xf32> to vector<16x1xf32>
    %cst_82 = arith.constant 3.200000e+01 : f32
    %264 = vector.broadcast %cst_82 : f32 to vector<16x1xf32>
    %265 = arith.divf %263, %264 : vector<16x1xf32>
    %266 = vector.broadcast %258 : vector<16x1xf32> to vector<16x32xf32>
    %267 = arith.subf %252, %266 : vector<16x32xf32>
    %cst_83 = arith.constant 9.99999974E-6 : f32
    %268 = vector.broadcast %cst_83 : f32 to vector<16x1xf32>
    %269 = arith.addf %265, %268 : vector<16x1xf32>
    %270 = math.rsqrt %269 : vector<16x1xf32>
    %271 = vector.broadcast %270 : vector<16x1xf32> to vector<16x32xf32>
    %272 = arith.mulf %267, %271 : vector<16x32xf32>
    %273 = vector.broadcast %253 : vector<1x32xf32> to vector<16x32xf32>
    %274 = arith.mulf %272, %273 : vector<16x32xf32>
    %275 = vector.broadcast %254 : vector<1x32xf32> to vector<16x32xf32>
    %276 = arith.addf %274, %275 : vector<16x32xf32>
    %277 = vector.broadcast %3 : vector<16x1xf32> to vector<16x32xf32>
    %278 = arith.mulf %276, %277 : vector<16x32xf32>
    %279 = vector.shape_cast %278 : vector<16x32xf32> to vector<2x8x32xf32>
    %280 = vector.extract_strided_slice %176 {offsets = [4, 0], sizes = [1, 64], strides = [1, 1]} : vector<8x96xf32> to vector<1x64xf32>
    %cst_84 = arith.constant 0.000000e+00 : f32
    %281 = vector.broadcast %cst_84 : f32 to vector<2x1x32xf32>
    %cst_85 = arith.constant 0.000000e+00 : f32
    %282 = vector.broadcast %cst_85 : f32 to vector<2x1x32xf32>
    %283 = tpu.concatenate %281, %279, %282 in 1 : vector<2x1x32xf32>, vector<2x8x32xf32>, vector<2x1x32xf32> -> vector<2x10x32xf32>
    %284 = vector.extract_strided_slice %283 {offsets = [0, 0, 0], sizes = [2, 8, 32], strides = [1, 1, 1]} : vector<2x10x32xf32> to vector<2x8x32xf32>
    %285 = vector.extract_strided_slice %283 {offsets = [0, 1, 0], sizes = [2, 8, 32], strides = [1, 1, 1]} : vector<2x10x32xf32> to vector<2x8x32xf32>
    %286 = vector.extract_strided_slice %283 {offsets = [0, 2, 0], sizes = [2, 8, 32], strides = [1, 1, 1]} : vector<2x10x32xf32> to vector<2x8x32xf32>
    %287 = tpu.concatenate %284, %285, %286 in 2 : vector<2x8x32xf32>, vector<2x8x32xf32>, vector<2x8x32xf32> -> vector<2x8x96xf32>
    %288 = vector.shape_cast %287 : vector<2x8x96xf32> to vector<16x96xf32>
    %289 = arith.truncf %288 : vector<16x96xf32> to vector<16x96xbf16>
    %290 = arith.truncf %172 : vector<96x64xf32> to vector<96x64xbf16>
    %cst_86 = arith.constant dense<0.000000e+00> : vector<16x64xf32>
    %291 = tpu.matmul %289, %290, %cst_86 {dimension_numbers = #tpu.dot_dimension_numbers<[1], [0], [0], [1], [0, 0, 1, 1], [], []>} : vector<16x96xbf16>, vector<96x64xbf16>, vector<16x64xf32> -> vector<16x64xf32>
    %292 = vector.broadcast %280 : vector<1x64xf32> to vector<16x64xf32>
    %293 = arith.addf %291, %292 : vector<16x64xf32>
    %cst_87 = arith.constant 0.000000e+00 : f32
    %294 = vector.broadcast %cst_87 : f32 to vector<16x64xf32>
    %295 = arith.maximumf %293, %294 : vector<16x64xf32>
    %296 = arith.truncf %295 : vector<16x64xf32> to vector<16x64xbf16>
    %297 = arith.truncf %174 : vector<64x32xf32> to vector<64x32xbf16>
    %cst_88 = arith.constant dense<0.000000e+00> : vector<16x32xf32>
    %298 = tpu.matmul %296, %297, %cst_88 {dimension_numbers = #tpu.dot_dimension_numbers<[1], [0], [0], [1], [0, 0, 1, 1], [], []>} : vector<16x64xbf16>, vector<64x32xbf16>, vector<16x32xf32> -> vector<16x32xf32>
    %299 = vector.extract_strided_slice %176 {offsets = [5, 0], sizes = [1, 32], strides = [1, 1]} : vector<8x96xf32> to vector<1x32xf32>
    %300 = vector.broadcast %299 : vector<1x32xf32> to vector<16x32xf32>
    %301 = arith.addf %298, %300 : vector<16x32xf32>
    %302 = arith.addf %301, %278 : vector<16x32xf32>
    %303 = vector.extract_strided_slice %176 {offsets = [6, 0], sizes = [1, 32], strides = [1, 1]} : vector<8x96xf32> to vector<1x32xf32>
    %304 = vector.extract_strided_slice %176 {offsets = [7, 0], sizes = [1, 32], strides = [1, 1]} : vector<8x96xf32> to vector<1x32xf32>
    %cst_89 = arith.constant dense<0.000000e+00> : vector<16xf32>
    %305 = vector.multi_reduction <add>, %302, %cst_89 [1] : vector<16x32xf32> to vector<16xf32>
    %306 = vector.shape_cast %305 : vector<16xf32> to vector<16x1xf32>
    %cst_90 = arith.constant 3.200000e+01 : f32
    %307 = vector.broadcast %cst_90 : f32 to vector<16x1xf32>
    %308 = arith.divf %306, %307 : vector<16x1xf32>
    %309 = vector.broadcast %308 : vector<16x1xf32> to vector<16x32xf32>
    %310 = arith.subf %302, %309 : vector<16x32xf32>
    %311 = arith.mulf %310, %310 : vector<16x32xf32>
    %cst_91 = arith.constant dense<0.000000e+00> : vector<16xf32>
    %312 = vector.multi_reduction <add>, %311, %cst_91 [1] : vector<16x32xf32> to vector<16xf32>
    %313 = vector.shape_cast %312 : vector<16xf32> to vector<16x1xf32>
    %cst_92 = arith.constant 3.200000e+01 : f32
    %314 = vector.broadcast %cst_92 : f32 to vector<16x1xf32>
    %315 = arith.divf %313, %314 : vector<16x1xf32>
    %316 = vector.broadcast %308 : vector<16x1xf32> to vector<16x32xf32>
    %317 = arith.subf %302, %316 : vector<16x32xf32>
    %cst_93 = arith.constant 9.99999974E-6 : f32
    %318 = vector.broadcast %cst_93 : f32 to vector<16x1xf32>
    %319 = arith.addf %315, %318 : vector<16x1xf32>
    %320 = math.rsqrt %319 : vector<16x1xf32>
    %321 = vector.broadcast %320 : vector<16x1xf32> to vector<16x32xf32>
    %322 = arith.mulf %317, %321 : vector<16x32xf32>
    %323 = vector.broadcast %303 : vector<1x32xf32> to vector<16x32xf32>
    %324 = arith.mulf %322, %323 : vector<16x32xf32>
    %325 = vector.broadcast %304 : vector<1x32xf32> to vector<16x32xf32>
    %326 = arith.addf %324, %325 : vector<16x32xf32>
    %327 = vector.broadcast %3 : vector<16x1xf32> to vector<16x32xf32>
    %328 = arith.mulf %326, %327 : vector<16x32xf32>
    %329 = vector.shape_cast %328 : vector<16x32xf32> to vector<2x8x32xf32>
    %c0_94 = arith.constant 0 : index
    %c0_95 = arith.constant 0 : index
    %c0_96 = arith.constant 0 : index
    %330 = vector.load %arg11[%c0_94, %c0_95, %c0_96] : memref<2x8x32xf32, #tpu.memory_space<vmem>>, vector<2x8x32xf32>
    tpu.vector_store %arg11[%c0_94, %c0_95, %c0_96], %329 {strides = array<i32>} : memref<2x8x32xf32, #tpu.memory_space<vmem>>, vector<2x8x32xf32>,
    %c0_97 = arith.constant 0 : index
    %c0_98 = arith.constant 0 : index
    %331 = vector.load %arg10[%c0_97, %c0_98] : memref<7x32xf32, #tpu.memory_space<vmem>>, vector<7x32xf32>
    %c0_99 = arith.constant 0 : index
    %c0_100 = arith.constant 0 : index
    %c0_101 = arith.constant 0 : index
    %332 = vector.load %arg8[%c0_99, %c0_100, %c0_101] : memref<2x96x32xf32, #tpu.memory_space<vmem>>, vector<1x96x32xf32>
    %333 = vector.shape_cast %332 : vector<1x96x32xf32> to vector<96x32xf32>
    %334 = vector.extract_strided_slice %331 {offsets = [0, 0], sizes = [1, 32], strides = [1, 1]} : vector<7x32xf32> to vector<1x32xf32>
    %cst_102 = arith.constant 0.000000e+00 : f32
    %335 = vector.broadcast %cst_102 : f32 to vector<2x1x32xf32>
    %cst_103 = arith.constant 0.000000e+00 : f32
    %336 = vector.broadcast %cst_103 : f32 to vector<2x1x32xf32>
    %337 = tpu.concatenate %335, %329, %336 in 1 : vector<2x1x32xf32>, vector<2x8x32xf32>, vector<2x1x32xf32> -> vector<2x10x32xf32>
    %338 = vector.extract_strided_slice %337 {offsets = [0, 0, 0], sizes = [2, 8, 32], strides = [1, 1, 1]} : vector<2x10x32xf32> to vector<2x8x32xf32>
    %339 = vector.extract_strided_slice %337 {offsets = [0, 1, 0], sizes = [2, 8, 32], strides = [1, 1, 1]} : vector<2x10x32xf32> to vector<2x8x32xf32>
    %340 = vector.extract_strided_slice %337 {offsets = [0, 2, 0], sizes = [2, 8, 32], strides = [1, 1, 1]} : vector<2x10x32xf32> to vector<2x8x32xf32>
    %341 = tpu.concatenate %338, %339, %340 in 2 : vector<2x8x32xf32>, vector<2x8x32xf32>, vector<2x8x32xf32> -> vector<2x8x96xf32>
    %342 = vector.shape_cast %341 : vector<2x8x96xf32> to vector<16x96xf32>
    %343 = arith.truncf %342 : vector<16x96xf32> to vector<16x96xbf16>
    %344 = arith.truncf %333 : vector<96x32xf32> to vector<96x32xbf16>
    %cst_104 = arith.constant dense<0.000000e+00> : vector<16x32xf32>
    %345 = tpu.matmul %343, %344, %cst_104 {dimension_numbers = #tpu.dot_dimension_numbers<[1], [0], [0], [1], [0, 0, 1, 1], [], []>} : vector<16x96xbf16>, vector<96x32xbf16>, vector<16x32xf32> -> vector<16x32xf32>
    %346 = vector.broadcast %334 : vector<1x32xf32> to vector<16x32xf32>
    %347 = arith.addf %345, %346 : vector<16x32xf32>
    %cst_105 = arith.constant 0.000000e+00 : f32
    %348 = vector.broadcast %cst_105 : f32 to vector<16x32xf32>
    %349 = arith.maximumf %347, %348 : vector<16x32xf32>
    %350 = vector.extract_strided_slice %331 {offsets = [1, 0], sizes = [1, 32], strides = [1, 1]} : vector<7x32xf32> to vector<1x32xf32>
    %351 = vector.extract_strided_slice %331 {offsets = [2, 0], sizes = [1, 32], strides = [1, 1]} : vector<7x32xf32> to vector<1x32xf32>
    %cst_106 = arith.constant dense<0.000000e+00> : vector<16xf32>
    %352 = vector.multi_reduction <add>, %349, %cst_106 [1] : vector<16x32xf32> to vector<16xf32>
    %353 = vector.shape_cast %352 : vector<16xf32> to vector<16x1xf32>
    %cst_107 = arith.constant 3.200000e+01 : f32
    %354 = vector.broadcast %cst_107 : f32 to vector<16x1xf32>
    %355 = arith.divf %353, %354 : vector<16x1xf32>
    %356 = vector.broadcast %355 : vector<16x1xf32> to vector<16x32xf32>
    %357 = arith.subf %349, %356 : vector<16x32xf32>
    %358 = arith.mulf %357, %357 : vector<16x32xf32>
    %cst_108 = arith.constant dense<0.000000e+00> : vector<16xf32>
    %359 = vector.multi_reduction <add>, %358, %cst_108 [1] : vector<16x32xf32> to vector<16xf32>
    %360 = vector.shape_cast %359 : vector<16xf32> to vector<16x1xf32>
    %cst_109 = arith.constant 3.200000e+01 : f32
    %361 = vector.broadcast %cst_109 : f32 to vector<16x1xf32>
    %362 = arith.divf %360, %361 : vector<16x1xf32>
    %363 = vector.broadcast %355 : vector<16x1xf32> to vector<16x32xf32>
    %364 = arith.subf %349, %363 : vector<16x32xf32>
    %cst_110 = arith.constant 9.99999974E-6 : f32
    %365 = vector.broadcast %cst_110 : f32 to vector<16x1xf32>
    %366 = arith.addf %362, %365 : vector<16x1xf32>
    %367 = math.rsqrt %366 : vector<16x1xf32>
    %368 = vector.broadcast %367 : vector<16x1xf32> to vector<16x32xf32>
    %369 = arith.mulf %364, %368 : vector<16x32xf32>
    %370 = vector.broadcast %350 : vector<1x32xf32> to vector<16x32xf32>
    %371 = arith.mulf %369, %370 : vector<16x32xf32>
    %372 = vector.broadcast %351 : vector<1x32xf32> to vector<16x32xf32>
    %373 = arith.addf %371, %372 : vector<16x32xf32>
    %374 = vector.shape_cast %373 : vector<16x32xf32> to vector<2x8x32xf32>
    %c1_111 = arith.constant 1 : index
    %c0_112 = arith.constant 0 : index
    %c0_113 = arith.constant 0 : index
    %375 = vector.load %arg8[%c1_111, %c0_112, %c0_113] : memref<2x96x32xf32, #tpu.memory_space<vmem>>, vector<1x96x32xf32>
    %376 = vector.shape_cast %375 : vector<1x96x32xf32> to vector<96x32xf32>
    %377 = vector.extract_strided_slice %331 {offsets = [3, 0], sizes = [1, 32], strides = [1, 1]} : vector<7x32xf32> to vector<1x32xf32>
    %cst_114 = arith.constant 0.000000e+00 : f32
    %378 = vector.broadcast %cst_114 : f32 to vector<2x1x32xf32>
    %cst_115 = arith.constant 0.000000e+00 : f32
    %379 = vector.broadcast %cst_115 : f32 to vector<2x1x32xf32>
    %380 = tpu.concatenate %378, %374, %379 in 1 : vector<2x1x32xf32>, vector<2x8x32xf32>, vector<2x1x32xf32> -> vector<2x10x32xf32>
    %381 = vector.extract_strided_slice %380 {offsets = [0, 0, 0], sizes = [2, 8, 32], strides = [1, 1, 1]} : vector<2x10x32xf32> to vector<2x8x32xf32>
    %382 = vector.extract_strided_slice %380 {offsets = [0, 1, 0], sizes = [2, 8, 32], strides = [1, 1, 1]} : vector<2x10x32xf32> to vector<2x8x32xf32>
    %383 = vector.extract_strided_slice %380 {offsets = [0, 2, 0], sizes = [2, 8, 32], strides = [1, 1, 1]} : vector<2x10x32xf32> to vector<2x8x32xf32>
    %384 = tpu.concatenate %381, %382, %383 in 2 : vector<2x8x32xf32>, vector<2x8x32xf32>, vector<2x8x32xf32> -> vector<2x8x96xf32>
    %385 = vector.shape_cast %384 : vector<2x8x96xf32> to vector<16x96xf32>
    %386 = arith.truncf %385 : vector<16x96xf32> to vector<16x96xbf16>
    %387 = arith.truncf %376 : vector<96x32xf32> to vector<96x32xbf16>
    %cst_116 = arith.constant dense<0.000000e+00> : vector<16x32xf32>
    %388 = tpu.matmul %386, %387, %cst_116 {dimension_numbers = #tpu.dot_dimension_numbers<[1], [0], [0], [1], [0, 0, 1, 1], [], []>} : vector<16x96xbf16>, vector<96x32xbf16>, vector<16x32xf32> -> vector<16x32xf32>
    %389 = vector.broadcast %377 : vector<1x32xf32> to vector<16x32xf32>
    %390 = arith.addf %388, %389 : vector<16x32xf32>
    %cst_117 = arith.constant 0.000000e+00 : f32
    %391 = vector.broadcast %cst_117 : f32 to vector<16x32xf32>
    %392 = arith.maximumf %390, %391 : vector<16x32xf32>
    %393 = vector.extract_strided_slice %331 {offsets = [4, 0], sizes = [1, 32], strides = [1, 1]} : vector<7x32xf32> to vector<1x32xf32>
    %394 = vector.extract_strided_slice %331 {offsets = [5, 0], sizes = [1, 32], strides = [1, 1]} : vector<7x32xf32> to vector<1x32xf32>
    %cst_118 = arith.constant dense<0.000000e+00> : vector<16xf32>
    %395 = vector.multi_reduction <add>, %392, %cst_118 [1] : vector<16x32xf32> to vector<16xf32>
    %396 = vector.shape_cast %395 : vector<16xf32> to vector<16x1xf32>
    %cst_119 = arith.constant 3.200000e+01 : f32
    %397 = vector.broadcast %cst_119 : f32 to vector<16x1xf32>
    %398 = arith.divf %396, %397 : vector<16x1xf32>
    %399 = vector.broadcast %398 : vector<16x1xf32> to vector<16x32xf32>
    %400 = arith.subf %392, %399 : vector<16x32xf32>
    %401 = arith.mulf %400, %400 : vector<16x32xf32>
    %cst_120 = arith.constant dense<0.000000e+00> : vector<16xf32>
    %402 = vector.multi_reduction <add>, %401, %cst_120 [1] : vector<16x32xf32> to vector<16xf32>
    %403 = vector.shape_cast %402 : vector<16xf32> to vector<16x1xf32>
    %cst_121 = arith.constant 3.200000e+01 : f32
    %404 = vector.broadcast %cst_121 : f32 to vector<16x1xf32>
    %405 = arith.divf %403, %404 : vector<16x1xf32>
    %406 = vector.broadcast %398 : vector<16x1xf32> to vector<16x32xf32>
    %407 = arith.subf %392, %406 : vector<16x32xf32>
    %cst_122 = arith.constant 9.99999974E-6 : f32
    %408 = vector.broadcast %cst_122 : f32 to vector<16x1xf32>
    %409 = arith.addf %405, %408 : vector<16x1xf32>
    %410 = math.rsqrt %409 : vector<16x1xf32>
    %411 = vector.broadcast %410 : vector<16x1xf32> to vector<16x32xf32>
    %412 = arith.mulf %407, %411 : vector<16x32xf32>
    %413 = vector.broadcast %393 : vector<1x32xf32> to vector<16x32xf32>
    %414 = arith.mulf %412, %413 : vector<16x32xf32>
    %415 = vector.broadcast %394 : vector<1x32xf32> to vector<16x32xf32>
    %416 = arith.addf %414, %415 : vector<16x32xf32>
    %c0_123 = arith.constant 0 : index
    %c0_124 = arith.constant 0 : index
    %417 = vector.load %arg9[%c0_123, %c0_124] : memref<1x32xf32, #tpu.memory_space<vmem>>, vector<1x32xf32>
    %418 = tpu.transpose %416, [1, 0] : vector<16x32xf32> -> vector<32x16xf32>
    %419 = arith.truncf %417 : vector<1x32xf32> to vector<1x32xbf16>
    %420 = arith.truncf %418 : vector<32x16xf32> to vector<32x16xbf16>
    %cst_125 = arith.constant dense<0.000000e+00> : vector<1x16xf32>
    %421 = tpu.matmul %419, %420, %cst_125 {dimension_numbers = #tpu.dot_dimension_numbers<[1], [0], [0], [1], [0, 0, 1, 1], [], []>} : vector<1x32xbf16>, vector<32x16xbf16>, vector<1x16xf32> -> vector<1x16xf32>
    %422 = vector.extract_strided_slice %331 {offsets = [6, 0], sizes = [1, 1], strides = [1, 1]} : vector<7x32xf32> to vector<1x1xf32>
    %423 = vector.broadcast %422 : vector<1x1xf32> to vector<1x16xf32>
    %424 = arith.addf %421, %423 : vector<1x16xf32>
    %cst_126 = arith.constant 0.000000e+00 : f32
    %425 = vector.broadcast %cst_126 : f32 to vector<1x16xf32>
    %426 = arith.maximumf %424, %425 : vector<1x16xf32>
    %c0_127 = arith.constant 0 : index
    %c0_128 = arith.constant 0 : index
    %427 = vector.load %arg12[%c0_127, %c0_128] : memref<1x16xf32, #tpu.memory_space<vmem>>, vector<1x16xf32>
    tpu.vector_store %arg12[%c0_127, %c0_128], %426 {strides = array<i32>} : memref<1x16xf32, #tpu.memory_space<vmem>>, vector<1x16xf32>,
    return
  }
}

module attributes {stable_mosaic.version = 11 : i64} {
  func.func @_decoder_kernel(%arg0: memref<2x16x8xf32, #tpu.memory_space<vmem>>, %arg1: memref<2x8x32xf32, #tpu.memory_space<vmem>>, %arg2: memref<2x16x32xf32, #tpu.memory_space<vmem>>, %arg3: memref<2x1x16xf32, #tpu.memory_space<vmem>>, %arg4: memref<2x16x1xf32, #tpu.memory_space<vmem>>, %arg5: memref<2x32x96xf32, #tpu.memory_space<vmem>>, %arg6: memref<2x32x32xf32, #tpu.memory_space<vmem>>, %arg7: memref<2x96x64xf32, #tpu.memory_space<vmem>>, %arg8: memref<2x64x32xf32, #tpu.memory_space<vmem>>, %arg9: memref<2x8x96xf32, #tpu.memory_space<vmem>>, %arg10: memref<2x16x32xf32, #tpu.memory_space<vmem>>) attributes {dimension_semantics = [], scalar_prefetch = 0 : i64, scratch_operands = 0 : i64, tpu.core_type = #tpu.core_type<tc>} {
    %c0 = arith.constant 0 : index
    %c0_0 = arith.constant 0 : index
    %c0_1 = arith.constant 0 : index
    %0 = vector.load %arg0[%c0, %c0_0, %c0_1] : memref<2x16x8xf32, #tpu.memory_space<vmem>>, vector<2x16x8xf32>
    %c0_2 = arith.constant 0 : index
    %c0_3 = arith.constant 0 : index
    %c0_4 = arith.constant 0 : index
    %1 = vector.load %arg1[%c0_2, %c0_3, %c0_4] : memref<2x8x32xf32, #tpu.memory_space<vmem>>, vector<2x8x32xf32>
    %2 = arith.truncf %0 : vector<2x16x8xf32> to vector<2x16x8xbf16>
    %3 = arith.truncf %1 : vector<2x8x32xf32> to vector<2x8x32xbf16>
    "tpu.trace_start"() <{level = 10 : i32, message = "bml,bld->bmd"}> : () -> ()
    %cst = arith.constant dense<0.000000e+00> : vector<2x16x32xf32>
    %4 = tpu.matmul %2, %3, %cst {dimension_numbers = #tpu.dot_dimension_numbers<[2], [1], [1], [2], [0, 0, 0, 1, 1, 2], [0], [0]>} : vector<2x16x8xbf16>, vector<2x8x32xbf16>, vector<2x16x32xf32> -> vector<2x16x32xf32>
    "tpu.trace_stop"() : () -> ()
    %c0_5 = arith.constant 0 : index
    %c0_6 = arith.constant 0 : index
    %c0_7 = arith.constant 0 : index
    %5 = vector.load %arg2[%c0_5, %c0_6, %c0_7] : memref<2x16x32xf32, #tpu.memory_space<vmem>>, vector<2x16x32xf32>
    %6 = arith.addf %4, %5 : vector<2x16x32xf32>
    %c0_8 = arith.constant 0 : index
    %c0_9 = arith.constant 0 : index
    %c0_10 = arith.constant 0 : index
    %7 = vector.load %arg3[%c0_8, %c0_9, %c0_10] : memref<2x1x16xf32, #tpu.memory_space<vmem>>, vector<2x1x16xf32>
    %c0_11 = arith.constant 0 : index
    %c0_12 = arith.constant 0 : index
    %c0_13 = arith.constant 0 : index
    %8 = vector.load %arg4[%c0_11, %c0_12, %c0_13] : memref<2x16x1xf32, #tpu.memory_space<vmem>>, vector<2x16x1xf32>
    %9 = vector.shape_cast %8 : vector<2x16x1xf32> to vector<32x1xf32>
    %c0_14 = arith.constant 0 : index
    %c0_15 = arith.constant 0 : index
    %c0_16 = arith.constant 0 : index
    %10 = vector.load %arg5[%c0_14, %c0_15, %c0_16] : memref<2x32x96xf32, #tpu.memory_space<vmem>>, vector<1x32x96xf32>
    %11 = vector.shape_cast %10 : vector<1x32x96xf32> to vector<32x96xf32>
    %c0_17 = arith.constant 0 : index
    %c0_18 = arith.constant 0 : index
    %c0_19 = arith.constant 0 : index
    %12 = vector.load %arg6[%c0_17, %c0_18, %c0_19] : memref<2x32x32xf32, #tpu.memory_space<vmem>>, vector<1x32x32xf32>
    %13 = vector.shape_cast %12 : vector<1x32x32xf32> to vector<32x32xf32>
    %c0_20 = arith.constant 0 : index
    %c0_21 = arith.constant 0 : index
    %c0_22 = arith.constant 0 : index
    %14 = vector.load %arg7[%c0_20, %c0_21, %c0_22] : memref<2x96x64xf32, #tpu.memory_space<vmem>>, vector<1x96x64xf32>
    %15 = vector.shape_cast %14 : vector<1x96x64xf32> to vector<96x64xf32>
    %c0_23 = arith.constant 0 : index
    %c0_24 = arith.constant 0 : index
    %c0_25 = arith.constant 0 : index
    %16 = vector.load %arg8[%c0_23, %c0_24, %c0_25] : memref<2x64x32xf32, #tpu.memory_space<vmem>>, vector<1x64x32xf32>
    %17 = vector.shape_cast %16 : vector<1x64x32xf32> to vector<64x32xf32>
    %c0_26 = arith.constant 0 : index
    %c0_27 = arith.constant 0 : index
    %c0_28 = arith.constant 0 : index
    %18 = vector.load %arg9[%c0_26, %c0_27, %c0_28] : memref<2x8x96xf32, #tpu.memory_space<vmem>>, vector<1x8x96xf32>
    %19 = vector.shape_cast %18 : vector<1x8x96xf32> to vector<8x96xf32>
    %20 = vector.shape_cast %6 : vector<2x16x32xf32> to vector<32x32xf32>
    %21 = arith.truncf %20 : vector<32x32xf32> to vector<32x32xbf16>
    %22 = arith.truncf %11 : vector<32x96xf32> to vector<32x96xbf16>
    %cst_29 = arith.constant dense<0.000000e+00> : vector<32x96xf32>
    %23 = tpu.matmul %21, %22, %cst_29 {dimension_numbers = #tpu.dot_dimension_numbers<[1], [0], [0], [1], [0, 0, 1, 1], [], []>} : vector<32x32xbf16>, vector<32x96xbf16>, vector<32x96xf32> -> vector<32x96xf32>
    %24 = vector.extract_strided_slice %19 {offsets = [0, 0], sizes = [1, 96], strides = [1, 1]} : vector<8x96xf32> to vector<1x96xf32>
    %25 = vector.broadcast %24 : vector<1x96xf32> to vector<32x96xf32>
    %26 = arith.addf %23, %25 : vector<32x96xf32>
    %27 = vector.extract_strided_slice %26 {offsets = [0, 0], sizes = [32, 32], strides = [1, 1]} : vector<32x96xf32> to vector<32x32xf32>
    %28 = vector.shape_cast %27 : vector<32x32xf32> to vector<2x16x32xf32>
    %29 = vector.extract_strided_slice %26 {offsets = [0, 32], sizes = [32, 32], strides = [1, 1]} : vector<32x96xf32> to vector<32x32xf32>
    %30 = vector.shape_cast %29 : vector<32x32xf32> to vector<2x16x32xf32>
    %31 = vector.extract_strided_slice %26 {offsets = [0, 64], sizes = [32, 32], strides = [1, 1]} : vector<32x96xf32> to vector<32x32xf32>
    %32 = vector.shape_cast %31 : vector<32x32xf32> to vector<2x16x32xf32>
    %cst_30 = arith.constant 0.000000e+00 : f32
    %33 = vector.broadcast %cst_30 : f32 to vector<32x32xf32>
    %34 = vector.extract_strided_slice %28 {offsets = [0, 0, 0], sizes = [2, 16, 16], strides = [1, 1, 1]} : vector<2x16x32xf32> to vector<2x16x16xf32>
    %35 = vector.extract_strided_slice %30 {offsets = [0, 0, 0], sizes = [2, 16, 16], strides = [1, 1, 1]} : vector<2x16x32xf32> to vector<2x16x16xf32>
    %36 = arith.truncf %34 : vector<2x16x16xf32> to vector<2x16x16xbf16>
    %37 = arith.truncf %35 : vector<2x16x16xf32> to vector<2x16x16xbf16>
    "tpu.trace_start"() <{level = 10 : i32, message = "bqd,bkd->bqk"}> : () -> ()
    %cst_31 = arith.constant dense<0.000000e+00> : vector<2x16x16xf32>
    %38 = tpu.matmul %36, %37, %cst_31 {dimension_numbers = #tpu.dot_dimension_numbers<[2], [2], [1], [1], [0, 0, 0, 1, 1, 1], [0], [0]>} : vector<2x16x16xbf16>, vector<2x16x16xbf16>, vector<2x16x16xf32> -> vector<2x16x16xf32>
    "tpu.trace_stop"() : () -> ()
    %cst_32 = arith.constant 2.500000e-01 : f32
    %39 = vector.broadcast %cst_32 : f32 to vector<2x16x16xf32>
    %40 = arith.mulf %38, %39 : vector<2x16x16xf32>
    %41 = vector.broadcast %7 : vector<2x1x16xf32> to vector<2x16x16xf32>
    %42 = arith.addf %40, %41 : vector<2x16x16xf32>
    %cst_33 = arith.constant dense<0xFF800000> : vector<2x16xf32>
    %43 = vector.multi_reduction <maximumf>, %42, %cst_33 [2] : vector<2x16x16xf32> to vector<2x16xf32>
    %44 = vector.shape_cast %43 : vector<2x16xf32> to vector<2x16x1xf32>
    %45 = vector.broadcast %44 : vector<2x16x1xf32> to vector<2x16x16xf32>
    %46 = arith.subf %42, %45 : vector<2x16x16xf32>
    %47 = math.exp %46 : vector<2x16x16xf32>
    %cst_34 = arith.constant dense<0.000000e+00> : vector<2x16xf32>
    %48 = vector.multi_reduction <add>, %47, %cst_34 [2] : vector<2x16x16xf32> to vector<2x16xf32>
    %49 = vector.shape_cast %48 : vector<2x16xf32> to vector<2x16x1xf32>
    %50 = tpu.reciprocal %49 {approx = true} : vector<2x16x1xf32> -> vector<2x16x1xf32>
    %51 = vector.broadcast %50 : vector<2x16x1xf32> to vector<2x16x16xf32>
    %52 = arith.mulf %47, %51 : vector<2x16x16xf32>
    %53 = vector.extract_strided_slice %32 {offsets = [0, 0, 0], sizes = [2, 16, 16], strides = [1, 1, 1]} : vector<2x16x32xf32> to vector<2x16x16xf32>
    %54 = arith.truncf %52 : vector<2x16x16xf32> to vector<2x16x16xbf16>
    %55 = arith.truncf %53 : vector<2x16x16xf32> to vector<2x16x16xbf16>
    "tpu.trace_start"() <{level = 10 : i32, message = "bqk,bkd->bqd"}> : () -> ()
    %cst_35 = arith.constant dense<0.000000e+00> : vector<2x16x16xf32>
    %56 = tpu.matmul %54, %55, %cst_35 {dimension_numbers = #tpu.dot_dimension_numbers<[2], [1], [1], [2], [0, 0, 0, 1, 1, 2], [0], [0]>} : vector<2x16x16xbf16>, vector<2x16x16xbf16>, vector<2x16x16xf32> -> vector<2x16x16xf32>
    "tpu.trace_stop"() : () -> ()
    %57 = vector.shape_cast %56 : vector<2x16x16xf32> to vector<32x16xf32>
    %58 = vector.extract_strided_slice %13 {offsets = [0, 0], sizes = [16, 32], strides = [1, 1]} : vector<32x32xf32> to vector<16x32xf32>
    %59 = arith.truncf %57 : vector<32x16xf32> to vector<32x16xbf16>
    %60 = arith.truncf %58 : vector<16x32xf32> to vector<16x32xbf16>
    %cst_36 = arith.constant dense<0.000000e+00> : vector<32x32xf32>
    %61 = tpu.matmul %59, %60, %cst_36 {dimension_numbers = #tpu.dot_dimension_numbers<[1], [0], [0], [1], [0, 0, 1, 1], [], []>} : vector<32x16xbf16>, vector<16x32xbf16>, vector<32x32xf32> -> vector<32x32xf32>
    %62 = arith.addf %33, %61 : vector<32x32xf32>
    %63 = vector.extract_strided_slice %28 {offsets = [0, 0, 16], sizes = [2, 16, 16], strides = [1, 1, 1]} : vector<2x16x32xf32> to vector<2x16x16xf32>
    %64 = vector.extract_strided_slice %30 {offsets = [0, 0, 16], sizes = [2, 16, 16], strides = [1, 1, 1]} : vector<2x16x32xf32> to vector<2x16x16xf32>
    %65 = arith.truncf %63 : vector<2x16x16xf32> to vector<2x16x16xbf16>
    %66 = arith.truncf %64 : vector<2x16x16xf32> to vector<2x16x16xbf16>
    "tpu.trace_start"() <{level = 10 : i32, message = "bqd,bkd->bqk"}> : () -> ()
    %cst_37 = arith.constant dense<0.000000e+00> : vector<2x16x16xf32>
    %67 = tpu.matmul %65, %66, %cst_37 {dimension_numbers = #tpu.dot_dimension_numbers<[2], [2], [1], [1], [0, 0, 0, 1, 1, 1], [0], [0]>} : vector<2x16x16xbf16>, vector<2x16x16xbf16>, vector<2x16x16xf32> -> vector<2x16x16xf32>
    "tpu.trace_stop"() : () -> ()
    %cst_38 = arith.constant 2.500000e-01 : f32
    %68 = vector.broadcast %cst_38 : f32 to vector<2x16x16xf32>
    %69 = arith.mulf %67, %68 : vector<2x16x16xf32>
    %70 = vector.broadcast %7 : vector<2x1x16xf32> to vector<2x16x16xf32>
    %71 = arith.addf %69, %70 : vector<2x16x16xf32>
    %cst_39 = arith.constant dense<0xFF800000> : vector<2x16xf32>
    %72 = vector.multi_reduction <maximumf>, %71, %cst_39 [2] : vector<2x16x16xf32> to vector<2x16xf32>
    %73 = vector.shape_cast %72 : vector<2x16xf32> to vector<2x16x1xf32>
    %74 = vector.broadcast %73 : vector<2x16x1xf32> to vector<2x16x16xf32>
    %75 = arith.subf %71, %74 : vector<2x16x16xf32>
    %76 = math.exp %75 : vector<2x16x16xf32>
    %cst_40 = arith.constant dense<0.000000e+00> : vector<2x16xf32>
    %77 = vector.multi_reduction <add>, %76, %cst_40 [2] : vector<2x16x16xf32> to vector<2x16xf32>
    %78 = vector.shape_cast %77 : vector<2x16xf32> to vector<2x16x1xf32>
    %79 = tpu.reciprocal %78 {approx = true} : vector<2x16x1xf32> -> vector<2x16x1xf32>
    %80 = vector.broadcast %79 : vector<2x16x1xf32> to vector<2x16x16xf32>
    %81 = arith.mulf %76, %80 : vector<2x16x16xf32>
    %82 = vector.extract_strided_slice %32 {offsets = [0, 0, 16], sizes = [2, 16, 16], strides = [1, 1, 1]} : vector<2x16x32xf32> to vector<2x16x16xf32>
    %83 = arith.truncf %81 : vector<2x16x16xf32> to vector<2x16x16xbf16>
    %84 = arith.truncf %82 : vector<2x16x16xf32> to vector<2x16x16xbf16>
    "tpu.trace_start"() <{level = 10 : i32, message = "bqk,bkd->bqd"}> : () -> ()
    %cst_41 = arith.constant dense<0.000000e+00> : vector<2x16x16xf32>
    %85 = tpu.matmul %83, %84, %cst_41 {dimension_numbers = #tpu.dot_dimension_numbers<[2], [1], [1], [2], [0, 0, 0, 1, 1, 2], [0], [0]>} : vector<2x16x16xbf16>, vector<2x16x16xbf16>, vector<2x16x16xf32> -> vector<2x16x16xf32>
    "tpu.trace_stop"() : () -> ()
    %86 = vector.shape_cast %85 : vector<2x16x16xf32> to vector<32x16xf32>
    %87 = vector.extract_strided_slice %13 {offsets = [16, 0], sizes = [16, 32], strides = [1, 1]} : vector<32x32xf32> to vector<16x32xf32>
    %88 = arith.truncf %86 : vector<32x16xf32> to vector<32x16xbf16>
    %89 = arith.truncf %87 : vector<16x32xf32> to vector<16x32xbf16>
    %cst_42 = arith.constant dense<0.000000e+00> : vector<32x32xf32>
    %90 = tpu.matmul %88, %89, %cst_42 {dimension_numbers = #tpu.dot_dimension_numbers<[1], [0], [0], [1], [0, 0, 1, 1], [], []>} : vector<32x16xbf16>, vector<16x32xbf16>, vector<32x32xf32> -> vector<32x32xf32>
    %91 = arith.addf %62, %90 : vector<32x32xf32>
    %92 = vector.extract_strided_slice %19 {offsets = [1, 0], sizes = [1, 32], strides = [1, 1]} : vector<8x96xf32> to vector<1x32xf32>
    %93 = vector.broadcast %92 : vector<1x32xf32> to vector<32x32xf32>
    %94 = arith.addf %91, %93 : vector<32x32xf32>
    %95 = arith.addf %94, %20 : vector<32x32xf32>
    %96 = vector.extract_strided_slice %19 {offsets = [2, 0], sizes = [1, 32], strides = [1, 1]} : vector<8x96xf32> to vector<1x32xf32>
    %97 = vector.extract_strided_slice %19 {offsets = [3, 0], sizes = [1, 32], strides = [1, 1]} : vector<8x96xf32> to vector<1x32xf32>
    %cst_43 = arith.constant dense<0.000000e+00> : vector<32xf32>
    %98 = vector.multi_reduction <add>, %95, %cst_43 [1] : vector<32x32xf32> to vector<32xf32>
    %99 = vector.shape_cast %98 : vector<32xf32> to vector<32x1xf32>
    %cst_44 = arith.constant 3.200000e+01 : f32
    %100 = vector.broadcast %cst_44 : f32 to vector<32x1xf32>
    %101 = arith.divf %99, %100 : vector<32x1xf32>
    %102 = vector.broadcast %101 : vector<32x1xf32> to vector<32x32xf32>
    %103 = arith.subf %95, %102 : vector<32x32xf32>
    %104 = arith.mulf %103, %103 : vector<32x32xf32>
    %cst_45 = arith.constant dense<0.000000e+00> : vector<32xf32>
    %105 = vector.multi_reduction <add>, %104, %cst_45 [1] : vector<32x32xf32> to vector<32xf32>
    %106 = vector.shape_cast %105 : vector<32xf32> to vector<32x1xf32>
    %cst_46 = arith.constant 3.200000e+01 : f32
    %107 = vector.broadcast %cst_46 : f32 to vector<32x1xf32>
    %108 = arith.divf %106, %107 : vector<32x1xf32>
    %109 = vector.broadcast %101 : vector<32x1xf32> to vector<32x32xf32>
    %110 = arith.subf %95, %109 : vector<32x32xf32>
    %cst_47 = arith.constant 9.99999974E-6 : f32
    %111 = vector.broadcast %cst_47 : f32 to vector<32x1xf32>
    %112 = arith.addf %108, %111 : vector<32x1xf32>
    %113 = math.rsqrt %112 : vector<32x1xf32>
    %114 = vector.broadcast %113 : vector<32x1xf32> to vector<32x32xf32>
    %115 = arith.mulf %110, %114 : vector<32x32xf32>
    %116 = vector.broadcast %96 : vector<1x32xf32> to vector<32x32xf32>
    %117 = arith.mulf %115, %116 : vector<32x32xf32>
    %118 = vector.broadcast %97 : vector<1x32xf32> to vector<32x32xf32>
    %119 = arith.addf %117, %118 : vector<32x32xf32>
    %120 = vector.broadcast %9 : vector<32x1xf32> to vector<32x32xf32>
    %121 = arith.mulf %119, %120 : vector<32x32xf32>
    %122 = vector.shape_cast %121 : vector<32x32xf32> to vector<2x16x32xf32>
    %123 = vector.extract_strided_slice %19 {offsets = [4, 0], sizes = [1, 64], strides = [1, 1]} : vector<8x96xf32> to vector<1x64xf32>
    %cst_48 = arith.constant 0.000000e+00 : f32
    %124 = vector.broadcast %cst_48 : f32 to vector<2x1x32xf32>
    %cst_49 = arith.constant 0.000000e+00 : f32
    %125 = vector.broadcast %cst_49 : f32 to vector<2x1x32xf32>
    %126 = tpu.concatenate %124, %122, %125 in 1 : vector<2x1x32xf32>, vector<2x16x32xf32>, vector<2x1x32xf32> -> vector<2x18x32xf32>
    %127 = vector.extract_strided_slice %126 {offsets = [0, 0, 0], sizes = [2, 16, 32], strides = [1, 1, 1]} : vector<2x18x32xf32> to vector<2x16x32xf32>
    %128 = vector.extract_strided_slice %126 {offsets = [0, 1, 0], sizes = [2, 16, 32], strides = [1, 1, 1]} : vector<2x18x32xf32> to vector<2x16x32xf32>
    %129 = vector.extract_strided_slice %126 {offsets = [0, 2, 0], sizes = [2, 16, 32], strides = [1, 1, 1]} : vector<2x18x32xf32> to vector<2x16x32xf32>
    %130 = tpu.concatenate %127, %128, %129 in 2 : vector<2x16x32xf32>, vector<2x16x32xf32>, vector<2x16x32xf32> -> vector<2x16x96xf32>
    %131 = vector.shape_cast %130 : vector<2x16x96xf32> to vector<32x96xf32>
    %132 = arith.truncf %131 : vector<32x96xf32> to vector<32x96xbf16>
    %133 = arith.truncf %15 : vector<96x64xf32> to vector<96x64xbf16>
    %cst_50 = arith.constant dense<0.000000e+00> : vector<32x64xf32>
    %134 = tpu.matmul %132, %133, %cst_50 {dimension_numbers = #tpu.dot_dimension_numbers<[1], [0], [0], [1], [0, 0, 1, 1], [], []>} : vector<32x96xbf16>, vector<96x64xbf16>, vector<32x64xf32> -> vector<32x64xf32>
    %135 = vector.broadcast %123 : vector<1x64xf32> to vector<32x64xf32>
    %136 = arith.addf %134, %135 : vector<32x64xf32>
    %cst_51 = arith.constant 0.000000e+00 : f32
    %137 = vector.broadcast %cst_51 : f32 to vector<32x64xf32>
    %138 = arith.maximumf %136, %137 : vector<32x64xf32>
    %139 = arith.truncf %138 : vector<32x64xf32> to vector<32x64xbf16>
    %140 = arith.truncf %17 : vector<64x32xf32> to vector<64x32xbf16>
    %cst_52 = arith.constant dense<0.000000e+00> : vector<32x32xf32>
    %141 = tpu.matmul %139, %140, %cst_52 {dimension_numbers = #tpu.dot_dimension_numbers<[1], [0], [0], [1], [0, 0, 1, 1], [], []>} : vector<32x64xbf16>, vector<64x32xbf16>, vector<32x32xf32> -> vector<32x32xf32>
    %142 = vector.extract_strided_slice %19 {offsets = [5, 0], sizes = [1, 32], strides = [1, 1]} : vector<8x96xf32> to vector<1x32xf32>
    %143 = vector.broadcast %142 : vector<1x32xf32> to vector<32x32xf32>
    %144 = arith.addf %141, %143 : vector<32x32xf32>
    %145 = arith.addf %144, %121 : vector<32x32xf32>
    %146 = vector.extract_strided_slice %19 {offsets = [6, 0], sizes = [1, 32], strides = [1, 1]} : vector<8x96xf32> to vector<1x32xf32>
    %147 = vector.extract_strided_slice %19 {offsets = [7, 0], sizes = [1, 32], strides = [1, 1]} : vector<8x96xf32> to vector<1x32xf32>
    %cst_53 = arith.constant dense<0.000000e+00> : vector<32xf32>
    %148 = vector.multi_reduction <add>, %145, %cst_53 [1] : vector<32x32xf32> to vector<32xf32>
    %149 = vector.shape_cast %148 : vector<32xf32> to vector<32x1xf32>
    %cst_54 = arith.constant 3.200000e+01 : f32
    %150 = vector.broadcast %cst_54 : f32 to vector<32x1xf32>
    %151 = arith.divf %149, %150 : vector<32x1xf32>
    %152 = vector.broadcast %151 : vector<32x1xf32> to vector<32x32xf32>
    %153 = arith.subf %145, %152 : vector<32x32xf32>
    %154 = arith.mulf %153, %153 : vector<32x32xf32>
    %cst_55 = arith.constant dense<0.000000e+00> : vector<32xf32>
    %155 = vector.multi_reduction <add>, %154, %cst_55 [1] : vector<32x32xf32> to vector<32xf32>
    %156 = vector.shape_cast %155 : vector<32xf32> to vector<32x1xf32>
    %cst_56 = arith.constant 3.200000e+01 : f32
    %157 = vector.broadcast %cst_56 : f32 to vector<32x1xf32>
    %158 = arith.divf %156, %157 : vector<32x1xf32>
    %159 = vector.broadcast %151 : vector<32x1xf32> to vector<32x32xf32>
    %160 = arith.subf %145, %159 : vector<32x32xf32>
    %cst_57 = arith.constant 9.99999974E-6 : f32
    %161 = vector.broadcast %cst_57 : f32 to vector<32x1xf32>
    %162 = arith.addf %158, %161 : vector<32x1xf32>
    %163 = math.rsqrt %162 : vector<32x1xf32>
    %164 = vector.broadcast %163 : vector<32x1xf32> to vector<32x32xf32>
    %165 = arith.mulf %160, %164 : vector<32x32xf32>
    %166 = vector.broadcast %146 : vector<1x32xf32> to vector<32x32xf32>
    %167 = arith.mulf %165, %166 : vector<32x32xf32>
    %168 = vector.broadcast %147 : vector<1x32xf32> to vector<32x32xf32>
    %169 = arith.addf %167, %168 : vector<32x32xf32>
    %170 = vector.broadcast %9 : vector<32x1xf32> to vector<32x32xf32>
    %171 = arith.mulf %169, %170 : vector<32x32xf32>
    %172 = vector.shape_cast %171 : vector<32x32xf32> to vector<2x16x32xf32>
    %c1 = arith.constant 1 : index
    %c0_58 = arith.constant 0 : index
    %c0_59 = arith.constant 0 : index
    %173 = vector.load %arg5[%c1, %c0_58, %c0_59] : memref<2x32x96xf32, #tpu.memory_space<vmem>>, vector<1x32x96xf32>
    %174 = vector.shape_cast %173 : vector<1x32x96xf32> to vector<32x96xf32>
    %c1_60 = arith.constant 1 : index
    %c0_61 = arith.constant 0 : index
    %c0_62 = arith.constant 0 : index
    %175 = vector.load %arg6[%c1_60, %c0_61, %c0_62] : memref<2x32x32xf32, #tpu.memory_space<vmem>>, vector<1x32x32xf32>
    %176 = vector.shape_cast %175 : vector<1x32x32xf32> to vector<32x32xf32>
    %c1_63 = arith.constant 1 : index
    %c0_64 = arith.constant 0 : index
    %c0_65 = arith.constant 0 : index
    %177 = vector.load %arg7[%c1_63, %c0_64, %c0_65] : memref<2x96x64xf32, #tpu.memory_space<vmem>>, vector<1x96x64xf32>
    %178 = vector.shape_cast %177 : vector<1x96x64xf32> to vector<96x64xf32>
    %c1_66 = arith.constant 1 : index
    %c0_67 = arith.constant 0 : index
    %c0_68 = arith.constant 0 : index
    %179 = vector.load %arg8[%c1_66, %c0_67, %c0_68] : memref<2x64x32xf32, #tpu.memory_space<vmem>>, vector<1x64x32xf32>
    %180 = vector.shape_cast %179 : vector<1x64x32xf32> to vector<64x32xf32>
    %c1_69 = arith.constant 1 : index
    %c0_70 = arith.constant 0 : index
    %c0_71 = arith.constant 0 : index
    %181 = vector.load %arg9[%c1_69, %c0_70, %c0_71] : memref<2x8x96xf32, #tpu.memory_space<vmem>>, vector<1x8x96xf32>
    %182 = vector.shape_cast %181 : vector<1x8x96xf32> to vector<8x96xf32>
    %183 = vector.shape_cast %172 : vector<2x16x32xf32> to vector<32x32xf32>
    %184 = arith.truncf %183 : vector<32x32xf32> to vector<32x32xbf16>
    %185 = arith.truncf %174 : vector<32x96xf32> to vector<32x96xbf16>
    %cst_72 = arith.constant dense<0.000000e+00> : vector<32x96xf32>
    %186 = tpu.matmul %184, %185, %cst_72 {dimension_numbers = #tpu.dot_dimension_numbers<[1], [0], [0], [1], [0, 0, 1, 1], [], []>} : vector<32x32xbf16>, vector<32x96xbf16>, vector<32x96xf32> -> vector<32x96xf32>
    %187 = vector.extract_strided_slice %182 {offsets = [0, 0], sizes = [1, 96], strides = [1, 1]} : vector<8x96xf32> to vector<1x96xf32>
    %188 = vector.broadcast %187 : vector<1x96xf32> to vector<32x96xf32>
    %189 = arith.addf %186, %188 : vector<32x96xf32>
    %190 = vector.extract_strided_slice %189 {offsets = [0, 0], sizes = [32, 32], strides = [1, 1]} : vector<32x96xf32> to vector<32x32xf32>
    %191 = vector.shape_cast %190 : vector<32x32xf32> to vector<2x16x32xf32>
    %192 = vector.extract_strided_slice %189 {offsets = [0, 32], sizes = [32, 32], strides = [1, 1]} : vector<32x96xf32> to vector<32x32xf32>
    %193 = vector.shape_cast %192 : vector<32x32xf32> to vector<2x16x32xf32>
    %194 = vector.extract_strided_slice %189 {offsets = [0, 64], sizes = [32, 32], strides = [1, 1]} : vector<32x96xf32> to vector<32x32xf32>
    %195 = vector.shape_cast %194 : vector<32x32xf32> to vector<2x16x32xf32>
    %cst_73 = arith.constant 0.000000e+00 : f32
    %196 = vector.broadcast %cst_73 : f32 to vector<32x32xf32>
    %197 = vector.extract_strided_slice %191 {offsets = [0, 0, 0], sizes = [2, 16, 16], strides = [1, 1, 1]} : vector<2x16x32xf32> to vector<2x16x16xf32>
    %198 = vector.extract_strided_slice %193 {offsets = [0, 0, 0], sizes = [2, 16, 16], strides = [1, 1, 1]} : vector<2x16x32xf32> to vector<2x16x16xf32>
    %199 = arith.truncf %197 : vector<2x16x16xf32> to vector<2x16x16xbf16>
    %200 = arith.truncf %198 : vector<2x16x16xf32> to vector<2x16x16xbf16>
    "tpu.trace_start"() <{level = 10 : i32, message = "bqd,bkd->bqk"}> : () -> ()
    %cst_74 = arith.constant dense<0.000000e+00> : vector<2x16x16xf32>
    %201 = tpu.matmul %199, %200, %cst_74 {dimension_numbers = #tpu.dot_dimension_numbers<[2], [2], [1], [1], [0, 0, 0, 1, 1, 1], [0], [0]>} : vector<2x16x16xbf16>, vector<2x16x16xbf16>, vector<2x16x16xf32> -> vector<2x16x16xf32>
    "tpu.trace_stop"() : () -> ()
    %cst_75 = arith.constant 2.500000e-01 : f32
    %202 = vector.broadcast %cst_75 : f32 to vector<2x16x16xf32>
    %203 = arith.mulf %201, %202 : vector<2x16x16xf32>
    %204 = vector.broadcast %7 : vector<2x1x16xf32> to vector<2x16x16xf32>
    %205 = arith.addf %203, %204 : vector<2x16x16xf32>
    %cst_76 = arith.constant dense<0xFF800000> : vector<2x16xf32>
    %206 = vector.multi_reduction <maximumf>, %205, %cst_76 [2] : vector<2x16x16xf32> to vector<2x16xf32>
    %207 = vector.shape_cast %206 : vector<2x16xf32> to vector<2x16x1xf32>
    %208 = vector.broadcast %207 : vector<2x16x1xf32> to vector<2x16x16xf32>
    %209 = arith.subf %205, %208 : vector<2x16x16xf32>
    %210 = math.exp %209 : vector<2x16x16xf32>
    %cst_77 = arith.constant dense<0.000000e+00> : vector<2x16xf32>
    %211 = vector.multi_reduction <add>, %210, %cst_77 [2] : vector<2x16x16xf32> to vector<2x16xf32>
    %212 = vector.shape_cast %211 : vector<2x16xf32> to vector<2x16x1xf32>
    %213 = tpu.reciprocal %212 {approx = true} : vector<2x16x1xf32> -> vector<2x16x1xf32>
    %214 = vector.broadcast %213 : vector<2x16x1xf32> to vector<2x16x16xf32>
    %215 = arith.mulf %210, %214 : vector<2x16x16xf32>
    %216 = vector.extract_strided_slice %195 {offsets = [0, 0, 0], sizes = [2, 16, 16], strides = [1, 1, 1]} : vector<2x16x32xf32> to vector<2x16x16xf32>
    %217 = arith.truncf %215 : vector<2x16x16xf32> to vector<2x16x16xbf16>
    %218 = arith.truncf %216 : vector<2x16x16xf32> to vector<2x16x16xbf16>
    "tpu.trace_start"() <{level = 10 : i32, message = "bqk,bkd->bqd"}> : () -> ()
    %cst_78 = arith.constant dense<0.000000e+00> : vector<2x16x16xf32>
    %219 = tpu.matmul %217, %218, %cst_78 {dimension_numbers = #tpu.dot_dimension_numbers<[2], [1], [1], [2], [0, 0, 0, 1, 1, 2], [0], [0]>} : vector<2x16x16xbf16>, vector<2x16x16xbf16>, vector<2x16x16xf32> -> vector<2x16x16xf32>
    "tpu.trace_stop"() : () -> ()
    %220 = vector.shape_cast %219 : vector<2x16x16xf32> to vector<32x16xf32>
    %221 = vector.extract_strided_slice %176 {offsets = [0, 0], sizes = [16, 32], strides = [1, 1]} : vector<32x32xf32> to vector<16x32xf32>
    %222 = arith.truncf %220 : vector<32x16xf32> to vector<32x16xbf16>
    %223 = arith.truncf %221 : vector<16x32xf32> to vector<16x32xbf16>
    %cst_79 = arith.constant dense<0.000000e+00> : vector<32x32xf32>
    %224 = tpu.matmul %222, %223, %cst_79 {dimension_numbers = #tpu.dot_dimension_numbers<[1], [0], [0], [1], [0, 0, 1, 1], [], []>} : vector<32x16xbf16>, vector<16x32xbf16>, vector<32x32xf32> -> vector<32x32xf32>
    %225 = arith.addf %196, %224 : vector<32x32xf32>
    %226 = vector.extract_strided_slice %191 {offsets = [0, 0, 16], sizes = [2, 16, 16], strides = [1, 1, 1]} : vector<2x16x32xf32> to vector<2x16x16xf32>
    %227 = vector.extract_strided_slice %193 {offsets = [0, 0, 16], sizes = [2, 16, 16], strides = [1, 1, 1]} : vector<2x16x32xf32> to vector<2x16x16xf32>
    %228 = arith.truncf %226 : vector<2x16x16xf32> to vector<2x16x16xbf16>
    %229 = arith.truncf %227 : vector<2x16x16xf32> to vector<2x16x16xbf16>
    "tpu.trace_start"() <{level = 10 : i32, message = "bqd,bkd->bqk"}> : () -> ()
    %cst_80 = arith.constant dense<0.000000e+00> : vector<2x16x16xf32>
    %230 = tpu.matmul %228, %229, %cst_80 {dimension_numbers = #tpu.dot_dimension_numbers<[2], [2], [1], [1], [0, 0, 0, 1, 1, 1], [0], [0]>} : vector<2x16x16xbf16>, vector<2x16x16xbf16>, vector<2x16x16xf32> -> vector<2x16x16xf32>
    "tpu.trace_stop"() : () -> ()
    %cst_81 = arith.constant 2.500000e-01 : f32
    %231 = vector.broadcast %cst_81 : f32 to vector<2x16x16xf32>
    %232 = arith.mulf %230, %231 : vector<2x16x16xf32>
    %233 = vector.broadcast %7 : vector<2x1x16xf32> to vector<2x16x16xf32>
    %234 = arith.addf %232, %233 : vector<2x16x16xf32>
    %cst_82 = arith.constant dense<0xFF800000> : vector<2x16xf32>
    %235 = vector.multi_reduction <maximumf>, %234, %cst_82 [2] : vector<2x16x16xf32> to vector<2x16xf32>
    %236 = vector.shape_cast %235 : vector<2x16xf32> to vector<2x16x1xf32>
    %237 = vector.broadcast %236 : vector<2x16x1xf32> to vector<2x16x16xf32>
    %238 = arith.subf %234, %237 : vector<2x16x16xf32>
    %239 = math.exp %238 : vector<2x16x16xf32>
    %cst_83 = arith.constant dense<0.000000e+00> : vector<2x16xf32>
    %240 = vector.multi_reduction <add>, %239, %cst_83 [2] : vector<2x16x16xf32> to vector<2x16xf32>
    %241 = vector.shape_cast %240 : vector<2x16xf32> to vector<2x16x1xf32>
    %242 = tpu.reciprocal %241 {approx = true} : vector<2x16x1xf32> -> vector<2x16x1xf32>
    %243 = vector.broadcast %242 : vector<2x16x1xf32> to vector<2x16x16xf32>
    %244 = arith.mulf %239, %243 : vector<2x16x16xf32>
    %245 = vector.extract_strided_slice %195 {offsets = [0, 0, 16], sizes = [2, 16, 16], strides = [1, 1, 1]} : vector<2x16x32xf32> to vector<2x16x16xf32>
    %246 = arith.truncf %244 : vector<2x16x16xf32> to vector<2x16x16xbf16>
    %247 = arith.truncf %245 : vector<2x16x16xf32> to vector<2x16x16xbf16>
    "tpu.trace_start"() <{level = 10 : i32, message = "bqk,bkd->bqd"}> : () -> ()
    %cst_84 = arith.constant dense<0.000000e+00> : vector<2x16x16xf32>
    %248 = tpu.matmul %246, %247, %cst_84 {dimension_numbers = #tpu.dot_dimension_numbers<[2], [1], [1], [2], [0, 0, 0, 1, 1, 2], [0], [0]>} : vector<2x16x16xbf16>, vector<2x16x16xbf16>, vector<2x16x16xf32> -> vector<2x16x16xf32>
    "tpu.trace_stop"() : () -> ()
    %249 = vector.shape_cast %248 : vector<2x16x16xf32> to vector<32x16xf32>
    %250 = vector.extract_strided_slice %176 {offsets = [16, 0], sizes = [16, 32], strides = [1, 1]} : vector<32x32xf32> to vector<16x32xf32>
    %251 = arith.truncf %249 : vector<32x16xf32> to vector<32x16xbf16>
    %252 = arith.truncf %250 : vector<16x32xf32> to vector<16x32xbf16>
    %cst_85 = arith.constant dense<0.000000e+00> : vector<32x32xf32>
    %253 = tpu.matmul %251, %252, %cst_85 {dimension_numbers = #tpu.dot_dimension_numbers<[1], [0], [0], [1], [0, 0, 1, 1], [], []>} : vector<32x16xbf16>, vector<16x32xbf16>, vector<32x32xf32> -> vector<32x32xf32>
    %254 = arith.addf %225, %253 : vector<32x32xf32>
    %255 = vector.extract_strided_slice %182 {offsets = [1, 0], sizes = [1, 32], strides = [1, 1]} : vector<8x96xf32> to vector<1x32xf32>
    %256 = vector.broadcast %255 : vector<1x32xf32> to vector<32x32xf32>
    %257 = arith.addf %254, %256 : vector<32x32xf32>
    %258 = arith.addf %257, %183 : vector<32x32xf32>
    %259 = vector.extract_strided_slice %182 {offsets = [2, 0], sizes = [1, 32], strides = [1, 1]} : vector<8x96xf32> to vector<1x32xf32>
    %260 = vector.extract_strided_slice %182 {offsets = [3, 0], sizes = [1, 32], strides = [1, 1]} : vector<8x96xf32> to vector<1x32xf32>
    %cst_86 = arith.constant dense<0.000000e+00> : vector<32xf32>
    %261 = vector.multi_reduction <add>, %258, %cst_86 [1] : vector<32x32xf32> to vector<32xf32>
    %262 = vector.shape_cast %261 : vector<32xf32> to vector<32x1xf32>
    %cst_87 = arith.constant 3.200000e+01 : f32
    %263 = vector.broadcast %cst_87 : f32 to vector<32x1xf32>
    %264 = arith.divf %262, %263 : vector<32x1xf32>
    %265 = vector.broadcast %264 : vector<32x1xf32> to vector<32x32xf32>
    %266 = arith.subf %258, %265 : vector<32x32xf32>
    %267 = arith.mulf %266, %266 : vector<32x32xf32>
    %cst_88 = arith.constant dense<0.000000e+00> : vector<32xf32>
    %268 = vector.multi_reduction <add>, %267, %cst_88 [1] : vector<32x32xf32> to vector<32xf32>
    %269 = vector.shape_cast %268 : vector<32xf32> to vector<32x1xf32>
    %cst_89 = arith.constant 3.200000e+01 : f32
    %270 = vector.broadcast %cst_89 : f32 to vector<32x1xf32>
    %271 = arith.divf %269, %270 : vector<32x1xf32>
    %272 = vector.broadcast %264 : vector<32x1xf32> to vector<32x32xf32>
    %273 = arith.subf %258, %272 : vector<32x32xf32>
    %cst_90 = arith.constant 9.99999974E-6 : f32
    %274 = vector.broadcast %cst_90 : f32 to vector<32x1xf32>
    %275 = arith.addf %271, %274 : vector<32x1xf32>
    %276 = math.rsqrt %275 : vector<32x1xf32>
    %277 = vector.broadcast %276 : vector<32x1xf32> to vector<32x32xf32>
    %278 = arith.mulf %273, %277 : vector<32x32xf32>
    %279 = vector.broadcast %259 : vector<1x32xf32> to vector<32x32xf32>
    %280 = arith.mulf %278, %279 : vector<32x32xf32>
    %281 = vector.broadcast %260 : vector<1x32xf32> to vector<32x32xf32>
    %282 = arith.addf %280, %281 : vector<32x32xf32>
    %283 = vector.broadcast %9 : vector<32x1xf32> to vector<32x32xf32>
    %284 = arith.mulf %282, %283 : vector<32x32xf32>
    %285 = vector.shape_cast %284 : vector<32x32xf32> to vector<2x16x32xf32>
    %286 = vector.extract_strided_slice %182 {offsets = [4, 0], sizes = [1, 64], strides = [1, 1]} : vector<8x96xf32> to vector<1x64xf32>
    %cst_91 = arith.constant 0.000000e+00 : f32
    %287 = vector.broadcast %cst_91 : f32 to vector<2x1x32xf32>
    %cst_92 = arith.constant 0.000000e+00 : f32
    %288 = vector.broadcast %cst_92 : f32 to vector<2x1x32xf32>
    %289 = tpu.concatenate %287, %285, %288 in 1 : vector<2x1x32xf32>, vector<2x16x32xf32>, vector<2x1x32xf32> -> vector<2x18x32xf32>
    %290 = vector.extract_strided_slice %289 {offsets = [0, 0, 0], sizes = [2, 16, 32], strides = [1, 1, 1]} : vector<2x18x32xf32> to vector<2x16x32xf32>
    %291 = vector.extract_strided_slice %289 {offsets = [0, 1, 0], sizes = [2, 16, 32], strides = [1, 1, 1]} : vector<2x18x32xf32> to vector<2x16x32xf32>
    %292 = vector.extract_strided_slice %289 {offsets = [0, 2, 0], sizes = [2, 16, 32], strides = [1, 1, 1]} : vector<2x18x32xf32> to vector<2x16x32xf32>
    %293 = tpu.concatenate %290, %291, %292 in 2 : vector<2x16x32xf32>, vector<2x16x32xf32>, vector<2x16x32xf32> -> vector<2x16x96xf32>
    %294 = vector.shape_cast %293 : vector<2x16x96xf32> to vector<32x96xf32>
    %295 = arith.truncf %294 : vector<32x96xf32> to vector<32x96xbf16>
    %296 = arith.truncf %178 : vector<96x64xf32> to vector<96x64xbf16>
    %cst_93 = arith.constant dense<0.000000e+00> : vector<32x64xf32>
    %297 = tpu.matmul %295, %296, %cst_93 {dimension_numbers = #tpu.dot_dimension_numbers<[1], [0], [0], [1], [0, 0, 1, 1], [], []>} : vector<32x96xbf16>, vector<96x64xbf16>, vector<32x64xf32> -> vector<32x64xf32>
    %298 = vector.broadcast %286 : vector<1x64xf32> to vector<32x64xf32>
    %299 = arith.addf %297, %298 : vector<32x64xf32>
    %cst_94 = arith.constant 0.000000e+00 : f32
    %300 = vector.broadcast %cst_94 : f32 to vector<32x64xf32>
    %301 = arith.maximumf %299, %300 : vector<32x64xf32>
    %302 = arith.truncf %301 : vector<32x64xf32> to vector<32x64xbf16>
    %303 = arith.truncf %180 : vector<64x32xf32> to vector<64x32xbf16>
    %cst_95 = arith.constant dense<0.000000e+00> : vector<32x32xf32>
    %304 = tpu.matmul %302, %303, %cst_95 {dimension_numbers = #tpu.dot_dimension_numbers<[1], [0], [0], [1], [0, 0, 1, 1], [], []>} : vector<32x64xbf16>, vector<64x32xbf16>, vector<32x32xf32> -> vector<32x32xf32>
    %305 = vector.extract_strided_slice %182 {offsets = [5, 0], sizes = [1, 32], strides = [1, 1]} : vector<8x96xf32> to vector<1x32xf32>
    %306 = vector.broadcast %305 : vector<1x32xf32> to vector<32x32xf32>
    %307 = arith.addf %304, %306 : vector<32x32xf32>
    %308 = arith.addf %307, %284 : vector<32x32xf32>
    %309 = vector.extract_strided_slice %182 {offsets = [6, 0], sizes = [1, 32], strides = [1, 1]} : vector<8x96xf32> to vector<1x32xf32>
    %310 = vector.extract_strided_slice %182 {offsets = [7, 0], sizes = [1, 32], strides = [1, 1]} : vector<8x96xf32> to vector<1x32xf32>
    %cst_96 = arith.constant dense<0.000000e+00> : vector<32xf32>
    %311 = vector.multi_reduction <add>, %308, %cst_96 [1] : vector<32x32xf32> to vector<32xf32>
    %312 = vector.shape_cast %311 : vector<32xf32> to vector<32x1xf32>
    %cst_97 = arith.constant 3.200000e+01 : f32
    %313 = vector.broadcast %cst_97 : f32 to vector<32x1xf32>
    %314 = arith.divf %312, %313 : vector<32x1xf32>
    %315 = vector.broadcast %314 : vector<32x1xf32> to vector<32x32xf32>
    %316 = arith.subf %308, %315 : vector<32x32xf32>
    %317 = arith.mulf %316, %316 : vector<32x32xf32>
    %cst_98 = arith.constant dense<0.000000e+00> : vector<32xf32>
    %318 = vector.multi_reduction <add>, %317, %cst_98 [1] : vector<32x32xf32> to vector<32xf32>
    %319 = vector.shape_cast %318 : vector<32xf32> to vector<32x1xf32>
    %cst_99 = arith.constant 3.200000e+01 : f32
    %320 = vector.broadcast %cst_99 : f32 to vector<32x1xf32>
    %321 = arith.divf %319, %320 : vector<32x1xf32>
    %322 = vector.broadcast %314 : vector<32x1xf32> to vector<32x32xf32>
    %323 = arith.subf %308, %322 : vector<32x32xf32>
    %cst_100 = arith.constant 9.99999974E-6 : f32
    %324 = vector.broadcast %cst_100 : f32 to vector<32x1xf32>
    %325 = arith.addf %321, %324 : vector<32x1xf32>
    %326 = math.rsqrt %325 : vector<32x1xf32>
    %327 = vector.broadcast %326 : vector<32x1xf32> to vector<32x32xf32>
    %328 = arith.mulf %323, %327 : vector<32x32xf32>
    %329 = vector.broadcast %309 : vector<1x32xf32> to vector<32x32xf32>
    %330 = arith.mulf %328, %329 : vector<32x32xf32>
    %331 = vector.broadcast %310 : vector<1x32xf32> to vector<32x32xf32>
    %332 = arith.addf %330, %331 : vector<32x32xf32>
    %333 = vector.broadcast %9 : vector<32x1xf32> to vector<32x32xf32>
    %334 = arith.mulf %332, %333 : vector<32x32xf32>
    %335 = vector.shape_cast %334 : vector<32x32xf32> to vector<2x16x32xf32>
    %c0_101 = arith.constant 0 : index
    %c0_102 = arith.constant 0 : index
    %c0_103 = arith.constant 0 : index
    %336 = vector.load %arg10[%c0_101, %c0_102, %c0_103] : memref<2x16x32xf32, #tpu.memory_space<vmem>>, vector<2x16x32xf32>
    tpu.vector_store %arg10[%c0_101, %c0_102, %c0_103], %335 {strides = array<i32>} : memref<2x16x32xf32, #tpu.memory_space<vmem>>, vector<2x16x32xf32>,
    return
  }
}

module attributes {stable_mosaic.version = 11 : i64} {
  func.func @_tail_kernel(%arg0: memref<16x2x32xf32, #tpu.memory_space<vmem>>, %arg1: memref<32x1xf32, #tpu.memory_space<vmem>>, %arg2: memref<2x32x16xf32, #tpu.memory_space<vmem>>, %arg3: memref<128x128xf32, #tpu.memory_space<vmem>>, %arg4: memref<384x32xf32, #tpu.memory_space<vmem>>, %arg5: memref<96x16xf32, #tpu.memory_space<vmem>>, %arg6: memref<4x16x32xf32, #tpu.memory_space<vmem>>, %arg7: memref<16x96xf32, #tpu.memory_space<vmem>>, %arg8: memref<2x16x48xf32, #tpu.memory_space<vmem>>, %arg9: memref<14x128xf32, #tpu.memory_space<vmem>>, %arg10: memref<32x16xf32, #tpu.memory_space<vmem>>, %arg11: memref<32x16xf32, #tpu.memory_space<vmem>>, %arg12: memref<16x2x96xf32, #tpu.memory_space<vmem>>, %arg13: memref<16x2x16xf32, #tpu.memory_space<vmem>>, %arg14: memref<16x2x16xf32, #tpu.memory_space<vmem>>) attributes {dimension_semantics = [], scalar_prefetch = 0 : i64, scratch_operands = 3 : i64, tpu.core_type = #tpu.core_type<tc>} {
    %c0 = arith.constant 0 : index
    %c0_0 = arith.constant 0 : index
    %0 = vector.load %arg9[%c0, %c0_0] : memref<14x128xf32, #tpu.memory_space<vmem>>, vector<14x128xf32>
    %c0_1 = arith.constant 0 : index
    %c0_2 = arith.constant 0 : index
    %1 = vector.load %arg1[%c0_1, %c0_2] : memref<32x1xf32, #tpu.memory_space<vmem>>, vector<32x1xf32>
    %c0_3 = arith.constant 0 : index
    %c0_4 = arith.constant 0 : index
    %c0_5 = arith.constant 0 : index
    %2 = vector.load %arg0[%c0_3, %c0_4, %c0_5] : memref<16x2x32xf32, #tpu.memory_space<vmem>>, vector<16x2x32xf32>
    %3 = vector.shape_cast %2 : vector<16x2x32xf32> to vector<32x32xf32>
    %c0_6 = arith.constant 0 : index
    %c0_7 = arith.constant 0 : index
    %c0_8 = arith.constant 0 : index
    %4 = vector.load %arg2[%c0_6, %c0_7, %c0_8] : memref<2x32x16xf32, #tpu.memory_space<vmem>>, vector<1x32x16xf32>
    %5 = vector.shape_cast %4 : vector<1x32x16xf32> to vector<32x16xf32>
    %6 = arith.truncf %3 : vector<32x32xf32> to vector<32x32xbf16>
    %7 = arith.truncf %5 : vector<32x16xf32> to vector<32x16xbf16>
    %cst = arith.constant dense<0.000000e+00> : vector<32x16xf32>
    %8 = tpu.matmul %6, %7, %cst {dimension_numbers = #tpu.dot_dimension_numbers<[1], [0], [0], [1], [0, 0, 1, 1], [], []>} : vector<32x32xbf16>, vector<32x16xbf16>, vector<32x16xf32> -> vector<32x16xf32>
    %9 = vector.extract_strided_slice %0 {offsets = [0, 0], sizes = [1, 16], strides = [1, 1]} : vector<14x128xf32> to vector<1x16xf32>
    %10 = vector.broadcast %9 : vector<1x16xf32> to vector<32x16xf32>
    %11 = arith.addf %8, %10 : vector<32x16xf32>
    %12 = vector.broadcast %1 : vector<32x1xf32> to vector<32x16xf32>
    %13 = arith.mulf %11, %12 : vector<32x16xf32>
    %c0_9 = arith.constant 0 : index
    %c0_10 = arith.constant 0 : index
    %14 = vector.load %arg10[%c0_9, %c0_10] : memref<32x16xf32, #tpu.memory_space<vmem>>, vector<32x16xf32>
    tpu.vector_store %arg10[%c0_9, %c0_10], %13 {strides = array<i32>} : memref<32x16xf32, #tpu.memory_space<vmem>>, vector<32x16xf32>,
    %15 = vector.shape_cast %13 : vector<32x16xf32> to vector<16x2x16xf32>
    %c0_11 = arith.constant 0 : index
    %c0_12 = arith.constant 0 : index
    %16 = vector.load %arg3[%c0_11, %c0_12] : memref<128x128xf32, #tpu.memory_space<vmem>>, vector<128x128xf32>
    %cst_13 = arith.constant 0.000000e+00 : f32
    %17 = vector.broadcast %cst_13 : f32 to vector<4x2x16xf32>
    %cst_14 = arith.constant 0.000000e+00 : f32
    %18 = vector.broadcast %cst_14 : f32 to vector<3x2x16xf32>
    %19 = tpu.concatenate %17, %15, %18 in 0 : vector<4x2x16xf32>, vector<16x2x16xf32>, vector<3x2x16xf32> -> vector<23x2x16xf32>
    %20 = vector.extract_strided_slice %19 {offsets = [0, 0, 0], sizes = [16, 2, 16], strides = [1, 1, 1]} : vector<23x2x16xf32> to vector<16x2x16xf32>
    %21 = vector.extract_strided_slice %19 {offsets = [1, 0, 0], sizes = [16, 2, 16], strides = [1, 1, 1]} : vector<23x2x16xf32> to vector<16x2x16xf32>
    %22 = vector.extract_strided_slice %19 {offsets = [2, 0, 0], sizes = [16, 2, 16], strides = [1, 1, 1]} : vector<23x2x16xf32> to vector<16x2x16xf32>
    %23 = vector.extract_strided_slice %19 {offsets = [3, 0, 0], sizes = [16, 2, 16], strides = [1, 1, 1]} : vector<23x2x16xf32> to vector<16x2x16xf32>
    %24 = vector.extract_strided_slice %19 {offsets = [4, 0, 0], sizes = [16, 2, 16], strides = [1, 1, 1]} : vector<23x2x16xf32> to vector<16x2x16xf32>
    %25 = vector.extract_strided_slice %19 {offsets = [5, 0, 0], sizes = [16, 2, 16], strides = [1, 1, 1]} : vector<23x2x16xf32> to vector<16x2x16xf32>
    %26 = vector.extract_strided_slice %19 {offsets = [6, 0, 0], sizes = [16, 2, 16], strides = [1, 1, 1]} : vector<23x2x16xf32> to vector<16x2x16xf32>
    %27 = vector.extract_strided_slice %19 {offsets = [7, 0, 0], sizes = [16, 2, 16], strides = [1, 1, 1]} : vector<23x2x16xf32> to vector<16x2x16xf32>
    %28 = tpu.concatenate %20, %21, %22, %23, %24, %25, %26, %27 in 2 : vector<16x2x16xf32>, vector<16x2x16xf32>, vector<16x2x16xf32>, vector<16x2x16xf32>, vector<16x2x16xf32>, vector<16x2x16xf32>, vector<16x2x16xf32>, vector<16x2x16xf32> -> vector<16x2x128xf32>
    %29 = vector.shape_cast %28 : vector<16x2x128xf32> to vector<32x128xf32>
    %30 = arith.truncf %29 : vector<32x128xf32> to vector<32x128xbf16>
    %31 = arith.truncf %16 : vector<128x128xf32> to vector<128x128xbf16>
    %cst_15 = arith.constant dense<0.000000e+00> : vector<32x128xf32>
    %32 = tpu.matmul %30, %31, %cst_15 {dimension_numbers = #tpu.dot_dimension_numbers<[1], [0], [0], [1], [0, 0, 1, 1], [], []>} : vector<32x128xbf16>, vector<128x128xbf16>, vector<32x128xf32> -> vector<32x128xf32>
    %33 = vector.extract_strided_slice %0 {offsets = [1, 0], sizes = [1, 128], strides = [1, 1]} : vector<14x128xf32> to vector<1x128xf32>
    %34 = vector.extract_strided_slice %0 {offsets = [2, 0], sizes = [1, 128], strides = [1, 1]} : vector<14x128xf32> to vector<1x128xf32>
    %cst_16 = arith.constant dense<0.000000e+00> : vector<128xf32>
    %35 = vector.multi_reduction <add>, %32, %cst_16 [0] : vector<32x128xf32> to vector<128xf32>
    %36 = vector.shape_cast %35 : vector<128xf32> to vector<1x128xf32>
    %cst_17 = arith.constant 3.200000e+01 : f32
    %37 = vector.broadcast %cst_17 : f32 to vector<1x128xf32>
    %38 = arith.divf %36, %37 : vector<1x128xf32>
    %39 = vector.broadcast %38 : vector<1x128xf32> to vector<32x128xf32>
    %40 = arith.subf %32, %39 : vector<32x128xf32>
    %41 = arith.mulf %40, %40 : vector<32x128xf32>
    %cst_18 = arith.constant dense<0.000000e+00> : vector<128xf32>
    %42 = vector.multi_reduction <add>, %41, %cst_18 [0] : vector<32x128xf32> to vector<128xf32>
    %43 = vector.shape_cast %42 : vector<128xf32> to vector<1x128xf32>
    %cst_19 = arith.constant 3.200000e+01 : f32
    %44 = vector.broadcast %cst_19 : f32 to vector<1x128xf32>
    %45 = arith.divf %43, %44 : vector<1x128xf32>
    %46 = vector.broadcast %38 : vector<1x128xf32> to vector<32x128xf32>
    %47 = arith.subf %32, %46 : vector<32x128xf32>
    %cst_20 = arith.constant 9.99999974E-6 : f32
    %48 = vector.broadcast %cst_20 : f32 to vector<1x128xf32>
    %49 = arith.addf %45, %48 : vector<1x128xf32>
    %50 = math.rsqrt %49 : vector<1x128xf32>
    %51 = vector.broadcast %50 : vector<1x128xf32> to vector<32x128xf32>
    %52 = arith.mulf %47, %51 : vector<32x128xf32>
    %53 = vector.broadcast %33 : vector<1x128xf32> to vector<32x128xf32>
    %54 = arith.mulf %52, %53 : vector<32x128xf32>
    %55 = vector.broadcast %34 : vector<1x128xf32> to vector<32x128xf32>
    %56 = arith.addf %54, %55 : vector<32x128xf32>
    %cst_21 = arith.constant 0.000000e+00 : f32
    %57 = vector.broadcast %cst_21 : f32 to vector<32x128xf32>
    %58 = arith.maximumf %56, %57 : vector<32x128xf32>
    %59 = vector.shape_cast %58 : vector<32x128xf32> to vector<16x2x128xf32>
    %cst_22 = arith.constant 0.000000e+00 : f32
    %60 = vector.broadcast %cst_22 : f32 to vector<1x2x128xf32>
    %61 = tpu.concatenate %60, %59 in 0 : vector<1x2x128xf32>, vector<16x2x128xf32> -> vector<17x2x128xf32>
    %62 = vector.extract_strided_slice %61 {offsets = [0, 0, 0], sizes = [16, 2, 128], strides = [1, 1, 1]} : vector<17x2x128xf32> to vector<16x2x128xf32>
    %63 = vector.extract_strided_slice %61 {offsets = [1, 0, 0], sizes = [16, 2, 128], strides = [1, 1, 1]} : vector<17x2x128xf32> to vector<16x2x128xf32>
    %64 = arith.maximumf %62, %63 : vector<16x2x128xf32>
    %c0_23 = arith.constant 0 : index
    %c0_24 = arith.constant 0 : index
    %65 = vector.load %arg4[%c0_23, %c0_24] : memref<384x32xf32, #tpu.memory_space<vmem>>, vector<384x32xf32>
    %cst_25 = arith.constant 0.000000e+00 : f32
    %66 = vector.broadcast %cst_25 : f32 to vector<1x2x128xf32>
    %cst_26 = arith.constant 0.000000e+00 : f32
    %67 = vector.broadcast %cst_26 : f32 to vector<1x2x128xf32>
    %68 = tpu.concatenate %66, %64, %67 in 0 : vector<1x2x128xf32>, vector<16x2x128xf32>, vector<1x2x128xf32> -> vector<18x2x128xf32>
    %69 = vector.extract_strided_slice %68 {offsets = [0, 0, 0], sizes = [16, 2, 128], strides = [1, 1, 1]} : vector<18x2x128xf32> to vector<16x2x128xf32>
    %70 = vector.extract_strided_slice %68 {offsets = [1, 0, 0], sizes = [16, 2, 128], strides = [1, 1, 1]} : vector<18x2x128xf32> to vector<16x2x128xf32>
    %71 = vector.extract_strided_slice %68 {offsets = [2, 0, 0], sizes = [16, 2, 128], strides = [1, 1, 1]} : vector<18x2x128xf32> to vector<16x2x128xf32>
    %72 = tpu.concatenate %69, %70, %71 in 2 : vector<16x2x128xf32>, vector<16x2x128xf32>, vector<16x2x128xf32> -> vector<16x2x384xf32>
    %73 = vector.shape_cast %72 : vector<16x2x384xf32> to vector<32x384xf32>
    %74 = arith.truncf %73 : vector<32x384xf32> to vector<32x384xbf16>
    %75 = arith.truncf %65 : vector<384x32xf32> to vector<384x32xbf16>
    %cst_27 = arith.constant dense<0.000000e+00> : vector<32x32xf32>
    %76 = tpu.matmul %74, %75, %cst_27 {dimension_numbers = #tpu.dot_dimension_numbers<[1], [0], [0], [1], [0, 0, 1, 1], [], []>} : vector<32x384xbf16>, vector<384x32xbf16>, vector<32x32xf32> -> vector<32x32xf32>
    %77 = vector.extract_strided_slice %0 {offsets = [3, 0], sizes = [1, 32], strides = [1, 1]} : vector<14x128xf32> to vector<1x32xf32>
    %78 = vector.extract_strided_slice %0 {offsets = [4, 0], sizes = [1, 32], strides = [1, 1]} : vector<14x128xf32> to vector<1x32xf32>
    %cst_28 = arith.constant dense<0.000000e+00> : vector<32xf32>
    %79 = vector.multi_reduction <add>, %76, %cst_28 [0] : vector<32x32xf32> to vector<32xf32>
    %80 = vector.shape_cast %79 : vector<32xf32> to vector<1x32xf32>
    %cst_29 = arith.constant 3.200000e+01 : f32
    %81 = vector.broadcast %cst_29 : f32 to vector<1x32xf32>
    %82 = arith.divf %80, %81 : vector<1x32xf32>
    %83 = vector.broadcast %82 : vector<1x32xf32> to vector<32x32xf32>
    %84 = arith.subf %76, %83 : vector<32x32xf32>
    %85 = arith.mulf %84, %84 : vector<32x32xf32>
    %cst_30 = arith.constant dense<0.000000e+00> : vector<32xf32>
    %86 = vector.multi_reduction <add>, %85, %cst_30 [0] : vector<32x32xf32> to vector<32xf32>
    %87 = vector.shape_cast %86 : vector<32xf32> to vector<1x32xf32>
    %cst_31 = arith.constant 3.200000e+01 : f32
    %88 = vector.broadcast %cst_31 : f32 to vector<1x32xf32>
    %89 = arith.divf %87, %88 : vector<1x32xf32>
    %90 = vector.broadcast %82 : vector<1x32xf32> to vector<32x32xf32>
    %91 = arith.subf %76, %90 : vector<32x32xf32>
    %cst_32 = arith.constant 9.99999974E-6 : f32
    %92 = vector.broadcast %cst_32 : f32 to vector<1x32xf32>
    %93 = arith.addf %89, %92 : vector<1x32xf32>
    %94 = math.rsqrt %93 : vector<1x32xf32>
    %95 = vector.broadcast %94 : vector<1x32xf32> to vector<32x32xf32>
    %96 = arith.mulf %91, %95 : vector<32x32xf32>
    %97 = vector.broadcast %77 : vector<1x32xf32> to vector<32x32xf32>
    %98 = arith.mulf %96, %97 : vector<32x32xf32>
    %99 = vector.broadcast %78 : vector<1x32xf32> to vector<32x32xf32>
    %100 = arith.addf %98, %99 : vector<32x32xf32>
    %cst_33 = arith.constant 0.000000e+00 : f32
    %101 = vector.broadcast %cst_33 : f32 to vector<32x32xf32>
    %102 = arith.maximumf %100, %101 : vector<32x32xf32>
    %103 = vector.shape_cast %102 : vector<32x32xf32> to vector<16x2x32xf32>
    %c0_34 = arith.constant 0 : index
    %c0_35 = arith.constant 0 : index
    %104 = vector.load %arg5[%c0_34, %c0_35] : memref<96x16xf32, #tpu.memory_space<vmem>>, vector<96x16xf32>
    %cst_36 = arith.constant 0.000000e+00 : f32
    %105 = vector.broadcast %cst_36 : f32 to vector<1x2x32xf32>
    %cst_37 = arith.constant 0.000000e+00 : f32
    %106 = vector.broadcast %cst_37 : f32 to vector<1x2x32xf32>
    %107 = tpu.concatenate %105, %103, %106 in 0 : vector<1x2x32xf32>, vector<16x2x32xf32>, vector<1x2x32xf32> -> vector<18x2x32xf32>
    %108 = vector.extract_strided_slice %107 {offsets = [0, 0, 0], sizes = [16, 2, 32], strides = [1, 1, 1]} : vector<18x2x32xf32> to vector<16x2x32xf32>
    %109 = vector.extract_strided_slice %107 {offsets = [1, 0, 0], sizes = [16, 2, 32], strides = [1, 1, 1]} : vector<18x2x32xf32> to vector<16x2x32xf32>
    %110 = vector.extract_strided_slice %107 {offsets = [2, 0, 0], sizes = [16, 2, 32], strides = [1, 1, 1]} : vector<18x2x32xf32> to vector<16x2x32xf32>
    %111 = tpu.concatenate %108, %109, %110 in 2 : vector<16x2x32xf32>, vector<16x2x32xf32>, vector<16x2x32xf32> -> vector<16x2x96xf32>
    %112 = vector.shape_cast %111 : vector<16x2x96xf32> to vector<32x96xf32>
    %113 = arith.truncf %112 : vector<32x96xf32> to vector<32x96xbf16>
    %114 = arith.truncf %104 : vector<96x16xf32> to vector<96x16xbf16>
    %cst_38 = arith.constant dense<0.000000e+00> : vector<32x16xf32>
    %115 = tpu.matmul %113, %114, %cst_38 {dimension_numbers = #tpu.dot_dimension_numbers<[1], [0], [0], [1], [0, 0, 1, 1], [], []>} : vector<32x96xbf16>, vector<96x16xbf16>, vector<32x16xf32> -> vector<32x16xf32>
    %116 = vector.extract_strided_slice %0 {offsets = [5, 0], sizes = [1, 16], strides = [1, 1]} : vector<14x128xf32> to vector<1x16xf32>
    %117 = vector.extract_strided_slice %0 {offsets = [6, 0], sizes = [1, 16], strides = [1, 1]} : vector<14x128xf32> to vector<1x16xf32>
    %cst_39 = arith.constant dense<0.000000e+00> : vector<16xf32>
    %118 = vector.multi_reduction <add>, %115, %cst_39 [0] : vector<32x16xf32> to vector<16xf32>
    %119 = vector.shape_cast %118 : vector<16xf32> to vector<1x16xf32>
    %cst_40 = arith.constant 3.200000e+01 : f32
    %120 = vector.broadcast %cst_40 : f32 to vector<1x16xf32>
    %121 = arith.divf %119, %120 : vector<1x16xf32>
    %122 = vector.broadcast %121 : vector<1x16xf32> to vector<32x16xf32>
    %123 = arith.subf %115, %122 : vector<32x16xf32>
    %124 = arith.mulf %123, %123 : vector<32x16xf32>
    %cst_41 = arith.constant dense<0.000000e+00> : vector<16xf32>
    %125 = vector.multi_reduction <add>, %124, %cst_41 [0] : vector<32x16xf32> to vector<16xf32>
    %126 = vector.shape_cast %125 : vector<16xf32> to vector<1x16xf32>
    %cst_42 = arith.constant 3.200000e+01 : f32
    %127 = vector.broadcast %cst_42 : f32 to vector<1x16xf32>
    %128 = arith.divf %126, %127 : vector<1x16xf32>
    %129 = vector.broadcast %121 : vector<1x16xf32> to vector<32x16xf32>
    %130 = arith.subf %115, %129 : vector<32x16xf32>
    %cst_43 = arith.constant 9.99999974E-6 : f32
    %131 = vector.broadcast %cst_43 : f32 to vector<1x16xf32>
    %132 = arith.addf %128, %131 : vector<1x16xf32>
    %133 = math.rsqrt %132 : vector<1x16xf32>
    %134 = vector.broadcast %133 : vector<1x16xf32> to vector<32x16xf32>
    %135 = arith.mulf %130, %134 : vector<32x16xf32>
    %136 = vector.broadcast %116 : vector<1x16xf32> to vector<32x16xf32>
    %137 = arith.mulf %135, %136 : vector<32x16xf32>
    %138 = vector.broadcast %117 : vector<1x16xf32> to vector<32x16xf32>
    %139 = arith.addf %137, %138 : vector<32x16xf32>
    %140 = arith.addf %139, %13 : vector<32x16xf32>
    %c0_44 = arith.constant 0 : index
    %c0_45 = arith.constant 0 : index
    %c0_46 = arith.constant 0 : index
    %141 = vector.load %arg6[%c0_44, %c0_45, %c0_46] : memref<4x16x32xf32, #tpu.memory_space<vmem>>, vector<1x16x32xf32>
    %142 = vector.shape_cast %141 : vector<1x16x32xf32> to vector<16x32xf32>
    %143 = arith.truncf %140 : vector<32x16xf32> to vector<32x16xbf16>
    %144 = arith.truncf %142 : vector<16x32xf32> to vector<16x32xbf16>
    %cst_47 = arith.constant dense<0.000000e+00> : vector<32x32xf32>
    %145 = tpu.matmul %143, %144, %cst_47 {dimension_numbers = #tpu.dot_dimension_numbers<[1], [0], [0], [1], [0, 0, 1, 1], [], []>} : vector<32x16xbf16>, vector<16x32xbf16>, vector<32x32xf32> -> vector<32x32xf32>
    %146 = vector.extract_strided_slice %0 {offsets = [7, 0], sizes = [1, 32], strides = [1, 1]} : vector<14x128xf32> to vector<1x32xf32>
    %147 = vector.broadcast %146 : vector<1x32xf32> to vector<32x32xf32>
    %148 = arith.addf %145, %147 : vector<32x32xf32>
    %149 = vector.extract_strided_slice %148 {offsets = [0, 0], sizes = [32, 16], strides = [1, 1]} : vector<32x32xf32> to vector<32x16xf32>
    %cst_48 = arith.constant 0.000000e+00 : f32
    %150 = vector.broadcast %cst_48 : f32 to vector<32x16xf32>
    %151 = arith.maximumf %149, %150 : vector<32x16xf32>
    %152 = vector.extract_strided_slice %148 {offsets = [0, 16], sizes = [32, 16], strides = [1, 1]} : vector<32x32xf32> to vector<32x16xf32>
    %153 = arith.negf %152 : vector<32x16xf32>
    %154 = math.exp %153 : vector<32x16xf32>
    %cst_49 = arith.constant 1.000000e+00 : f32
    %155 = vector.broadcast %cst_49 : f32 to vector<32x16xf32>
    %156 = arith.addf %155, %154 : vector<32x16xf32>
    %157 = arith.divf %155, %156 : vector<32x16xf32>
    %158 = arith.mulf %151, %157 : vector<32x16xf32>
    %cst_50 = arith.constant 1.000000e+00 : f32
    %159 = vector.broadcast %cst_50 : f32 to vector<32x16xf32>
    %160 = arith.subf %159, %157 : vector<32x16xf32>
    %161 = arith.mulf %140, %160 : vector<32x16xf32>
    %162 = arith.addf %158, %161 : vector<32x16xf32>
    %c1 = arith.constant 1 : index
    %c0_51 = arith.constant 0 : index
    %c0_52 = arith.constant 0 : index
    %163 = vector.load %arg6[%c1, %c0_51, %c0_52] : memref<4x16x32xf32, #tpu.memory_space<vmem>>, vector<1x16x32xf32>
    %164 = vector.shape_cast %163 : vector<1x16x32xf32> to vector<16x32xf32>
    %165 = arith.truncf %162 : vector<32x16xf32> to vector<32x16xbf16>
    %166 = arith.truncf %164 : vector<16x32xf32> to vector<16x32xbf16>
    %cst_53 = arith.constant dense<0.000000e+00> : vector<32x32xf32>
    %167 = tpu.matmul %165, %166, %cst_53 {dimension_numbers = #tpu.dot_dimension_numbers<[1], [0], [0], [1], [0, 0, 1, 1], [], []>} : vector<32x16xbf16>, vector<16x32xbf16>, vector<32x32xf32> -> vector<32x32xf32>
    %168 = vector.extract_strided_slice %0 {offsets = [8, 0], sizes = [1, 32], strides = [1, 1]} : vector<14x128xf32> to vector<1x32xf32>
    %169 = vector.broadcast %168 : vector<1x32xf32> to vector<32x32xf32>
    %170 = arith.addf %167, %169 : vector<32x32xf32>
    %171 = vector.extract_strided_slice %170 {offsets = [0, 0], sizes = [32, 16], strides = [1, 1]} : vector<32x32xf32> to vector<32x16xf32>
    %cst_54 = arith.constant 0.000000e+00 : f32
    %172 = vector.broadcast %cst_54 : f32 to vector<32x16xf32>
    %173 = arith.maximumf %171, %172 : vector<32x16xf32>
    %174 = vector.extract_strided_slice %170 {offsets = [0, 16], sizes = [32, 16], strides = [1, 1]} : vector<32x32xf32> to vector<32x16xf32>
    %175 = arith.negf %174 : vector<32x16xf32>
    %176 = math.exp %175 : vector<32x16xf32>
    %cst_55 = arith.constant 1.000000e+00 : f32
    %177 = vector.broadcast %cst_55 : f32 to vector<32x16xf32>
    %178 = arith.addf %177, %176 : vector<32x16xf32>
    %179 = arith.divf %177, %178 : vector<32x16xf32>
    %180 = arith.mulf %173, %179 : vector<32x16xf32>
    %cst_56 = arith.constant 1.000000e+00 : f32
    %181 = vector.broadcast %cst_56 : f32 to vector<32x16xf32>
    %182 = arith.subf %181, %179 : vector<32x16xf32>
    %183 = arith.mulf %162, %182 : vector<32x16xf32>
    %184 = arith.addf %180, %183 : vector<32x16xf32>
    %c2 = arith.constant 2 : index
    %c0_57 = arith.constant 0 : index
    %c0_58 = arith.constant 0 : index
    %185 = vector.load %arg6[%c2, %c0_57, %c0_58] : memref<4x16x32xf32, #tpu.memory_space<vmem>>, vector<1x16x32xf32>
    %186 = vector.shape_cast %185 : vector<1x16x32xf32> to vector<16x32xf32>
    %187 = arith.truncf %184 : vector<32x16xf32> to vector<32x16xbf16>
    %188 = arith.truncf %186 : vector<16x32xf32> to vector<16x32xbf16>
    %cst_59 = arith.constant dense<0.000000e+00> : vector<32x32xf32>
    %189 = tpu.matmul %187, %188, %cst_59 {dimension_numbers = #tpu.dot_dimension_numbers<[1], [0], [0], [1], [0, 0, 1, 1], [], []>} : vector<32x16xbf16>, vector<16x32xbf16>, vector<32x32xf32> -> vector<32x32xf32>
    %190 = vector.extract_strided_slice %0 {offsets = [9, 0], sizes = [1, 32], strides = [1, 1]} : vector<14x128xf32> to vector<1x32xf32>
    %191 = vector.broadcast %190 : vector<1x32xf32> to vector<32x32xf32>
    %192 = arith.addf %189, %191 : vector<32x32xf32>
    %193 = vector.extract_strided_slice %192 {offsets = [0, 0], sizes = [32, 16], strides = [1, 1]} : vector<32x32xf32> to vector<32x16xf32>
    %cst_60 = arith.constant 0.000000e+00 : f32
    %194 = vector.broadcast %cst_60 : f32 to vector<32x16xf32>
    %195 = arith.maximumf %193, %194 : vector<32x16xf32>
    %196 = vector.extract_strided_slice %192 {offsets = [0, 16], sizes = [32, 16], strides = [1, 1]} : vector<32x32xf32> to vector<32x16xf32>
    %197 = arith.negf %196 : vector<32x16xf32>
    %198 = math.exp %197 : vector<32x16xf32>
    %cst_61 = arith.constant 1.000000e+00 : f32
    %199 = vector.broadcast %cst_61 : f32 to vector<32x16xf32>
    %200 = arith.addf %199, %198 : vector<32x16xf32>
    %201 = arith.divf %199, %200 : vector<32x16xf32>
    %202 = arith.mulf %195, %201 : vector<32x16xf32>
    %cst_62 = arith.constant 1.000000e+00 : f32
    %203 = vector.broadcast %cst_62 : f32 to vector<32x16xf32>
    %204 = arith.subf %203, %201 : vector<32x16xf32>
    %205 = arith.mulf %184, %204 : vector<32x16xf32>
    %206 = arith.addf %202, %205 : vector<32x16xf32>
    %c3 = arith.constant 3 : index
    %c0_63 = arith.constant 0 : index
    %c0_64 = arith.constant 0 : index
    %207 = vector.load %arg6[%c3, %c0_63, %c0_64] : memref<4x16x32xf32, #tpu.memory_space<vmem>>, vector<1x16x32xf32>
    %208 = vector.shape_cast %207 : vector<1x16x32xf32> to vector<16x32xf32>
    %209 = arith.truncf %206 : vector<32x16xf32> to vector<32x16xbf16>
    %210 = arith.truncf %208 : vector<16x32xf32> to vector<16x32xbf16>
    %cst_65 = arith.constant dense<0.000000e+00> : vector<32x32xf32>
    %211 = tpu.matmul %209, %210, %cst_65 {dimension_numbers = #tpu.dot_dimension_numbers<[1], [0], [0], [1], [0, 0, 1, 1], [], []>} : vector<32x16xbf16>, vector<16x32xbf16>, vector<32x32xf32> -> vector<32x32xf32>
    %212 = vector.extract_strided_slice %0 {offsets = [10, 0], sizes = [1, 32], strides = [1, 1]} : vector<14x128xf32> to vector<1x32xf32>
    %213 = vector.broadcast %212 : vector<1x32xf32> to vector<32x32xf32>
    %214 = arith.addf %211, %213 : vector<32x32xf32>
    %215 = vector.extract_strided_slice %214 {offsets = [0, 0], sizes = [32, 16], strides = [1, 1]} : vector<32x32xf32> to vector<32x16xf32>
    %cst_66 = arith.constant 0.000000e+00 : f32
    %216 = vector.broadcast %cst_66 : f32 to vector<32x16xf32>
    %217 = arith.maximumf %215, %216 : vector<32x16xf32>
    %218 = vector.extract_strided_slice %214 {offsets = [0, 16], sizes = [32, 16], strides = [1, 1]} : vector<32x32xf32> to vector<32x16xf32>
    %219 = arith.negf %218 : vector<32x16xf32>
    %220 = math.exp %219 : vector<32x16xf32>
    %cst_67 = arith.constant 1.000000e+00 : f32
    %221 = vector.broadcast %cst_67 : f32 to vector<32x16xf32>
    %222 = arith.addf %221, %220 : vector<32x16xf32>
    %223 = arith.divf %221, %222 : vector<32x16xf32>
    %224 = arith.mulf %217, %223 : vector<32x16xf32>
    %cst_68 = arith.constant 1.000000e+00 : f32
    %225 = vector.broadcast %cst_68 : f32 to vector<32x16xf32>
    %226 = arith.subf %225, %223 : vector<32x16xf32>
    %227 = arith.mulf %206, %226 : vector<32x16xf32>
    %228 = arith.addf %224, %227 : vector<32x16xf32>
    %c0_69 = arith.constant 0 : index
    %c0_70 = arith.constant 0 : index
    %229 = vector.load %arg7[%c0_69, %c0_70] : memref<16x96xf32, #tpu.memory_space<vmem>>, vector<16x96xf32>
    %230 = arith.truncf %228 : vector<32x16xf32> to vector<32x16xbf16>
    %231 = arith.truncf %229 : vector<16x96xf32> to vector<16x96xbf16>
    %cst_71 = arith.constant dense<0.000000e+00> : vector<32x96xf32>
    %232 = tpu.matmul %230, %231, %cst_71 {dimension_numbers = #tpu.dot_dimension_numbers<[1], [0], [0], [1], [0, 0, 1, 1], [], []>} : vector<32x16xbf16>, vector<16x96xbf16>, vector<32x96xf32> -> vector<32x96xf32>
    %233 = vector.extract_strided_slice %0 {offsets = [11, 0], sizes = [1, 96], strides = [1, 1]} : vector<14x128xf32> to vector<1x96xf32>
    %234 = vector.broadcast %233 : vector<1x96xf32> to vector<32x96xf32>
    %235 = arith.addf %232, %234 : vector<32x96xf32>
    %236 = vector.shape_cast %235 : vector<32x96xf32> to vector<16x2x96xf32>
    %c0_72 = arith.constant 0 : index
    %c0_73 = arith.constant 0 : index
    %c0_74 = arith.constant 0 : index
    %237 = vector.load %arg12[%c0_72, %c0_73, %c0_74] : memref<16x2x96xf32, #tpu.memory_space<vmem>>, vector<16x2x96xf32>
    tpu.vector_store %arg12[%c0_72, %c0_73, %c0_74], %236 {strides = array<i32>} : memref<16x2x96xf32, #tpu.memory_space<vmem>>, vector<16x2x96xf32>,
    %c0_75 = arith.constant 0 : index
    %c0_76 = arith.constant 0 : index
    %c0_77 = arith.constant 0 : index
    %238 = vector.load %arg8[%c0_75, %c0_76, %c0_77] : memref<2x16x48xf32, #tpu.memory_space<vmem>>, vector<1x16x48xf32>
    %239 = vector.shape_cast %238 : vector<1x16x48xf32> to vector<16x48xf32>
    %c1_78 = arith.constant 1 : index
    %c0_79 = arith.constant 0 : index
    %c0_80 = arith.constant 0 : index
    %240 = vector.load %arg8[%c1_78, %c0_79, %c0_80] : memref<2x16x48xf32, #tpu.memory_space<vmem>>, vector<1x16x48xf32>
    %241 = vector.shape_cast %240 : vector<1x16x48xf32> to vector<16x48xf32>
    %242 = vector.extract_strided_slice %0 {offsets = [12, 0], sizes = [1, 48], strides = [1, 1]} : vector<14x128xf32> to vector<1x48xf32>
    %243 = vector.extract_strided_slice %0 {offsets = [12, 48], sizes = [1, 48], strides = [1, 1]} : vector<14x128xf32> to vector<1x48xf32>
    %cst_81 = arith.constant 0.000000e+00 : f32
    %244 = vector.broadcast %cst_81 : f32 to vector<2x16xf32>
    %c0_i32 = arith.constant 0 : i32
    %c16_i32 = arith.constant 16 : i32
    %245 = arith.addi %c0_i32, %c16_i32 : i32
    %c1_i32 = arith.constant 1 : i32
    %246:2 = scf.for %arg15 = %c0_i32 to %245 step %c1_i32 iter_args(%arg16 = %244, %arg17 = %244) -> (vector<2x16xf32>, vector<2x16xf32>)  : i32 {
      %269 = arith.index_cast %arg15 : i32 to index
      %c0_96 = arith.constant 0 : index
      %c0_97 = arith.constant 0 : index
      %270 = vector.load %arg12[%269, %c0_96, %c0_97] : memref<16x2x96xf32, #tpu.memory_space<vmem>>, vector<1x2x96xf32>
      %271 = vector.shape_cast %270 : vector<1x2x96xf32> to vector<2x96xf32>
      %272 = vector.extract_strided_slice %271 {offsets = [0, 0], sizes = [2, 48], strides = [1, 1]} : vector<2x96xf32> to vector<2x48xf32>
      %c15_i32 = arith.constant 15 : i32
      %273 = arith.subi %c15_i32, %arg15 : i32
      %274 = arith.index_cast %273 : i32 to index
      %c0_98 = arith.constant 0 : index
      %c0_99 = arith.constant 0 : index
      %275 = vector.load %arg12[%274, %c0_98, %c0_99] : memref<16x2x96xf32, #tpu.memory_space<vmem>>, vector<1x2x96xf32>
      %276 = vector.shape_cast %275 : vector<1x2x96xf32> to vector<2x96xf32>
      %277 = vector.extract_strided_slice %276 {offsets = [0, 48], sizes = [2, 48], strides = [1, 1]} : vector<2x96xf32> to vector<2x48xf32>
      %278 = arith.truncf %arg16 : vector<2x16xf32> to vector<2x16xbf16>
      %279 = arith.truncf %239 : vector<16x48xf32> to vector<16x48xbf16>
      %cst_100 = arith.constant dense<0.000000e+00> : vector<2x48xf32>
      %280 = tpu.matmul %278, %279, %cst_100 {dimension_numbers = #tpu.dot_dimension_numbers<[1], [0], [0], [1], [0, 0, 1, 1], [], []>} : vector<2x16xbf16>, vector<16x48xbf16>, vector<2x48xf32> -> vector<2x48xf32>
      %281 = vector.broadcast %242 : vector<1x48xf32> to vector<2x48xf32>
      %282 = arith.addf %280, %281 : vector<2x48xf32>
      %283 = arith.truncf %arg17 : vector<2x16xf32> to vector<2x16xbf16>
      %284 = arith.truncf %241 : vector<16x48xf32> to vector<16x48xbf16>
      %cst_101 = arith.constant dense<0.000000e+00> : vector<2x48xf32>
      %285 = tpu.matmul %283, %284, %cst_101 {dimension_numbers = #tpu.dot_dimension_numbers<[1], [0], [0], [1], [0, 0, 1, 1], [], []>} : vector<2x16xbf16>, vector<16x48xbf16>, vector<2x48xf32> -> vector<2x48xf32>
      %286 = vector.broadcast %243 : vector<1x48xf32> to vector<2x48xf32>
      %287 = arith.addf %285, %286 : vector<2x48xf32>
      %288 = vector.extract_strided_slice %272 {offsets = [0, 0], sizes = [2, 16], strides = [1, 1]} : vector<2x48xf32> to vector<2x16xf32>
      %289 = vector.extract_strided_slice %282 {offsets = [0, 0], sizes = [2, 16], strides = [1, 1]} : vector<2x48xf32> to vector<2x16xf32>
      %290 = arith.addf %288, %289 : vector<2x16xf32>
      %291 = arith.negf %290 : vector<2x16xf32>
      %292 = math.exp %291 : vector<2x16xf32>
      %cst_102 = arith.constant 1.000000e+00 : f32
      %293 = vector.broadcast %cst_102 : f32 to vector<2x16xf32>
      %294 = arith.addf %293, %292 : vector<2x16xf32>
      %295 = arith.divf %293, %294 : vector<2x16xf32>
      %296 = vector.extract_strided_slice %272 {offsets = [0, 16], sizes = [2, 16], strides = [1, 1]} : vector<2x48xf32> to vector<2x16xf32>
      %297 = vector.extract_strided_slice %282 {offsets = [0, 16], sizes = [2, 16], strides = [1, 1]} : vector<2x48xf32> to vector<2x16xf32>
      %298 = arith.addf %296, %297 : vector<2x16xf32>
      %299 = arith.negf %298 : vector<2x16xf32>
      %300 = math.exp %299 : vector<2x16xf32>
      %cst_103 = arith.constant 1.000000e+00 : f32
      %301 = vector.broadcast %cst_103 : f32 to vector<2x16xf32>
      %302 = arith.addf %301, %300 : vector<2x16xf32>
      %303 = arith.divf %301, %302 : vector<2x16xf32>
      %304 = vector.extract_strided_slice %272 {offsets = [0, 32], sizes = [2, 16], strides = [1, 1]} : vector<2x48xf32> to vector<2x16xf32>
      %305 = vector.extract_strided_slice %282 {offsets = [0, 32], sizes = [2, 16], strides = [1, 1]} : vector<2x48xf32> to vector<2x16xf32>
      %306 = arith.mulf %295, %305 : vector<2x16xf32>
      %307 = arith.addf %304, %306 : vector<2x16xf32>
      %308 = math.tanh %307 : vector<2x16xf32>
      %309 = vector.extract_strided_slice %277 {offsets = [0, 0], sizes = [2, 16], strides = [1, 1]} : vector<2x48xf32> to vector<2x16xf32>
      %310 = vector.extract_strided_slice %287 {offsets = [0, 0], sizes = [2, 16], strides = [1, 1]} : vector<2x48xf32> to vector<2x16xf32>
      %311 = arith.addf %309, %310 : vector<2x16xf32>
      %312 = arith.negf %311 : vector<2x16xf32>
      %313 = math.exp %312 : vector<2x16xf32>
      %cst_104 = arith.constant 1.000000e+00 : f32
      %314 = vector.broadcast %cst_104 : f32 to vector<2x16xf32>
      %315 = arith.addf %314, %313 : vector<2x16xf32>
      %316 = arith.divf %314, %315 : vector<2x16xf32>
      %317 = vector.extract_strided_slice %277 {offsets = [0, 16], sizes = [2, 16], strides = [1, 1]} : vector<2x48xf32> to vector<2x16xf32>
      %318 = vector.extract_strided_slice %287 {offsets = [0, 16], sizes = [2, 16], strides = [1, 1]} : vector<2x48xf32> to vector<2x16xf32>
      %319 = arith.addf %317, %318 : vector<2x16xf32>
      %320 = arith.negf %319 : vector<2x16xf32>
      %321 = math.exp %320 : vector<2x16xf32>
      %cst_105 = arith.constant 1.000000e+00 : f32
      %322 = vector.broadcast %cst_105 : f32 to vector<2x16xf32>
      %323 = arith.addf %322, %321 : vector<2x16xf32>
      %324 = arith.divf %322, %323 : vector<2x16xf32>
      %325 = vector.extract_strided_slice %277 {offsets = [0, 32], sizes = [2, 16], strides = [1, 1]} : vector<2x48xf32> to vector<2x16xf32>
      %326 = vector.extract_strided_slice %287 {offsets = [0, 32], sizes = [2, 16], strides = [1, 1]} : vector<2x48xf32> to vector<2x16xf32>
      %327 = arith.mulf %316, %326 : vector<2x16xf32>
      %328 = arith.addf %325, %327 : vector<2x16xf32>
      %329 = math.tanh %328 : vector<2x16xf32>
      %cst_106 = arith.constant 1.000000e+00 : f32
      %330 = vector.broadcast %cst_106 : f32 to vector<2x16xf32>
      %331 = arith.subf %330, %303 : vector<2x16xf32>
      %332 = arith.mulf %331, %308 : vector<2x16xf32>
      %333 = arith.mulf %303, %arg16 : vector<2x16xf32>
      %334 = arith.addf %332, %333 : vector<2x16xf32>
      %cst_107 = arith.constant 1.000000e+00 : f32
      %335 = vector.broadcast %cst_107 : f32 to vector<2x16xf32>
      %336 = arith.subf %335, %324 : vector<2x16xf32>
      %337 = arith.mulf %336, %329 : vector<2x16xf32>
      %338 = arith.mulf %324, %arg17 : vector<2x16xf32>
      %339 = arith.addf %337, %338 : vector<2x16xf32>
      %340 = arith.index_cast %arg15 : i32 to index
      %c0_108 = arith.constant 0 : index
      %c0_109 = arith.constant 0 : index
      %341 = vector.load %arg13[%340, %c0_108, %c0_109] : memref<16x2x16xf32, #tpu.memory_space<vmem>>, vector<1x2x16xf32>
      %342 = vector.shape_cast %341 : vector<1x2x16xf32> to vector<2x16xf32>
      %343 = vector.shape_cast %334 : vector<2x16xf32> to vector<1x2x16xf32>
      tpu.vector_store %arg13[%340, %c0_108, %c0_109], %343 {strides = array<i32>} : memref<16x2x16xf32, #tpu.memory_space<vmem>>, vector<1x2x16xf32>,
      %c15_i32_110 = arith.constant 15 : i32
      %344 = arith.subi %c15_i32_110, %arg15 : i32
      %345 = arith.index_cast %344 : i32 to index
      %c0_111 = arith.constant 0 : index
      %c0_112 = arith.constant 0 : index
      %346 = vector.load %arg14[%345, %c0_111, %c0_112] : memref<16x2x16xf32, #tpu.memory_space<vmem>>, vector<1x2x16xf32>
      %347 = vector.shape_cast %346 : vector<1x2x16xf32> to vector<2x16xf32>
      %348 = vector.shape_cast %339 : vector<2x16xf32> to vector<1x2x16xf32>
      tpu.vector_store %arg14[%345, %c0_111, %c0_112], %348 {strides = array<i32>} : memref<16x2x16xf32, #tpu.memory_space<vmem>>, vector<1x2x16xf32>,
      scf.yield %334, %339 : vector<2x16xf32>, vector<2x16xf32>
    }
    %c16_i32_82 = arith.constant 16 : i32
    %c1_83 = arith.constant 1 : index
    %c0_84 = arith.constant 0 : index
    %c0_85 = arith.constant 0 : index
    %247 = vector.load %arg2[%c1_83, %c0_84, %c0_85] : memref<2x32x16xf32, #tpu.memory_space<vmem>>, vector<1x32x16xf32>
    %248 = vector.shape_cast %247 : vector<1x32x16xf32> to vector<32x16xf32>
    %c0_86 = arith.constant 0 : index
    %c0_87 = arith.constant 0 : index
    %c0_88 = arith.constant 0 : index
    %249 = vector.load %arg13[%c0_86, %c0_87, %c0_88] : memref<16x2x16xf32, #tpu.memory_space<vmem>>, vector<16x2x16xf32>
    %250 = vector.shape_cast %249 : vector<16x2x16xf32> to vector<32x16xf32>
    %251 = vector.extract_strided_slice %248 {offsets = [0, 0], sizes = [16, 16], strides = [1, 1]} : vector<32x16xf32> to vector<16x16xf32>
    %252 = arith.truncf %250 : vector<32x16xf32> to vector<32x16xbf16>
    %253 = arith.truncf %251 : vector<16x16xf32> to vector<16x16xbf16>
    %cst_89 = arith.constant dense<0.000000e+00> : vector<32x16xf32>
    %254 = tpu.matmul %252, %253, %cst_89 {dimension_numbers = #tpu.dot_dimension_numbers<[1], [0], [0], [1], [0, 0, 1, 1], [], []>} : vector<32x16xbf16>, vector<16x16xbf16>, vector<32x16xf32> -> vector<32x16xf32>
    %c0_90 = arith.constant 0 : index
    %c0_91 = arith.constant 0 : index
    %c0_92 = arith.constant 0 : index
    %255 = vector.load %arg14[%c0_90, %c0_91, %c0_92] : memref<16x2x16xf32, #tpu.memory_space<vmem>>, vector<16x2x16xf32>
    %256 = vector.shape_cast %255 : vector<16x2x16xf32> to vector<32x16xf32>
    %257 = vector.extract_strided_slice %248 {offsets = [16, 0], sizes = [16, 16], strides = [1, 1]} : vector<32x16xf32> to vector<16x16xf32>
    %258 = arith.truncf %256 : vector<32x16xf32> to vector<32x16xbf16>
    %259 = arith.truncf %257 : vector<16x16xf32> to vector<16x16xbf16>
    %cst_93 = arith.constant dense<0.000000e+00> : vector<32x16xf32>
    %260 = tpu.matmul %258, %259, %cst_93 {dimension_numbers = #tpu.dot_dimension_numbers<[1], [0], [0], [1], [0, 0, 1, 1], [], []>} : vector<32x16xbf16>, vector<16x16xbf16>, vector<32x16xf32> -> vector<32x16xf32>
    %261 = arith.addf %254, %260 : vector<32x16xf32>
    %262 = vector.extract_strided_slice %0 {offsets = [13, 0], sizes = [1, 16], strides = [1, 1]} : vector<14x128xf32> to vector<1x16xf32>
    %263 = vector.broadcast %262 : vector<1x16xf32> to vector<32x16xf32>
    %264 = arith.addf %261, %263 : vector<32x16xf32>
    %265 = arith.addf %13, %264 : vector<32x16xf32>
    %266 = vector.broadcast %1 : vector<32x1xf32> to vector<32x16xf32>
    %267 = arith.mulf %265, %266 : vector<32x16xf32>
    %c0_94 = arith.constant 0 : index
    %c0_95 = arith.constant 0 : index
    %268 = vector.load %arg11[%c0_94, %c0_95] : memref<32x16xf32, #tpu.memory_space<vmem>>, vector<32x16xf32>
    tpu.vector_store %arg11[%c0_94, %c0_95], %267 {strides = array<i32>} : memref<32x16xf32, #tpu.memory_space<vmem>>, vector<32x16xf32>,
    return
  }
}

</mosaic_0001>

<llo_original>
// kernel: sub.1
$region0: #{sub.1}
  #allocation0 [shape = 's32[1]{0}', space=sflag, size = 0x4, scoped, tag = 'scoped memory for sub.1']
  %s0 = inlined_call_operand.vmem [shape: s32[2,8], index: 0, kind: input, shape index: {}]
  %s1 = inlined_call_operand.vmem [shape: s32[2,8], index: 1, kind: input, shape index: {}]
  %s2 = inlined_call_operand.vmem [shape: s32[2,8], index: 2, kind: output, shape index: {}]
  %v3 = vld [vmem:[%s0] sm:$0x3]
  %v4 = vld [vmem:[%s1] sm:$0x3]
  %5 = xla_tuple %v3, %v4
  %6 = xla_tuple %5
  %v7 = vsub.s32 %v3, %v4
  %8 = xla_tuple %v7
  %9 = vst [vmem:[%s2] sm:$0x3] %v7

// kernel: fastspeech_forward.4
$region0: #{fastspeech_forward.4}
  #allocation0 [shape = 'u32[]', space=smem, size = 0x4, offset = 0x4, fixed_abs, tag = 'smem constant byte address 0x4 - core index']
  #allocation1 [shape = 'u32[144,128]{1,0:T(1,128)}', space=vmem, size = 0x12000, scoped, tag = 'internal scratch']
  %s0 = inlined_call_operand.vmem [shape: f32[2,16,8], index: 0, kind: input, shape index: {}]
  %s1 = inlined_call_operand.vmem [shape: f32[2,8,32], index: 1, kind: input, shape index: {}]
  %s2 = inlined_call_operand.vmem [shape: f32[2,16,32], index: 2, kind: input, shape index: {}]
  %s3 = inlined_call_operand.vmem [shape: f32[2,1,16], index: 3, kind: input, shape index: {}]
  %s4 = inlined_call_operand.vmem [shape: f32[2,16,1], index: 4, kind: input, shape index: {}]
  %s5 = inlined_call_operand.vmem [shape: f32[2,32,96], index: 5, kind: input, shape index: {}]
  %s6 = inlined_call_operand.vmem [shape: f32[2,32,32], index: 6, kind: input, shape index: {}]
  %s7 = inlined_call_operand.vmem [shape: f32[2,96,64], index: 7, kind: input, shape index: {}]
  %s8 = inlined_call_operand.vmem [shape: f32[2,64,32], index: 8, kind: input, shape index: {}]
  %s9 = inlined_call_operand.vmem [shape: f32[2,8,96], index: 9, kind: input, shape index: {}]
  %s10 = inlined_call_operand.vmem [shape: f32[2,16,32], index: 10, kind: output, shape index: {}]
  %s11 = sld [smem:[#allocation0]]
  $region50: #{fastspeech_forward.4} parent=0
    _
  %s13 = ssub.s32 1, %s11
  %s14 = scalar_select 0, %s13, %s11
  // Predicated region
  $region2: #{fastspeech_forward.4} parent=0 // pred_check
    _
  $region3: #{fastspeech_forward.4} parent=0 // pred_check_branch
    %16 = sbr.rel (0) target = $region5
  $region4: #{fastspeech_forward.4} parent=0 // pred_region
    _
  $region5: #{fastspeech_forward.4} parent=0 // pred_fallthru
    _
  // Predicated region
  $region6: #{fastspeech_forward.4} parent=0 // pred_check
    _
  $region7: #{fastspeech_forward.4} parent=0 // pred_check_branch
    %18 = sbr.rel (0) target = $region9
  $region8: #{fastspeech_forward.4} parent=0 // pred_region
    _
  $region9: #{fastspeech_forward.4} parent=0 // pred_fallthru
    _
  // Predicated region
  $region10: #{fastspeech_forward.4} parent=0 // pred_check
    _
  $region11: #{fastspeech_forward.4} parent=0 // pred_check_branch
    %20 = sbr.rel (0) target = $region13
  $region12: #{fastspeech_forward.4} parent=0 // pred_region
    _
  $region13: #{fastspeech_forward.4} parent=0 // pred_fallthru
    _
  // Predicated region
  $region14: #{fastspeech_forward.4} parent=0 // pred_check
    _
  $region15: #{fastspeech_forward.4} parent=0 // pred_check_branch
    %22 = sbr.rel (0) target = $region17
  $region16: #{fastspeech_forward.4} parent=0 // pred_region
    _
  $region17: #{fastspeech_forward.4} parent=0 // pred_fallthru
    _
  // Predicated region
  $region18: #{fastspeech_forward.4} parent=0 // pred_check
    _
  $region19: #{fastspeech_forward.4} parent=0 // pred_check_branch
    %24 = sbr.rel (0) target = $region21
  $region20: #{fastspeech_forward.4} parent=0 // pred_region
    _
  $region21: #{fastspeech_forward.4} parent=0 // pred_fallthru
    _
  // Predicated region
  $region22: #{fastspeech_forward.4} parent=0 // pred_check
    _
  $region23: #{fastspeech_forward.4} parent=0 // pred_check_branch
    %26 = sbr.rel (0) target = $region25
  $region24: #{fastspeech_forward.4} parent=0 // pred_region
    _
  $region25: #{fastspeech_forward.4} parent=0 // pred_fallthru
    _
  // Predicated region
  $region26: #{fastspeech_forward.4} parent=0 // pred_check
    _
  $region27: #{fastspeech_forward.4} parent=0 // pred_check_branch
    %28 = sbr.rel (0) target = $region29
  $region28: #{fastspeech_forward.4} parent=0 // pred_region
    _
  $region29: #{fastspeech_forward.4} parent=0 // pred_fallthru
    _
  // Predicated region
  $region30: #{fastspeech_forward.4} parent=0 // pred_check
    _
  $region31: #{fastspeech_forward.4} parent=0 // pred_check_branch
    %30 = sbr.rel (0) target = $region33
  $region32: #{fastspeech_forward.4} parent=0 // pred_region
    _
  $region33: #{fastspeech_forward.4} parent=0 // pred_fallthru
    _
  // Predicated region
  $region34: #{fastspeech_forward.4} parent=0 // pred_check
    _
  $region35: #{fastspeech_forward.4} parent=0 // pred_check_branch
    %32 = sbr.rel (0) target = $region37
  $region36: #{fastspeech_forward.4} parent=0 // pred_region
    _
  $region37: #{fastspeech_forward.4} parent=0 // pred_fallthru
    _
  // Predicated region
  $region38: #{fastspeech_forward.4} parent=0 // pred_check
    _
  $region39: #{fastspeech_forward.4} parent=0 // pred_check_branch
    %34 = sbr.rel (0) target = $region41
  $region40: #{fastspeech_forward.4} parent=0 // pred_region
    _
  $region41: #{fastspeech_forward.4} parent=0 // pred_fallthru
    _
  %v36 = vld [vmem:[%s0] sm:$0xff]
  %v37 = vld [vmem:[%s0 + $0x8] sm:$0xff]
  %v38 = vld [vmem:[%s0 + $0x10] sm:$0xff]
  %v39 = vld [vmem:[%s0 + $0x18] sm:$0xff]
  %v40 = vld [vmem:[%s1] sm:$0xff]
  %v41 = vld [vmem:[%s1 + $0x8] sm:$0xff]
  %v42 = vpack.c.bf16 %v37, %v36
  %v43 = vpack.c.bf16 %v39, %v38
  %v44 = vpack.c.bf16 %v40, %v40
  %v45 = vpack.c.bf16 %v41, %v41
  %v46 = vld [vmem:[%s2] sm:$0xff]
  %v47 = vld [vmem:[%s2 + $0x8] sm:$0xff]
  %v48 = vld [vmem:[%s2 + $0x10] sm:$0xff]
  %v49 = vld [vmem:[%s2 + $0x18] sm:$0xff]
  %vm50 = vcmask 64512
  %v52 = vsel %vm50, %v42, 0
  %vm54 = vcmask 1043456
  %v56 = vsel %vm54, %v44, 0
  %58 = vmatprep.subr.bf16.mxu0 0
  %59 = vmatpush1.bf16.msra.mxu0 0
  %60 = vmatprep.subr.bf16.mxu0 0
  %61 = vmatpush1.bf16.msra.mxu0 0
  %62 = vmatprep.subr.bf16.mxu0 0
  %63 = vmatpush1.bf16.msra.mxu0 0
  %64 = vmatprep.subr.bf16.mxu0 0
  %65 = vmatpush1.bf16.msra.mxu0 0
  %66 = vmatprep.subr.bf16.mxu0 0
  %67 = vmatpush1.bf16.msra.mxu0 0
  %68 = vmatprep.subr.bf16.mxu0 0
  %69 = vmatpush1.bf16.msra.mxu0 0
  %70 = vmatprep.subr.bf16.mxu0 0
  %71 = vmatpush1.bf16.msra.mxu0 0
  %72 = vmatprep.subr.bf16.mxu0 0
  %73 = vmatpush1.bf16.msra.mxu0 %v56
  %74 = vmatprep.subr.bf16.mxu0 0
  %75 = vmatpush2.bf16.msra.mxu0 0
  %76 = vmatprep.subr.bf16.mxu0 0
  %77 = vmatpush2.bf16.msra.mxu0 0
  %78 = vmatprep.subr.bf16.mxu0 0
  %79 = vmatpush2.bf16.msra.mxu0 0
  %80 = vmatprep.subr.bf16.mxu0 0
  %81 = vmatpush2.bf16.msra.mxu0 0
  %82 = vmatprep.subr.bf16.mxu0 0
  %83 = vmatpush2.bf16.msra.mxu0 0
  %84 = vmatprep.subr.bf16.mxu0 0
  %85 = vmatpush2.bf16.msra.mxu0 0
  %86 = vmatprep.subr.bf16.mxu0 0
  %87 = vmatpush2.bf16.msra.mxu0 0
  %88 = vmatprep.subr.bf16.mxu0 0
  %89 = vmatpush2.bf16.msra.mxu0 0
  %90 = vmatprep.mubr.bf16.mxu0 0
  %91 = vmatmul.mubr.bf16.gmra.mxu0 %v52
  %v92 = vpop.f32.mrf.mxu0
  %v93 = vadd.f32 %v46, %v92
  %v94 = vpop.f32.mrf.mxu0
  %v95 = vpop.f32.mrf.mxu0
  %v96 = vadd.f32 %v47, %v95
  %v97 = vpop.f32.mrf.mxu0
  %98 = vdwg.mxu0
  %v100 = vsel %vm50, %v43, 0
  %v103 = vsel %vm54, %v45, 0
  %105 = vmatprep.subr.bf16.mxu0 0
  %106 = vmatpush1.bf16.msra.mxu0 0
  %107 = vmatprep.subr.bf16.mxu0 0
  %108 = vmatpush1.bf16.msra.mxu0 0
  %109 = vmatprep.subr.bf16.mxu0 0
  %110 = vmatpush1.bf16.msra.mxu0 0
  %111 = vmatprep.subr.bf16.mxu0 0
  %112 = vmatpush1.bf16.msra.mxu0 0
  %113 = vmatprep.subr.bf16.mxu0 0
  %114 = vmatpush1.bf16.msra.mxu0 0
  %115 = vmatprep.subr.bf16.mxu0 0
  %116 = vmatpush1.bf16.msra.mxu0 0
  %117 = vmatprep.subr.bf16.mxu0 0
  %118 = vmatpush1.bf16.msra.mxu0 0
  %119 = vmatprep.subr.bf16.mxu0 0
  %120 = vmatpush1.bf16.msra.mxu0 %v103
  %121 = vmatprep.subr.bf16.mxu0 0
  %122 = vmatpush2.bf16.msra.mxu0 0
  %123 = vmatprep.subr.bf16.mxu0 0
  %124 = vmatpush2.bf16.msra.mxu0 0
  %125 = vmatprep.subr.bf16.mxu0 0
  %126 = vmatpush2.bf16.msra.mxu0 0
  %127 = vmatprep.subr.bf16.mxu0 0
  %128 = vmatpush2.bf16.msra.mxu0 0
  %129 = vmatprep.subr.bf16.mxu0 0
  %130 = vmatpush2.bf16.msra.mxu0 0
  %131 = vmatprep.subr.bf16.mxu0 0
  %132 = vmatpush2.bf16.msra.mxu0 0
  %133 = vmatprep.subr.bf16.mxu0 0
  %134 = vmatpush2.bf16.msra.mxu0 0
  %135 = vmatprep.subr.bf16.mxu0 0
  %136 = vmatpush2.bf16.msra.mxu0 0
  %137 = vmatprep.mubr.bf16.mxu0 0
  %138 = vmatmul.mubr.bf16.gmra.mxu0 %v100
  %v139 = vpop.f32.mrf.mxu0
  %v140 = vadd.f32 %v48, %v139
  %v141 = vpop.f32.mrf.mxu0
  %v142 = vpop.f32.mrf.mxu0
  %v143 = vadd.f32 %v49, %v142
  %v144 = vpop.f32.mrf.mxu0
  %145 = vdwg.mxu0
  %v146 = vld [vmem:[%s3] sm:$0x1]
  %v147 = vld [vmem:[%s3 + $0x1] sm:$0x1]
  %v148 = vld [vmem:[%s4] sm:$0xff]
  %v149 = vld [vmem:[%s4 + $0x8] sm:$0xff]
  %v150 = vld [vmem:[%s4 + $0x10] sm:$0xff]
  %v151 = vld [vmem:[%s4 + $0x18] sm:$0xff]
  %v152 = vld [vmem:[%s5] sm:$0xff]
  %v153 = vld [vmem:[%s5 + $0x8] sm:$0xff]
  %v154 = vld [vmem:[%s5 + $0x10] sm:$0xff]
  %v155 = vld [vmem:[%s5 + $0x18] sm:$0xff]
  %v156 = vld [vmem:[%s6] sm:$0xff]
  %v157 = vld [vmem:[%s6 + $0x8] sm:$0xff]
  %v158 = vld [vmem:[%s6 + $0x10] sm:$0xff]
  %v159 = vld [vmem:[%s6 + $0x18] sm:$0xff]
  %v160 = vld [vmem:[%s7] sm:$0xff]
  %v161 = vld [vmem:[%s7 + $0x8] sm:$0xff]
  %v162 = vld [vmem:[%s7 + $0x10] sm:$0xff]
  %v163 = vld [vmem:[%s7 + $0x18] sm:$0xff]
  %v164 = vld [vmem:[%s7 + $0x20] sm:$0xff]
  %v165 = vld [vmem:[%s7 + $0x28] sm:$0xff]
  %v166 = vld [vmem:[%s7 + $0x30] sm:$0xff]
  %v167 = vld [vmem:[%s7 + $0x38] sm:$0xff]
  %v168 = vld [vmem:[%s7 + $0x40] sm:$0xff]
  %v169 = vld [vmem:[%s7 + $0x48] sm:$0xff]
  %v170 = vld [vmem:[%s7 + $0x50] sm:$0xff]
  %v171 = vld [vmem:[%s7 + $0x58] sm:$0xff]
  %v172 = vld [vmem:[%s8] sm:$0xff]
  %v173 = vld [vmem:[%s8 + $0x8] sm:$0xff]
  %v174 = vld [vmem:[%s8 + $0x10] sm:$0xff]
  %v175 = vld [vmem:[%s8 + $0x18] sm:$0xff]
  %v176 = vld [vmem:[%s8 + $0x20] sm:$0xff]
  %v177 = vld [vmem:[%s8 + $0x28] sm:$0xff]
  %v178 = vld [vmem:[%s8 + $0x30] sm:$0xff]
  %v179 = vld [vmem:[%s8 + $0x38] sm:$0xff]
  %v180 = vld [vmem:[%s9] sm:$0xff]
  %v181 = vpack.c.bf16 %v96, %v93
  %v182 = vpack.c.bf16 %v143, %v140
  %v183 = vpack.c.bf16 %v153, %v152
  %v184 = vpack.c.bf16 %v155, %v154
  %v185 = vlaneseq
  %v186 = vshrl.u32 %v185, 7
  %v187 = vsub.s32 0, %v186
  %v188 = vrot.slane %v180, %v187
  %vm189 = vcmask 261120
  %v191 = vsel %vm189, %v181, 0
  %v194 = vsel %vm189, %v182, 0
  %196 = vmatprep.subr.bf16.mxu0 0
  %197 = vmatpush1.bf16.msra.mxu0 0
  %198 = vmatprep.subr.bf16.mxu0 0
  %199 = vmatpush1.bf16.msra.mxu0 0
  %200 = vmatprep.subr.bf16.mxu0 0
  %201 = vmatpush1.bf16.msra.mxu0 0
  %202 = vmatprep.subr.bf16.mxu0 0
  %203 = vmatpush1.bf16.msra.mxu0 0
  %204 = vmatprep.subr.bf16.mxu0 0
  %205 = vmatpush1.bf16.msra.mxu0 0
  %206 = vmatprep.subr.bf16.mxu0 0
  %207 = vmatpush1.bf16.msra.mxu0 0
  %208 = vmatprep.subr.bf16.mxu0 0
  %209 = vmatpush1.bf16.msra.mxu0 %v184
  %210 = vmatprep.subr.bf16.mxu0 0
  %211 = vmatpush1.bf16.msra.mxu0 %v183
  %212 = vmatprep.subr.bf16.mxu0 0
  %213 = vmatpush2.bf16.msra.mxu0 0
  %214 = vmatprep.subr.bf16.mxu0 0
  %215 = vmatpush2.bf16.msra.mxu0 0
  %216 = vmatprep.subr.bf16.mxu0 0
  %217 = vmatpush2.bf16.msra.mxu0 0
  %218 = vmatprep.subr.bf16.mxu0 0
  %219 = vmatpush2.bf16.msra.mxu0 0
  %220 = vmatprep.subr.bf16.mxu0 0
  %221 = vmatpush2.bf16.msra.mxu0 0
  %222 = vmatprep.subr.bf16.mxu0 0
  %223 = vmatpush2.bf16.msra.mxu0 0
  %224 = vmatprep.subr.bf16.mxu0 0
  %225 = vmatpush2.bf16.msra.mxu0 0
  %226 = vmatprep.subr.bf16.mxu0 0
  %227 = vmatpush2.bf16.msra.mxu0 0
  %228 = vmatprep.mubr.bf16.mxu0 0
  %229 = vmatmul.mubr.bf16.gmra.mxu0 %v191
  %v230 = vpop.f32.mrf.mxu0
  %v231 = vadd.f32 %v188, %v230
  %v232 = vpop.f32.mrf.mxu0
  %v233 = vpop.f32.mrf.mxu0
  %v234 = vadd.f32 %v188, %v233
  %v235 = vpop.f32.mrf.mxu0
  %236 = vmatprep.mubr.bf16.mxu0 0
  %237 = vmatmul.mubr.bf16.gmra.mxu0 %v194
  %v238 = vpop.f32.mrf.mxu0
  %v239 = vadd.f32 %v188, %v238
  %v240 = vpop.f32.mrf.mxu0
  %v241 = vpop.f32.mrf.mxu0
  %v242 = vadd.f32 %v188, %v241
  %v243 = vpop.f32.mrf.mxu0
  %244 = vdwg.mxu0
  %v245 = vpack.c.bf16 %v234, %v231
  %v246 = vpack.c.bf16 %v242, %v239
  %248 = vrot.lane.b32.xlu0 %v245, 96
  %v249 = vpop.permute.xlu0 %248
  %vm250 = vcmask 130048
  %v252 = vsel %vm250, %v245, 0
  %v255 = vsel %vm250, %v249, 0
  %257 = vmatprep.subr.bf16.mxu0 0
  %258 = vmatpush1.bf16.xpose.msra.mxu0 0
  %259 = vmatprep.subr.bf16.mxu0 0
  %260 = vmatpush1.bf16.xpose.msra.mxu0 0
  %261 = vmatprep.subr.bf16.mxu0 0
  %262 = vmatpush1.bf16.xpose.msra.mxu0 0
  %263 = vmatprep.subr.bf16.mxu0 0
  %264 = vmatpush1.bf16.xpose.msra.mxu0 0
  %265 = vmatprep.subr.bf16.mxu0 0
  %266 = vmatpush1.bf16.xpose.msra.mxu0 0
  %267 = vmatprep.subr.bf16.mxu0 0
  %268 = vmatpush1.bf16.xpose.msra.mxu0 0
  %269 = vmatprep.subr.bf16.mxu0 0
  %270 = vmatpush1.bf16.xpose.msra.mxu0 0
  %271 = vmatprep.subr.bf16.mxu0 0
  %272 = vmatpush1.bf16.xpose.msra.mxu0 %v255
  %273 = vmatprep.subr.bf16.mxu0 0
  %274 = vmatpush2.bf16.xpose.msra.mxu0 0
  %275 = vmatprep.subr.bf16.mxu0 0
  %276 = vmatpush2.bf16.xpose.msra.mxu0 0
  %277 = vmatprep.subr.bf16.mxu0 0
  %278 = vmatpush2.bf16.xpose.msra.mxu0 0
  %279 = vmatprep.subr.bf16.mxu0 0
  %280 = vmatpush2.bf16.xpose.msra.mxu0 0
  %281 = vmatprep.subr.bf16.mxu0 0
  %282 = vmatpush2.bf16.xpose.msra.mxu0 0
  %283 = vmatprep.subr.bf16.mxu0 0
  %284 = vmatpush2.bf16.xpose.msra.mxu0 0
  %285 = vmatprep.subr.bf16.mxu0 0
  %286 = vmatpush2.bf16.xpose.msra.mxu0 0
  %287 = vmatprep.subr.bf16.mxu0 0
  %288 = vmatpush2.bf16.xpose.msra.mxu0 0
  %289 = vmatprep.mubr.bf16.mxu0 0
  %290 = vmatmul.mubr.bf16.gmra.mxu0 %v252
  %v291 = vpop.f32.mrf.mxu0
  %v292 = vadd.f32 0.0, %v291
  %v293 = vpop.f32.mrf.mxu0
  %v294 = vpop.f32.mrf.mxu0
  %v295 = vadd.f32 0.0, %v294
  %v296 = vpop.f32.mrf.mxu0
  %297 = vdwg.mxu0
  %299 = vrot.lane.b32.xlu0 %v246, 96
  %v300 = vpop.permute.xlu0 %299
  %v302 = vsel %vm250, %v246, 0
  %v305 = vsel %vm250, %v300, 0
  %307 = vmatprep.subr.bf16.mxu0 0
  %308 = vmatpush1.bf16.xpose.msra.mxu0 0
  %309 = vmatprep.subr.bf16.mxu0 0
  %310 = vmatpush1.bf16.xpose.msra.mxu0 0
  %311 = vmatprep.subr.bf16.mxu0 0
  %312 = vmatpush1.bf16.xpose.msra.mxu0 0
  %313 = vmatprep.subr.bf16.mxu0 0
  %314 = vmatpush1.bf16.xpose.msra.mxu0 0
  %315 = vmatprep.subr.bf16.mxu0 0
  %316 = vmatpush1.bf16.xpose.msra.mxu0 0
  %317 = vmatprep.subr.bf16.mxu0 0
  %318 = vmatpush1.bf16.xpose.msra.mxu0 0
  %319 = vmatprep.subr.bf16.mxu0 0
  %320 = vmatpush1.bf16.xpose.msra.mxu0 0
  %321 = vmatprep.subr.bf16.mxu0 0
  %322 = vmatpush1.bf16.xpose.msra.mxu0 %v305
  %323 = vmatprep.subr.bf16.mxu0 0
  %324 = vmatpush2.bf16.xpose.msra.mxu0 0
  %325 = vmatprep.subr.bf16.mxu0 0
  %326 = vmatpush2.bf16.xpose.msra.mxu0 0
  %327 = vmatprep.subr.bf16.mxu0 0
  %328 = vmatpush2.bf16.xpose.msra.mxu0 0
  %329 = vmatprep.subr.bf16.mxu0 0
  %330 = vmatpush2.bf16.xpose.msra.mxu0 0
  %331 = vmatprep.subr.bf16.mxu0 0
  %332 = vmatpush2.bf16.xpose.msra.mxu0 0
  %333 = vmatprep.subr.bf16.mxu0 0
  %334 = vmatpush2.bf16.xpose.msra.mxu0 0
  %335 = vmatprep.subr.bf16.mxu0 0
  %336 = vmatpush2.bf16.xpose.msra.mxu0 0
  %337 = vmatprep.subr.bf16.mxu0 0
  %338 = vmatpush2.bf16.xpose.msra.mxu0 0
  %339 = vmatprep.mubr.bf16.mxu0 0
  %340 = vmatmul.mubr.bf16.gmra.mxu0 %v302
  %v341 = vpop.f32.mrf.mxu0
  %v342 = vadd.f32 0.0, %v341
  %v343 = vpop.f32.mrf.mxu0
  %v344 = vpop.f32.mrf.mxu0
  %v345 = vadd.f32 0.0, %v344
  %v346 = vpop.f32.mrf.mxu0
  %347 = vdwg.mxu0
  %v348 = vmul.f32 %v292, 0.25
  %v349 = vmul.f32 %v295, 0.25
  %v350 = vmul.f32 %v342, 0.25
  %v351 = vmul.f32 %v345, 0.25
  %v354 = vlaneseq
  %v355 = vshrl.u32 %v354, 7
  %v356 = vsub.s32 0, %v355
  %v357 = vrot.slane %v146, %v356
  %v358 = vlaneseq
  %v359 = vshrl.u32 %v358, 7
  %v360 = vsub.s32 0, %v359
  %v361 = vrot.slane %v147, %v360
  %v364 = vadd.f32 %v348, %v357
  %v365 = vadd.f32 %v349, %v357
  %v366 = vadd.f32 %v350, %v361
  %v367 = vadd.f32 %v351, %v361
  %v368 = vsel %vm250, %v364, -inf
  %369 = vmax.xlane.f32.xlu0 %v368
  %v370 = vpop.xlane.xlu0 %369
  %v371 = vsel %vm250, %v365, -inf
  %372 = vmax.xlane.f32.xlu0 %v371
  %v373 = vpop.xlane.xlu0 %372
  %v374 = vsel %vm250, %v366, -inf
  %375 = vmax.xlane.f32.xlu0 %v374
  %v376 = vpop.xlane.xlu0 %375
  %v377 = vsel %vm250, %v367, -inf
  %378 = vmax.xlane.f32.xlu0 %v377
  %v379 = vpop.xlane.xlu0 %378
  %v380 = vsub.f32 %v364, %v370
  %v381 = vsub.f32 %v365, %v373
  %v382 = vsub.f32 %v366, %v376
  %v383 = vsub.f32 %v367, %v379
  %v384 = vmul.f32 %v380, 1.442695
  %v385 = vpow.pop %v384
  %v386 = vmul.f32 %v381, 1.442695
  %v387 = vpow.pop %v386
  %v388 = vmul.f32 %v382, 1.442695
  %v389 = vpow.pop %v388
  %v390 = vmul.f32 %v383, 1.442695
  %v391 = vpow.pop %v390
  %v392 = vsel %vm250, %v385, 0.0
  %393 = vadd.xlane.f32.xlu0 %v392
  %v394 = vpop.xlane.xlu0 %393
  %v395 = vsel %vm250, %v387, 0.0
  %396 = vadd.xlane.f32.xlu0 %v395
  %v397 = vpop.xlane.xlu0 %396
  %v398 = vsel %vm250, %v389, 0.0
  %399 = vadd.xlane.f32.xlu0 %v398
  %v400 = vpop.xlane.xlu0 %399
  %v401 = vsel %vm250, %v391, 0.0
  %402 = vadd.xlane.f32.xlu0 %v401
  %v403 = vpop.xlane.xlu0 %402
  %v404 = vrcp.pop %v394
  %v405 = vrcp.pop %v397
  %v406 = vrcp.pop %v400
  %v407 = vrcp.pop %v403
  %v408 = vmul.f32 %v385, %v404
  %v409 = vmul.f32 %v387, %v405
  %v410 = vmul.f32 %v389, %v406
  %v411 = vmul.f32 %v391, %v407
  %v412 = vpack.c.bf16 %v409, %v408
  %v413 = vpack.c.bf16 %v411, %v410
  %414 = vrot.lane.b32.xlu0 %v245, 64
  %v415 = vpop.permute.xlu0 %414
  %v418 = vsel %vm250, %v412, 0
  %420 = vmatprep.subr.bf16.mxu0 0
  %421 = vmatpush1.bf16.msra.mxu0 0
  %422 = vmatprep.subr.bf16.mxu0 0
  %423 = vmatpush1.bf16.msra.mxu0 0
  %424 = vmatprep.subr.bf16.mxu0 0
  %425 = vmatpush1.bf16.msra.mxu0 0
  %426 = vmatprep.subr.bf16.mxu0 0
  %427 = vmatpush1.bf16.msra.mxu0 0
  %428 = vmatprep.subr.bf16.mxu0 0
  %429 = vmatpush1.bf16.msra.mxu0 0
  %430 = vmatprep.subr.bf16.mxu0 0
  %431 = vmatpush1.bf16.msra.mxu0 0
  %432 = vmatprep.subr.bf16.mxu0 0
  %433 = vmatpush1.bf16.msra.mxu0 0
  %434 = vmatprep.subr.bf16.mxu0 0
  %435 = vmatpush1.bf16.msra.mxu0 %v415
  %436 = vmatprep.subr.bf16.mxu0 0
  %437 = vmatpush2.bf16.msra.mxu0 0
  %438 = vmatprep.subr.bf16.mxu0 0
  %439 = vmatpush2.bf16.msra.mxu0 0
  %440 = vmatprep.subr.bf16.mxu0 0
  %441 = vmatpush2.bf16.msra.mxu0 0
  %442 = vmatprep.subr.bf16.mxu0 0
  %443 = vmatpush2.bf16.msra.mxu0 0
  %444 = vmatprep.subr.bf16.mxu0 0
  %445 = vmatpush2.bf16.msra.mxu0 0
  %446 = vmatprep.subr.bf16.mxu0 0
  %447 = vmatpush2.bf16.msra.mxu0 0
  %448 = vmatprep.subr.bf16.mxu0 0
  %449 = vmatpush2.bf16.msra.mxu0 0
  %450 = vmatprep.subr.bf16.mxu0 0
  %451 = vmatpush2.bf16.msra.mxu0 0
  %452 = vmatprep.mubr.bf16.mxu0 0
  %453 = vmatmul.mubr.bf16.gmra.mxu0 %v418
  %v454 = vpop.f32.mrf.mxu0
  %v455 = vadd.f32 0.0, %v454
  %v456 = vpop.f32.mrf.mxu0
  %v457 = vpop.f32.mrf.mxu0
  %v458 = vadd.f32 0.0, %v457
  %v459 = vpop.f32.mrf.mxu0
  %460 = vdwg.mxu0
  %461 = vrot.lane.b32.xlu0 %v246, 64
  %v462 = vpop.permute.xlu0 %461
  %v465 = vsel %vm250, %v413, 0
  %467 = vmatprep.subr.bf16.mxu0 0
  %468 = vmatpush1.bf16.msra.mxu0 0
  %469 = vmatprep.subr.bf16.mxu0 0
  %470 = vmatpush1.bf16.msra.mxu0 0
  %471 = vmatprep.subr.bf16.mxu0 0
  %472 = vmatpush1.bf16.msra.mxu0 0
  %473 = vmatprep.subr.bf16.mxu0 0
  %474 = vmatpush1.bf16.msra.mxu0 0
  %475 = vmatprep.subr.bf16.mxu0 0
  %476 = vmatpush1.bf16.msra.mxu0 0
  %477 = vmatprep.subr.bf16.mxu0 0
  %478 = vmatpush1.bf16.msra.mxu0 0
  %479 = vmatprep.subr.bf16.mxu0 0
  %480 = vmatpush1.bf16.msra.mxu0 0
  %481 = vmatprep.subr.bf16.mxu0 0
  %482 = vmatpush1.bf16.msra.mxu0 %v462
  %483 = vmatprep.subr.bf16.mxu0 0
  %484 = vmatpush2.bf16.msra.mxu0 0
  %485 = vmatprep.subr.bf16.mxu0 0
  %486 = vmatpush2.bf16.msra.mxu0 0
  %487 = vmatprep.subr.bf16.mxu0 0
  %488 = vmatpush2.bf16.msra.mxu0 0
  %489 = vmatprep.subr.bf16.mxu0 0
  %490 = vmatpush2.bf16.msra.mxu0 0
  %491 = vmatprep.subr.bf16.mxu0 0
  %492 = vmatpush2.bf16.msra.mxu0 0
  %493 = vmatprep.subr.bf16.mxu0 0
  %494 = vmatpush2.bf16.msra.mxu0 0
  %495 = vmatprep.subr.bf16.mxu0 0
  %496 = vmatpush2.bf16.msra.mxu0 0
  %497 = vmatprep.subr.bf16.mxu0 0
  %498 = vmatpush2.bf16.msra.mxu0 0
  %499 = vmatprep.mubr.bf16.mxu0 0
  %500 = vmatmul.mubr.bf16.gmra.mxu0 %v465
  %v501 = vpop.f32.mrf.mxu0
  %v502 = vadd.f32 0.0, %v501
  %v503 = vpop.f32.mrf.mxu0
  %v504 = vpop.f32.mrf.mxu0
  %v505 = vadd.f32 0.0, %v504
  %v506 = vpop.f32.mrf.mxu0
  %507 = vdwg.mxu0
  %v508 = vpack.c.bf16 %v458, %v455
  %v509 = vpack.c.bf16 %v505, %v502
  %v510 = vpack.c.bf16 %v157, %v156
  %511 = vrot.lane.b32.xlu0 %v245, 112
  %v512 = vpop.permute.xlu0 %511
  %513 = vrot.lane.b32.xlu0 %v245, 80
  %v514 = vpop.permute.xlu0 %513
  %v516 = vsel %vm250, %v512, 0
  %v519 = vsel %vm250, %v514, 0
  %521 = vmatprep.subr.bf16.mxu0 0
  %522 = vmatpush1.bf16.xpose.msra.mxu0 0
  %523 = vmatprep.subr.bf16.mxu0 0
  %524 = vmatpush1.bf16.xpose.msra.mxu0 0
  %525 = vmatprep.subr.bf16.mxu0 0
  %526 = vmatpush1.bf16.xpose.msra.mxu0 0
  %527 = vmatprep.subr.bf16.mxu0 0
  %528 = vmatpush1.bf16.xpose.msra.mxu0 0
  %529 = vmatprep.subr.bf16.mxu0 0
  %530 = vmatpush1.bf16.xpose.msra.mxu0 0
  %531 = vmatprep.subr.bf16.mxu0 0
  %532 = vmatpush1.bf16.xpose.msra.mxu0 0
  %533 = vmatprep.subr.bf16.mxu0 0
  %534 = vmatpush1.bf16.xpose.msra.mxu0 0
  %535 = vmatprep.subr.bf16.mxu0 0
  %536 = vmatpush1.bf16.xpose.msra.mxu0 %v519
  %537 = vmatprep.subr.bf16.mxu0 0
  %538 = vmatpush2.bf16.xpose.msra.mxu0 0
  %539 = vmatprep.subr.bf16.mxu0 0
  %540 = vmatpush2.bf16.xpose.msra.mxu0 0
  %541 = vmatprep.subr.bf16.mxu0 0
  %542 = vmatpush2.bf16.xpose.msra.mxu0 0
  %543 = vmatprep.subr.bf16.mxu0 0
  %544 = vmatpush2.bf16.xpose.msra.mxu0 0
  %545 = vmatprep.subr.bf16.mxu0 0
  %546 = vmatpush2.bf16.xpose.msra.mxu0 0
  %547 = vmatprep.subr.bf16.mxu0 0
  %548 = vmatpush2.bf16.xpose.msra.mxu0 0
  %549 = vmatprep.subr.bf16.mxu0 0
  %550 = vmatpush2.bf16.xpose.msra.mxu0 0
  %551 = vmatprep.subr.bf16.mxu0 0
  %552 = vmatpush2.bf16.xpose.msra.mxu0 0
  %553 = vmatprep.mubr.bf16.mxu0 0
  %554 = vmatmul.mubr.bf16.gmra.mxu0 %v516
  %v555 = vpop.f32.mrf.mxu0
  %v556 = vadd.f32 0.0, %v555
  %v557 = vpop.f32.mrf.mxu0
  %v558 = vpop.f32.mrf.mxu0
  %v559 = vadd.f32 0.0, %v558
  %v560 = vpop.f32.mrf.mxu0
  %561 = vdwg.mxu0
  %562 = vrot.lane.b32.xlu0 %v246, 112
  %v563 = vpop.permute.xlu0 %562
  %564 = vrot.lane.b32.xlu0 %v246, 80
  %v565 = vpop.permute.xlu0 %564
  %v567 = vsel %vm250, %v563, 0
  %v570 = vsel %vm250, %v565, 0
  %572 = vmatprep.subr.bf16.mxu0 0
  %573 = vmatpush1.bf16.xpose.msra.mxu0 0
  %574 = vmatprep.subr.bf16.mxu0 0
  %575 = vmatpush1.bf16.xpose.msra.mxu0 0
  %576 = vmatprep.subr.bf16.mxu0 0
  %577 = vmatpush1.bf16.xpose.msra.mxu0 0
  %578 = vmatprep.subr.bf16.mxu0 0
  %579 = vmatpush1.bf16.xpose.msra.mxu0 0
  %580 = vmatprep.subr.bf16.mxu0 0
  %581 = vmatpush1.bf16.xpose.msra.mxu0 0
  %582 = vmatprep.subr.bf16.mxu0 0
  %583 = vmatpush1.bf16.xpose.msra.mxu0 0
  %584 = vmatprep.subr.bf16.mxu0 0
  %585 = vmatpush1.bf16.xpose.msra.mxu0 0
  %586 = vmatprep.subr.bf16.mxu0 0
  %587 = vmatpush1.bf16.xpose.msra.mxu0 %v570
  %588 = vmatprep.subr.bf16.mxu0 0
  %589 = vmatpush2.bf16.xpose.msra.mxu0 0
  %590 = vmatprep.subr.bf16.mxu0 0
  %591 = vmatpush2.bf16.xpose.msra.mxu0 0
  %592 = vmatprep.subr.bf16.mxu0 0
  %593 = vmatpush2.bf16.xpose.msra.mxu0 0
  %594 = vmatprep.subr.bf16.mxu0 0
  %595 = vmatpush2.bf16.xpose.msra.mxu0 0
  %596 = vmatprep.subr.bf16.mxu0 0
  %597 = vmatpush2.bf16.xpose.msra.mxu0 0
  %598 = vmatprep.subr.bf16.mxu0 0
  %599 = vmatpush2.bf16.xpose.msra.mxu0 0
  %600 = vmatprep.subr.bf16.mxu0 0
  %601 = vmatpush2.bf16.xpose.msra.mxu0 0
  %602 = vmatprep.subr.bf16.mxu0 0
  %603 = vmatpush2.bf16.xpose.msra.mxu0 0
  %604 = vmatprep.mubr.bf16.mxu0 0
  %605 = vmatmul.mubr.bf16.gmra.mxu0 %v567
  %v606 = vpop.f32.mrf.mxu0
  %v607 = vadd.f32 0.0, %v606
  %v608 = vpop.f32.mrf.mxu0
  %v609 = vpop.f32.mrf.mxu0
  %v610 = vadd.f32 0.0, %v609
  %v611 = vpop.f32.mrf.mxu0
  %612 = vdwg.mxu0
  %v613 = vmul.f32 %v556, 0.25
  %v614 = vmul.f32 %v559, 0.25
  %v615 = vmul.f32 %v607, 0.25
  %v616 = vmul.f32 %v610, 0.25
  %v617 = vadd.f32 %v613, %v357
  %v618 = vadd.f32 %v614, %v357
  %v619 = vadd.f32 %v615, %v361
  %v620 = vadd.f32 %v616, %v361
  %v621 = vsel %vm250, %v617, -inf
  %622 = vmax.xlane.f32.xlu0 %v621
  %v623 = vpop.xlane.xlu0 %622
  %v624 = vsel %vm250, %v618, -inf
  %625 = vmax.xlane.f32.xlu0 %v624
  %v626 = vpop.xlane.xlu0 %625
  %v627 = vsel %vm250, %v619, -inf
  %628 = vmax.xlane.f32.xlu0 %v627
  %v629 = vpop.xlane.xlu0 %628
  %v630 = vsel %vm250, %v620, -inf
  %631 = vmax.xlane.f32.xlu0 %v630
  %v632 = vpop.xlane.xlu0 %631
  %v633 = vsub.f32 %v617, %v623
  %v634 = vsub.f32 %v618, %v626
  %v635 = vsub.f32 %v619, %v629
  %v636 = vsub.f32 %v620, %v632
  %v637 = vmul.f32 %v633, 1.442695
  %v638 = vpow.pop %v637
  %v639 = vmul.f32 %v634, 1.442695
  %v640 = vpow.pop %v639
  %v641 = vmul.f32 %v635, 1.442695
  %v642 = vpow.pop %v641
  %v643 = vmul.f32 %v636, 1.442695
  %v644 = vpow.pop %v643
  %v645 = vsel %vm250, %v638, 0.0
  %646 = vadd.xlane.f32.xlu0 %v645
  %v647 = vpop.xlane.xlu0 %646
  %v648 = vsel %vm250, %v640, 0.0
  %649 = vadd.xlane.f32.xlu0 %v648
  %v650 = vpop.xlane.xlu0 %649
  %v651 = vsel %vm250, %v642, 0.0
  %652 = vadd.xlane.f32.xlu0 %v651
  %v653 = vpop.xlane.xlu0 %652
  %v654 = vsel %vm250, %v644, 0.0
  %655 = vadd.xlane.f32.xlu0 %v654
  %v656 = vpop.xlane.xlu0 %655
  %v657 = vrcp.pop %v647
  %v658 = vrcp.pop %v650
  %v659 = vrcp.pop %v653
  %v660 = vrcp.pop %v656
  %v661 = vmul.f32 %v638, %v657
  %v662 = vmul.f32 %v640, %v658
  %v663 = vmul.f32 %v642, %v659
  %v664 = vmul.f32 %v644, %v660
  %v665 = vpack.c.bf16 %v662, %v661
  %v666 = vpack.c.bf16 %v664, %v663
  %667 = vrot.lane.b32.xlu0 %v245, 48
  %v668 = vpop.permute.xlu0 %667
  %v671 = vsel %vm250, %v665, 0
  %673 = vmatprep.subr.bf16.mxu0 0
  %674 = vmatpush1.bf16.msra.mxu0 0
  %675 = vmatprep.subr.bf16.mxu0 0
  %676 = vmatpush1.bf16.msra.mxu0 0
  %677 = vmatprep.subr.bf16.mxu0 0
  %678 = vmatpush1.bf16.msra.mxu0 0
  %679 = vmatprep.subr.bf16.mxu0 0
  %680 = vmatpush1.bf16.msra.mxu0 0
  %681 = vmatprep.subr.bf16.mxu0 0
  %682 = vmatpush1.bf16.msra.mxu0 0
  %683 = vmatprep.subr.bf16.mxu0 0
  %684 = vmatpush1.bf16.msra.mxu0 0
  %685 = vmatprep.subr.bf16.mxu0 0
  %686 = vmatpush1.bf16.msra.mxu0 0
  %687 = vmatprep.subr.bf16.mxu0 0
  %688 = vmatpush1.bf16.msra.mxu0 %v668
  %689 = vmatprep.subr.bf16.mxu0 0
  %690 = vmatpush2.bf16.msra.mxu0 0
  %691 = vmatprep.subr.bf16.mxu0 0
  %692 = vmatpush2.bf16.msra.mxu0 0
  %693 = vmatprep.subr.bf16.mxu0 0
  %694 = vmatpush2.bf16.msra.mxu0 0
  %695 = vmatprep.subr.bf16.mxu0 0
  %696 = vmatpush2.bf16.msra.mxu0 0
  %697 = vmatprep.subr.bf16.mxu0 0
  %698 = vmatpush2.bf16.msra.mxu0 0
  %699 = vmatprep.subr.bf16.mxu0 0
  %700 = vmatpush2.bf16.msra.mxu0 0
  %701 = vmatprep.subr.bf16.mxu0 0
  %702 = vmatpush2.bf16.msra.mxu0 0
  %703 = vmatprep.subr.bf16.mxu0 0
  %704 = vmatpush2.bf16.msra.mxu0 0
  %705 = vmatprep.mubr.bf16.mxu0 0
  %706 = vmatmul.mubr.bf16.gmra.mxu0 %v671
  %v707 = vpop.f32.mrf.mxu0
  %v708 = vadd.f32 0.0, %v707
  %v709 = vpop.f32.mrf.mxu0
  %v710 = vpop.f32.mrf.mxu0
  %v711 = vadd.f32 0.0, %v710
  %v712 = vpop.f32.mrf.mxu0
  %713 = vdwg.mxu0
  %714 = vrot.lane.b32.xlu0 %v246, 48
  %v715 = vpop.permute.xlu0 %714
  %v718 = vsel %vm250, %v666, 0
  %720 = vmatprep.subr.bf16.mxu0 0
  %721 = vmatpush1.bf16.msra.mxu0 0
  %722 = vmatprep.subr.bf16.mxu0 0
  %723 = vmatpush1.bf16.msra.mxu0 0
  %724 = vmatprep.subr.bf16.mxu0 0
  %725 = vmatpush1.bf16.msra.mxu0 0
  %726 = vmatprep.subr.bf16.mxu0 0
  %727 = vmatpush1.bf16.msra.mxu0 0
  %728 = vmatprep.subr.bf16.mxu0 0
  %729 = vmatpush1.bf16.msra.mxu0 0
  %730 = vmatprep.subr.bf16.mxu0 0
  %731 = vmatpush1.bf16.msra.mxu0 0
  %732 = vmatprep.subr.bf16.mxu0 0
  %733 = vmatpush1.bf16.msra.mxu0 0
  %734 = vmatprep.subr.bf16.mxu0 0
  %735 = vmatpush1.bf16.msra.mxu0 %v715
  %736 = vmatprep.subr.bf16.mxu0 0
  %737 = vmatpush2.bf16.msra.mxu0 0
  %738 = vmatprep.subr.bf16.mxu0 0
  %739 = vmatpush2.bf16.msra.mxu0 0
  %740 = vmatprep.subr.bf16.mxu0 0
  %741 = vmatpush2.bf16.msra.mxu0 0
  %742 = vmatprep.subr.bf16.mxu0 0
  %743 = vmatpush2.bf16.msra.mxu0 0
  %744 = vmatprep.subr.bf16.mxu0 0
  %745 = vmatpush2.bf16.msra.mxu0 0
  %746 = vmatprep.subr.bf16.mxu0 0
  %747 = vmatpush2.bf16.msra.mxu0 0
  %748 = vmatprep.subr.bf16.mxu0 0
  %749 = vmatpush2.bf16.msra.mxu0 0
  %750 = vmatprep.subr.bf16.mxu0 0
  %751 = vmatpush2.bf16.msra.mxu0 0
  %752 = vmatprep.mubr.bf16.mxu0 0
  %753 = vmatmul.mubr.bf16.gmra.mxu0 %v718
  %v754 = vpop.f32.mrf.mxu0
  %v755 = vadd.f32 0.0, %v754
  %v756 = vpop.f32.mrf.mxu0
  %v757 = vpop.f32.mrf.mxu0
  %v758 = vadd.f32 0.0, %v757
  %v759 = vpop.f32.mrf.mxu0
  %760 = vdwg.mxu0
  %v761 = vpack.c.bf16 %v711, %v708
  %v762 = vpack.c.bf16 %v758, %v755
  %v763 = vpack.c.bf16 %v159, %v158
  %v765 = vsel %vm250, %v761, 0
  %v768 = vsel %vm250, %v762, 0
  %770 = vmatprep.subr.bf16.mxu0 0
  %771 = vmatpush1.bf16.msra.mxu0 0
  %772 = vmatprep.subr.bf16.mxu0 0
  %773 = vmatpush1.bf16.msra.mxu0 0
  %774 = vmatprep.subr.bf16.mxu0 0
  %775 = vmatpush1.bf16.msra.mxu0 0
  %776 = vmatprep.subr.bf16.mxu0 0
  %777 = vmatpush1.bf16.msra.mxu0 0
  %778 = vmatprep.subr.bf16.mxu0 0
  %779 = vmatpush1.bf16.msra.mxu0 0
  %780 = vmatprep.subr.bf16.mxu0 0
  %781 = vmatpush1.bf16.msra.mxu0 0
  %782 = vmatprep.subr.bf16.mxu0 0
  %783 = vmatpush1.bf16.msra.mxu0 0
  %784 = vmatprep.subr.bf16.mxu0 0
  %785 = vmatpush1.bf16.msra.mxu0 %v763
  %786 = vmatprep.subr.bf16.mxu0 0
  %787 = vmatpush2.bf16.msra.mxu0 0
  %788 = vmatprep.subr.bf16.mxu0 0
  %789 = vmatpush2.bf16.msra.mxu0 0
  %790 = vmatprep.subr.bf16.mxu0 0
  %791 = vmatpush2.bf16.msra.mxu0 0
  %792 = vmatprep.subr.bf16.mxu0 0
  %793 = vmatpush2.bf16.msra.mxu0 0
  %794 = vmatprep.subr.bf16.mxu0 0
  %795 = vmatpush2.bf16.msra.mxu0 0
  %796 = vmatprep.subr.bf16.mxu0 0
  %797 = vmatpush2.bf16.msra.mxu0 0
  %798 = vmatprep.subr.bf16.mxu0 0
  %799 = vmatpush2.bf16.msra.mxu0 0
  %800 = vmatprep.subr.bf16.mxu0 0
  %801 = vmatpush2.bf16.msra.mxu0 0
  %802 = vmatprep.mubr.bf16.mxu0 0
  %803 = vmatmul.mubr.bf16.gmra.mxu0 %v765
  %v804 = vpop.f32.mrf.mxu0
  %v805 = vadd.f32 0.0, %v804
  %v806 = vpop.f32.mrf.mxu0
  %v807 = vpop.f32.mrf.mxu0
  %v808 = vadd.f32 0.0, %v807
  %v809 = vpop.f32.mrf.mxu0
  %810 = vmatprep.mubr.bf16.mxu0 0
  %811 = vmatmul.mubr.bf16.gmra.mxu0 %v768
  %v812 = vpop.f32.mrf.mxu0
  %v813 = vadd.f32 0.0, %v812
  %v814 = vpop.f32.mrf.mxu0
  %v815 = vpop.f32.mrf.mxu0
  %v816 = vadd.f32 0.0, %v815
  %v817 = vpop.f32.mrf.mxu0
  %818 = vdwg.mxu0
  %v820 = vsel %vm250, %v508, 0
  %v823 = vsel %vm250, %v509, 0
  %825 = vmatprep.subr.bf16.mxu0 0
  %826 = vmatpush1.bf16.msra.mxu0 0
  %827 = vmatprep.subr.bf16.mxu0 0
  %828 = vmatpush1.bf16.msra.mxu0 0
  %829 = vmatprep.subr.bf16.mxu0 0
  %830 = vmatpush1.bf16.msra.mxu0 0
  %831 = vmatprep.subr.bf16.mxu0 0
  %832 = vmatpush1.bf16.msra.mxu0 0
  %833 = vmatprep.subr.bf16.mxu0 0
  %834 = vmatpush1.bf16.msra.mxu0 0
  %835 = vmatprep.subr.bf16.mxu0 0
  %836 = vmatpush1.bf16.msra.mxu0 0
  %837 = vmatprep.subr.bf16.mxu0 0
  %838 = vmatpush1.bf16.msra.mxu0 0
  %839 = vmatprep.subr.bf16.mxu0 0
  %840 = vmatpush1.bf16.msra.mxu0 %v510
  %841 = vmatprep.subr.bf16.mxu0 0
  %842 = vmatpush2.bf16.msra.mxu0 0
  %843 = vmatprep.subr.bf16.mxu0 0
  %844 = vmatpush2.bf16.msra.mxu0 0
  %845 = vmatprep.subr.bf16.mxu0 0
  %846 = vmatpush2.bf16.msra.mxu0 0
  %847 = vmatprep.subr.bf16.mxu0 0
  %848 = vmatpush2.bf16.msra.mxu0 0
  %849 = vmatprep.subr.bf16.mxu0 0
  %850 = vmatpush2.bf16.msra.mxu0 0
  %851 = vmatprep.subr.bf16.mxu0 0
  %852 = vmatpush2.bf16.msra.mxu0 0
  %853 = vmatprep.subr.bf16.mxu0 0
  %854 = vmatpush2.bf16.msra.mxu0 0
  %855 = vmatprep.subr.bf16.mxu0 0
  %856 = vmatpush2.bf16.msra.mxu0 0
  %857 = vmatprep.mubr.bf16.mxu0 0
  %858 = vmatmul.mubr.bf16.gmra.mxu0 %v820
  %v859 = vpop.f32.mrf.mxu0
  %v860 = vadd.f32 %v805, %v859
  %v861 = vpop.f32.mrf.mxu0
  %v862 = vpop.f32.mrf.mxu0
  %v863 = vadd.f32 %v808, %v862
  %v864 = vpop.f32.mrf.mxu0
  %865 = vmatprep.mubr.bf16.mxu0 0
  %866 = vmatmul.mubr.bf16.gmra.mxu0 %v823
  %v867 = vpop.f32.mrf.mxu0
  %v868 = vadd.f32 %v813, %v867
  %v869 = vpop.f32.mrf.mxu0
  %v870 = vpop.f32.mrf.mxu0
  %v871 = vadd.f32 %v816, %v870
  %v872 = vpop.f32.mrf.mxu0
  %873 = vdwg.mxu0
  %v874 = vlaneseq
  %v875 = vshrl.u32 %v874, 7
  %v876 = vsub.s32 1, %v875
  %v877 = vrot.slane %v180, %v876
  %v878 = vadd.f32 %v860, %v877
  %v879 = vadd.f32 %v863, %v877
  %v880 = vadd.f32 %v868, %v877
  %v881 = vadd.f32 %v871, %v877
  %v882 = vadd.f32 %v878, %v93
  %v883 = vadd.f32 %v879, %v96
  %v884 = vadd.f32 %v880, %v140
  %v885 = vadd.f32 %v881, %v143
  %v886 = vsel %vm189, %v882, 0.0
  %887 = vadd.xlane.f32.xlu0 %v886
  %v888 = vpop.xlane.xlu0 %887
  %v889 = vsel %vm189, %v883, 0.0
  %890 = vadd.xlane.f32.xlu0 %v889
  %v891 = vpop.xlane.xlu0 %890
  %v892 = vsel %vm189, %v884, 0.0
  %893 = vadd.xlane.f32.xlu0 %v892
  %v894 = vpop.xlane.xlu0 %893
  %v895 = vsel %vm189, %v885, 0.0
  %896 = vadd.xlane.f32.xlu0 %v895
  %v897 = vpop.xlane.xlu0 %896
  %v898 = vrcp.pop 32.0
  %v899 = vmul.f32 %v888, %v898
  %v900 = vmul.f32 %v891, %v898
  %v901 = vmul.f32 %v894, %v898
  %v902 = vmul.f32 %v897, %v898
  %v903 = vsub.f32 %v882, %v899
  %v904 = vsub.f32 %v883, %v900
  %v905 = vsub.f32 %v884, %v901
  %v906 = vsub.f32 %v885, %v902
  %v907 = vmul.f32 %v903, %v903
  %v908 = vmul.f32 %v904, %v904
  %v909 = vmul.f32 %v905, %v905
  %v910 = vmul.f32 %v906, %v906
  %v911 = vsel %vm189, %v907, 0.0
  %912 = vadd.xlane.f32.xlu0 %v911
  %v913 = vpop.xlane.xlu0 %912
  %v914 = vsel %vm189, %v908, 0.0
  %915 = vadd.xlane.f32.xlu0 %v914
  %v916 = vpop.xlane.xlu0 %915
  %v917 = vsel %vm189, %v909, 0.0
  %918 = vadd.xlane.f32.xlu0 %v917
  %v919 = vpop.xlane.xlu0 %918
  %v920 = vsel %vm189, %v910, 0.0
  %921 = vadd.xlane.f32.xlu0 %v920
  %v922 = vpop.xlane.xlu0 %921
  %v923 = vmul.f32 %v913, %v898
  %v924 = vmul.f32 %v916, %v898
  %v925 = vmul.f32 %v919, %v898
  %v926 = vmul.f32 %v922, %v898
  %v927 = vadd.f32 %v923, 1e-05
  %v928 = vadd.f32 %v924, 1e-05
  %v929 = vadd.f32 %v925, 1e-05
  %v930 = vadd.f32 %v926, 1e-05
  %v931 = vrsqrt.pop %v927
  %v932 = vrsqrt.pop %v928
  %v933 = vrsqrt.pop %v929
  %v934 = vrsqrt.pop %v930
  %v935 = vmul.f32 %v903, %v931
  %v936 = vmul.f32 %v904, %v932
  %v937 = vmul.f32 %v905, %v933
  %v938 = vmul.f32 %v906, %v934
  %v939 = vlaneseq
  %v940 = vshrl.u32 %v939, 7
  %v941 = vsub.s32 2, %v940
  %v942 = vrot.slane %v180, %v941
  %v943 = vmul.f32 %v935, %v942
  %v944 = vmul.f32 %v936, %v942
  %v945 = vmul.f32 %v937, %v942
  %v946 = vmul.f32 %v938, %v942
  %v947 = vlaneseq
  %v948 = vshrl.u32 %v947, 7
  %v949 = vsub.s32 3, %v948
  %v950 = vrot.slane %v180, %v949
  %v951 = vadd.f32 %v943, %v950
  %v952 = vadd.f32 %v944, %v950
  %v953 = vadd.f32 %v945, %v950
  %v954 = vadd.f32 %v946, %v950
  %956 = vset.pattern.permute.xlu0 0
  %957 = vperm.xlu0 %956, %v148
  %v958 = vpop.permute.xlu0 %957
  %961 = vset.pattern.permute.xlu0 0
  %962 = vperm.xlu0 %961, %v149
  %v963 = vpop.permute.xlu0 %962
  %966 = vset.pattern.permute.xlu0 0
  %967 = vperm.xlu0 %966, %v150
  %v968 = vpop.permute.xlu0 %967
  %971 = vset.pattern.permute.xlu0 0
  %972 = vperm.xlu0 %971, %v151
  %v973 = vpop.permute.xlu0 %972
  %v975 = vmul.f32 %v951, %v958
  %v976 = vmul.f32 %v952, %v963
  %v977 = vmul.f32 %v953, %v968
  %v978 = vmul.f32 %v954, %v973
  %vm983 = vcmask 1040384
  %v984 = vrot.slane %v975, 7
  %v985 = vrot.slane %v976, 7
  %v986 = vsel %vm983, %v984, %v985
  %v987 = vrot.slane %v977, 7
  %v988 = vrot.slane %v978, 7
  %v989 = vsel %vm983, %v987, %v988
  %v996 = vsel %vm983, 0.0, %v984
  %v997 = vsel %vm983, 0.0, %v987
  %v998 = vsel %vm983, %v985, 0.0
  %v999 = vsel %vm983, %v988, 0.0
  %vm1004 = vcmask 1046528
  %v1005 = vrot.slane %v996, 1
  %v1006 = vrot.slane %v986, 1
  %v1007 = vsel %vm1004, %v1005, %v1006
  %v1008 = vrot.slane %v998, 1
  %v1009 = vsel %vm1004, %v1006, %v1008
  %v1010 = vrot.slane %v997, 1
  %v1011 = vrot.slane %v989, 1
  %v1012 = vsel %vm1004, %v1010, %v1011
  %v1013 = vrot.slane %v999, 1
  %v1014 = vsel %vm1004, %v1011, %v1013
  %1015 = vrot.lane.b32.xlu0 %v1007, 32
  %v1016 = vpop.permute.xlu0 %1015
  %1017 = vrot.lane.b32.xlu0 %v1009, 32
  %v1018 = vpop.permute.xlu0 %1017
  %1019 = vrot.lane.b32.xlu0 %v1012, 32
  %v1020 = vpop.permute.xlu0 %1019
  %1021 = vrot.lane.b32.xlu0 %v1014, 32
  %v1022 = vpop.permute.xlu0 %1021
  %vm1027 = vcmask 1045504
  %v1028 = vrot.slane %v996, 2
  %v1029 = vrot.slane %v986, 2
  %v1030 = vsel %vm1027, %v1028, %v1029
  %v1031 = vrot.slane %v998, 2
  %v1032 = vsel %vm1027, %v1029, %v1031
  %v1033 = vrot.slane %v997, 2
  %v1034 = vrot.slane %v989, 2
  %v1035 = vsel %vm1027, %v1033, %v1034
  %v1036 = vrot.slane %v999, 2
  %v1037 = vsel %vm1027, %v1034, %v1036
  %1038 = vrot.lane.b32.xlu0 %v1030, 64
  %v1039 = vpop.permute.xlu0 %1038
  %1040 = vrot.lane.b32.xlu0 %v1032, 64
  %v1041 = vpop.permute.xlu0 %1040
  %1042 = vrot.lane.b32.xlu0 %v1035, 64
  %v1043 = vpop.permute.xlu0 %1042
  %1044 = vrot.lane.b32.xlu0 %v1037, 64
  %v1045 = vpop.permute.xlu0 %1044
  %v1050 = vsel %vm189, %v996, %v1016
  %v1051 = vsel %vm189, %v986, %v1018
  %v1052 = vsel %vm189, %v997, %v1020
  %v1053 = vsel %vm189, %v989, %v1022
  %vm1054 = vcmask 523264
  %v1055 = vsel %vm1054, %v1050, %v1039
  %v1056 = vsel %vm1054, %v1051, %v1041
  %v1057 = vsel %vm1054, %v1052, %v1043
  %v1058 = vsel %vm1054, %v1053, %v1045
  %v1059 = vpack.c.bf16 %v1056, %v1055
  %v1060 = vpack.c.bf16 %v1058, %v1057
  %v1061 = vpack.c.bf16 %v161, %v160
  %v1062 = vpack.c.bf16 %v163, %v162
  %v1063 = vpack.c.bf16 %v165, %v164
  %v1064 = vpack.c.bf16 %v167, %v166
  %v1065 = vpack.c.bf16 %v169, %v168
  %v1066 = vpack.c.bf16 %v171, %v170
  %v1067 = vlaneseq
  %v1068 = vshrl.u32 %v1067, 7
  %v1069 = vsub.s32 4, %v1068
  %v1070 = vrot.slane %v180, %v1069
  %vm1071 = vcmask 785408
  %v1073 = vsel %vm1071, %v1059, 0
  %v1076 = vsel %vm1071, %v1060, 0
  %1078 = vmatprep.subr.bf16.mxu0 0
  %1079 = vmatpush1.bf16.msra.mxu0 0
  %1080 = vmatprep.subr.bf16.mxu0 0
  %1081 = vmatpush1.bf16.msra.mxu0 0
  %1082 = vmatprep.subr.bf16.mxu0 0
  %1083 = vmatpush1.bf16.msra.mxu0 %v1066
  %1084 = vmatprep.subr.bf16.mxu0 0
  %1085 = vmatpush1.bf16.msra.mxu0 %v1065
  %1086 = vmatprep.subr.bf16.mxu0 0
  %1087 = vmatpush1.bf16.msra.mxu0 %v1064
  %1088 = vmatprep.subr.bf16.mxu0 0
  %1089 = vmatpush1.bf16.msra.mxu0 %v1063
  %1090 = vmatprep.subr.bf16.mxu0 0
  %1091 = vmatpush1.bf16.msra.mxu0 %v1062
  %1092 = vmatprep.subr.bf16.mxu0 0
  %1093 = vmatpush1.bf16.msra.mxu0 %v1061
  %1094 = vmatprep.subr.bf16.mxu0 0
  %1095 = vmatpush2.bf16.msra.mxu0 0
  %1096 = vmatprep.subr.bf16.mxu0 0
  %1097 = vmatpush2.bf16.msra.mxu0 0
  %1098 = vmatprep.subr.bf16.mxu0 0
  %1099 = vmatpush2.bf16.msra.mxu0 0
  %1100 = vmatprep.subr.bf16.mxu0 0
  %1101 = vmatpush2.bf16.msra.mxu0 0
  %1102 = vmatprep.subr.bf16.mxu0 0
  %1103 = vmatpush2.bf16.msra.mxu0 0
  %1104 = vmatprep.subr.bf16.mxu0 0
  %1105 = vmatpush2.bf16.msra.mxu0 0
  %1106 = vmatprep.subr.bf16.mxu0 0
  %1107 = vmatpush2.bf16.msra.mxu0 0
  %1108 = vmatprep.subr.bf16.mxu0 0
  %1109 = vmatpush2.bf16.msra.mxu0 0
  %1110 = vmatprep.mubr.bf16.mxu0 0
  %1111 = vmatmul.mubr.bf16.gmra.mxu0 %v1073
  %v1112 = vpop.f32.mrf.mxu0
  %v1113 = vadd.f32 %v1070, %v1112
  %v1114 = vpop.f32.mrf.mxu0
  %v1115 = vpop.f32.mrf.mxu0
  %v1116 = vadd.f32 %v1070, %v1115
  %v1117 = vpop.f32.mrf.mxu0
  %1118 = vmatprep.mubr.bf16.mxu0 0
  %1119 = vmatmul.mubr.bf16.gmra.mxu0 %v1076
  %v1120 = vpop.f32.mrf.mxu0
  %v1121 = vadd.f32 %v1070, %v1120
  %v1122 = vpop.f32.mrf.mxu0
  %v1123 = vpop.f32.mrf.mxu0
  %v1124 = vadd.f32 %v1070, %v1123
  %v1125 = vpop.f32.mrf.mxu0
  %1126 = vdwg.mxu0
  %v1127 = vmax.f32 %v1113, 0.0
  %v1128 = vmax.f32 %v1116, 0.0
  %v1129 = vmax.f32 %v1121, 0.0
  %v1130 = vmax.f32 %v1124, 0.0
  %v1131 = vpack.c.bf16 %v1128, %v1127
  %v1132 = vpack.c.bf16 %v1130, %v1129
  %v1133 = vpack.c.bf16 %v173, %v172
  %v1134 = vpack.c.bf16 %v175, %v174
  %v1135 = vpack.c.bf16 %v177, %v176
  %v1136 = vpack.c.bf16 %v179, %v178
  %v1137 = vlaneseq
  %v1138 = vshrl.u32 %v1137, 7
  %v1139 = vsub.s32 5, %v1138
  %v1140 = vrot.slane %v180, %v1139
  %v1142 = vsel %vm1054, %v1131, 0
  %v1145 = vsel %vm1054, %v1132, 0
  %1147 = vmatprep.subr.bf16.mxu0 0
  %1148 = vmatpush1.bf16.msra.mxu0 0
  %1149 = vmatprep.subr.bf16.mxu0 0
  %1150 = vmatpush1.bf16.msra.mxu0 0
  %1151 = vmatprep.subr.bf16.mxu0 0
  %1152 = vmatpush1.bf16.msra.mxu0 0
  %1153 = vmatprep.subr.bf16.mxu0 0
  %1154 = vmatpush1.bf16.msra.mxu0 0
  %1155 = vmatprep.subr.bf16.mxu0 0
  %1156 = vmatpush1.bf16.msra.mxu0 %v1136
  %1157 = vmatprep.subr.bf16.mxu0 0
  %1158 = vmatpush1.bf16.msra.mxu0 %v1135
  %1159 = vmatprep.subr.bf16.mxu0 0
  %1160 = vmatpush1.bf16.msra.mxu0 %v1134
  %1161 = vmatprep.subr.bf16.mxu0 0
  %1162 = vmatpush1.bf16.msra.mxu0 %v1133
  %1163 = vmatprep.subr.bf16.mxu0 0
  %1164 = vmatpush2.bf16.msra.mxu0 0
  %1165 = vmatprep.subr.bf16.mxu0 0
  %1166 = vmatpush2.bf16.msra.mxu0 0
  %1167 = vmatprep.subr.bf16.mxu0 0
  %1168 = vmatpush2.bf16.msra.mxu0 0
  %1169 = vmatprep.subr.bf16.mxu0 0
  %1170 = vmatpush2.bf16.msra.mxu0 0
  %1171 = vmatprep.subr.bf16.mxu0 0
  %1172 = vmatpush2.bf16.msra.mxu0 0
  %1173 = vmatprep.subr.bf16.mxu0 0
  %1174 = vmatpush2.bf16.msra.mxu0 0
  %1175 = vmatprep.subr.bf16.mxu0 0
  %1176 = vmatpush2.bf16.msra.mxu0 0
  %1177 = vmatprep.subr.bf16.mxu0 0
  %1178 = vmatpush2.bf16.msra.mxu0 0
  %1179 = vmatprep.mubr.bf16.mxu0 0
  %1180 = vmatmul.mubr.bf16.gmra.mxu0 %v1142
  %v1181 = vpop.f32.mrf.mxu0
  %v1182 = vadd.f32 %v1140, %v1181
  %v1183 = vpop.f32.mrf.mxu0
  %v1184 = vpop.f32.mrf.mxu0
  %v1185 = vadd.f32 %v1140, %v1184
  %v1186 = vpop.f32.mrf.mxu0
  %1187 = vmatprep.mubr.bf16.mxu0 0
  %1188 = vmatmul.mubr.bf16.gmra.mxu0 %v1145
  %v1189 = vpop.f32.mrf.mxu0
  %v1190 = vadd.f32 %v1140, %v1189
  %v1191 = vpop.f32.mrf.mxu0
  %v1192 = vpop.f32.mrf.mxu0
  %v1193 = vadd.f32 %v1140, %v1192
  %v1194 = vpop.f32.mrf.mxu0
  %1195 = vdwg.mxu0
  %v1196 = vadd.f32 %v1182, %v975
  %v1197 = vadd.f32 %v1185, %v976
  %v1198 = vadd.f32 %v1190, %v977
  %v1199 = vadd.f32 %v1193, %v978
  %v1200 = vsel %vm189, %v1196, 0.0
  %1201 = vadd.xlane.f32.xlu0 %v1200
  %v1202 = vpop.xlane.xlu0 %1201
  %v1203 = vsel %vm189, %v1197, 0.0
  %1204 = vadd.xlane.f32.xlu0 %v1203
  %v1205 = vpop.xlane.xlu0 %1204
  %v1206 = vsel %vm189, %v1198, 0.0
  %1207 = vadd.xlane.f32.xlu0 %v1206
  %v1208 = vpop.xlane.xlu0 %1207
  %v1209 = vsel %vm189, %v1199, 0.0
  %1210 = vadd.xlane.f32.xlu0 %v1209
  %v1211 = vpop.xlane.xlu0 %1210
  %v1212 = vmul.f32 %v1202, %v898
  %v1213 = vmul.f32 %v1205, %v898
  %v1214 = vmul.f32 %v1208, %v898
  %v1215 = vmul.f32 %v1211, %v898
  %v1216 = vsub.f32 %v1196, %v1212
  %v1217 = vsub.f32 %v1197, %v1213
  %v1218 = vsub.f32 %v1198, %v1214
  %v1219 = vsub.f32 %v1199, %v1215
  %v1220 = vmul.f32 %v1216, %v1216
  %v1221 = vmul.f32 %v1217, %v1217
  %v1222 = vmul.f32 %v1218, %v1218
  %v1223 = vmul.f32 %v1219, %v1219
  %v1224 = vsel %vm189, %v1220, 0.0
  %1225 = vadd.xlane.f32.xlu0 %v1224
  %v1226 = vpop.xlane.xlu0 %1225
  %v1227 = vsel %vm189, %v1221, 0.0
  %1228 = vadd.xlane.f32.xlu0 %v1227
  %v1229 = vpop.xlane.xlu0 %1228
  %v1230 = vsel %vm189, %v1222, 0.0
  %1231 = vadd.xlane.f32.xlu0 %v1230
  %v1232 = vpop.xlane.xlu0 %1231
  %v1233 = vsel %vm189, %v1223, 0.0
  %1234 = vadd.xlane.f32.xlu0 %v1233
  %v1235 = vpop.xlane.xlu0 %1234
  %v1236 = vmul.f32 %v1226, %v898
  %v1237 = vmul.f32 %v1229, %v898
  %v1238 = vmul.f32 %v1232, %v898
  %v1239 = vmul.f32 %v1235, %v898
  %v1240 = vadd.f32 %v1236, 1e-05
  %v1241 = vadd.f32 %v1237, 1e-05
  %v1242 = vadd.f32 %v1238, 1e-05
  %v1243 = vadd.f32 %v1239, 1e-05
  %v1244 = vrsqrt.pop %v1240
  %v1245 = vrsqrt.pop %v1241
  %v1246 = vrsqrt.pop %v1242
  %v1247 = vrsqrt.pop %v1243
  %v1248 = vmul.f32 %v1216, %v1244
  %v1249 = vmul.f32 %v1217, %v1245
  %v1250 = vmul.f32 %v1218, %v1246
  %v1251 = vmul.f32 %v1219, %v1247
  %v1252 = vlaneseq
  %v1253 = vshrl.u32 %v1252, 7
  %v1254 = vsub.s32 6, %v1253
  %v1255 = vrot.slane %v180, %v1254
  %v1256 = vmul.f32 %v1248, %v1255
  %v1257 = vmul.f32 %v1249, %v1255
  %v1258 = vmul.f32 %v1250, %v1255
  %v1259 = vmul.f32 %v1251, %v1255
  %v1260 = vlaneseq
  %v1261 = vshrl.u32 %v1260, 7
  %v1262 = vsub.s32 7, %v1261
  %v1263 = vrot.slane %v180, %v1262
  %v1264 = vadd.f32 %v1256, %v1263
  %v1265 = vadd.f32 %v1257, %v1263
  %v1266 = vadd.f32 %v1258, %v1263
  %v1267 = vadd.f32 %v1259, %v1263
  %v1268 = vmul.f32 %v1264, %v958
  %v1269 = vmul.f32 %v1265, %v963
  %v1270 = vmul.f32 %v1266, %v968
  %v1271 = vmul.f32 %v1267, %v973
  %s1272 = scalar_lea.vmem %s5, 32
  %v1273 = vld [vmem:[%s1272] sm:$0xff]
  %v1274 = vld [vmem:[%s1272 + $0x8] sm:$0xff]
  %v1275 = vld [vmem:[%s1272 + $0x10] sm:$0xff]
  %v1276 = vld [vmem:[%s1272 + $0x18] sm:$0xff]
  %s1277 = scalar_lea.vmem %s6, 32
  %v1278 = vld [vmem:[%s1277] sm:$0xff]
  %v1279 = vld [vmem:[%s1277 + $0x8] sm:$0xff]
  %v1280 = vld [vmem:[%s1277 + $0x10] sm:$0xff]
  %v1281 = vld [vmem:[%s1277 + $0x18] sm:$0xff]
  %s1282 = scalar_lea.vmem %s7, 96
  %v1283 = vld [vmem:[%s1282] sm:$0xff]
  %v1284 = vld [vmem:[%s1282 + $0x8] sm:$0xff]
  %v1285 = vld [vmem:[%s1282 + $0x10] sm:$0xff]
  %v1286 = vld [vmem:[%s1282 + $0x18] sm:$0xff]
  %v1287 = vld [vmem:[%s1282 + $0x20] sm:$0xff]
  %v1288 = vld [vmem:[%s1282 + $0x28] sm:$0xff]
  %v1289 = vld [vmem:[%s1282 + $0x30] sm:$0xff]
  %v1290 = vld [vmem:[%s1282 + $0x38] sm:$0xff]
  %v1291 = vld [vmem:[%s1282 + $0x40] sm:$0xff]
  %v1292 = vld [vmem:[%s1282 + $0x48] sm:$0xff]
  %v1293 = vld [vmem:[%s1282 + $0x50] sm:$0xff]
  %v1294 = vld [vmem:[%s1282 + $0x58] sm:$0xff]
  %s1295 = scalar_lea.vmem %s8, 64
  %v1296 = vld [vmem:[%s1295] sm:$0xff]
  %v1297 = vld [vmem:[%s1295 + $0x8] sm:$0xff]
  %v1298 = vld [vmem:[%s1295 + $0x10] sm:$0xff]
  %v1299 = vld [vmem:[%s1295 + $0x18] sm:$0xff]
  %v1300 = vld [vmem:[%s1295 + $0x20] sm:$0xff]
  %v1301 = vld [vmem:[%s1295 + $0x28] sm:$0xff]
  %v1302 = vld [vmem:[%s1295 + $0x30] sm:$0xff]
  %v1303 = vld [vmem:[%s1295 + $0x38] sm:$0xff]
  %s1304 = scalar_lea.vmem %s9, 8
  %v1305 = vld [vmem:[%s1304] sm:$0xff]
  %v1306 = vpack.c.bf16 %v1269, %v1268
  %v1307 = vpack.c.bf16 %v1271, %v1270
  %v1308 = vpack.c.bf16 %v1274, %v1273
  %v1309 = vpack.c.bf16 %v1276, %v1275
  %v1310 = vlaneseq
  %v1311 = vshrl.u32 %v1310, 7
  %v1312 = vsub.s32 0, %v1311
  %v1313 = vrot.slane %v1305, %v1312
  %v1315 = vsel %vm189, %v1306, 0
  %v1318 = vsel %vm189, %v1307, 0
  %1320 = vmatprep.subr.bf16.mxu0 0
  %1321 = vmatpush1.bf16.msra.mxu0 0
  %1322 = vmatprep.subr.bf16.mxu0 0
  %1323 = vmatpush1.bf16.msra.mxu0 0
  %1324 = vmatprep.subr.bf16.mxu0 0
  %1325 = vmatpush1.bf16.msra.mxu0 0
  %1326 = vmatprep.subr.bf16.mxu0 0
  %1327 = vmatpush1.bf16.msra.mxu0 0
  %1328 = vmatprep.subr.bf16.mxu0 0
  %1329 = vmatpush1.bf16.msra.mxu0 0
  %1330 = vmatprep.subr.bf16.mxu0 0
  %1331 = vmatpush1.bf16.msra.mxu0 0
  %1332 = vmatprep.subr.bf16.mxu0 0
  %1333 = vmatpush1.bf16.msra.mxu0 %v1309
  %1334 = vmatprep.subr.bf16.mxu0 0
  %1335 = vmatpush1.bf16.msra.mxu0 %v1308
  %1336 = vmatprep.subr.bf16.mxu0 0
  %1337 = vmatpush2.bf16.msra.mxu0 0
  %1338 = vmatprep.subr.bf16.mxu0 0
  %1339 = vmatpush2.bf16.msra.mxu0 0
  %1340 = vmatprep.subr.bf16.mxu0 0
  %1341 = vmatpush2.bf16.msra.mxu0 0
  %1342 = vmatprep.subr.bf16.mxu0 0
  %1343 = vmatpush2.bf16.msra.mxu0 0
  %1344 = vmatprep.subr.bf16.mxu0 0
  %1345 = vmatpush2.bf16.msra.mxu0 0
  %1346 = vmatprep.subr.bf16.mxu0 0
  %1347 = vmatpush2.bf16.msra.mxu0 0
  %1348 = vmatprep.subr.bf16.mxu0 0
  %1349 = vmatpush2.bf16.msra.mxu0 0
  %1350 = vmatprep.subr.bf16.mxu0 0
  %1351 = vmatpush2.bf16.msra.mxu0 0
  %1352 = vmatprep.mubr.bf16.mxu0 0
  %1353 = vmatmul.mubr.bf16.gmra.mxu0 %v1315
  %v1354 = vpop.f32.mrf.mxu0
  %v1355 = vadd.f32 %v1313, %v1354
  %v1356 = vpop.f32.mrf.mxu0
  %v1357 = vpop.f32.mrf.mxu0
  %v1358 = vadd.f32 %v1313, %v1357
  %v1359 = vpop.f32.mrf.mxu0
  %1360 = vmatprep.mubr.bf16.mxu0 0
  %1361 = vmatmul.mubr.bf16.gmra.mxu0 %v1318
  %v1362 = vpop.f32.mrf.mxu0
  %v1363 = vadd.f32 %v1313, %v1362
  %v1364 = vpop.f32.mrf.mxu0
  %v1365 = vpop.f32.mrf.mxu0
  %v1366 = vadd.f32 %v1313, %v1365
  %v1367 = vpop.f32.mrf.mxu0
  %1368 = vdwg.mxu0
  %v1369 = vpack.c.bf16 %v1358, %v1355
  %v1370 = vpack.c.bf16 %v1366, %v1363
  %1372 = vrot.lane.b32.xlu0 %v1369, 96
  %v1373 = vpop.permute.xlu0 %1372
  %v1375 = vsel %vm250, %v1369, 0
  %v1378 = vsel %vm250, %v1373, 0
  %1380 = vmatprep.subr.bf16.mxu0 0
  %1381 = vmatpush1.bf16.xpose.msra.mxu0 0
  %1382 = vmatprep.subr.bf16.mxu0 0
  %1383 = vmatpush1.bf16.xpose.msra.mxu0 0
  %1384 = vmatprep.subr.bf16.mxu0 0
  %1385 = vmatpush1.bf16.xpose.msra.mxu0 0
  %1386 = vmatprep.subr.bf16.mxu0 0
  %1387 = vmatpush1.bf16.xpose.msra.mxu0 0
  %1388 = vmatprep.subr.bf16.mxu0 0
  %1389 = vmatpush1.bf16.xpose.msra.mxu0 0
  %1390 = vmatprep.subr.bf16.mxu0 0
  %1391 = vmatpush1.bf16.xpose.msra.mxu0 0
  %1392 = vmatprep.subr.bf16.mxu0 0
  %1393 = vmatpush1.bf16.xpose.msra.mxu0 0
  %1394 = vmatprep.subr.bf16.mxu0 0
  %1395 = vmatpush1.bf16.xpose.msra.mxu0 %v1378
  %1396 = vmatprep.subr.bf16.mxu0 0
  %1397 = vmatpush2.bf16.xpose.msra.mxu0 0
  %1398 = vmatprep.subr.bf16.mxu0 0
  %1399 = vmatpush2.bf16.xpose.msra.mxu0 0
  %1400 = vmatprep.subr.bf16.mxu0 0
  %1401 = vmatpush2.bf16.xpose.msra.mxu0 0
  %1402 = vmatprep.subr.bf16.mxu0 0
  %1403 = vmatpush2.bf16.xpose.msra.mxu0 0
  %1404 = vmatprep.subr.bf16.mxu0 0
  %1405 = vmatpush2.bf16.xpose.msra.mxu0 0
  %1406 = vmatprep.subr.bf16.mxu0 0
  %1407 = vmatpush2.bf16.xpose.msra.mxu0 0
  %1408 = vmatprep.subr.bf16.mxu0 0
  %1409 = vmatpush2.bf16.xpose.msra.mxu0 0
  %1410 = vmatprep.subr.bf16.mxu0 0
  %1411 = vmatpush2.bf16.xpose.msra.mxu0 0
  %1412 = vmatprep.mubr.bf16.mxu0 0
  %1413 = vmatmul.mubr.bf16.gmra.mxu0 %v1375
  %v1414 = vpop.f32.mrf.mxu0
  %v1415 = vadd.f32 0.0, %v1414
  %v1416 = vpop.f32.mrf.mxu0
  %v1417 = vpop.f32.mrf.mxu0
  %v1418 = vadd.f32 0.0, %v1417
  %v1419 = vpop.f32.mrf.mxu0
  %1420 = vdwg.mxu0
  %1422 = vrot.lane.b32.xlu0 %v1370, 96
  %v1423 = vpop.permute.xlu0 %1422
  %v1425 = vsel %vm250, %v1370, 0
  %v1428 = vsel %vm250, %v1423, 0
  %1430 = vmatprep.subr.bf16.mxu0 0
  %1431 = vmatpush1.bf16.xpose.msra.mxu0 0
  %1432 = vmatprep.subr.bf16.mxu0 0
  %1433 = vmatpush1.bf16.xpose.msra.mxu0 0
  %1434 = vmatprep.subr.bf16.mxu0 0
  %1435 = vmatpush1.bf16.xpose.msra.mxu0 0
  %1436 = vmatprep.subr.bf16.mxu0 0
  %1437 = vmatpush1.bf16.xpose.msra.mxu0 0
  %1438 = vmatprep.subr.bf16.mxu0 0
  %1439 = vmatpush1.bf16.xpose.msra.mxu0 0
  %1440 = vmatprep.subr.bf16.mxu0 0
  %1441 = vmatpush1.bf16.xpose.msra.mxu0 0
  %1442 = vmatprep.subr.bf16.mxu0 0
  %1443 = vmatpush1.bf16.xpose.msra.mxu0 0
  %1444 = vmatprep.subr.bf16.mxu0 0
  %1445 = vmatpush1.bf16.xpose.msra.mxu0 %v1428
  %1446 = vmatprep.subr.bf16.mxu0 0
  %1447 = vmatpush2.bf16.xpose.msra.mxu0 0
  %1448 = vmatprep.subr.bf16.mxu0 0
  %1449 = vmatpush2.bf16.xpose.msra.mxu0 0
  %1450 = vmatprep.subr.bf16.mxu0 0
  %1451 = vmatpush2.bf16.xpose.msra.mxu0 0
  %1452 = vmatprep.subr.bf16.mxu0 0
  %1453 = vmatpush2.bf16.xpose.msra.mxu0 0
  %1454 = vmatprep.subr.bf16.mxu0 0
  %1455 = vmatpush2.bf16.xpose.msra.mxu0 0
  %1456 = vmatprep.subr.bf16.mxu0 0
  %1457 = vmatpush2.bf16.xpose.msra.mxu0 0
  %1458 = vmatprep.subr.bf16.mxu0 0
  %1459 = vmatpush2.bf16.xpose.msra.mxu0 0
  %1460 = vmatprep.subr.bf16.mxu0 0
  %1461 = vmatpush2.bf16.xpose.msra.mxu0 0
  %1462 = vmatprep.mubr.bf16.mxu0 0
  %1463 = vmatmul.mubr.bf16.gmra.mxu0 %v1425
  %v1464 = vpop.f32.mrf.mxu0
  %v1465 = vadd.f32 0.0, %v1464
  %v1466 = vpop.f32.mrf.mxu0
  %v1467 = vpop.f32.mrf.mxu0
  %v1468 = vadd.f32 0.0, %v1467
  %v1469 = vpop.f32.mrf.mxu0
  %1470 = vdwg.mxu0
  %v1471 = vmul.f32 %v1415, 0.25
  %v1472 = vmul.f32 %v1418, 0.25
  %v1473 = vmul.f32 %v1465, 0.25
  %v1474 = vmul.f32 %v1468, 0.25
  %v1475 = vadd.f32 %v1471, %v357
  %v1476 = vadd.f32 %v1472, %v357
  %v1477 = vadd.f32 %v1473, %v361
  %v1478 = vadd.f32 %v1474, %v361
  %v1479 = vsel %vm250, %v1475, -inf
  %1480 = vmax.xlane.f32.xlu0 %v1479
  %v1481 = vpop.xlane.xlu0 %1480
  %v1482 = vsel %vm250, %v1476, -inf
  %1483 = vmax.xlane.f32.xlu0 %v1482
  %v1484 = vpop.xlane.xlu0 %1483
  %v1485 = vsel %vm250, %v1477, -inf
  %1486 = vmax.xlane.f32.xlu0 %v1485
  %v1487 = vpop.xlane.xlu0 %1486
  %v1488 = vsel %vm250, %v1478, -inf
  %1489 = vmax.xlane.f32.xlu0 %v1488
  %v1490 = vpop.xlane.xlu0 %1489
  %v1491 = vsub.f32 %v1475, %v1481
  %v1492 = vsub.f32 %v1476, %v1484
  %v1493 = vsub.f32 %v1477, %v1487
  %v1494 = vsub.f32 %v1478, %v1490
  %v1495 = vmul.f32 %v1491, 1.442695
  %v1496 = vpow.pop %v1495
  %v1497 = vmul.f32 %v1492, 1.442695
  %v1498 = vpow.pop %v1497
  %v1499 = vmul.f32 %v1493, 1.442695
  %v1500 = vpow.pop %v1499
  %v1501 = vmul.f32 %v1494, 1.442695
  %v1502 = vpow.pop %v1501
  %v1503 = vsel %vm250, %v1496, 0.0
  %1504 = vadd.xlane.f32.xlu0 %v1503
  %v1505 = vpop.xlane.xlu0 %1504
  %v1506 = vsel %vm250, %v1498, 0.0
  %1507 = vadd.xlane.f32.xlu0 %v1506
  %v1508 = vpop.xlane.xlu0 %1507
  %v1509 = vsel %vm250, %v1500, 0.0
  %1510 = vadd.xlane.f32.xlu0 %v1509
  %v1511 = vpop.xlane.xlu0 %1510
  %v1512 = vsel %vm250, %v1502, 0.0
  %1513 = vadd.xlane.f32.xlu0 %v1512
  %v1514 = vpop.xlane.xlu0 %1513
  %v1515 = vrcp.pop %v1505
  %v1516 = vrcp.pop %v1508
  %v1517 = vrcp.pop %v1511
  %v1518 = vrcp.pop %v1514
  %v1519 = vmul.f32 %v1496, %v1515
  %v1520 = vmul.f32 %v1498, %v1516
  %v1521 = vmul.f32 %v1500, %v1517
  %v1522 = vmul.f32 %v1502, %v1518
  %v1523 = vpack.c.bf16 %v1520, %v1519
  %v1524 = vpack.c.bf16 %v1522, %v1521
  %1525 = vrot.lane.b32.xlu0 %v1369, 64
  %v1526 = vpop.permute.xlu0 %1525
  %v1529 = vsel %vm250, %v1523, 0
  %1531 = vmatprep.subr.bf16.mxu0 0
  %1532 = vmatpush1.bf16.msra.mxu0 0
  %1533 = vmatprep.subr.bf16.mxu0 0
  %1534 = vmatpush1.bf16.msra.mxu0 0
  %1535 = vmatprep.subr.bf16.mxu0 0
  %1536 = vmatpush1.bf16.msra.mxu0 0
  %1537 = vmatprep.subr.bf16.mxu0 0
  %1538 = vmatpush1.bf16.msra.mxu0 0
  %1539 = vmatprep.subr.bf16.mxu0 0
  %1540 = vmatpush1.bf16.msra.mxu0 0
  %1541 = vmatprep.subr.bf16.mxu0 0
  %1542 = vmatpush1.bf16.msra.mxu0 0
  %1543 = vmatprep.subr.bf16.mxu0 0
  %1544 = vmatpush1.bf16.msra.mxu0 0
  %1545 = vmatprep.subr.bf16.mxu0 0
  %1546 = vmatpush1.bf16.msra.mxu0 %v1526
  %1547 = vmatprep.subr.bf16.mxu0 0
  %1548 = vmatpush2.bf16.msra.mxu0 0
  %1549 = vmatprep.subr.bf16.mxu0 0
  %1550 = vmatpush2.bf16.msra.mxu0 0
  %1551 = vmatprep.subr.bf16.mxu0 0
  %1552 = vmatpush2.bf16.msra.mxu0 0
  %1553 = vmatprep.subr.bf16.mxu0 0
  %1554 = vmatpush2.bf16.msra.mxu0 0
  %1555 = vmatprep.subr.bf16.mxu0 0
  %1556 = vmatpush2.bf16.msra.mxu0 0
  %1557 = vmatprep.subr.bf16.mxu0 0
  %1558 = vmatpush2.bf16.msra.mxu0 0
  %1559 = vmatprep.subr.bf16.mxu0 0
  %1560 = vmatpush2.bf16.msra.mxu0 0
  %1561 = vmatprep.subr.bf16.mxu0 0
  %1562 = vmatpush2.bf16.msra.mxu0 0
  %1563 = vmatprep.mubr.bf16.mxu0 0
  %1564 = vmatmul.mubr.bf16.gmra.mxu0 %v1529
  %v1565 = vpop.f32.mrf.mxu0
  %v1566 = vadd.f32 0.0, %v1565
  %v1567 = vpop.f32.mrf.mxu0
  %v1568 = vpop.f32.mrf.mxu0
  %v1569 = vadd.f32 0.0, %v1568
  %v1570 = vpop.f32.mrf.mxu0
  %1571 = vdwg.mxu0
  %1572 = vrot.lane.b32.xlu0 %v1370, 64
  %v1573 = vpop.permute.xlu0 %1572
  %v1576 = vsel %vm250, %v1524, 0
  %1578 = vmatprep.subr.bf16.mxu0 0
  %1579 = vmatpush1.bf16.msra.mxu0 0
  %1580 = vmatprep.subr.bf16.mxu0 0
  %1581 = vmatpush1.bf16.msra.mxu0 0
  %1582 = vmatprep.subr.bf16.mxu0 0
  %1583 = vmatpush1.bf16.msra.mxu0 0
  %1584 = vmatprep.subr.bf16.mxu0 0
  %1585 = vmatpush1.bf16.msra.mxu0 0
  %1586 = vmatprep.subr.bf16.mxu0 0
  %1587 = vmatpush1.bf16.msra.mxu0 0
  %1588 = vmatprep.subr.bf16.mxu0 0
  %1589 = vmatpush1.bf16.msra.mxu0 0
  %1590 = vmatprep.subr.bf16.mxu0 0
  %1591 = vmatpush1.bf16.msra.mxu0 0
  %1592 = vmatprep.subr.bf16.mxu0 0
  %1593 = vmatpush1.bf16.msra.mxu0 %v1573
  %1594 = vmatprep.subr.bf16.mxu0 0
  %1595 = vmatpush2.bf16.msra.mxu0 0
  %1596 = vmatprep.subr.bf16.mxu0 0
  %1597 = vmatpush2.bf16.msra.mxu0 0
  %1598 = vmatprep.subr.bf16.mxu0 0
  %1599 = vmatpush2.bf16.msra.mxu0 0
  %1600 = vmatprep.subr.bf16.mxu0 0
  %1601 = vmatpush2.bf16.msra.mxu0 0
  %1602 = vmatprep.subr.bf16.mxu0 0
  %1603 = vmatpush2.bf16.msra.mxu0 0
  %1604 = vmatprep.subr.bf16.mxu0 0
  %1605 = vmatpush2.bf16.msra.mxu0 0
  %1606 = vmatprep.subr.bf16.mxu0 0
  %1607 = vmatpush2.bf16.msra.mxu0 0
  %1608 = vmatprep.subr.bf16.mxu0 0
  %1609 = vmatpush2.bf16.msra.mxu0 0
  %1610 = vmatprep.mubr.bf16.mxu0 0
  %1611 = vmatmul.mubr.bf16.gmra.mxu0 %v1576
  %v1612 = vpop.f32.mrf.mxu0
  %v1613 = vadd.f32 0.0, %v1612
  %v1614 = vpop.f32.mrf.mxu0
  %v1615 = vpop.f32.mrf.mxu0
  %v1616 = vadd.f32 0.0, %v1615
  %v1617 = vpop.f32.mrf.mxu0
  %1618 = vdwg.mxu0
  %v1619 = vpack.c.bf16 %v1569, %v1566
  %v1620 = vpack.c.bf16 %v1616, %v1613
  %v1621 = vpack.c.bf16 %v1279, %v1278
  %1622 = vrot.lane.b32.xlu0 %v1369, 112
  %v1623 = vpop.permute.xlu0 %1622
  %1624 = vrot.lane.b32.xlu0 %v1369, 80
  %v1625 = vpop.permute.xlu0 %1624
  %v1627 = vsel %vm250, %v1623, 0
  %v1630 = vsel %vm250, %v1625, 0
  %1632 = vmatprep.subr.bf16.mxu0 0
  %1633 = vmatpush1.bf16.xpose.msra.mxu0 0
  %1634 = vmatprep.subr.bf16.mxu0 0
  %1635 = vmatpush1.bf16.xpose.msra.mxu0 0
  %1636 = vmatprep.subr.bf16.mxu0 0
  %1637 = vmatpush1.bf16.xpose.msra.mxu0 0
  %1638 = vmatprep.subr.bf16.mxu0 0
  %1639 = vmatpush1.bf16.xpose.msra.mxu0 0
  %1640 = vmatprep.subr.bf16.mxu0 0
  %1641 = vmatpush1.bf16.xpose.msra.mxu0 0
  %1642 = vmatprep.subr.bf16.mxu0 0
  %1643 = vmatpush1.bf16.xpose.msra.mxu0 0
  %1644 = vmatprep.subr.bf16.mxu0 0
  %1645 = vmatpush1.bf16.xpose.msra.mxu0 0
  %1646 = vmatprep.subr.bf16.mxu0 0
  %1647 = vmatpush1.bf16.xpose.msra.mxu0 %v1630
  %1648 = vmatprep.subr.bf16.mxu0 0
  %1649 = vmatpush2.bf16.xpose.msra.mxu0 0
  %1650 = vmatprep.subr.bf16.mxu0 0
  %1651 = vmatpush2.bf16.xpose.msra.mxu0 0
  %1652 = vmatprep.subr.bf16.mxu0 0
  %1653 = vmatpush2.bf16.xpose.msra.mxu0 0
  %1654 = vmatprep.subr.bf16.mxu0 0
  %1655 = vmatpush2.bf16.xpose.msra.mxu0 0
  %1656 = vmatprep.subr.bf16.mxu0 0
  %1657 = vmatpush2.bf16.xpose.msra.mxu0 0
  %1658 = vmatprep.subr.bf16.mxu0 0
  %1659 = vmatpush2.bf16.xpose.msra.mxu0 0
  %1660 = vmatprep.subr.bf16.mxu0 0
  %1661 = vmatpush2.bf16.xpose.msra.mxu0 0
  %1662 = vmatprep.subr.bf16.mxu0 0
  %1663 = vmatpush2.bf16.xpose.msra.mxu0 0
  %1664 = vmatprep.mubr.bf16.mxu0 0
  %1665 = vmatmul.mubr.bf16.gmra.mxu0 %v1627
  %v1666 = vpop.f32.mrf.mxu0
  %v1667 = vadd.f32 0.0, %v1666
  %v1668 = vpop.f32.mrf.mxu0
  %v1669 = vpop.f32.mrf.mxu0
  %v1670 = vadd.f32 0.0, %v1669
  %v1671 = vpop.f32.mrf.mxu0
  %1672 = vdwg.mxu0
  %1673 = vrot.lane.b32.xlu0 %v1370, 112
  %v1674 = vpop.permute.xlu0 %1673
  %1675 = vrot.lane.b32.xlu0 %v1370, 80
  %v1676 = vpop.permute.xlu0 %1675
  %v1678 = vsel %vm250, %v1674, 0
  %v1681 = vsel %vm250, %v1676, 0
  %1683 = vmatprep.subr.bf16.mxu0 0
  %1684 = vmatpush1.bf16.xpose.msra.mxu0 0
  %1685 = vmatprep.subr.bf16.mxu0 0
  %1686 = vmatpush1.bf16.xpose.msra.mxu0 0
  %1687 = vmatprep.subr.bf16.mxu0 0
  %1688 = vmatpush1.bf16.xpose.msra.mxu0 0
  %1689 = vmatprep.subr.bf16.mxu0 0
  %1690 = vmatpush1.bf16.xpose.msra.mxu0 0
  %1691 = vmatprep.subr.bf16.mxu0 0
  %1692 = vmatpush1.bf16.xpose.msra.mxu0 0
  %1693 = vmatprep.subr.bf16.mxu0 0
  %1694 = vmatpush1.bf16.xpose.msra.mxu0 0
  %1695 = vmatprep.subr.bf16.mxu0 0
  %1696 = vmatpush1.bf16.xpose.msra.mxu0 0
  %1697 = vmatprep.subr.bf16.mxu0 0
  %1698 = vmatpush1.bf16.xpose.msra.mxu0 %v1681
  %1699 = vmatprep.subr.bf16.mxu0 0
  %1700 = vmatpush2.bf16.xpose.msra.mxu0 0
  %1701 = vmatprep.subr.bf16.mxu0 0
  %1702 = vmatpush2.bf16.xpose.msra.mxu0 0
  %1703 = vmatprep.subr.bf16.mxu0 0
  %1704 = vmatpush2.bf16.xpose.msra.mxu0 0
  %1705 = vmatprep.subr.bf16.mxu0 0
  %1706 = vmatpush2.bf16.xpose.msra.mxu0 0
  %1707 = vmatprep.subr.bf16.mxu0 0
  %1708 = vmatpush2.bf16.xpose.msra.mxu0 0
  %1709 = vmatprep.subr.bf16.mxu0 0
  %1710 = vmatpush2.bf16.xpose.msra.mxu0 0
  %1711 = vmatprep.subr.bf16.mxu0 0
  %1712 = vmatpush2.bf16.xpose.msra.mxu0 0
  %1713 = vmatprep.subr.bf16.mxu0 0
  %1714 = vmatpush2.bf16.xpose.msra.mxu0 0
  %1715 = vmatprep.mubr.bf16.mxu0 0
  %1716 = vmatmul.mubr.bf16.gmra.mxu0 %v1678
  %v1717 = vpop.f32.mrf.mxu0
  %v1718 = vadd.f32 0.0, %v1717
  %v1719 = vpop.f32.mrf.mxu0
  %v1720 = vpop.f32.mrf.mxu0
  %v1721 = vadd.f32 0.0, %v1720
  %v1722 = vpop.f32.mrf.mxu0
  %1723 = vdwg.mxu0
  %v1724 = vmul.f32 %v1667, 0.25
  %v1725 = vmul.f32 %v1670, 0.25
  %v1726 = vmul.f32 %v1718, 0.25
  %v1727 = vmul.f32 %v1721, 0.25
  %v1728 = vadd.f32 %v1724, %v357
  %v1729 = vadd.f32 %v1725, %v357
  %v1730 = vadd.f32 %v1726, %v361
  %v1731 = vadd.f32 %v1727, %v361
  %v1732 = vsel %vm250, %v1728, -inf
  %1733 = vmax.xlane.f32.xlu0 %v1732
  %v1734 = vpop.xlane.xlu0 %1733
  %v1735 = vsel %vm250, %v1729, -inf
  %1736 = vmax.xlane.f32.xlu0 %v1735
  %v1737 = vpop.xlane.xlu0 %1736
  %v1738 = vsel %vm250, %v1730, -inf
  %1739 = vmax.xlane.f32.xlu0 %v1738
  %v1740 = vpop.xlane.xlu0 %1739
  %v1741 = vsel %vm250, %v1731, -inf
  %1742 = vmax.xlane.f32.xlu0 %v1741
  %v1743 = vpop.xlane.xlu0 %1742
  %v1744 = vsub.f32 %v1728, %v1734
  %v1745 = vsub.f32 %v1729, %v1737
  %v1746 = vsub.f32 %v1730, %v1740
  %v1747 = vsub.f32 %v1731, %v1743
  %v1748 = vmul.f32 %v1744, 1.442695
  %v1749 = vpow.pop %v1748
  %v1750 = vmul.f32 %v1745, 1.442695
  %v1751 = vpow.pop %v1750
  %v1752 = vmul.f32 %v1746, 1.442695
  %v1753 = vpow.pop %v1752
  %v1754 = vmul.f32 %v1747, 1.442695
  %v1755 = vpow.pop %v1754
  %v1756 = vsel %vm250, %v1749, 0.0
  %1757 = vadd.xlane.f32.xlu0 %v1756
  %v1758 = vpop.xlane.xlu0 %1757
  %v1759 = vsel %vm250, %v1751, 0.0
  %1760 = vadd.xlane.f32.xlu0 %v1759
  %v1761 = vpop.xlane.xlu0 %1760
  %v1762 = vsel %vm250, %v1753, 0.0
  %1763 = vadd.xlane.f32.xlu0 %v1762
  %v1764 = vpop.xlane.xlu0 %1763
  %v1765 = vsel %vm250, %v1755, 0.0
  %1766 = vadd.xlane.f32.xlu0 %v1765
  %v1767 = vpop.xlane.xlu0 %1766
  %v1768 = vrcp.pop %v1758
  %v1769 = vrcp.pop %v1761
  %v1770 = vrcp.pop %v1764
  %v1771 = vrcp.pop %v1767
  %v1772 = vmul.f32 %v1749, %v1768
  %v1773 = vmul.f32 %v1751, %v1769
  %v1774 = vmul.f32 %v1753, %v1770
  %v1775 = vmul.f32 %v1755, %v1771
  %v1776 = vpack.c.bf16 %v1773, %v1772
  %v1777 = vpack.c.bf16 %v1775, %v1774
  %1778 = vrot.lane.b32.xlu0 %v1369, 48
  %v1779 = vpop.permute.xlu0 %1778
  %v1782 = vsel %vm250, %v1776, 0
  %1784 = vmatprep.subr.bf16.mxu0 0
  %1785 = vmatpush1.bf16.msra.mxu0 0
  %1786 = vmatprep.subr.bf16.mxu0 0
  %1787 = vmatpush1.bf16.msra.mxu0 0
  %1788 = vmatprep.subr.bf16.mxu0 0
  %1789 = vmatpush1.bf16.msra.mxu0 0
  %1790 = vmatprep.subr.bf16.mxu0 0
  %1791 = vmatpush1.bf16.msra.mxu0 0
  %1792 = vmatprep.subr.bf16.mxu0 0
  %1793 = vmatpush1.bf16.msra.mxu0 0
  %1794 = vmatprep.subr.bf16.mxu0 0
  %1795 = vmatpush1.bf16.msra.mxu0 0
  %1796 = vmatprep.subr.bf16.mxu0 0
  %1797 = vmatpush1.bf16.msra.mxu0 0
  %1798 = vmatprep.subr.bf16.mxu0 0
  %1799 = vmatpush1.bf16.msra.mxu0 %v1779
  %1800 = vmatprep.subr.bf16.mxu0 0
  %1801 = vmatpush2.bf16.msra.mxu0 0
  %1802 = vmatprep.subr.bf16.mxu0 0
  %1803 = vmatpush2.bf16.msra.mxu0 0
  %1804 = vmatprep.subr.bf16.mxu0 0
  %1805 = vmatpush2.bf16.msra.mxu0 0
  %1806 = vmatprep.subr.bf16.mxu0 0
  %1807 = vmatpush2.bf16.msra.mxu0 0
  %1808 = vmatprep.subr.bf16.mxu0 0
  %1809 = vmatpush2.bf16.msra.mxu0 0
  %1810 = vmatprep.subr.bf16.mxu0 0
  %1811 = vmatpush2.bf16.msra.mxu0 0
  %1812 = vmatprep.subr.bf16.mxu0 0
  %1813 = vmatpush2.bf16.msra.mxu0 0
  %1814 = vmatprep.subr.bf16.mxu0 0
  %1815 = vmatpush2.bf16.msra.mxu0 0
  %1816 = vmatprep.mubr.bf16.mxu0 0
  %1817 = vmatmul.mubr.bf16.gmra.mxu0 %v1782
  %v1818 = vpop.f32.mrf.mxu0
  %v1819 = vadd.f32 0.0, %v1818
  %v1820 = vpop.f32.mrf.mxu0
  %v1821 = vpop.f32.mrf.mxu0
  %v1822 = vadd.f32 0.0, %v1821
  %v1823 = vpop.f32.mrf.mxu0
  %1824 = vdwg.mxu0
  %1825 = vrot.lane.b32.xlu0 %v1370, 48
  %v1826 = vpop.permute.xlu0 %1825
  %v1829 = vsel %vm250, %v1777, 0
  %1831 = vmatprep.subr.bf16.mxu0 0
  %1832 = vmatpush1.bf16.msra.mxu0 0
  %1833 = vmatprep.subr.bf16.mxu0 0
  %1834 = vmatpush1.bf16.msra.mxu0 0
  %1835 = vmatprep.subr.bf16.mxu0 0
  %1836 = vmatpush1.bf16.msra.mxu0 0
  %1837 = vmatprep.subr.bf16.mxu0 0
  %1838 = vmatpush1.bf16.msra.mxu0 0
  %1839 = vmatprep.subr.bf16.mxu0 0
  %1840 = vmatpush1.bf16.msra.mxu0 0
  %1841 = vmatprep.subr.bf16.mxu0 0
  %1842 = vmatpush1.bf16.msra.mxu0 0
  %1843 = vmatprep.subr.bf16.mxu0 0
  %1844 = vmatpush1.bf16.msra.mxu0 0
  %1845 = vmatprep.subr.bf16.mxu0 0
  %1846 = vmatpush1.bf16.msra.mxu0 %v1826
  %1847 = vmatprep.subr.bf16.mxu0 0
  %1848 = vmatpush2.bf16.msra.mxu0 0
  %1849 = vmatprep.subr.bf16.mxu0 0
  %1850 = vmatpush2.bf16.msra.mxu0 0
  %1851 = vmatprep.subr.bf16.mxu0 0
  %1852 = vmatpush2.bf16.msra.mxu0 0
  %1853 = vmatprep.subr.bf16.mxu0 0
  %1854 = vmatpush2.bf16.msra.mxu0 0
  %1855 = vmatprep.subr.bf16.mxu0 0
  %1856 = vmatpush2.bf16.msra.mxu0 0
  %1857 = vmatprep.subr.bf16.mxu0 0
  %1858 = vmatpush2.bf16.msra.mxu0 0
  %1859 = vmatprep.subr.bf16.mxu0 0
  %1860 = vmatpush2.bf16.msra.mxu0 0
  %1861 = vmatprep.subr.bf16.mxu0 0
  %1862 = vmatpush2.bf16.msra.mxu0 0
  %1863 = vmatprep.mubr.bf16.mxu0 0
  %1864 = vmatmul.mubr.bf16.gmra.mxu0 %v1829
  %v1865 = vpop.f32.mrf.mxu0
  %v1866 = vadd.f32 0.0, %v1865
  %v1867 = vpop.f32.mrf.mxu0
  %v1868 = vpop.f32.mrf.mxu0
  %v1869 = vadd.f32 0.0, %v1868
  %v1870 = vpop.f32.mrf.mxu0
  %1871 = vdwg.mxu0
  %v1872 = vpack.c.bf16 %v1822, %v1819
  %v1873 = vpack.c.bf16 %v1869, %v1866
  %v1874 = vpack.c.bf16 %v1281, %v1280
  %v1876 = vsel %vm250, %v1872, 0
  %v1879 = vsel %vm250, %v1873, 0
  %1881 = vmatprep.subr.bf16.mxu0 0
  %1882 = vmatpush1.bf16.msra.mxu0 0
  %1883 = vmatprep.subr.bf16.mxu0 0
  %1884 = vmatpush1.bf16.msra.mxu0 0
  %1885 = vmatprep.subr.bf16.mxu0 0
  %1886 = vmatpush1.bf16.msra.mxu0 0
  %1887 = vmatprep.subr.bf16.mxu0 0
  %1888 = vmatpush1.bf16.msra.mxu0 0
  %1889 = vmatprep.subr.bf16.mxu0 0
  %1890 = vmatpush1.bf16.msra.mxu0 0
  %1891 = vmatprep.subr.bf16.mxu0 0
  %1892 = vmatpush1.bf16.msra.mxu0 0
  %1893 = vmatprep.subr.bf16.mxu0 0
  %1894 = vmatpush1.bf16.msra.mxu0 0
  %1895 = vmatprep.subr.bf16.mxu0 0
  %1896 = vmatpush1.bf16.msra.mxu0 %v1874
  %1897 = vmatprep.subr.bf16.mxu0 0
  %1898 = vmatpush2.bf16.msra.mxu0 0
  %1899 = vmatprep.subr.bf16.mxu0 0
  %1900 = vmatpush2.bf16.msra.mxu0 0
  %1901 = vmatprep.subr.bf16.mxu0 0
  %1902 = vmatpush2.bf16.msra.mxu0 0
  %1903 = vmatprep.subr.bf16.mxu0 0
  %1904 = vmatpush2.bf16.msra.mxu0 0
  %1905 = vmatprep.subr.bf16.mxu0 0
  %1906 = vmatpush2.bf16.msra.mxu0 0
  %1907 = vmatprep.subr.bf16.mxu0 0
  %1908 = vmatpush2.bf16.msra.mxu0 0
  %1909 = vmatprep.subr.bf16.mxu0 0
  %1910 = vmatpush2.bf16.msra.mxu0 0
  %1911 = vmatprep.subr.bf16.mxu0 0
  %1912 = vmatpush2.bf16.msra.mxu0 0
  %1913 = vmatprep.mubr.bf16.mxu0 0
  %1914 = vmatmul.mubr.bf16.gmra.mxu0 %v1876
  %v1915 = vpop.f32.mrf.mxu0
  %v1916 = vadd.f32 0.0, %v1915
  %v1917 = vpop.f32.mrf.mxu0
  %v1918 = vpop.f32.mrf.mxu0
  %v1919 = vadd.f32 0.0, %v1918
  %v1920 = vpop.f32.mrf.mxu0
  %1921 = vmatprep.mubr.bf16.mxu0 0
  %1922 = vmatmul.mubr.bf16.gmra.mxu0 %v1879
  %v1923 = vpop.f32.mrf.mxu0
  %v1924 = vadd.f32 0.0, %v1923
  %v1925 = vpop.f32.mrf.mxu0
  %v1926 = vpop.f32.mrf.mxu0
  %v1927 = vadd.f32 0.0, %v1926
  %v1928 = vpop.f32.mrf.mxu0
  %1929 = vdwg.mxu0
  %v1931 = vsel %vm250, %v1619, 0
  %v1934 = vsel %vm250, %v1620, 0
  %1936 = vmatprep.subr.bf16.mxu0 0
  %1937 = vmatpush1.bf16.msra.mxu0 0
  %1938 = vmatprep.subr.bf16.mxu0 0
  %1939 = vmatpush1.bf16.msra.mxu0 0
  %1940 = vmatprep.subr.bf16.mxu0 0
  %1941 = vmatpush1.bf16.msra.mxu0 0
  %1942 = vmatprep.subr.bf16.mxu0 0
  %1943 = vmatpush1.bf16.msra.mxu0 0
  %1944 = vmatprep.subr.bf16.mxu0 0
  %1945 = vmatpush1.bf16.msra.mxu0 0
  %1946 = vmatprep.subr.bf16.mxu0 0
  %1947 = vmatpush1.bf16.msra.mxu0 0
  %1948 = vmatprep.subr.bf16.mxu0 0
  %1949 = vmatpush1.bf16.msra.mxu0 0
  %1950 = vmatprep.subr.bf16.mxu0 0
  %1951 = vmatpush1.bf16.msra.mxu0 %v1621
  %1952 = vmatprep.subr.bf16.mxu0 0
  %1953 = vmatpush2.bf16.msra.mxu0 0
  %1954 = vmatprep.subr.bf16.mxu0 0
  %1955 = vmatpush2.bf16.msra.mxu0 0
  %1956 = vmatprep.subr.bf16.mxu0 0
  %1957 = vmatpush2.bf16.msra.mxu0 0
  %1958 = vmatprep.subr.bf16.mxu0 0
  %1959 = vmatpush2.bf16.msra.mxu0 0
  %1960 = vmatprep.subr.bf16.mxu0 0
  %1961 = vmatpush2.bf16.msra.mxu0 0
  %1962 = vmatprep.subr.bf16.mxu0 0
  %1963 = vmatpush2.bf16.msra.mxu0 0
  %1964 = vmatprep.subr.bf16.mxu0 0
  %1965 = vmatpush2.bf16.msra.mxu0 0
  %1966 = vmatprep.subr.bf16.mxu0 0
  %1967 = vmatpush2.bf16.msra.mxu0 0
  %1968 = vmatprep.mubr.bf16.mxu0 0
  %1969 = vmatmul.mubr.bf16.gmra.mxu0 %v1931
  %v1970 = vpop.f32.mrf.mxu0
  %v1971 = vadd.f32 %v1916, %v1970
  %v1972 = vpop.f32.mrf.mxu0
  %v1973 = vpop.f32.mrf.mxu0
  %v1974 = vadd.f32 %v1919, %v1973
  %v1975 = vpop.f32.mrf.mxu0
  %1976 = vmatprep.mubr.bf16.mxu0 0
  %1977 = vmatmul.mubr.bf16.gmra.mxu0 %v1934
  %v1978 = vpop.f32.mrf.mxu0
  %v1979 = vadd.f32 %v1924, %v1978
  %v1980 = vpop.f32.mrf.mxu0
  %v1981 = vpop.f32.mrf.mxu0
  %v1982 = vadd.f32 %v1927, %v1981
  %v1983 = vpop.f32.mrf.mxu0
  %1984 = vdwg.mxu0
  %v1985 = vlaneseq
  %v1986 = vshrl.u32 %v1985, 7
  %v1987 = vsub.s32 1, %v1986
  %v1988 = vrot.slane %v1305, %v1987
  %v1989 = vadd.f32 %v1971, %v1988
  %v1990 = vadd.f32 %v1974, %v1988
  %v1991 = vadd.f32 %v1979, %v1988
  %v1992 = vadd.f32 %v1982, %v1988
  %v1993 = vadd.f32 %v1989, %v1268
  %v1994 = vadd.f32 %v1990, %v1269
  %v1995 = vadd.f32 %v1991, %v1270
  %v1996 = vadd.f32 %v1992, %v1271
  %v1997 = vsel %vm189, %v1993, 0.0
  %1998 = vadd.xlane.f32.xlu0 %v1997
  %v1999 = vpop.xlane.xlu0 %1998
  %v2000 = vsel %vm189, %v1994, 0.0
  %2001 = vadd.xlane.f32.xlu0 %v2000
  %v2002 = vpop.xlane.xlu0 %2001
  %v2003 = vsel %vm189, %v1995, 0.0
  %2004 = vadd.xlane.f32.xlu0 %v2003
  %v2005 = vpop.xlane.xlu0 %2004
  %v2006 = vsel %vm189, %v1996, 0.0
  %2007 = vadd.xlane.f32.xlu0 %v2006
  %v2008 = vpop.xlane.xlu0 %2007
  %v2009 = vmul.f32 %v1999, %v898
  %v2010 = vmul.f32 %v2002, %v898
  %v2011 = vmul.f32 %v2005, %v898
  %v2012 = vmul.f32 %v2008, %v898
  %v2013 = vsub.f32 %v1993, %v2009
  %v2014 = vsub.f32 %v1994, %v2010
  %v2015 = vsub.f32 %v1995, %v2011
  %v2016 = vsub.f32 %v1996, %v2012
  %v2017 = vmul.f32 %v2013, %v2013
  %v2018 = vmul.f32 %v2014, %v2014
  %v2019 = vmul.f32 %v2015, %v2015
  %v2020 = vmul.f32 %v2016, %v2016
  %v2021 = vsel %vm189, %v2017, 0.0
  %2022 = vadd.xlane.f32.xlu0 %v2021
  %v2023 = vpop.xlane.xlu0 %2022
  %v2024 = vsel %vm189, %v2018, 0.0
  %2025 = vadd.xlane.f32.xlu0 %v2024
  %v2026 = vpop.xlane.xlu0 %2025
  %v2027 = vsel %vm189, %v2019, 0.0
  %2028 = vadd.xlane.f32.xlu0 %v2027
  %v2029 = vpop.xlane.xlu0 %2028
  %v2030 = vsel %vm189, %v2020, 0.0
  %2031 = vadd.xlane.f32.xlu0 %v2030
  %v2032 = vpop.xlane.xlu0 %2031
  %v2033 = vmul.f32 %v2023, %v898
  %v2034 = vmul.f32 %v2026, %v898
  %v2035 = vmul.f32 %v2029, %v898
  %v2036 = vmul.f32 %v2032, %v898
  %v2037 = vadd.f32 %v2033, 1e-05
  %v2038 = vadd.f32 %v2034, 1e-05
  %v2039 = vadd.f32 %v2035, 1e-05
  %v2040 = vadd.f32 %v2036, 1e-05
  %v2041 = vrsqrt.pop %v2037
  %v2042 = vrsqrt.pop %v2038
  %v2043 = vrsqrt.pop %v2039
  %v2044 = vrsqrt.pop %v2040
  %v2045 = vmul.f32 %v2013, %v2041
  %v2046 = vmul.f32 %v2014, %v2042
  %v2047 = vmul.f32 %v2015, %v2043
  %v2048 = vmul.f32 %v2016, %v2044
  %v2049 = vlaneseq
  %v2050 = vshrl.u32 %v2049, 7
  %v2051 = vsub.s32 2, %v2050
  %v2052 = vrot.slane %v1305, %v2051
  %v2053 = vmul.f32 %v2045, %v2052
  %v2054 = vmul.f32 %v2046, %v2052
  %v2055 = vmul.f32 %v2047, %v2052
  %v2056 = vmul.f32 %v2048, %v2052
  %v2057 = vlaneseq
  %v2058 = vshrl.u32 %v2057, 7
  %v2059 = vsub.s32 3, %v2058
  %v2060 = vrot.slane %v1305, %v2059
  %v2061 = vadd.f32 %v2053, %v2060
  %v2062 = vadd.f32 %v2054, %v2060
  %v2063 = vadd.f32 %v2055, %v2060
  %v2064 = vadd.f32 %v2056, %v2060
  %v2065 = vmul.f32 %v2061, %v958
  %v2066 = vmul.f32 %v2062, %v963
  %v2067 = vmul.f32 %v2063, %v968
  %v2068 = vmul.f32 %v2064, %v973
  %v2073 = vrot.slane %v2065, 7
  %v2074 = vrot.slane %v2066, 7
  %v2075 = vsel %vm983, %v2073, %v2074
  %v2076 = vrot.slane %v2067, 7
  %v2077 = vrot.slane %v2068, 7
  %v2078 = vsel %vm983, %v2076, %v2077
  %v2085 = vsel %vm983, 0.0, %v2073
  %v2086 = vsel %vm983, 0.0, %v2076
  %v2087 = vsel %vm983, %v2074, 0.0
  %v2088 = vsel %vm983, %v2077, 0.0
  %v2093 = vrot.slane %v2085, 1
  %v2094 = vrot.slane %v2075, 1
  %v2095 = vsel %vm1004, %v2093, %v2094
  %v2096 = vrot.slane %v2087, 1
  %v2097 = vsel %vm1004, %v2094, %v2096
  %v2098 = vrot.slane %v2086, 1
  %v2099 = vrot.slane %v2078, 1
  %v2100 = vsel %vm1004, %v2098, %v2099
  %v2101 = vrot.slane %v2088, 1
  %v2102 = vsel %vm1004, %v2099, %v2101
  %2103 = vrot.lane.b32.xlu0 %v2095, 32
  %v2104 = vpop.permute.xlu0 %2103
  %2105 = vrot.lane.b32.xlu0 %v2097, 32
  %v2106 = vpop.permute.xlu0 %2105
  %2107 = vrot.lane.b32.xlu0 %v2100, 32
  %v2108 = vpop.permute.xlu0 %2107
  %2109 = vrot.lane.b32.xlu0 %v2102, 32
  %v2110 = vpop.permute.xlu0 %2109
  %v2115 = vrot.slane %v2085, 2
  %v2116 = vrot.slane %v2075, 2
  %v2117 = vsel %vm1027, %v2115, %v2116
  %v2118 = vrot.slane %v2087, 2
  %v2119 = vsel %vm1027, %v2116, %v2118
  %v2120 = vrot.slane %v2086, 2
  %v2121 = vrot.slane %v2078, 2
  %v2122 = vsel %vm1027, %v2120, %v2121
  %v2123 = vrot.slane %v2088, 2
  %v2124 = vsel %vm1027, %v2121, %v2123
  %2125 = vrot.lane.b32.xlu0 %v2117, 64
  %v2126 = vpop.permute.xlu0 %2125
  %2127 = vrot.lane.b32.xlu0 %v2119, 64
  %v2128 = vpop.permute.xlu0 %2127
  %2129 = vrot.lane.b32.xlu0 %v2122, 64
  %v2130 = vpop.permute.xlu0 %2129
  %2131 = vrot.lane.b32.xlu0 %v2124, 64
  %v2132 = vpop.permute.xlu0 %2131
  %v2137 = vsel %vm189, %v2085, %v2104
  %v2138 = vsel %vm189, %v2075, %v2106
  %v2139 = vsel %vm189, %v2086, %v2108
  %v2140 = vsel %vm189, %v2078, %v2110
  %v2141 = vsel %vm1054, %v2137, %v2126
  %v2142 = vsel %vm1054, %v2138, %v2128
  %v2143 = vsel %vm1054, %v2139, %v2130
  %v2144 = vsel %vm1054, %v2140, %v2132
  %v2145 = vpack.c.bf16 %v2142, %v2141
  %v2146 = vpack.c.bf16 %v2144, %v2143
  %v2147 = vpack.c.bf16 %v1284, %v1283
  %v2148 = vpack.c.bf16 %v1286, %v1285
  %v2149 = vpack.c.bf16 %v1288, %v1287
  %v2150 = vpack.c.bf16 %v1290, %v1289
  %v2151 = vpack.c.bf16 %v1292, %v1291
  %v2152 = vpack.c.bf16 %v1294, %v1293
  %v2153 = vlaneseq
  %v2154 = vshrl.u32 %v2153, 7
  %v2155 = vsub.s32 4, %v2154
  %v2156 = vrot.slane %v1305, %v2155
  %v2158 = vsel %vm1071, %v2145, 0
  %v2161 = vsel %vm1071, %v2146, 0
  %2163 = vmatprep.subr.bf16.mxu0 0
  %2164 = vmatpush1.bf16.msra.mxu0 0
  %2165 = vmatprep.subr.bf16.mxu0 0
  %2166 = vmatpush1.bf16.msra.mxu0 0
  %2167 = vmatprep.subr.bf16.mxu0 0
  %2168 = vmatpush1.bf16.msra.mxu0 %v2152
  %2169 = vmatprep.subr.bf16.mxu0 0
  %2170 = vmatpush1.bf16.msra.mxu0 %v2151
  %2171 = vmatprep.subr.bf16.mxu0 0
  %2172 = vmatpush1.bf16.msra.mxu0 %v2150
  %2173 = vmatprep.subr.bf16.mxu0 0
  %2174 = vmatpush1.bf16.msra.mxu0 %v2149
  %2175 = vmatprep.subr.bf16.mxu0 0
  %2176 = vmatpush1.bf16.msra.mxu0 %v2148
  %2177 = vmatprep.subr.bf16.mxu0 0
  %2178 = vmatpush1.bf16.msra.mxu0 %v2147
  %2179 = vmatprep.subr.bf16.mxu0 0
  %2180 = vmatpush2.bf16.msra.mxu0 0
  %2181 = vmatprep.subr.bf16.mxu0 0
  %2182 = vmatpush2.bf16.msra.mxu0 0
  %2183 = vmatprep.subr.bf16.mxu0 0
  %2184 = vmatpush2.bf16.msra.mxu0 0
  %2185 = vmatprep.subr.bf16.mxu0 0
  %2186 = vmatpush2.bf16.msra.mxu0 0
  %2187 = vmatprep.subr.bf16.mxu0 0
  %2188 = vmatpush2.bf16.msra.mxu0 0
  %2189 = vmatprep.subr.bf16.mxu0 0
  %2190 = vmatpush2.bf16.msra.mxu0 0
  %2191 = vmatprep.subr.bf16.mxu0 0
  %2192 = vmatpush2.bf16.msra.mxu0 0
  %2193 = vmatprep.subr.bf16.mxu0 0
  %2194 = vmatpush2.bf16.msra.mxu0 0
  %2195 = vmatprep.mubr.bf16.mxu0 0
  %2196 = vmatmul.mubr.bf16.gmra.mxu0 %v2158
  %v2197 = vpop.f32.mrf.mxu0
  %v2198 = vadd.f32 %v2156, %v2197
  %v2199 = vpop.f32.mrf.mxu0
  %v2200 = vpop.f32.mrf.mxu0
  %v2201 = vadd.f32 %v2156, %v2200
  %v2202 = vpop.f32.mrf.mxu0
  %2203 = vmatprep.mubr.bf16.mxu0 0
  %2204 = vmatmul.mubr.bf16.gmra.mxu0 %v2161
  %v2205 = vpop.f32.mrf.mxu0
  %v2206 = vadd.f32 %v2156, %v2205
  %v2207 = vpop.f32.mrf.mxu0
  %v2208 = vpop.f32.mrf.mxu0
  %v2209 = vadd.f32 %v2156, %v2208
  %v2210 = vpop.f32.mrf.mxu0
  %2211 = vdwg.mxu0
  %v2212 = vmax.f32 %v2198, 0.0
  %v2213 = vmax.f32 %v2201, 0.0
  %v2214 = vmax.f32 %v2206, 0.0
  %v2215 = vmax.f32 %v2209, 0.0
  %v2216 = vpack.c.bf16 %v2213, %v2212
  %v2217 = vpack.c.bf16 %v2215, %v2214
  %v2218 = vpack.c.bf16 %v1297, %v1296
  %v2219 = vpack.c.bf16 %v1299, %v1298
  %v2220 = vpack.c.bf16 %v1301, %v1300
  %v2221 = vpack.c.bf16 %v1303, %v1302
  %v2222 = vlaneseq
  %v2223 = vshrl.u32 %v2222, 7
  %v2224 = vsub.s32 5, %v2223
  %v2225 = vrot.slane %v1305, %v2224
  %v2227 = vsel %vm1054, %v2216, 0
  %v2230 = vsel %vm1054, %v2217, 0
  %2232 = vmatprep.subr.bf16.mxu0 0
  %2233 = vmatpush1.bf16.msra.mxu0 0
  %2234 = vmatprep.subr.bf16.mxu0 0
  %2235 = vmatpush1.bf16.msra.mxu0 0
  %2236 = vmatprep.subr.bf16.mxu0 0
  %2237 = vmatpush1.bf16.msra.mxu0 0
  %2238 = vmatprep.subr.bf16.mxu0 0
  %2239 = vmatpush1.bf16.msra.mxu0 0
  %2240 = vmatprep.subr.bf16.mxu0 0
  %2241 = vmatpush1.bf16.msra.mxu0 %v2221
  %2242 = vmatprep.subr.bf16.mxu0 0
  %2243 = vmatpush1.bf16.msra.mxu0 %v2220
  %2244 = vmatprep.subr.bf16.mxu0 0
  %2245 = vmatpush1.bf16.msra.mxu0 %v2219
  %2246 = vmatprep.subr.bf16.mxu0 0
  %2247 = vmatpush1.bf16.msra.mxu0 %v2218
  %2248 = vmatprep.subr.bf16.mxu0 0
  %2249 = vmatpush2.bf16.msra.mxu0 0
  %2250 = vmatprep.subr.bf16.mxu0 0
  %2251 = vmatpush2.bf16.msra.mxu0 0
  %2252 = vmatprep.subr.bf16.mxu0 0
  %2253 = vmatpush2.bf16.msra.mxu0 0
  %2254 = vmatprep.subr.bf16.mxu0 0
  %2255 = vmatpush2.bf16.msra.mxu0 0
  %2256 = vmatprep.subr.bf16.mxu0 0
  %2257 = vmatpush2.bf16.msra.mxu0 0
  %2258 = vmatprep.subr.bf16.mxu0 0
  %2259 = vmatpush2.bf16.msra.mxu0 0
  %2260 = vmatprep.subr.bf16.mxu0 0
  %2261 = vmatpush2.bf16.msra.mxu0 0
  %2262 = vmatprep.subr.bf16.mxu0 0
  %2263 = vmatpush2.bf16.msra.mxu0 0
  %2264 = vmatprep.mubr.bf16.mxu0 0
  %2265 = vmatmul.mubr.bf16.gmra.mxu0 %v2227
  %v2266 = vpop.f32.mrf.mxu0
  %v2267 = vadd.f32 %v2225, %v2266
  %v2268 = vpop.f32.mrf.mxu0
  %v2269 = vpop.f32.mrf.mxu0
  %v2270 = vadd.f32 %v2225, %v2269
  %v2271 = vpop.f32.mrf.mxu0
  %2272 = vmatprep.mubr.bf16.mxu0 0
  %2273 = vmatmul.mubr.bf16.gmra.mxu0 %v2230
  %v2274 = vpop.f32.mrf.mxu0
  %v2275 = vadd.f32 %v2225, %v2274
  %v2276 = vpop.f32.mrf.mxu0
  %v2277 = vpop.f32.mrf.mxu0
  %v2278 = vadd.f32 %v2225, %v2277
  %v2279 = vpop.f32.mrf.mxu0
  %2280 = vdwg.mxu0
  %v2281 = vadd.f32 %v2267, %v2065
  %v2282 = vadd.f32 %v2270, %v2066
  %v2283 = vadd.f32 %v2275, %v2067
  %v2284 = vadd.f32 %v2278, %v2068
  %v2285 = vsel %vm189, %v2281, 0.0
  %2286 = vadd.xlane.f32.xlu0 %v2285
  %v2287 = vpop.xlane.xlu0 %2286
  %v2288 = vsel %vm189, %v2282, 0.0
  %2289 = vadd.xlane.f32.xlu0 %v2288
  %v2290 = vpop.xlane.xlu0 %2289
  %v2291 = vsel %vm189, %v2283, 0.0
  %2292 = vadd.xlane.f32.xlu0 %v2291
  %v2293 = vpop.xlane.xlu0 %2292
  %v2294 = vsel %vm189, %v2284, 0.0
  %2295 = vadd.xlane.f32.xlu0 %v2294
  %v2296 = vpop.xlane.xlu0 %2295
  %v2297 = vmul.f32 %v2287, %v898
  %v2298 = vmul.f32 %v2290, %v898
  %v2299 = vmul.f32 %v2293, %v898
  %v2300 = vmul.f32 %v2296, %v898
  %v2301 = vsub.f32 %v2281, %v2297
  %v2302 = vsub.f32 %v2282, %v2298
  %v2303 = vsub.f32 %v2283, %v2299
  %v2304 = vsub.f32 %v2284, %v2300
  %v2305 = vmul.f32 %v2301, %v2301
  %v2306 = vmul.f32 %v2302, %v2302
  %v2307 = vmul.f32 %v2303, %v2303
  %v2308 = vmul.f32 %v2304, %v2304
  %v2309 = vsel %vm189, %v2305, 0.0
  %2310 = vadd.xlane.f32.xlu0 %v2309
  %v2311 = vpop.xlane.xlu0 %2310
  %v2312 = vsel %vm189, %v2306, 0.0
  %2313 = vadd.xlane.f32.xlu0 %v2312
  %v2314 = vpop.xlane.xlu0 %2313
  %v2315 = vsel %vm189, %v2307, 0.0
  %2316 = vadd.xlane.f32.xlu0 %v2315
  %v2317 = vpop.xlane.xlu0 %2316
  %v2318 = vsel %vm189, %v2308, 0.0
  %2319 = vadd.xlane.f32.xlu0 %v2318
  %v2320 = vpop.xlane.xlu0 %2319
  %v2321 = vmul.f32 %v2311, %v898
  %v2322 = vmul.f32 %v2314, %v898
  %v2323 = vmul.f32 %v2317, %v898
  %v2324 = vmul.f32 %v2320, %v898
  %v2325 = vadd.f32 %v2321, 1e-05
  %v2326 = vadd.f32 %v2322, 1e-05
  %v2327 = vadd.f32 %v2323, 1e-05
  %v2328 = vadd.f32 %v2324, 1e-05
  %v2329 = vrsqrt.pop %v2325
  %v2330 = vrsqrt.pop %v2326
  %v2331 = vrsqrt.pop %v2327
  %v2332 = vrsqrt.pop %v2328
  %v2333 = vmul.f32 %v2301, %v2329
  %v2334 = vmul.f32 %v2302, %v2330
  %v2335 = vmul.f32 %v2303, %v2331
  %v2336 = vmul.f32 %v2304, %v2332
  %v2337 = vlaneseq
  %v2338 = vshrl.u32 %v2337, 7
  %v2339 = vsub.s32 6, %v2338
  %v2340 = vrot.slane %v1305, %v2339
  %v2341 = vmul.f32 %v2333, %v2340
  %v2342 = vmul.f32 %v2334, %v2340
  %v2343 = vmul.f32 %v2335, %v2340
  %v2344 = vmul.f32 %v2336, %v2340
  %v2345 = vlaneseq
  %v2346 = vshrl.u32 %v2345, 7
  %v2347 = vsub.s32 7, %v2346
  %v2348 = vrot.slane %v1305, %v2347
  %v2349 = vadd.f32 %v2341, %v2348
  %v2350 = vadd.f32 %v2342, %v2348
  %v2351 = vadd.f32 %v2343, %v2348
  %v2352 = vadd.f32 %v2344, %v2348
  %v2353 = vmul.f32 %v2349, %v958
  %v2354 = vmul.f32 %v2350, %v963
  %v2355 = vmul.f32 %v2351, %v968
  %v2356 = vmul.f32 %v2352, %v973
  %2357 = vst.msk [vmem:[%s10] sm:$0xff] %vm189, %v2353
  %2358 = vst.msk [vmem:[%s10 + $0x8] sm:$0xff] %vm189, %v2354
  %2359 = vst.msk [vmem:[%s10 + $0x10] sm:$0xff] %vm189, %v2355
  %2360 = vst.msk [vmem:[%s10 + $0x18] sm:$0xff] %vm189, %v2356
  // Predicated region
  $region42: #{fastspeech_forward.4} parent=0 // pred_check
    _
  $region43: #{fastspeech_forward.4} parent=0 // pred_check_branch
    %2362 = sbr.rel (0) target = $region45
  $region44: #{fastspeech_forward.4} parent=0 // pred_region
    _
  $region45: #{fastspeech_forward.4} parent=0 // pred_fallthru
    _
  // Predicated region
  $region46: #{fastspeech_forward.4} parent=0 // pred_check
    _
  $region47: #{fastspeech_forward.4} parent=0 // pred_check_branch
    %2364 = sbr.rel (0) target = $region49
  $region48: #{fastspeech_forward.4} parent=0 // pred_region
    _
  $region49: #{fastspeech_forward.4} parent=0 // pred_fallthru
    _

// kernel: fastspeech_forward.3
$region0: #{fastspeech_forward.3}
  #allocation0 [shape = 'u32[]', space=smem, size = 0x4, offset = 0x4, fixed_abs, tag = 'smem constant byte address 0x4 - core index']
  #allocation1 [shape = 'u32[144,128]{1,0:T(1,128)}', space=vmem, size = 0x12000, scoped, tag = 'internal scratch']
  %s0 = inlined_call_operand.vmem [shape: f32[2,8,32], index: 0, kind: input, shape index: {}]
  %s1 = inlined_call_operand.vmem [shape: f32[2,1,8], index: 1, kind: input, shape index: {}]
  %s2 = inlined_call_operand.vmem [shape: f32[2,8,1], index: 2, kind: input, shape index: {}]
  %s3 = inlined_call_operand.vmem [shape: f32[2,32,96], index: 3, kind: input, shape index: {}]
  %s4 = inlined_call_operand.vmem [shape: f32[2,32,32], index: 4, kind: input, shape index: {}]
  %s5 = inlined_call_operand.vmem [shape: f32[2,96,64], index: 5, kind: input, shape index: {}]
  %s6 = inlined_call_operand.vmem [shape: f32[2,64,32], index: 6, kind: input, shape index: {}]
  %s7 = inlined_call_operand.vmem [shape: f32[2,8,96], index: 7, kind: input, shape index: {}]
  %s8 = inlined_call_operand.vmem [shape: f32[2,96,32], index: 8, kind: input, shape index: {}]
  %s9 = inlined_call_operand.vmem [shape: f32[1,32], index: 9, kind: input, shape index: {}]
  %s10 = inlined_call_operand.vmem [shape: f32[7,32], index: 10, kind: input, shape index: {}]
  %s11 = inlined_call_operand.vmem [shape: f32[2,8,32], index: 11, kind: output, shape index: {0}]
  %s12 = inlined_call_operand.vmem [shape: f32[1,16], index: 12, kind: output, shape index: {1}]
  %13 = xla_tuple %s11, %s12
  %s14 = sld [smem:[#allocation0]]
  $region62: #{fastspeech_forward.3} parent=0
    _
  %s16 = ssub.s32 1, %s14
  %s17 = scalar_select 0, %s16, %s14
  // Predicated region
  $region2: #{fastspeech_forward.3} parent=0 // pred_check
    _
  $region3: #{fastspeech_forward.3} parent=0 // pred_check_branch
    %19 = sbr.rel (0) target = $region5
  $region4: #{fastspeech_forward.3} parent=0 // pred_region
    _
  $region5: #{fastspeech_forward.3} parent=0 // pred_fallthru
    _
  // Predicated region
  $region6: #{fastspeech_forward.3} parent=0 // pred_check
    _
  $region7: #{fastspeech_forward.3} parent=0 // pred_check_branch
    %21 = sbr.rel (0) target = $region9
  $region8: #{fastspeech_forward.3} parent=0 // pred_region
    _
  $region9: #{fastspeech_forward.3} parent=0 // pred_fallthru
    _
  // Predicated region
  $region10: #{fastspeech_forward.3} parent=0 // pred_check
    _
  $region11: #{fastspeech_forward.3} parent=0 // pred_check_branch
    %23 = sbr.rel (0) target = $region13
  $region12: #{fastspeech_forward.3} parent=0 // pred_region
    _
  $region13: #{fastspeech_forward.3} parent=0 // pred_fallthru
    _
  // Predicated region
  $region14: #{fastspeech_forward.3} parent=0 // pred_check
    _
  $region15: #{fastspeech_forward.3} parent=0 // pred_check_branch
    %25 = sbr.rel (0) target = $region17
  $region16: #{fastspeech_forward.3} parent=0 // pred_region
    _
  $region17: #{fastspeech_forward.3} parent=0 // pred_fallthru
    _
  // Predicated region
  $region18: #{fastspeech_forward.3} parent=0 // pred_check
    _
  $region19: #{fastspeech_forward.3} parent=0 // pred_check_branch
    %27 = sbr.rel (0) target = $region21
  $region20: #{fastspeech_forward.3} parent=0 // pred_region
    _
  $region21: #{fastspeech_forward.3} parent=0 // pred_fallthru
    _
  // Predicated region
  $region22: #{fastspeech_forward.3} parent=0 // pred_check
    _
  $region23: #{fastspeech_forward.3} parent=0 // pred_check_branch
    %29 = sbr.rel (0) target = $region25
  $region24: #{fastspeech_forward.3} parent=0 // pred_region
    _
  $region25: #{fastspeech_forward.3} parent=0 // pred_fallthru
    _
  // Predicated region
  $region26: #{fastspeech_forward.3} parent=0 // pred_check
    _
  $region27: #{fastspeech_forward.3} parent=0 // pred_check_branch
    %31 = sbr.rel (0) target = $region29
  $region28: #{fastspeech_forward.3} parent=0 // pred_region
    _
  $region29: #{fastspeech_forward.3} parent=0 // pred_fallthru
    _
  // Predicated region
  $region30: #{fastspeech_forward.3} parent=0 // pred_check
    _
  $region31: #{fastspeech_forward.3} parent=0 // pred_check_branch
    %33 = sbr.rel (0) target = $region33
  $region32: #{fastspeech_forward.3} parent=0 // pred_region
    _
  $region33: #{fastspeech_forward.3} parent=0 // pred_fallthru
    _
  // Predicated region
  $region34: #{fastspeech_forward.3} parent=0 // pred_check
    _
  $region35: #{fastspeech_forward.3} parent=0 // pred_check_branch
    %35 = sbr.rel (0) target = $region37
  $region36: #{fastspeech_forward.3} parent=0 // pred_region
    _
  $region37: #{fastspeech_forward.3} parent=0 // pred_fallthru
    _
  // Predicated region
  $region38: #{fastspeech_forward.3} parent=0 // pred_check
    _
  $region39: #{fastspeech_forward.3} parent=0 // pred_check_branch
    %37 = sbr.rel (0) target = $region41
  $region40: #{fastspeech_forward.3} parent=0 // pred_region
    _
  $region41: #{fastspeech_forward.3} parent=0 // pred_fallthru
    _
  // Predicated region
  $region42: #{fastspeech_forward.3} parent=0 // pred_check
    _
  $region43: #{fastspeech_forward.3} parent=0 // pred_check_branch
    %39 = sbr.rel (0) target = $region45
  $region44: #{fastspeech_forward.3} parent=0 // pred_region
    _
  $region45: #{fastspeech_forward.3} parent=0 // pred_fallthru
    _
  %v41 = vld [vmem:[%s0] sm:$0xff]
  %v42 = vld [vmem:[%s0 + $0x8] sm:$0xff]
  %v43 = vld [vmem:[%s1] sm:$0x1]
  %v44 = vld [vmem:[%s1 + $0x1] sm:$0x1]
  %v45 = vld [vmem:[%s2] sm:$0xff]
  %v46 = vld [vmem:[%s2 + $0x8] sm:$0xff]
  %v47 = vld [vmem:[%s3] sm:$0xff]
  %v48 = vld [vmem:[%s3 + $0x8] sm:$0xff]
  %v49 = vld [vmem:[%s3 + $0x10] sm:$0xff]
  %v50 = vld [vmem:[%s3 + $0x18] sm:$0xff]
  %v51 = vld [vmem:[%s4] sm:$0xff]
  %v52 = vld [vmem:[%s4 + $0x8] sm:$0xff]
  %v53 = vld [vmem:[%s4 + $0x10] sm:$0xff]
  %v54 = vld [vmem:[%s4 + $0x18] sm:$0xff]
  %v55 = vld [vmem:[%s5] sm:$0xff]
  %v56 = vld [vmem:[%s5 + $0x8] sm:$0xff]
  %v57 = vld [vmem:[%s5 + $0x10] sm:$0xff]
  %v58 = vld [vmem:[%s5 + $0x18] sm:$0xff]
  %v59 = vld [vmem:[%s5 + $0x20] sm:$0xff]
  %v60 = vld [vmem:[%s5 + $0x28] sm:$0xff]
  %v61 = vld [vmem:[%s5 + $0x30] sm:$0xff]
  %v62 = vld [vmem:[%s5 + $0x38] sm:$0xff]
  %v63 = vld [vmem:[%s5 + $0x40] sm:$0xff]
  %v64 = vld [vmem:[%s5 + $0x48] sm:$0xff]
  %v65 = vld [vmem:[%s5 + $0x50] sm:$0xff]
  %v66 = vld [vmem:[%s5 + $0x58] sm:$0xff]
  %v67 = vld [vmem:[%s6] sm:$0xff]
  %v68 = vld [vmem:[%s6 + $0x8] sm:$0xff]
  %v69 = vld [vmem:[%s6 + $0x10] sm:$0xff]
  %v70 = vld [vmem:[%s6 + $0x18] sm:$0xff]
  %v71 = vld [vmem:[%s6 + $0x20] sm:$0xff]
  %v72 = vld [vmem:[%s6 + $0x28] sm:$0xff]
  %v73 = vld [vmem:[%s6 + $0x30] sm:$0xff]
  %v74 = vld [vmem:[%s6 + $0x38] sm:$0xff]
  %v75 = vld [vmem:[%s7] sm:$0xff]
  %v76 = vpack.c.bf16 %v42, %v41
  %v77 = vpack.c.bf16 %v48, %v47
  %v78 = vpack.c.bf16 %v50, %v49
  %v79 = vlaneseq
  %v80 = vshrl.u32 %v79, 7
  %v81 = vsub.s32 0, %v80
  %v82 = vrot.slane %v75, %v81
  %vm83 = vcmask 261120
  %v85 = vsel %vm83, %v76, 0
  %87 = vmatprep.subr.bf16.mxu0 0
  %88 = vmatpush1.bf16.msra.mxu0 0
  %89 = vmatprep.subr.bf16.mxu0 0
  %90 = vmatpush1.bf16.msra.mxu0 0
  %91 = vmatprep.subr.bf16.mxu0 0
  %92 = vmatpush1.bf16.msra.mxu0 0
  %93 = vmatprep.subr.bf16.mxu0 0
  %94 = vmatpush1.bf16.msra.mxu0 0
  %95 = vmatprep.subr.bf16.mxu0 0
  %96 = vmatpush1.bf16.msra.mxu0 0
  %97 = vmatprep.subr.bf16.mxu0 0
  %98 = vmatpush1.bf16.msra.mxu0 0
  %99 = vmatprep.subr.bf16.mxu0 0
  %100 = vmatpush1.bf16.msra.mxu0 %v78
  %101 = vmatprep.subr.bf16.mxu0 0
  %102 = vmatpush1.bf16.msra.mxu0 %v77
  %103 = vmatprep.subr.bf16.mxu0 0
  %104 = vmatpush2.bf16.msra.mxu0 0
  %105 = vmatprep.subr.bf16.mxu0 0
  %106 = vmatpush2.bf16.msra.mxu0 0
  %107 = vmatprep.subr.bf16.mxu0 0
  %108 = vmatpush2.bf16.msra.mxu0 0
  %109 = vmatprep.subr.bf16.mxu0 0
  %110 = vmatpush2.bf16.msra.mxu0 0
  %111 = vmatprep.subr.bf16.mxu0 0
  %112 = vmatpush2.bf16.msra.mxu0 0
  %113 = vmatprep.subr.bf16.mxu0 0
  %114 = vmatpush2.bf16.msra.mxu0 0
  %115 = vmatprep.subr.bf16.mxu0 0
  %116 = vmatpush2.bf16.msra.mxu0 0
  %117 = vmatprep.subr.bf16.mxu0 0
  %118 = vmatpush2.bf16.msra.mxu0 0
  %119 = vmatprep.mubr.bf16.mxu0 0
  %120 = vmatmul.mubr.bf16.gmra.mxu0 %v85
  %v121 = vpop.f32.mrf.mxu0
  %v122 = vadd.f32 %v82, %v121
  %v123 = vpop.f32.mrf.mxu0
  %v124 = vpop.f32.mrf.mxu0
  %v125 = vadd.f32 %v82, %v124
  %v126 = vpop.f32.mrf.mxu0
  %127 = vdwg.mxu0
  %v128 = vpack.c.bf16 %v122, %v122
  %v129 = vpack.c.bf16 %v125, %v125
  %131 = vrot.lane.b32.xlu0 %v128, 96
  %v132 = vpop.permute.xlu0 %131
  %vm133 = vcmask 130048
  %v135 = vsel %vm133, %v128, 0
  %v138 = vsel %vm133, %v132, 0
  %140 = vmatprep.subr.bf16.mxu0 0
  %141 = vmatpush1.bf16.xpose.msra.mxu0 0
  %142 = vmatprep.subr.bf16.mxu0 0
  %143 = vmatpush1.bf16.xpose.msra.mxu0 0
  %144 = vmatprep.subr.bf16.mxu0 0
  %145 = vmatpush1.bf16.xpose.msra.mxu0 0
  %146 = vmatprep.subr.bf16.mxu0 0
  %147 = vmatpush1.bf16.xpose.msra.mxu0 0
  %148 = vmatprep.subr.bf16.mxu0 0
  %149 = vmatpush1.bf16.xpose.msra.mxu0 0
  %150 = vmatprep.subr.bf16.mxu0 0
  %151 = vmatpush1.bf16.xpose.msra.mxu0 0
  %152 = vmatprep.subr.bf16.mxu0 0
  %153 = vmatpush1.bf16.xpose.msra.mxu0 0
  %154 = vmatprep.subr.bf16.mxu0 0
  %155 = vmatpush1.bf16.xpose.msra.mxu0 %v138
  %156 = vmatprep.subr.bf16.mxu0 0
  %157 = vmatpush2.bf16.xpose.msra.mxu0 0
  %158 = vmatprep.subr.bf16.mxu0 0
  %159 = vmatpush2.bf16.xpose.msra.mxu0 0
  %160 = vmatprep.subr.bf16.mxu0 0
  %161 = vmatpush2.bf16.xpose.msra.mxu0 0
  %162 = vmatprep.subr.bf16.mxu0 0
  %163 = vmatpush2.bf16.xpose.msra.mxu0 0
  %164 = vmatprep.subr.bf16.mxu0 0
  %165 = vmatpush2.bf16.xpose.msra.mxu0 0
  %166 = vmatprep.subr.bf16.mxu0 0
  %167 = vmatpush2.bf16.xpose.msra.mxu0 0
  %168 = vmatprep.subr.bf16.mxu0 0
  %169 = vmatpush2.bf16.xpose.msra.mxu0 0
  %170 = vmatprep.subr.bf16.mxu0 0
  %171 = vmatpush2.bf16.xpose.msra.mxu0 0
  %172 = vmatprep.mubr.bf16.mxu0 0
  %173 = vmatmul.mubr.bf16.gmra.mxu0 %v135
  %v174 = vpop.f32.mrf.mxu0
  %v175 = vadd.f32 0.0, %v174
  %v176 = vpop.f32.mrf.mxu0
  %v177 = vpop.f32.mrf.mxu0
  %v178 = vpop.f32.mrf.mxu0
  %179 = vdwg.mxu0
  %181 = vrot.lane.b32.xlu0 %v129, 96
  %v182 = vpop.permute.xlu0 %181
  %v184 = vsel %vm133, %v129, 0
  %v187 = vsel %vm133, %v182, 0
  %189 = vmatprep.subr.bf16.mxu0 0
  %190 = vmatpush1.bf16.xpose.msra.mxu0 0
  %191 = vmatprep.subr.bf16.mxu0 0
  %192 = vmatpush1.bf16.xpose.msra.mxu0 0
  %193 = vmatprep.subr.bf16.mxu0 0
  %194 = vmatpush1.bf16.xpose.msra.mxu0 0
  %195 = vmatprep.subr.bf16.mxu0 0
  %196 = vmatpush1.bf16.xpose.msra.mxu0 0
  %197 = vmatprep.subr.bf16.mxu0 0
  %198 = vmatpush1.bf16.xpose.msra.mxu0 0
  %199 = vmatprep.subr.bf16.mxu0 0
  %200 = vmatpush1.bf16.xpose.msra.mxu0 0
  %201 = vmatprep.subr.bf16.mxu0 0
  %202 = vmatpush1.bf16.xpose.msra.mxu0 0
  %203 = vmatprep.subr.bf16.mxu0 0
  %204 = vmatpush1.bf16.xpose.msra.mxu0 %v187
  %205 = vmatprep.subr.bf16.mxu0 0
  %206 = vmatpush2.bf16.xpose.msra.mxu0 0
  %207 = vmatprep.subr.bf16.mxu0 0
  %208 = vmatpush2.bf16.xpose.msra.mxu0 0
  %209 = vmatprep.subr.bf16.mxu0 0
  %210 = vmatpush2.bf16.xpose.msra.mxu0 0
  %211 = vmatprep.subr.bf16.mxu0 0
  %212 = vmatpush2.bf16.xpose.msra.mxu0 0
  %213 = vmatprep.subr.bf16.mxu0 0
  %214 = vmatpush2.bf16.xpose.msra.mxu0 0
  %215 = vmatprep.subr.bf16.mxu0 0
  %216 = vmatpush2.bf16.xpose.msra.mxu0 0
  %217 = vmatprep.subr.bf16.mxu0 0
  %218 = vmatpush2.bf16.xpose.msra.mxu0 0
  %219 = vmatprep.subr.bf16.mxu0 0
  %220 = vmatpush2.bf16.xpose.msra.mxu0 0
  %221 = vmatprep.mubr.bf16.mxu0 0
  %222 = vmatmul.mubr.bf16.gmra.mxu0 %v184
  %v223 = vpop.f32.mrf.mxu0
  %v224 = vadd.f32 0.0, %v223
  %v225 = vpop.f32.mrf.mxu0
  %v226 = vpop.f32.mrf.mxu0
  %v227 = vpop.f32.mrf.mxu0
  %228 = vdwg.mxu0
  %v229 = vmul.f32 %v175, 0.25
  %v230 = vmul.f32 %v224, 0.25
  %v233 = vlaneseq
  %v234 = vshrl.u32 %v233, 7
  %v235 = vsub.s32 0, %v234
  %v236 = vrot.slane %v43, %v235
  %v237 = vlaneseq
  %v238 = vshrl.u32 %v237, 7
  %v239 = vsub.s32 0, %v238
  %v240 = vrot.slane %v44, %v239
  %v243 = vadd.f32 %v229, %v236
  %v244 = vadd.f32 %v230, %v240
  %vm245 = vcmask 64512
  %v246 = vsel %vm245, %v243, -inf
  %247 = vmax.xlane.f32.xlu0 %v246
  %v248 = vpop.xlane.xlu0 %247
  %v249 = vsel %vm245, %v244, -inf
  %250 = vmax.xlane.f32.xlu0 %v249
  %v251 = vpop.xlane.xlu0 %250
  %v252 = vsub.f32 %v243, %v248
  %v253 = vsub.f32 %v244, %v251
  %v254 = vmul.f32 %v252, 1.442695
  %v255 = vpow.pop %v254
  %v256 = vmul.f32 %v253, 1.442695
  %v257 = vpow.pop %v256
  %v258 = vsel %vm245, %v255, 0.0
  %259 = vadd.xlane.f32.xlu0 %v258
  %v260 = vpop.xlane.xlu0 %259
  %v261 = vsel %vm245, %v257, 0.0
  %262 = vadd.xlane.f32.xlu0 %v261
  %v263 = vpop.xlane.xlu0 %262
  %v264 = vrcp.pop %v260
  %v265 = vrcp.pop %v263
  %v266 = vmul.f32 %v255, %v264
  %v267 = vmul.f32 %v257, %v265
  %v268 = vpack.c.bf16 %v266, %v266
  %v269 = vpack.c.bf16 %v267, %v267
  %270 = vrot.lane.b32.xlu0 %v128, 64
  %v271 = vpop.permute.xlu0 %270
  %v273 = vsel %vm245, %v268, 0
  %vm275 = vcmask 1043456
  %v277 = vsel %vm275, %v271, 0
  %279 = vmatprep.subr.bf16.mxu0 0
  %280 = vmatpush1.bf16.msra.mxu0 0
  %281 = vmatprep.subr.bf16.mxu0 0
  %282 = vmatpush1.bf16.msra.mxu0 0
  %283 = vmatprep.subr.bf16.mxu0 0
  %284 = vmatpush1.bf16.msra.mxu0 0
  %285 = vmatprep.subr.bf16.mxu0 0
  %286 = vmatpush1.bf16.msra.mxu0 0
  %287 = vmatprep.subr.bf16.mxu0 0
  %288 = vmatpush1.bf16.msra.mxu0 0
  %289 = vmatprep.subr.bf16.mxu0 0
  %290 = vmatpush1.bf16.msra.mxu0 0
  %291 = vmatprep.subr.bf16.mxu0 0
  %292 = vmatpush1.bf16.msra.mxu0 0
  %293 = vmatprep.subr.bf16.mxu0 0
  %294 = vmatpush1.bf16.msra.mxu0 %v277
  %295 = vmatprep.subr.bf16.mxu0 0
  %296 = vmatpush2.bf16.msra.mxu0 0
  %297 = vmatprep.subr.bf16.mxu0 0
  %298 = vmatpush2.bf16.msra.mxu0 0
  %299 = vmatprep.subr.bf16.mxu0 0
  %300 = vmatpush2.bf16.msra.mxu0 0
  %301 = vmatprep.subr.bf16.mxu0 0
  %302 = vmatpush2.bf16.msra.mxu0 0
  %303 = vmatprep.subr.bf16.mxu0 0
  %304 = vmatpush2.bf16.msra.mxu0 0
  %305 = vmatprep.subr.bf16.mxu0 0
  %306 = vmatpush2.bf16.msra.mxu0 0
  %307 = vmatprep.subr.bf16.mxu0 0
  %308 = vmatpush2.bf16.msra.mxu0 0
  %309 = vmatprep.subr.bf16.mxu0 0
  %310 = vmatpush2.bf16.msra.mxu0 0
  %311 = vmatprep.mubr.bf16.mxu0 0
  %312 = vmatmul.mubr.bf16.gmra.mxu0 %v273
  %v313 = vpop.f32.mrf.mxu0
  %v314 = vadd.f32 0.0, %v313
  %v315 = vpop.f32.mrf.mxu0
  %v316 = vpop.f32.mrf.mxu0
  %v317 = vpop.f32.mrf.mxu0
  %318 = vdwg.mxu0
  %319 = vrot.lane.b32.xlu0 %v129, 64
  %v320 = vpop.permute.xlu0 %319
  %v322 = vsel %vm245, %v269, 0
  %v325 = vsel %vm275, %v320, 0
  %327 = vmatprep.subr.bf16.mxu0 0
  %328 = vmatpush1.bf16.msra.mxu0 0
  %329 = vmatprep.subr.bf16.mxu0 0
  %330 = vmatpush1.bf16.msra.mxu0 0
  %331 = vmatprep.subr.bf16.mxu0 0
  %332 = vmatpush1.bf16.msra.mxu0 0
  %333 = vmatprep.subr.bf16.mxu0 0
  %334 = vmatpush1.bf16.msra.mxu0 0
  %335 = vmatprep.subr.bf16.mxu0 0
  %336 = vmatpush1.bf16.msra.mxu0 0
  %337 = vmatprep.subr.bf16.mxu0 0
  %338 = vmatpush1.bf16.msra.mxu0 0
  %339 = vmatprep.subr.bf16.mxu0 0
  %340 = vmatpush1.bf16.msra.mxu0 0
  %341 = vmatprep.subr.bf16.mxu0 0
  %342 = vmatpush1.bf16.msra.mxu0 %v325
  %343 = vmatprep.subr.bf16.mxu0 0
  %344 = vmatpush2.bf16.msra.mxu0 0
  %345 = vmatprep.subr.bf16.mxu0 0
  %346 = vmatpush2.bf16.msra.mxu0 0
  %347 = vmatprep.subr.bf16.mxu0 0
  %348 = vmatpush2.bf16.msra.mxu0 0
  %349 = vmatprep.subr.bf16.mxu0 0
  %350 = vmatpush2.bf16.msra.mxu0 0
  %351 = vmatprep.subr.bf16.mxu0 0
  %352 = vmatpush2.bf16.msra.mxu0 0
  %353 = vmatprep.subr.bf16.mxu0 0
  %354 = vmatpush2.bf16.msra.mxu0 0
  %355 = vmatprep.subr.bf16.mxu0 0
  %356 = vmatpush2.bf16.msra.mxu0 0
  %357 = vmatprep.subr.bf16.mxu0 0
  %358 = vmatpush2.bf16.msra.mxu0 0
  %359 = vmatprep.mubr.bf16.mxu0 0
  %360 = vmatmul.mubr.bf16.gmra.mxu0 %v322
  %v361 = vpop.f32.mrf.mxu0
  %v362 = vadd.f32 0.0, %v361
  %v363 = vpop.f32.mrf.mxu0
  %v364 = vpop.f32.mrf.mxu0
  %v365 = vpop.f32.mrf.mxu0
  %366 = vdwg.mxu0
  %v367 = vpack.c.bf16 %v362, %v314
  %v368 = vpack.c.bf16 %v52, %v51
  %369 = vrot.lane.b32.xlu0 %v128, 112
  %v370 = vpop.permute.xlu0 %369
  %371 = vrot.lane.b32.xlu0 %v128, 80
  %v372 = vpop.permute.xlu0 %371
  %v374 = vsel %vm133, %v370, 0
  %v377 = vsel %vm133, %v372, 0
  %379 = vmatprep.subr.bf16.mxu0 0
  %380 = vmatpush1.bf16.xpose.msra.mxu0 0
  %381 = vmatprep.subr.bf16.mxu0 0
  %382 = vmatpush1.bf16.xpose.msra.mxu0 0
  %383 = vmatprep.subr.bf16.mxu0 0
  %384 = vmatpush1.bf16.xpose.msra.mxu0 0
  %385 = vmatprep.subr.bf16.mxu0 0
  %386 = vmatpush1.bf16.xpose.msra.mxu0 0
  %387 = vmatprep.subr.bf16.mxu0 0
  %388 = vmatpush1.bf16.xpose.msra.mxu0 0
  %389 = vmatprep.subr.bf16.mxu0 0
  %390 = vmatpush1.bf16.xpose.msra.mxu0 0
  %391 = vmatprep.subr.bf16.mxu0 0
  %392 = vmatpush1.bf16.xpose.msra.mxu0 0
  %393 = vmatprep.subr.bf16.mxu0 0
  %394 = vmatpush1.bf16.xpose.msra.mxu0 %v377
  %395 = vmatprep.subr.bf16.mxu0 0
  %396 = vmatpush2.bf16.xpose.msra.mxu0 0
  %397 = vmatprep.subr.bf16.mxu0 0
  %398 = vmatpush2.bf16.xpose.msra.mxu0 0
  %399 = vmatprep.subr.bf16.mxu0 0
  %400 = vmatpush2.bf16.xpose.msra.mxu0 0
  %401 = vmatprep.subr.bf16.mxu0 0
  %402 = vmatpush2.bf16.xpose.msra.mxu0 0
  %403 = vmatprep.subr.bf16.mxu0 0
  %404 = vmatpush2.bf16.xpose.msra.mxu0 0
  %405 = vmatprep.subr.bf16.mxu0 0
  %406 = vmatpush2.bf16.xpose.msra.mxu0 0
  %407 = vmatprep.subr.bf16.mxu0 0
  %408 = vmatpush2.bf16.xpose.msra.mxu0 0
  %409 = vmatprep.subr.bf16.mxu0 0
  %410 = vmatpush2.bf16.xpose.msra.mxu0 0
  %411 = vmatprep.mubr.bf16.mxu0 0
  %412 = vmatmul.mubr.bf16.gmra.mxu0 %v374
  %v413 = vpop.f32.mrf.mxu0
  %v414 = vadd.f32 0.0, %v413
  %v415 = vpop.f32.mrf.mxu0
  %v416 = vpop.f32.mrf.mxu0
  %v417 = vpop.f32.mrf.mxu0
  %418 = vdwg.mxu0
  %419 = vrot.lane.b32.xlu0 %v129, 112
  %v420 = vpop.permute.xlu0 %419
  %421 = vrot.lane.b32.xlu0 %v129, 80
  %v422 = vpop.permute.xlu0 %421
  %v424 = vsel %vm133, %v420, 0
  %v427 = vsel %vm133, %v422, 0
  %429 = vmatprep.subr.bf16.mxu0 0
  %430 = vmatpush1.bf16.xpose.msra.mxu0 0
  %431 = vmatprep.subr.bf16.mxu0 0
  %432 = vmatpush1.bf16.xpose.msra.mxu0 0
  %433 = vmatprep.subr.bf16.mxu0 0
  %434 = vmatpush1.bf16.xpose.msra.mxu0 0
  %435 = vmatprep.subr.bf16.mxu0 0
  %436 = vmatpush1.bf16.xpose.msra.mxu0 0
  %437 = vmatprep.subr.bf16.mxu0 0
  %438 = vmatpush1.bf16.xpose.msra.mxu0 0
  %439 = vmatprep.subr.bf16.mxu0 0
  %440 = vmatpush1.bf16.xpose.msra.mxu0 0
  %441 = vmatprep.subr.bf16.mxu0 0
  %442 = vmatpush1.bf16.xpose.msra.mxu0 0
  %443 = vmatprep.subr.bf16.mxu0 0
  %444 = vmatpush1.bf16.xpose.msra.mxu0 %v427
  %445 = vmatprep.subr.bf16.mxu0 0
  %446 = vmatpush2.bf16.xpose.msra.mxu0 0
  %447 = vmatprep.subr.bf16.mxu0 0
  %448 = vmatpush2.bf16.xpose.msra.mxu0 0
  %449 = vmatprep.subr.bf16.mxu0 0
  %450 = vmatpush2.bf16.xpose.msra.mxu0 0
  %451 = vmatprep.subr.bf16.mxu0 0
  %452 = vmatpush2.bf16.xpose.msra.mxu0 0
  %453 = vmatprep.subr.bf16.mxu0 0
  %454 = vmatpush2.bf16.xpose.msra.mxu0 0
  %455 = vmatprep.subr.bf16.mxu0 0
  %456 = vmatpush2.bf16.xpose.msra.mxu0 0
  %457 = vmatprep.subr.bf16.mxu0 0
  %458 = vmatpush2.bf16.xpose.msra.mxu0 0
  %459 = vmatprep.subr.bf16.mxu0 0
  %460 = vmatpush2.bf16.xpose.msra.mxu0 0
  %461 = vmatprep.mubr.bf16.mxu0 0
  %462 = vmatmul.mubr.bf16.gmra.mxu0 %v424
  %v463 = vpop.f32.mrf.mxu0
  %v464 = vadd.f32 0.0, %v463
  %v465 = vpop.f32.mrf.mxu0
  %v466 = vpop.f32.mrf.mxu0
  %v467 = vpop.f32.mrf.mxu0
  %468 = vdwg.mxu0
  %v469 = vmul.f32 %v414, 0.25
  %v470 = vmul.f32 %v464, 0.25
  %v471 = vadd.f32 %v469, %v236
  %v472 = vadd.f32 %v470, %v240
  %v473 = vsel %vm245, %v471, -inf
  %474 = vmax.xlane.f32.xlu0 %v473
  %v475 = vpop.xlane.xlu0 %474
  %v476 = vsel %vm245, %v472, -inf
  %477 = vmax.xlane.f32.xlu0 %v476
  %v478 = vpop.xlane.xlu0 %477
  %v479 = vsub.f32 %v471, %v475
  %v480 = vsub.f32 %v472, %v478
  %v481 = vmul.f32 %v479, 1.442695
  %v482 = vpow.pop %v481
  %v483 = vmul.f32 %v480, 1.442695
  %v484 = vpow.pop %v483
  %v485 = vsel %vm245, %v482, 0.0
  %486 = vadd.xlane.f32.xlu0 %v485
  %v487 = vpop.xlane.xlu0 %486
  %v488 = vsel %vm245, %v484, 0.0
  %489 = vadd.xlane.f32.xlu0 %v488
  %v490 = vpop.xlane.xlu0 %489
  %v491 = vrcp.pop %v487
  %v492 = vrcp.pop %v490
  %v493 = vmul.f32 %v482, %v491
  %v494 = vmul.f32 %v484, %v492
  %v495 = vpack.c.bf16 %v493, %v493
  %v496 = vpack.c.bf16 %v494, %v494
  %497 = vrot.lane.b32.xlu0 %v128, 48
  %v498 = vpop.permute.xlu0 %497
  %v500 = vsel %vm245, %v495, 0
  %v503 = vsel %vm275, %v498, 0
  %505 = vmatprep.subr.bf16.mxu0 0
  %506 = vmatpush1.bf16.msra.mxu0 0
  %507 = vmatprep.subr.bf16.mxu0 0
  %508 = vmatpush1.bf16.msra.mxu0 0
  %509 = vmatprep.subr.bf16.mxu0 0
  %510 = vmatpush1.bf16.msra.mxu0 0
  %511 = vmatprep.subr.bf16.mxu0 0
  %512 = vmatpush1.bf16.msra.mxu0 0
  %513 = vmatprep.subr.bf16.mxu0 0
  %514 = vmatpush1.bf16.msra.mxu0 0
  %515 = vmatprep.subr.bf16.mxu0 0
  %516 = vmatpush1.bf16.msra.mxu0 0
  %517 = vmatprep.subr.bf16.mxu0 0
  %518 = vmatpush1.bf16.msra.mxu0 0
  %519 = vmatprep.subr.bf16.mxu0 0
  %520 = vmatpush1.bf16.msra.mxu0 %v503
  %521 = vmatprep.subr.bf16.mxu0 0
  %522 = vmatpush2.bf16.msra.mxu0 0
  %523 = vmatprep.subr.bf16.mxu0 0
  %524 = vmatpush2.bf16.msra.mxu0 0
  %525 = vmatprep.subr.bf16.mxu0 0
  %526 = vmatpush2.bf16.msra.mxu0 0
  %527 = vmatprep.subr.bf16.mxu0 0
  %528 = vmatpush2.bf16.msra.mxu0 0
  %529 = vmatprep.subr.bf16.mxu0 0
  %530 = vmatpush2.bf16.msra.mxu0 0
  %531 = vmatprep.subr.bf16.mxu0 0
  %532 = vmatpush2.bf16.msra.mxu0 0
  %533 = vmatprep.subr.bf16.mxu0 0
  %534 = vmatpush2.bf16.msra.mxu0 0
  %535 = vmatprep.subr.bf16.mxu0 0
  %536 = vmatpush2.bf16.msra.mxu0 0
  %537 = vmatprep.mubr.bf16.mxu0 0
  %538 = vmatmul.mubr.bf16.gmra.mxu0 %v500
  %v539 = vpop.f32.mrf.mxu0
  %v540 = vadd.f32 0.0, %v539
  %v541 = vpop.f32.mrf.mxu0
  %v542 = vpop.f32.mrf.mxu0
  %v543 = vpop.f32.mrf.mxu0
  %544 = vdwg.mxu0
  %545 = vrot.lane.b32.xlu0 %v129, 48
  %v546 = vpop.permute.xlu0 %545
  %v548 = vsel %vm245, %v496, 0
  %v551 = vsel %vm275, %v546, 0
  %553 = vmatprep.subr.bf16.mxu0 0
  %554 = vmatpush1.bf16.msra.mxu0 0
  %555 = vmatprep.subr.bf16.mxu0 0
  %556 = vmatpush1.bf16.msra.mxu0 0
  %557 = vmatprep.subr.bf16.mxu0 0
  %558 = vmatpush1.bf16.msra.mxu0 0
  %559 = vmatprep.subr.bf16.mxu0 0
  %560 = vmatpush1.bf16.msra.mxu0 0
  %561 = vmatprep.subr.bf16.mxu0 0
  %562 = vmatpush1.bf16.msra.mxu0 0
  %563 = vmatprep.subr.bf16.mxu0 0
  %564 = vmatpush1.bf16.msra.mxu0 0
  %565 = vmatprep.subr.bf16.mxu0 0
  %566 = vmatpush1.bf16.msra.mxu0 0
  %567 = vmatprep.subr.bf16.mxu0 0
  %568 = vmatpush1.bf16.msra.mxu0 %v551
  %569 = vmatprep.subr.bf16.mxu0 0
  %570 = vmatpush2.bf16.msra.mxu0 0
  %571 = vmatprep.subr.bf16.mxu0 0
  %572 = vmatpush2.bf16.msra.mxu0 0
  %573 = vmatprep.subr.bf16.mxu0 0
  %574 = vmatpush2.bf16.msra.mxu0 0
  %575 = vmatprep.subr.bf16.mxu0 0
  %576 = vmatpush2.bf16.msra.mxu0 0
  %577 = vmatprep.subr.bf16.mxu0 0
  %578 = vmatpush2.bf16.msra.mxu0 0
  %579 = vmatprep.subr.bf16.mxu0 0
  %580 = vmatpush2.bf16.msra.mxu0 0
  %581 = vmatprep.subr.bf16.mxu0 0
  %582 = vmatpush2.bf16.msra.mxu0 0
  %583 = vmatprep.subr.bf16.mxu0 0
  %584 = vmatpush2.bf16.msra.mxu0 0
  %585 = vmatprep.mubr.bf16.mxu0 0
  %586 = vmatmul.mubr.bf16.gmra.mxu0 %v548
  %v587 = vpop.f32.mrf.mxu0
  %v588 = vadd.f32 0.0, %v587
  %v589 = vpop.f32.mrf.mxu0
  %v590 = vpop.f32.mrf.mxu0
  %v591 = vpop.f32.mrf.mxu0
  %592 = vdwg.mxu0
  %v593 = vpack.c.bf16 %v588, %v540
  %v594 = vpack.c.bf16 %v54, %v53
  %v596 = vsel %vm133, %v593, 0
  %598 = vmatprep.subr.bf16.mxu0 0
  %599 = vmatpush1.bf16.msra.mxu0 0
  %600 = vmatprep.subr.bf16.mxu0 0
  %601 = vmatpush1.bf16.msra.mxu0 0
  %602 = vmatprep.subr.bf16.mxu0 0
  %603 = vmatpush1.bf16.msra.mxu0 0
  %604 = vmatprep.subr.bf16.mxu0 0
  %605 = vmatpush1.bf16.msra.mxu0 0
  %606 = vmatprep.subr.bf16.mxu0 0
  %607 = vmatpush1.bf16.msra.mxu0 0
  %608 = vmatprep.subr.bf16.mxu0 0
  %609 = vmatpush1.bf16.msra.mxu0 0
  %610 = vmatprep.subr.bf16.mxu0 0
  %611 = vmatpush1.bf16.msra.mxu0 0
  %612 = vmatprep.subr.bf16.mxu0 0
  %613 = vmatpush1.bf16.msra.mxu0 %v594
  %614 = vmatprep.subr.bf16.mxu0 0
  %615 = vmatpush2.bf16.msra.mxu0 0
  %616 = vmatprep.subr.bf16.mxu0 0
  %617 = vmatpush2.bf16.msra.mxu0 0
  %618 = vmatprep.subr.bf16.mxu0 0
  %619 = vmatpush2.bf16.msra.mxu0 0
  %620 = vmatprep.subr.bf16.mxu0 0
  %621 = vmatpush2.bf16.msra.mxu0 0
  %622 = vmatprep.subr.bf16.mxu0 0
  %623 = vmatpush2.bf16.msra.mxu0 0
  %624 = vmatprep.subr.bf16.mxu0 0
  %625 = vmatpush2.bf16.msra.mxu0 0
  %626 = vmatprep.subr.bf16.mxu0 0
  %627 = vmatpush2.bf16.msra.mxu0 0
  %628 = vmatprep.subr.bf16.mxu0 0
  %629 = vmatpush2.bf16.msra.mxu0 0
  %630 = vmatprep.mubr.bf16.mxu0 0
  %631 = vmatmul.mubr.bf16.gmra.mxu0 %v596
  %v632 = vpop.f32.mrf.mxu0
  %v633 = vadd.f32 0.0, %v632
  %v634 = vpop.f32.mrf.mxu0
  %v635 = vpop.f32.mrf.mxu0
  %v636 = vadd.f32 0.0, %v635
  %v637 = vpop.f32.mrf.mxu0
  %638 = vdwg.mxu0
  %v640 = vsel %vm133, %v367, 0
  %642 = vmatprep.subr.bf16.mxu0 0
  %643 = vmatpush1.bf16.msra.mxu0 0
  %644 = vmatprep.subr.bf16.mxu0 0
  %645 = vmatpush1.bf16.msra.mxu0 0
  %646 = vmatprep.subr.bf16.mxu0 0
  %647 = vmatpush1.bf16.msra.mxu0 0
  %648 = vmatprep.subr.bf16.mxu0 0
  %649 = vmatpush1.bf16.msra.mxu0 0
  %650 = vmatprep.subr.bf16.mxu0 0
  %651 = vmatpush1.bf16.msra.mxu0 0
  %652 = vmatprep.subr.bf16.mxu0 0
  %653 = vmatpush1.bf16.msra.mxu0 0
  %654 = vmatprep.subr.bf16.mxu0 0
  %655 = vmatpush1.bf16.msra.mxu0 0
  %656 = vmatprep.subr.bf16.mxu0 0
  %657 = vmatpush1.bf16.msra.mxu0 %v368
  %658 = vmatprep.subr.bf16.mxu0 0
  %659 = vmatpush2.bf16.msra.mxu0 0
  %660 = vmatprep.subr.bf16.mxu0 0
  %661 = vmatpush2.bf16.msra.mxu0 0
  %662 = vmatprep.subr.bf16.mxu0 0
  %663 = vmatpush2.bf16.msra.mxu0 0
  %664 = vmatprep.subr.bf16.mxu0 0
  %665 = vmatpush2.bf16.msra.mxu0 0
  %666 = vmatprep.subr.bf16.mxu0 0
  %667 = vmatpush2.bf16.msra.mxu0 0
  %668 = vmatprep.subr.bf16.mxu0 0
  %669 = vmatpush2.bf16.msra.mxu0 0
  %670 = vmatprep.subr.bf16.mxu0 0
  %671 = vmatpush2.bf16.msra.mxu0 0
  %672 = vmatprep.subr.bf16.mxu0 0
  %673 = vmatpush2.bf16.msra.mxu0 0
  %674 = vmatprep.mubr.bf16.mxu0 0
  %675 = vmatmul.mubr.bf16.gmra.mxu0 %v640
  %v676 = vpop.f32.mrf.mxu0
  %v677 = vadd.f32 %v633, %v676
  %v678 = vpop.f32.mrf.mxu0
  %v679 = vpop.f32.mrf.mxu0
  %v680 = vadd.f32 %v636, %v679
  %v681 = vpop.f32.mrf.mxu0
  %682 = vdwg.mxu0
  %v683 = vlaneseq
  %v684 = vshrl.u32 %v683, 7
  %v685 = vsub.s32 1, %v684
  %v686 = vrot.slane %v75, %v685
  %v687 = vadd.f32 %v677, %v686
  %v688 = vadd.f32 %v680, %v686
  %v689 = vadd.f32 %v687, %v41
  %v690 = vadd.f32 %v688, %v42
  %v691 = vsel %vm83, %v689, 0.0
  %692 = vadd.xlane.f32.xlu0 %v691
  %v693 = vpop.xlane.xlu0 %692
  %v694 = vsel %vm83, %v690, 0.0
  %695 = vadd.xlane.f32.xlu0 %v694
  %v696 = vpop.xlane.xlu0 %695
  %v697 = vrcp.pop 32.0
  %v698 = vmul.f32 %v693, %v697
  %v699 = vmul.f32 %v696, %v697
  %v700 = vsub.f32 %v689, %v698
  %v701 = vsub.f32 %v690, %v699
  %v702 = vmul.f32 %v700, %v700
  %v703 = vmul.f32 %v701, %v701
  %v704 = vsel %vm83, %v702, 0.0
  %705 = vadd.xlane.f32.xlu0 %v704
  %v706 = vpop.xlane.xlu0 %705
  %v707 = vsel %vm83, %v703, 0.0
  %708 = vadd.xlane.f32.xlu0 %v707
  %v709 = vpop.xlane.xlu0 %708
  %v710 = vmul.f32 %v706, %v697
  %v711 = vmul.f32 %v709, %v697
  %v712 = vadd.f32 %v710, 1e-05
  %v713 = vadd.f32 %v711, 1e-05
  %v714 = vrsqrt.pop %v712
  %v715 = vrsqrt.pop %v713
  %v716 = vmul.f32 %v700, %v714
  %v717 = vmul.f32 %v701, %v715
  %v718 = vlaneseq
  %v719 = vshrl.u32 %v718, 7
  %v720 = vsub.s32 2, %v719
  %v721 = vrot.slane %v75, %v720
  %v722 = vmul.f32 %v716, %v721
  %v723 = vmul.f32 %v717, %v721
  %v724 = vlaneseq
  %v725 = vshrl.u32 %v724, 7
  %v726 = vsub.s32 3, %v725
  %v727 = vrot.slane %v75, %v726
  %v728 = vadd.f32 %v722, %v727
  %v729 = vadd.f32 %v723, %v727
  %731 = vset.pattern.permute.xlu0 0
  %732 = vperm.xlu0 %731, %v45
  %v733 = vpop.permute.xlu0 %732
  %736 = vset.pattern.permute.xlu0 0
  %737 = vperm.xlu0 %736, %v46
  %v738 = vpop.permute.xlu0 %737
  %v740 = vmul.f32 %v728, %v733
  %v741 = vmul.f32 %v729, %v738
  %v744 = vrot.slane %v740, 7
  %v745 = vrot.slane %v741, 7
  %vm748 = vcmask 1040384
  %v749 = vsel %vm748, 0.0, %v744
  %v750 = vsel %vm748, 0.0, %v745
  %v751 = vsel %vm748, %v744, 0.0
  %v752 = vsel %vm748, %v745, 0.0
  %vm757 = vcmask 1046528
  %v758 = vrot.slane %v749, 1
  %v759 = vrot.slane %v751, 1
  %v760 = vsel %vm757, %v758, %v759
  %v761 = vrot.slane %v750, 1
  %v762 = vrot.slane %v752, 1
  %v763 = vsel %vm757, %v761, %v762
  %764 = vrot.lane.b32.xlu0 %v760, 32
  %v765 = vpop.permute.xlu0 %764
  %766 = vrot.lane.b32.xlu0 %v763, 32
  %v767 = vpop.permute.xlu0 %766
  %vm770 = vcmask 1045504
  %v771 = vrot.slane %v749, 2
  %v772 = vrot.slane %v751, 2
  %v773 = vsel %vm770, %v771, %v772
  %v774 = vrot.slane %v750, 2
  %v775 = vrot.slane %v752, 2
  %v776 = vsel %vm770, %v774, %v775
  %777 = vrot.lane.b32.xlu0 %v773, 64
  %v778 = vpop.permute.xlu0 %777
  %779 = vrot.lane.b32.xlu0 %v776, 64
  %v780 = vpop.permute.xlu0 %779
  %v783 = vsel %vm83, %v749, %v765
  %v784 = vsel %vm83, %v750, %v767
  %vm785 = vcmask 523264
  %v786 = vsel %vm785, %v783, %v778
  %v787 = vsel %vm785, %v784, %v780
  %v788 = vpack.c.bf16 %v787, %v786
  %v789 = vpack.c.bf16 %v56, %v55
  %v790 = vpack.c.bf16 %v58, %v57
  %v791 = vpack.c.bf16 %v60, %v59
  %v792 = vpack.c.bf16 %v62, %v61
  %v793 = vpack.c.bf16 %v64, %v63
  %v794 = vpack.c.bf16 %v66, %v65
  %v795 = vlaneseq
  %v796 = vshrl.u32 %v795, 7
  %v797 = vsub.s32 4, %v796
  %v798 = vrot.slane %v75, %v797
  %vm799 = vcmask 785408
  %v801 = vsel %vm799, %v788, 0
  %803 = vmatprep.subr.bf16.mxu0 0
  %804 = vmatpush1.bf16.msra.mxu0 0
  %805 = vmatprep.subr.bf16.mxu0 0
  %806 = vmatpush1.bf16.msra.mxu0 0
  %807 = vmatprep.subr.bf16.mxu0 0
  %808 = vmatpush1.bf16.msra.mxu0 %v794
  %809 = vmatprep.subr.bf16.mxu0 0
  %810 = vmatpush1.bf16.msra.mxu0 %v793
  %811 = vmatprep.subr.bf16.mxu0 0
  %812 = vmatpush1.bf16.msra.mxu0 %v792
  %813 = vmatprep.subr.bf16.mxu0 0
  %814 = vmatpush1.bf16.msra.mxu0 %v791
  %815 = vmatprep.subr.bf16.mxu0 0
  %816 = vmatpush1.bf16.msra.mxu0 %v790
  %817 = vmatprep.subr.bf16.mxu0 0
  %818 = vmatpush1.bf16.msra.mxu0 %v789
  %819 = vmatprep.subr.bf16.mxu0 0
  %820 = vmatpush2.bf16.msra.mxu0 0
  %821 = vmatprep.subr.bf16.mxu0 0
  %822 = vmatpush2.bf16.msra.mxu0 0
  %823 = vmatprep.subr.bf16.mxu0 0
  %824 = vmatpush2.bf16.msra.mxu0 0
  %825 = vmatprep.subr.bf16.mxu0 0
  %826 = vmatpush2.bf16.msra.mxu0 0
  %827 = vmatprep.subr.bf16.mxu0 0
  %828 = vmatpush2.bf16.msra.mxu0 0
  %829 = vmatprep.subr.bf16.mxu0 0
  %830 = vmatpush2.bf16.msra.mxu0 0
  %831 = vmatprep.subr.bf16.mxu0 0
  %832 = vmatpush2.bf16.msra.mxu0 0
  %833 = vmatprep.subr.bf16.mxu0 0
  %834 = vmatpush2.bf16.msra.mxu0 0
  %835 = vmatprep.mubr.bf16.mxu0 0
  %836 = vmatmul.mubr.bf16.gmra.mxu0 %v801
  %v837 = vpop.f32.mrf.mxu0
  %v838 = vadd.f32 %v798, %v837
  %v839 = vpop.f32.mrf.mxu0
  %v840 = vpop.f32.mrf.mxu0
  %v841 = vadd.f32 %v798, %v840
  %v842 = vpop.f32.mrf.mxu0
  %843 = vdwg.mxu0
  %v844 = vmax.f32 %v838, 0.0
  %v845 = vmax.f32 %v841, 0.0
  %v846 = vpack.c.bf16 %v845, %v844
  %v847 = vpack.c.bf16 %v68, %v67
  %v848 = vpack.c.bf16 %v70, %v69
  %v849 = vpack.c.bf16 %v72, %v71
  %v850 = vpack.c.bf16 %v74, %v73
  %v851 = vlaneseq
  %v852 = vshrl.u32 %v851, 7
  %v853 = vsub.s32 5, %v852
  %v854 = vrot.slane %v75, %v853
  %v856 = vsel %vm785, %v846, 0
  %858 = vmatprep.subr.bf16.mxu0 0
  %859 = vmatpush1.bf16.msra.mxu0 0
  %860 = vmatprep.subr.bf16.mxu0 0
  %861 = vmatpush1.bf16.msra.mxu0 0
  %862 = vmatprep.subr.bf16.mxu0 0
  %863 = vmatpush1.bf16.msra.mxu0 0
  %864 = vmatprep.subr.bf16.mxu0 0
  %865 = vmatpush1.bf16.msra.mxu0 0
  %866 = vmatprep.subr.bf16.mxu0 0
  %867 = vmatpush1.bf16.msra.mxu0 %v850
  %868 = vmatprep.subr.bf16.mxu0 0
  %869 = vmatpush1.bf16.msra.mxu0 %v849
  %870 = vmatprep.subr.bf16.mxu0 0
  %871 = vmatpush1.bf16.msra.mxu0 %v848
  %872 = vmatprep.subr.bf16.mxu0 0
  %873 = vmatpush1.bf16.msra.mxu0 %v847
  %874 = vmatprep.subr.bf16.mxu0 0
  %875 = vmatpush2.bf16.msra.mxu0 0
  %876 = vmatprep.subr.bf16.mxu0 0
  %877 = vmatpush2.bf16.msra.mxu0 0
  %878 = vmatprep.subr.bf16.mxu0 0
  %879 = vmatpush2.bf16.msra.mxu0 0
  %880 = vmatprep.subr.bf16.mxu0 0
  %881 = vmatpush2.bf16.msra.mxu0 0
  %882 = vmatprep.subr.bf16.mxu0 0
  %883 = vmatpush2.bf16.msra.mxu0 0
  %884 = vmatprep.subr.bf16.mxu0 0
  %885 = vmatpush2.bf16.msra.mxu0 0
  %886 = vmatprep.subr.bf16.mxu0 0
  %887 = vmatpush2.bf16.msra.mxu0 0
  %888 = vmatprep.subr.bf16.mxu0 0
  %889 = vmatpush2.bf16.msra.mxu0 0
  %890 = vmatprep.mubr.bf16.mxu0 0
  %891 = vmatmul.mubr.bf16.gmra.mxu0 %v856
  %v892 = vpop.f32.mrf.mxu0
  %v893 = vadd.f32 %v854, %v892
  %v894 = vpop.f32.mrf.mxu0
  %v895 = vpop.f32.mrf.mxu0
  %v896 = vadd.f32 %v854, %v895
  %v897 = vpop.f32.mrf.mxu0
  %898 = vdwg.mxu0
  %v899 = vadd.f32 %v893, %v740
  %v900 = vadd.f32 %v896, %v741
  %v901 = vsel %vm83, %v899, 0.0
  %902 = vadd.xlane.f32.xlu0 %v901
  %v903 = vpop.xlane.xlu0 %902
  %v904 = vsel %vm83, %v900, 0.0
  %905 = vadd.xlane.f32.xlu0 %v904
  %v906 = vpop.xlane.xlu0 %905
  %v907 = vmul.f32 %v903, %v697
  %v908 = vmul.f32 %v906, %v697
  %v909 = vsub.f32 %v899, %v907
  %v910 = vsub.f32 %v900, %v908
  %v911 = vmul.f32 %v909, %v909
  %v912 = vmul.f32 %v910, %v910
  %v913 = vsel %vm83, %v911, 0.0
  %914 = vadd.xlane.f32.xlu0 %v913
  %v915 = vpop.xlane.xlu0 %914
  %v916 = vsel %vm83, %v912, 0.0
  %917 = vadd.xlane.f32.xlu0 %v916
  %v918 = vpop.xlane.xlu0 %917
  %v919 = vmul.f32 %v915, %v697
  %v920 = vmul.f32 %v918, %v697
  %v921 = vadd.f32 %v919, 1e-05
  %v922 = vadd.f32 %v920, 1e-05
  %v923 = vrsqrt.pop %v921
  %v924 = vrsqrt.pop %v922
  %v925 = vmul.f32 %v909, %v923
  %v926 = vmul.f32 %v910, %v924
  %v927 = vlaneseq
  %v928 = vshrl.u32 %v927, 7
  %v929 = vsub.s32 6, %v928
  %v930 = vrot.slane %v75, %v929
  %v931 = vmul.f32 %v925, %v930
  %v932 = vmul.f32 %v926, %v930
  %v933 = vlaneseq
  %v934 = vshrl.u32 %v933, 7
  %v935 = vsub.s32 7, %v934
  %v936 = vrot.slane %v75, %v935
  %v937 = vadd.f32 %v931, %v936
  %v938 = vadd.f32 %v932, %v936
  %v939 = vmul.f32 %v937, %v733
  %v940 = vmul.f32 %v938, %v738
  %s941 = scalar_lea.vmem %s3, 32
  %v942 = vld [vmem:[%s941] sm:$0xff]
  %v943 = vld [vmem:[%s941 + $0x8] sm:$0xff]
  %v944 = vld [vmem:[%s941 + $0x10] sm:$0xff]
  %v945 = vld [vmem:[%s941 + $0x18] sm:$0xff]
  %s946 = scalar_lea.vmem %s4, 32
  %v947 = vld [vmem:[%s946] sm:$0xff]
  %v948 = vld [vmem:[%s946 + $0x8] sm:$0xff]
  %v949 = vld [vmem:[%s946 + $0x10] sm:$0xff]
  %v950 = vld [vmem:[%s946 + $0x18] sm:$0xff]
  %s951 = scalar_lea.vmem %s5, 96
  %v952 = vld [vmem:[%s951] sm:$0xff]
  %v953 = vld [vmem:[%s951 + $0x8] sm:$0xff]
  %v954 = vld [vmem:[%s951 + $0x10] sm:$0xff]
  %v955 = vld [vmem:[%s951 + $0x18] sm:$0xff]
  %v956 = vld [vmem:[%s951 + $0x20] sm:$0xff]
  %v957 = vld [vmem:[%s951 + $0x28] sm:$0xff]
  %v958 = vld [vmem:[%s951 + $0x30] sm:$0xff]
  %v959 = vld [vmem:[%s951 + $0x38] sm:$0xff]
  %v960 = vld [vmem:[%s951 + $0x40] sm:$0xff]
  %v961 = vld [vmem:[%s951 + $0x48] sm:$0xff]
  %v962 = vld [vmem:[%s951 + $0x50] sm:$0xff]
  %v963 = vld [vmem:[%s951 + $0x58] sm:$0xff]
  %s964 = scalar_lea.vmem %s6, 64
  %v965 = vld [vmem:[%s964] sm:$0xff]
  %v966 = vld [vmem:[%s964 + $0x8] sm:$0xff]
  %v967 = vld [vmem:[%s964 + $0x10] sm:$0xff]
  %v968 = vld [vmem:[%s964 + $0x18] sm:$0xff]
  %v969 = vld [vmem:[%s964 + $0x20] sm:$0xff]
  %v970 = vld [vmem:[%s964 + $0x28] sm:$0xff]
  %v971 = vld [vmem:[%s964 + $0x30] sm:$0xff]
  %v972 = vld [vmem:[%s964 + $0x38] sm:$0xff]
  %s973 = scalar_lea.vmem %s7, 8
  %v974 = vld [vmem:[%s973] sm:$0xff]
  %v975 = vpack.c.bf16 %v940, %v939
  %v976 = vpack.c.bf16 %v943, %v942
  %v977 = vpack.c.bf16 %v945, %v944
  %v978 = vlaneseq
  %v979 = vshrl.u32 %v978, 7
  %v980 = vsub.s32 0, %v979
  %v981 = vrot.slane %v974, %v980
  %v983 = vsel %vm83, %v975, 0
  %985 = vmatprep.subr.bf16.mxu0 0
  %986 = vmatpush1.bf16.msra.mxu0 0
  %987 = vmatprep.subr.bf16.mxu0 0
  %988 = vmatpush1.bf16.msra.mxu0 0
  %989 = vmatprep.subr.bf16.mxu0 0
  %990 = vmatpush1.bf16.msra.mxu0 0
  %991 = vmatprep.subr.bf16.mxu0 0
  %992 = vmatpush1.bf16.msra.mxu0 0
  %993 = vmatprep.subr.bf16.mxu0 0
  %994 = vmatpush1.bf16.msra.mxu0 0
  %995 = vmatprep.subr.bf16.mxu0 0
  %996 = vmatpush1.bf16.msra.mxu0 0
  %997 = vmatprep.subr.bf16.mxu0 0
  %998 = vmatpush1.bf16.msra.mxu0 %v977
  %999 = vmatprep.subr.bf16.mxu0 0
  %1000 = vmatpush1.bf16.msra.mxu0 %v976
  %1001 = vmatprep.subr.bf16.mxu0 0
  %1002 = vmatpush2.bf16.msra.mxu0 0
  %1003 = vmatprep.subr.bf16.mxu0 0
  %1004 = vmatpush2.bf16.msra.mxu0 0
  %1005 = vmatprep.subr.bf16.mxu0 0
  %1006 = vmatpush2.bf16.msra.mxu0 0
  %1007 = vmatprep.subr.bf16.mxu0 0
  %1008 = vmatpush2.bf16.msra.mxu0 0
  %1009 = vmatprep.subr.bf16.mxu0 0
  %1010 = vmatpush2.bf16.msra.mxu0 0
  %1011 = vmatprep.subr.bf16.mxu0 0
  %1012 = vmatpush2.bf16.msra.mxu0 0
  %1013 = vmatprep.subr.bf16.mxu0 0
  %1014 = vmatpush2.bf16.msra.mxu0 0
  %1015 = vmatprep.subr.bf16.mxu0 0
  %1016 = vmatpush2.bf16.msra.mxu0 0
  %1017 = vmatprep.mubr.bf16.mxu0 0
  %1018 = vmatmul.mubr.bf16.gmra.mxu0 %v983
  %v1019 = vpop.f32.mrf.mxu0
  %v1020 = vadd.f32 %v981, %v1019
  %v1021 = vpop.f32.mrf.mxu0
  %v1022 = vpop.f32.mrf.mxu0
  %v1023 = vadd.f32 %v981, %v1022
  %v1024 = vpop.f32.mrf.mxu0
  %1025 = vdwg.mxu0
  %v1026 = vpack.c.bf16 %v1020, %v1020
  %v1027 = vpack.c.bf16 %v1023, %v1023
  %1029 = vrot.lane.b32.xlu0 %v1026, 96
  %v1030 = vpop.permute.xlu0 %1029
  %v1032 = vsel %vm133, %v1026, 0
  %v1035 = vsel %vm133, %v1030, 0
  %1037 = vmatprep.subr.bf16.mxu0 0
  %1038 = vmatpush1.bf16.xpose.msra.mxu0 0
  %1039 = vmatprep.subr.bf16.mxu0 0
  %1040 = vmatpush1.bf16.xpose.msra.mxu0 0
  %1041 = vmatprep.subr.bf16.mxu0 0
  %1042 = vmatpush1.bf16.xpose.msra.mxu0 0
  %1043 = vmatprep.subr.bf16.mxu0 0
  %1044 = vmatpush1.bf16.xpose.msra.mxu0 0
  %1045 = vmatprep.subr.bf16.mxu0 0
  %1046 = vmatpush1.bf16.xpose.msra.mxu0 0
  %1047 = vmatprep.subr.bf16.mxu0 0
  %1048 = vmatpush1.bf16.xpose.msra.mxu0 0
  %1049 = vmatprep.subr.bf16.mxu0 0
  %1050 = vmatpush1.bf16.xpose.msra.mxu0 0
  %1051 = vmatprep.subr.bf16.mxu0 0
  %1052 = vmatpush1.bf16.xpose.msra.mxu0 %v1035
  %1053 = vmatprep.subr.bf16.mxu0 0
  %1054 = vmatpush2.bf16.xpose.msra.mxu0 0
  %1055 = vmatprep.subr.bf16.mxu0 0
  %1056 = vmatpush2.bf16.xpose.msra.mxu0 0
  %1057 = vmatprep.subr.bf16.mxu0 0
  %1058 = vmatpush2.bf16.xpose.msra.mxu0 0
  %1059 = vmatprep.subr.bf16.mxu0 0
  %1060 = vmatpush2.bf16.xpose.msra.mxu0 0
  %1061 = vmatprep.subr.bf16.mxu0 0
  %1062 = vmatpush2.bf16.xpose.msra.mxu0 0
  %1063 = vmatprep.subr.bf16.mxu0 0
  %1064 = vmatpush2.bf16.xpose.msra.mxu0 0
  %1065 = vmatprep.subr.bf16.mxu0 0
  %1066 = vmatpush2.bf16.xpose.msra.mxu0 0
  %1067 = vmatprep.subr.bf16.mxu0 0
  %1068 = vmatpush2.bf16.xpose.msra.mxu0 0
  %1069 = vmatprep.mubr.bf16.mxu0 0
  %1070 = vmatmul.mubr.bf16.gmra.mxu0 %v1032
  %v1071 = vpop.f32.mrf.mxu0
  %v1072 = vadd.f32 0.0, %v1071
  %v1073 = vpop.f32.mrf.mxu0
  %v1074 = vpop.f32.mrf.mxu0
  %v1075 = vpop.f32.mrf.mxu0
  %1076 = vdwg.mxu0
  %1078 = vrot.lane.b32.xlu0 %v1027, 96
  %v1079 = vpop.permute.xlu0 %1078
  %v1081 = vsel %vm133, %v1027, 0
  %v1084 = vsel %vm133, %v1079, 0
  %1086 = vmatprep.subr.bf16.mxu0 0
  %1087 = vmatpush1.bf16.xpose.msra.mxu0 0
  %1088 = vmatprep.subr.bf16.mxu0 0
  %1089 = vmatpush1.bf16.xpose.msra.mxu0 0
  %1090 = vmatprep.subr.bf16.mxu0 0
  %1091 = vmatpush1.bf16.xpose.msra.mxu0 0
  %1092 = vmatprep.subr.bf16.mxu0 0
  %1093 = vmatpush1.bf16.xpose.msra.mxu0 0
  %1094 = vmatprep.subr.bf16.mxu0 0
  %1095 = vmatpush1.bf16.xpose.msra.mxu0 0
  %1096 = vmatprep.subr.bf16.mxu0 0
  %1097 = vmatpush1.bf16.xpose.msra.mxu0 0
  %1098 = vmatprep.subr.bf16.mxu0 0
  %1099 = vmatpush1.bf16.xpose.msra.mxu0 0
  %1100 = vmatprep.subr.bf16.mxu0 0
  %1101 = vmatpush1.bf16.xpose.msra.mxu0 %v1084
  %1102 = vmatprep.subr.bf16.mxu0 0
  %1103 = vmatpush2.bf16.xpose.msra.mxu0 0
  %1104 = vmatprep.subr.bf16.mxu0 0
  %1105 = vmatpush2.bf16.xpose.msra.mxu0 0
  %1106 = vmatprep.subr.bf16.mxu0 0
  %1107 = vmatpush2.bf16.xpose.msra.mxu0 0
  %1108 = vmatprep.subr.bf16.mxu0 0
  %1109 = vmatpush2.bf16.xpose.msra.mxu0 0
  %1110 = vmatprep.subr.bf16.mxu0 0
  %1111 = vmatpush2.bf16.xpose.msra.mxu0 0
  %1112 = vmatprep.subr.bf16.mxu0 0
  %1113 = vmatpush2.bf16.xpose.msra.mxu0 0
  %1114 = vmatprep.subr.bf16.mxu0 0
  %1115 = vmatpush2.bf16.xpose.msra.mxu0 0
  %1116 = vmatprep.subr.bf16.mxu0 0
  %1117 = vmatpush2.bf16.xpose.msra.mxu0 0
  %1118 = vmatprep.mubr.bf16.mxu0 0
  %1119 = vmatmul.mubr.bf16.gmra.mxu0 %v1081
  %v1120 = vpop.f32.mrf.mxu0
  %v1121 = vadd.f32 0.0, %v1120
  %v1122 = vpop.f32.mrf.mxu0
  %v1123 = vpop.f32.mrf.mxu0
  %v1124 = vpop.f32.mrf.mxu0
  %1125 = vdwg.mxu0
  %v1126 = vmul.f32 %v1072, 0.25
  %v1127 = vmul.f32 %v1121, 0.25
  %v1128 = vadd.f32 %v1126, %v236
  %v1129 = vadd.f32 %v1127, %v240
  %v1130 = vsel %vm245, %v1128, -inf
  %1131 = vmax.xlane.f32.xlu0 %v1130
  %v1132 = vpop.xlane.xlu0 %1131
  %v1133 = vsel %vm245, %v1129, -inf
  %1134 = vmax.xlane.f32.xlu0 %v1133
  %v1135 = vpop.xlane.xlu0 %1134
  %v1136 = vsub.f32 %v1128, %v1132
  %v1137 = vsub.f32 %v1129, %v1135
  %v1138 = vmul.f32 %v1136, 1.442695
  %v1139 = vpow.pop %v1138
  %v1140 = vmul.f32 %v1137, 1.442695
  %v1141 = vpow.pop %v1140
  %v1142 = vsel %vm245, %v1139, 0.0
  %1143 = vadd.xlane.f32.xlu0 %v1142
  %v1144 = vpop.xlane.xlu0 %1143
  %v1145 = vsel %vm245, %v1141, 0.0
  %1146 = vadd.xlane.f32.xlu0 %v1145
  %v1147 = vpop.xlane.xlu0 %1146
  %v1148 = vrcp.pop %v1144
  %v1149 = vrcp.pop %v1147
  %v1150 = vmul.f32 %v1139, %v1148
  %v1151 = vmul.f32 %v1141, %v1149
  %v1152 = vpack.c.bf16 %v1150, %v1150
  %v1153 = vpack.c.bf16 %v1151, %v1151
  %1154 = vrot.lane.b32.xlu0 %v1026, 64
  %v1155 = vpop.permute.xlu0 %1154
  %v1157 = vsel %vm245, %v1152, 0
  %v1160 = vsel %vm275, %v1155, 0
  %1162 = vmatprep.subr.bf16.mxu0 0
  %1163 = vmatpush1.bf16.msra.mxu0 0
  %1164 = vmatprep.subr.bf16.mxu0 0
  %1165 = vmatpush1.bf16.msra.mxu0 0
  %1166 = vmatprep.subr.bf16.mxu0 0
  %1167 = vmatpush1.bf16.msra.mxu0 0
  %1168 = vmatprep.subr.bf16.mxu0 0
  %1169 = vmatpush1.bf16.msra.mxu0 0
  %1170 = vmatprep.subr.bf16.mxu0 0
  %1171 = vmatpush1.bf16.msra.mxu0 0
  %1172 = vmatprep.subr.bf16.mxu0 0
  %1173 = vmatpush1.bf16.msra.mxu0 0
  %1174 = vmatprep.subr.bf16.mxu0 0
  %1175 = vmatpush1.bf16.msra.mxu0 0
  %1176 = vmatprep.subr.bf16.mxu0 0
  %1177 = vmatpush1.bf16.msra.mxu0 %v1160
  %1178 = vmatprep.subr.bf16.mxu0 0
  %1179 = vmatpush2.bf16.msra.mxu0 0
  %1180 = vmatprep.subr.bf16.mxu0 0
  %1181 = vmatpush2.bf16.msra.mxu0 0
  %1182 = vmatprep.subr.bf16.mxu0 0
  %1183 = vmatpush2.bf16.msra.mxu0 0
  %1184 = vmatprep.subr.bf16.mxu0 0
  %1185 = vmatpush2.bf16.msra.mxu0 0
  %1186 = vmatprep.subr.bf16.mxu0 0
  %1187 = vmatpush2.bf16.msra.mxu0 0
  %1188 = vmatprep.subr.bf16.mxu0 0
  %1189 = vmatpush2.bf16.msra.mxu0 0
  %1190 = vmatprep.subr.bf16.mxu0 0
  %1191 = vmatpush2.bf16.msra.mxu0 0
  %1192 = vmatprep.subr.bf16.mxu0 0
  %1193 = vmatpush2.bf16.msra.mxu0 0
  %1194 = vmatprep.mubr.bf16.mxu0 0
  %1195 = vmatmul.mubr.bf16.gmra.mxu0 %v1157
  %v1196 = vpop.f32.mrf.mxu0
  %v1197 = vadd.f32 0.0, %v1196
  %v1198 = vpop.f32.mrf.mxu0
  %v1199 = vpop.f32.mrf.mxu0
  %v1200 = vpop.f32.mrf.mxu0
  %1201 = vdwg.mxu0
  %1202 = vrot.lane.b32.xlu0 %v1027, 64
  %v1203 = vpop.permute.xlu0 %1202
  %v1205 = vsel %vm245, %v1153, 0
  %v1208 = vsel %vm275, %v1203, 0
  %1210 = vmatprep.subr.bf16.mxu0 0
  %1211 = vmatpush1.bf16.msra.mxu0 0
  %1212 = vmatprep.subr.bf16.mxu0 0
  %1213 = vmatpush1.bf16.msra.mxu0 0
  %1214 = vmatprep.subr.bf16.mxu0 0
  %1215 = vmatpush1.bf16.msra.mxu0 0
  %1216 = vmatprep.subr.bf16.mxu0 0
  %1217 = vmatpush1.bf16.msra.mxu0 0
  %1218 = vmatprep.subr.bf16.mxu0 0
  %1219 = vmatpush1.bf16.msra.mxu0 0
  %1220 = vmatprep.subr.bf16.mxu0 0
  %1221 = vmatpush1.bf16.msra.mxu0 0
  %1222 = vmatprep.subr.bf16.mxu0 0
  %1223 = vmatpush1.bf16.msra.mxu0 0
  %1224 = vmatprep.subr.bf16.mxu0 0
  %1225 = vmatpush1.bf16.msra.mxu0 %v1208
  %1226 = vmatprep.subr.bf16.mxu0 0
  %1227 = vmatpush2.bf16.msra.mxu0 0
  %1228 = vmatprep.subr.bf16.mxu0 0
  %1229 = vmatpush2.bf16.msra.mxu0 0
  %1230 = vmatprep.subr.bf16.mxu0 0
  %1231 = vmatpush2.bf16.msra.mxu0 0
  %1232 = vmatprep.subr.bf16.mxu0 0
  %1233 = vmatpush2.bf16.msra.mxu0 0
  %1234 = vmatprep.subr.bf16.mxu0 0
  %1235 = vmatpush2.bf16.msra.mxu0 0
  %1236 = vmatprep.subr.bf16.mxu0 0
  %1237 = vmatpush2.bf16.msra.mxu0 0
  %1238 = vmatprep.subr.bf16.mxu0 0
  %1239 = vmatpush2.bf16.msra.mxu0 0
  %1240 = vmatprep.subr.bf16.mxu0 0
  %1241 = vmatpush2.bf16.msra.mxu0 0
  %1242 = vmatprep.mubr.bf16.mxu0 0
  %1243 = vmatmul.mubr.bf16.gmra.mxu0 %v1205
  %v1244 = vpop.f32.mrf.mxu0
  %v1245 = vadd.f32 0.0, %v1244
  %v1246 = vpop.f32.mrf.mxu0
  %v1247 = vpop.f32.mrf.mxu0
  %v1248 = vpop.f32.mrf.mxu0
  %1249 = vdwg.mxu0
  %v1250 = vpack.c.bf16 %v1245, %v1197
  %v1251 = vpack.c.bf16 %v948, %v947
  %1252 = vrot.lane.b32.xlu0 %v1026, 112
  %v1253 = vpop.permute.xlu0 %1252
  %1254 = vrot.lane.b32.xlu0 %v1026, 80
  %v1255 = vpop.permute.xlu0 %1254
  %v1257 = vsel %vm133, %v1253, 0
  %v1260 = vsel %vm133, %v1255, 0
  %1262 = vmatprep.subr.bf16.mxu0 0
  %1263 = vmatpush1.bf16.xpose.msra.mxu0 0
  %1264 = vmatprep.subr.bf16.mxu0 0
  %1265 = vmatpush1.bf16.xpose.msra.mxu0 0
  %1266 = vmatprep.subr.bf16.mxu0 0
  %1267 = vmatpush1.bf16.xpose.msra.mxu0 0
  %1268 = vmatprep.subr.bf16.mxu0 0
  %1269 = vmatpush1.bf16.xpose.msra.mxu0 0
  %1270 = vmatprep.subr.bf16.mxu0 0
  %1271 = vmatpush1.bf16.xpose.msra.mxu0 0
  %1272 = vmatprep.subr.bf16.mxu0 0
  %1273 = vmatpush1.bf16.xpose.msra.mxu0 0
  %1274 = vmatprep.subr.bf16.mxu0 0
  %1275 = vmatpush1.bf16.xpose.msra.mxu0 0
  %1276 = vmatprep.subr.bf16.mxu0 0
  %1277 = vmatpush1.bf16.xpose.msra.mxu0 %v1260
  %1278 = vmatprep.subr.bf16.mxu0 0
  %1279 = vmatpush2.bf16.xpose.msra.mxu0 0
  %1280 = vmatprep.subr.bf16.mxu0 0
  %1281 = vmatpush2.bf16.xpose.msra.mxu0 0
  %1282 = vmatprep.subr.bf16.mxu0 0
  %1283 = vmatpush2.bf16.xpose.msra.mxu0 0
  %1284 = vmatprep.subr.bf16.mxu0 0
  %1285 = vmatpush2.bf16.xpose.msra.mxu0 0
  %1286 = vmatprep.subr.bf16.mxu0 0
  %1287 = vmatpush2.bf16.xpose.msra.mxu0 0
  %1288 = vmatprep.subr.bf16.mxu0 0
  %1289 = vmatpush2.bf16.xpose.msra.mxu0 0
  %1290 = vmatprep.subr.bf16.mxu0 0
  %1291 = vmatpush2.bf16.xpose.msra.mxu0 0
  %1292 = vmatprep.subr.bf16.mxu0 0
  %1293 = vmatpush2.bf16.xpose.msra.mxu0 0
  %1294 = vmatprep.mubr.bf16.mxu0 0
  %1295 = vmatmul.mubr.bf16.gmra.mxu0 %v1257
  %v1296 = vpop.f32.mrf.mxu0
  %v1297 = vadd.f32 0.0, %v1296
  %v1298 = vpop.f32.mrf.mxu0
  %v1299 = vpop.f32.mrf.mxu0
  %v1300 = vpop.f32.mrf.mxu0
  %1301 = vdwg.mxu0
  %1302 = vrot.lane.b32.xlu0 %v1027, 112
  %v1303 = vpop.permute.xlu0 %1302
  %1304 = vrot.lane.b32.xlu0 %v1027, 80
  %v1305 = vpop.permute.xlu0 %1304
  %v1307 = vsel %vm133, %v1303, 0
  %v1310 = vsel %vm133, %v1305, 0
  %1312 = vmatprep.subr.bf16.mxu0 0
  %1313 = vmatpush1.bf16.xpose.msra.mxu0 0
  %1314 = vmatprep.subr.bf16.mxu0 0
  %1315 = vmatpush1.bf16.xpose.msra.mxu0 0
  %1316 = vmatprep.subr.bf16.mxu0 0
  %1317 = vmatpush1.bf16.xpose.msra.mxu0 0
  %1318 = vmatprep.subr.bf16.mxu0 0
  %1319 = vmatpush1.bf16.xpose.msra.mxu0 0
  %1320 = vmatprep.subr.bf16.mxu0 0
  %1321 = vmatpush1.bf16.xpose.msra.mxu0 0
  %1322 = vmatprep.subr.bf16.mxu0 0
  %1323 = vmatpush1.bf16.xpose.msra.mxu0 0
  %1324 = vmatprep.subr.bf16.mxu0 0
  %1325 = vmatpush1.bf16.xpose.msra.mxu0 0
  %1326 = vmatprep.subr.bf16.mxu0 0
  %1327 = vmatpush1.bf16.xpose.msra.mxu0 %v1310
  %1328 = vmatprep.subr.bf16.mxu0 0
  %1329 = vmatpush2.bf16.xpose.msra.mxu0 0
  %1330 = vmatprep.subr.bf16.mxu0 0
  %1331 = vmatpush2.bf16.xpose.msra.mxu0 0
  %1332 = vmatprep.subr.bf16.mxu0 0
  %1333 = vmatpush2.bf16.xpose.msra.mxu0 0
  %1334 = vmatprep.subr.bf16.mxu0 0
  %1335 = vmatpush2.bf16.xpose.msra.mxu0 0
  %1336 = vmatprep.subr.bf16.mxu0 0
  %1337 = vmatpush2.bf16.xpose.msra.mxu0 0
  %1338 = vmatprep.subr.bf16.mxu0 0
  %1339 = vmatpush2.bf16.xpose.msra.mxu0 0
  %1340 = vmatprep.subr.bf16.mxu0 0
  %1341 = vmatpush2.bf16.xpose.msra.mxu0 0
  %1342 = vmatprep.subr.bf16.mxu0 0
  %1343 = vmatpush2.bf16.xpose.msra.mxu0 0
  %1344 = vmatprep.mubr.bf16.mxu0 0
  %1345 = vmatmul.mubr.bf16.gmra.mxu0 %v1307
  %v1346 = vpop.f32.mrf.mxu0
  %v1347 = vadd.f32 0.0, %v1346
  %v1348 = vpop.f32.mrf.mxu0
  %v1349 = vpop.f32.mrf.mxu0
  %v1350 = vpop.f32.mrf.mxu0
  %1351 = vdwg.mxu0
  %v1352 = vmul.f32 %v1297, 0.25
  %v1353 = vmul.f32 %v1347, 0.25
  %v1354 = vadd.f32 %v1352, %v236
  %v1355 = vadd.f32 %v1353, %v240
  %v1356 = vsel %vm245, %v1354, -inf
  %1357 = vmax.xlane.f32.xlu0 %v1356
  %v1358 = vpop.xlane.xlu0 %1357
  %v1359 = vsel %vm245, %v1355, -inf
  %1360 = vmax.xlane.f32.xlu0 %v1359
  %v1361 = vpop.xlane.xlu0 %1360
  %v1362 = vsub.f32 %v1354, %v1358
  %v1363 = vsub.f32 %v1355, %v1361
  %v1364 = vmul.f32 %v1362, 1.442695
  %v1365 = vpow.pop %v1364
  %v1366 = vmul.f32 %v1363, 1.442695
  %v1367 = vpow.pop %v1366
  %v1368 = vsel %vm245, %v1365, 0.0
  %1369 = vadd.xlane.f32.xlu0 %v1368
  %v1370 = vpop.xlane.xlu0 %1369
  %v1371 = vsel %vm245, %v1367, 0.0
  %1372 = vadd.xlane.f32.xlu0 %v1371
  %v1373 = vpop.xlane.xlu0 %1372
  %v1374 = vrcp.pop %v1370
  %v1375 = vrcp.pop %v1373
  %v1376 = vmul.f32 %v1365, %v1374
  %v1377 = vmul.f32 %v1367, %v1375
  %v1378 = vpack.c.bf16 %v1376, %v1376
  %v1379 = vpack.c.bf16 %v1377, %v1377
  %1380 = vrot.lane.b32.xlu0 %v1026, 48
  %v1381 = vpop.permute.xlu0 %1380
  %v1383 = vsel %vm245, %v1378, 0
  %v1386 = vsel %vm275, %v1381, 0
  %1388 = vmatprep.subr.bf16.mxu0 0
  %1389 = vmatpush1.bf16.msra.mxu0 0
  %1390 = vmatprep.subr.bf16.mxu0 0
  %1391 = vmatpush1.bf16.msra.mxu0 0
  %1392 = vmatprep.subr.bf16.mxu0 0
  %1393 = vmatpush1.bf16.msra.mxu0 0
  %1394 = vmatprep.subr.bf16.mxu0 0
  %1395 = vmatpush1.bf16.msra.mxu0 0
  %1396 = vmatprep.subr.bf16.mxu0 0
  %1397 = vmatpush1.bf16.msra.mxu0 0
  %1398 = vmatprep.subr.bf16.mxu0 0
  %1399 = vmatpush1.bf16.msra.mxu0 0
  %1400 = vmatprep.subr.bf16.mxu0 0
  %1401 = vmatpush1.bf16.msra.mxu0 0
  %1402 = vmatprep.subr.bf16.mxu0 0
  %1403 = vmatpush1.bf16.msra.mxu0 %v1386
  %1404 = vmatprep.subr.bf16.mxu0 0
  %1405 = vmatpush2.bf16.msra.mxu0 0
  %1406 = vmatprep.subr.bf16.mxu0 0
  %1407 = vmatpush2.bf16.msra.mxu0 0
  %1408 = vmatprep.subr.bf16.mxu0 0
  %1409 = vmatpush2.bf16.msra.mxu0 0
  %1410 = vmatprep.subr.bf16.mxu0 0
  %1411 = vmatpush2.bf16.msra.mxu0 0
  %1412 = vmatprep.subr.bf16.mxu0 0
  %1413 = vmatpush2.bf16.msra.mxu0 0
  %1414 = vmatprep.subr.bf16.mxu0 0
  %1415 = vmatpush2.bf16.msra.mxu0 0
  %1416 = vmatprep.subr.bf16.mxu0 0
  %1417 = vmatpush2.bf16.msra.mxu0 0
  %1418 = vmatprep.subr.bf16.mxu0 0
  %1419 = vmatpush2.bf16.msra.mxu0 0
  %1420 = vmatprep.mubr.bf16.mxu0 0
  %1421 = vmatmul.mubr.bf16.gmra.mxu0 %v1383
  %v1422 = vpop.f32.mrf.mxu0
  %v1423 = vadd.f32 0.0, %v1422
  %v1424 = vpop.f32.mrf.mxu0
  %v1425 = vpop.f32.mrf.mxu0
  %v1426 = vpop.f32.mrf.mxu0
  %1427 = vdwg.mxu0
  %1428 = vrot.lane.b32.xlu0 %v1027, 48
  %v1429 = vpop.permute.xlu0 %1428
  %v1431 = vsel %vm245, %v1379, 0
  %v1434 = vsel %vm275, %v1429, 0
  %1436 = vmatprep.subr.bf16.mxu0 0
  %1437 = vmatpush1.bf16.msra.mxu0 0
  %1438 = vmatprep.subr.bf16.mxu0 0
  %1439 = vmatpush1.bf16.msra.mxu0 0
  %1440 = vmatprep.subr.bf16.mxu0 0
  %1441 = vmatpush1.bf16.msra.mxu0 0
  %1442 = vmatprep.subr.bf16.mxu0 0
  %1443 = vmatpush1.bf16.msra.mxu0 0
  %1444 = vmatprep.subr.bf16.mxu0 0
  %1445 = vmatpush1.bf16.msra.mxu0 0
  %1446 = vmatprep.subr.bf16.mxu0 0
  %1447 = vmatpush1.bf16.msra.mxu0 0
  %1448 = vmatprep.subr.bf16.mxu0 0
  %1449 = vmatpush1.bf16.msra.mxu0 0
  %1450 = vmatprep.subr.bf16.mxu0 0
  %1451 = vmatpush1.bf16.msra.mxu0 %v1434
  %1452 = vmatprep.subr.bf16.mxu0 0
  %1453 = vmatpush2.bf16.msra.mxu0 0
  %1454 = vmatprep.subr.bf16.mxu0 0
  %1455 = vmatpush2.bf16.msra.mxu0 0
  %1456 = vmatprep.subr.bf16.mxu0 0
  %1457 = vmatpush2.bf16.msra.mxu0 0
  %1458 = vmatprep.subr.bf16.mxu0 0
  %1459 = vmatpush2.bf16.msra.mxu0 0
  %1460 = vmatprep.subr.bf16.mxu0 0
  %1461 = vmatpush2.bf16.msra.mxu0 0
  %1462 = vmatprep.subr.bf16.mxu0 0
  %1463 = vmatpush2.bf16.msra.mxu0 0
  %1464 = vmatprep.subr.bf16.mxu0 0
  %1465 = vmatpush2.bf16.msra.mxu0 0
  %1466 = vmatprep.subr.bf16.mxu0 0
  %1467 = vmatpush2.bf16.msra.mxu0 0
  %1468 = vmatprep.mubr.bf16.mxu0 0
  %1469 = vmatmul.mubr.bf16.gmra.mxu0 %v1431
  %v1470 = vpop.f32.mrf.mxu0
  %v1471 = vadd.f32 0.0, %v1470
  %v1472 = vpop.f32.mrf.mxu0
  %v1473 = vpop.f32.mrf.mxu0
  %v1474 = vpop.f32.mrf.mxu0
  %1475 = vdwg.mxu0
  %v1476 = vpack.c.bf16 %v1471, %v1423
  %v1477 = vpack.c.bf16 %v950, %v949
  %v1479 = vsel %vm133, %v1476, 0
  %1481 = vmatprep.subr.bf16.mxu0 0
  %1482 = vmatpush1.bf16.msra.mxu0 0
  %1483 = vmatprep.subr.bf16.mxu0 0
  %1484 = vmatpush1.bf16.msra.mxu0 0
  %1485 = vmatprep.subr.bf16.mxu0 0
  %1486 = vmatpush1.bf16.msra.mxu0 0
  %1487 = vmatprep.subr.bf16.mxu0 0
  %1488 = vmatpush1.bf16.msra.mxu0 0
  %1489 = vmatprep.subr.bf16.mxu0 0
  %1490 = vmatpush1.bf16.msra.mxu0 0
  %1491 = vmatprep.subr.bf16.mxu0 0
  %1492 = vmatpush1.bf16.msra.mxu0 0
  %1493 = vmatprep.subr.bf16.mxu0 0
  %1494 = vmatpush1.bf16.msra.mxu0 0
  %1495 = vmatprep.subr.bf16.mxu0 0
  %1496 = vmatpush1.bf16.msra.mxu0 %v1477
  %1497 = vmatprep.subr.bf16.mxu0 0
  %1498 = vmatpush2.bf16.msra.mxu0 0
  %1499 = vmatprep.subr.bf16.mxu0 0
  %1500 = vmatpush2.bf16.msra.mxu0 0
  %1501 = vmatprep.subr.bf16.mxu0 0
  %1502 = vmatpush2.bf16.msra.mxu0 0
  %1503 = vmatprep.subr.bf16.mxu0 0
  %1504 = vmatpush2.bf16.msra.mxu0 0
  %1505 = vmatprep.subr.bf16.mxu0 0
  %1506 = vmatpush2.bf16.msra.mxu0 0
  %1507 = vmatprep.subr.bf16.mxu0 0
  %1508 = vmatpush2.bf16.msra.mxu0 0
  %1509 = vmatprep.subr.bf16.mxu0 0
  %1510 = vmatpush2.bf16.msra.mxu0 0
  %1511 = vmatprep.subr.bf16.mxu0 0
  %1512 = vmatpush2.bf16.msra.mxu0 0
  %1513 = vmatprep.mubr.bf16.mxu0 0
  %1514 = vmatmul.mubr.bf16.gmra.mxu0 %v1479
  %v1515 = vpop.f32.mrf.mxu0
  %v1516 = vadd.f32 0.0, %v1515
  %v1517 = vpop.f32.mrf.mxu0
  %v1518 = vpop.f32.mrf.mxu0
  %v1519 = vadd.f32 0.0, %v1518
  %v1520 = vpop.f32.mrf.mxu0
  %1521 = vdwg.mxu0
  %v1523 = vsel %vm133, %v1250, 0
  %1525 = vmatprep.subr.bf16.mxu0 0
  %1526 = vmatpush1.bf16.msra.mxu0 0
  %1527 = vmatprep.subr.bf16.mxu0 0
  %1528 = vmatpush1.bf16.msra.mxu0 0
  %1529 = vmatprep.subr.bf16.mxu0 0
  %1530 = vmatpush1.bf16.msra.mxu0 0
  %1531 = vmatprep.subr.bf16.mxu0 0
  %1532 = vmatpush1.bf16.msra.mxu0 0
  %1533 = vmatprep.subr.bf16.mxu0 0
  %1534 = vmatpush1.bf16.msra.mxu0 0
  %1535 = vmatprep.subr.bf16.mxu0 0
  %1536 = vmatpush1.bf16.msra.mxu0 0
  %1537 = vmatprep.subr.bf16.mxu0 0
  %1538 = vmatpush1.bf16.msra.mxu0 0
  %1539 = vmatprep.subr.bf16.mxu0 0
  %1540 = vmatpush1.bf16.msra.mxu0 %v1251
  %1541 = vmatprep.subr.bf16.mxu0 0
  %1542 = vmatpush2.bf16.msra.mxu0 0
  %1543 = vmatprep.subr.bf16.mxu0 0
  %1544 = vmatpush2.bf16.msra.mxu0 0
  %1545 = vmatprep.subr.bf16.mxu0 0
  %1546 = vmatpush2.bf16.msra.mxu0 0
  %1547 = vmatprep.subr.bf16.mxu0 0
  %1548 = vmatpush2.bf16.msra.mxu0 0
  %1549 = vmatprep.subr.bf16.mxu0 0
  %1550 = vmatpush2.bf16.msra.mxu0 0
  %1551 = vmatprep.subr.bf16.mxu0 0
  %1552 = vmatpush2.bf16.msra.mxu0 0
  %1553 = vmatprep.subr.bf16.mxu0 0
  %1554 = vmatpush2.bf16.msra.mxu0 0
  %1555 = vmatprep.subr.bf16.mxu0 0
  %1556 = vmatpush2.bf16.msra.mxu0 0
  %1557 = vmatprep.mubr.bf16.mxu0 0
  %1558 = vmatmul.mubr.bf16.gmra.mxu0 %v1523
  %v1559 = vpop.f32.mrf.mxu0
  %v1560 = vadd.f32 %v1516, %v1559
  %v1561 = vpop.f32.mrf.mxu0
  %v1562 = vpop.f32.mrf.mxu0
  %v1563 = vadd.f32 %v1519, %v1562
  %v1564 = vpop.f32.mrf.mxu0
  %1565 = vdwg.mxu0
  %v1566 = vlaneseq
  %v1567 = vshrl.u32 %v1566, 7
  %v1568 = vsub.s32 1, %v1567
  %v1569 = vrot.slane %v974, %v1568
  %v1570 = vadd.f32 %v1560, %v1569
  %v1571 = vadd.f32 %v1563, %v1569
  %v1572 = vadd.f32 %v1570, %v939
  %v1573 = vadd.f32 %v1571, %v940
  %v1574 = vsel %vm83, %v1572, 0.0
  %1575 = vadd.xlane.f32.xlu0 %v1574
  %v1576 = vpop.xlane.xlu0 %1575
  %v1577 = vsel %vm83, %v1573, 0.0
  %1578 = vadd.xlane.f32.xlu0 %v1577
  %v1579 = vpop.xlane.xlu0 %1578
  %v1580 = vmul.f32 %v1576, %v697
  %v1581 = vmul.f32 %v1579, %v697
  %v1582 = vsub.f32 %v1572, %v1580
  %v1583 = vsub.f32 %v1573, %v1581
  %v1584 = vmul.f32 %v1582, %v1582
  %v1585 = vmul.f32 %v1583, %v1583
  %v1586 = vsel %vm83, %v1584, 0.0
  %1587 = vadd.xlane.f32.xlu0 %v1586
  %v1588 = vpop.xlane.xlu0 %1587
  %v1589 = vsel %vm83, %v1585, 0.0
  %1590 = vadd.xlane.f32.xlu0 %v1589
  %v1591 = vpop.xlane.xlu0 %1590
  %v1592 = vmul.f32 %v1588, %v697
  %v1593 = vmul.f32 %v1591, %v697
  %v1594 = vadd.f32 %v1592, 1e-05
  %v1595 = vadd.f32 %v1593, 1e-05
  %v1596 = vrsqrt.pop %v1594
  %v1597 = vrsqrt.pop %v1595
  %v1598 = vmul.f32 %v1582, %v1596
  %v1599 = vmul.f32 %v1583, %v1597
  %v1600 = vlaneseq
  %v1601 = vshrl.u32 %v1600, 7
  %v1602 = vsub.s32 2, %v1601
  %v1603 = vrot.slane %v974, %v1602
  %v1604 = vmul.f32 %v1598, %v1603
  %v1605 = vmul.f32 %v1599, %v1603
  %v1606 = vlaneseq
  %v1607 = vshrl.u32 %v1606, 7
  %v1608 = vsub.s32 3, %v1607
  %v1609 = vrot.slane %v974, %v1608
  %v1610 = vadd.f32 %v1604, %v1609
  %v1611 = vadd.f32 %v1605, %v1609
  %v1612 = vmul.f32 %v1610, %v733
  %v1613 = vmul.f32 %v1611, %v738
  %v1616 = vrot.slane %v1612, 7
  %v1617 = vrot.slane %v1613, 7
  %v1620 = vsel %vm748, 0.0, %v1616
  %v1621 = vsel %vm748, 0.0, %v1617
  %v1622 = vsel %vm748, %v1616, 0.0
  %v1623 = vsel %vm748, %v1617, 0.0
  %v1628 = vrot.slane %v1620, 1
  %v1629 = vrot.slane %v1622, 1
  %v1630 = vsel %vm757, %v1628, %v1629
  %v1631 = vrot.slane %v1621, 1
  %v1632 = vrot.slane %v1623, 1
  %v1633 = vsel %vm757, %v1631, %v1632
  %1634 = vrot.lane.b32.xlu0 %v1630, 32
  %v1635 = vpop.permute.xlu0 %1634
  %1636 = vrot.lane.b32.xlu0 %v1633, 32
  %v1637 = vpop.permute.xlu0 %1636
  %v1640 = vrot.slane %v1620, 2
  %v1641 = vrot.slane %v1622, 2
  %v1642 = vsel %vm770, %v1640, %v1641
  %v1643 = vrot.slane %v1621, 2
  %v1644 = vrot.slane %v1623, 2
  %v1645 = vsel %vm770, %v1643, %v1644
  %1646 = vrot.lane.b32.xlu0 %v1642, 64
  %v1647 = vpop.permute.xlu0 %1646
  %1648 = vrot.lane.b32.xlu0 %v1645, 64
  %v1649 = vpop.permute.xlu0 %1648
  %v1652 = vsel %vm83, %v1620, %v1635
  %v1653 = vsel %vm83, %v1621, %v1637
  %v1654 = vsel %vm785, %v1652, %v1647
  %v1655 = vsel %vm785, %v1653, %v1649
  %v1656 = vpack.c.bf16 %v1655, %v1654
  %v1657 = vpack.c.bf16 %v953, %v952
  %v1658 = vpack.c.bf16 %v955, %v954
  %v1659 = vpack.c.bf16 %v957, %v956
  %v1660 = vpack.c.bf16 %v959, %v958
  %v1661 = vpack.c.bf16 %v961, %v960
  %v1662 = vpack.c.bf16 %v963, %v962
  %v1663 = vlaneseq
  %v1664 = vshrl.u32 %v1663, 7
  %v1665 = vsub.s32 4, %v1664
  %v1666 = vrot.slane %v974, %v1665
  %v1668 = vsel %vm799, %v1656, 0
  %1670 = vmatprep.subr.bf16.mxu0 0
  %1671 = vmatpush1.bf16.msra.mxu0 0
  %1672 = vmatprep.subr.bf16.mxu0 0
  %1673 = vmatpush1.bf16.msra.mxu0 0
  %1674 = vmatprep.subr.bf16.mxu0 0
  %1675 = vmatpush1.bf16.msra.mxu0 %v1662
  %1676 = vmatprep.subr.bf16.mxu0 0
  %1677 = vmatpush1.bf16.msra.mxu0 %v1661
  %1678 = vmatprep.subr.bf16.mxu0 0
  %1679 = vmatpush1.bf16.msra.mxu0 %v1660
  %1680 = vmatprep.subr.bf16.mxu0 0
  %1681 = vmatpush1.bf16.msra.mxu0 %v1659
  %1682 = vmatprep.subr.bf16.mxu0 0
  %1683 = vmatpush1.bf16.msra.mxu0 %v1658
  %1684 = vmatprep.subr.bf16.mxu0 0
  %1685 = vmatpush1.bf16.msra.mxu0 %v1657
  %1686 = vmatprep.subr.bf16.mxu0 0
  %1687 = vmatpush2.bf16.msra.mxu0 0
  %1688 = vmatprep.subr.bf16.mxu0 0
  %1689 = vmatpush2.bf16.msra.mxu0 0
  %1690 = vmatprep.subr.bf16.mxu0 0
  %1691 = vmatpush2.bf16.msra.mxu0 0
  %1692 = vmatprep.subr.bf16.mxu0 0
  %1693 = vmatpush2.bf16.msra.mxu0 0
  %1694 = vmatprep.subr.bf16.mxu0 0
  %1695 = vmatpush2.bf16.msra.mxu0 0
  %1696 = vmatprep.subr.bf16.mxu0 0
  %1697 = vmatpush2.bf16.msra.mxu0 0
  %1698 = vmatprep.subr.bf16.mxu0 0
  %1699 = vmatpush2.bf16.msra.mxu0 0
  %1700 = vmatprep.subr.bf16.mxu0 0
  %1701 = vmatpush2.bf16.msra.mxu0 0
  %1702 = vmatprep.mubr.bf16.mxu0 0
  %1703 = vmatmul.mubr.bf16.gmra.mxu0 %v1668
  %v1704 = vpop.f32.mrf.mxu0
  %v1705 = vadd.f32 %v1666, %v1704
  %v1706 = vpop.f32.mrf.mxu0
  %v1707 = vpop.f32.mrf.mxu0
  %v1708 = vadd.f32 %v1666, %v1707
  %v1709 = vpop.f32.mrf.mxu0
  %1710 = vdwg.mxu0
  %v1711 = vmax.f32 %v1705, 0.0
  %v1712 = vmax.f32 %v1708, 0.0
  %v1713 = vpack.c.bf16 %v1712, %v1711
  %v1714 = vpack.c.bf16 %v966, %v965
  %v1715 = vpack.c.bf16 %v968, %v967
  %v1716 = vpack.c.bf16 %v970, %v969
  %v1717 = vpack.c.bf16 %v972, %v971
  %v1718 = vlaneseq
  %v1719 = vshrl.u32 %v1718, 7
  %v1720 = vsub.s32 5, %v1719
  %v1721 = vrot.slane %v974, %v1720
  %v1723 = vsel %vm785, %v1713, 0
  %1725 = vmatprep.subr.bf16.mxu0 0
  %1726 = vmatpush1.bf16.msra.mxu0 0
  %1727 = vmatprep.subr.bf16.mxu0 0
  %1728 = vmatpush1.bf16.msra.mxu0 0
  %1729 = vmatprep.subr.bf16.mxu0 0
  %1730 = vmatpush1.bf16.msra.mxu0 0
  %1731 = vmatprep.subr.bf16.mxu0 0
  %1732 = vmatpush1.bf16.msra.mxu0 0
  %1733 = vmatprep.subr.bf16.mxu0 0
  %1734 = vmatpush1.bf16.msra.mxu0 %v1717
  %1735 = vmatprep.subr.bf16.mxu0 0
  %1736 = vmatpush1.bf16.msra.mxu0 %v1716
  %1737 = vmatprep.subr.bf16.mxu0 0
  %1738 = vmatpush1.bf16.msra.mxu0 %v1715
  %1739 = vmatprep.subr.bf16.mxu0 0
  %1740 = vmatpush1.bf16.msra.mxu0 %v1714
  %1741 = vmatprep.subr.bf16.mxu0 0
  %1742 = vmatpush2.bf16.msra.mxu0 0
  %1743 = vmatprep.subr.bf16.mxu0 0
  %1744 = vmatpush2.bf16.msra.mxu0 0
  %1745 = vmatprep.subr.bf16.mxu0 0
  %1746 = vmatpush2.bf16.msra.mxu0 0
  %1747 = vmatprep.subr.bf16.mxu0 0
  %1748 = vmatpush2.bf16.msra.mxu0 0
  %1749 = vmatprep.subr.bf16.mxu0 0
  %1750 = vmatpush2.bf16.msra.mxu0 0
  %1751 = vmatprep.subr.bf16.mxu0 0
  %1752 = vmatpush2.bf16.msra.mxu0 0
  %1753 = vmatprep.subr.bf16.mxu0 0
  %1754 = vmatpush2.bf16.msra.mxu0 0
  %1755 = vmatprep.subr.bf16.mxu0 0
  %1756 = vmatpush2.bf16.msra.mxu0 0
  %1757 = vmatprep.mubr.bf16.mxu0 0
  %1758 = vmatmul.mubr.bf16.gmra.mxu0 %v1723
  %v1759 = vpop.f32.mrf.mxu0
  %v1760 = vadd.f32 %v1721, %v1759
  %v1761 = vpop.f32.mrf.mxu0
  %v1762 = vpop.f32.mrf.mxu0
  %v1763 = vadd.f32 %v1721, %v1762
  %v1764 = vpop.f32.mrf.mxu0
  %1765 = vdwg.mxu0
  %v1766 = vadd.f32 %v1760, %v1612
  %v1767 = vadd.f32 %v1763, %v1613
  %v1768 = vsel %vm83, %v1766, 0.0
  %1769 = vadd.xlane.f32.xlu0 %v1768
  %v1770 = vpop.xlane.xlu0 %1769
  %v1771 = vsel %vm83, %v1767, 0.0
  %1772 = vadd.xlane.f32.xlu0 %v1771
  %v1773 = vpop.xlane.xlu0 %1772
  %v1774 = vmul.f32 %v1770, %v697
  %v1775 = vmul.f32 %v1773, %v697
  %v1776 = vsub.f32 %v1766, %v1774
  %v1777 = vsub.f32 %v1767, %v1775
  %v1778 = vmul.f32 %v1776, %v1776
  %v1779 = vmul.f32 %v1777, %v1777
  %v1780 = vsel %vm83, %v1778, 0.0
  %1781 = vadd.xlane.f32.xlu0 %v1780
  %v1782 = vpop.xlane.xlu0 %1781
  %v1783 = vsel %vm83, %v1779, 0.0
  %1784 = vadd.xlane.f32.xlu0 %v1783
  %v1785 = vpop.xlane.xlu0 %1784
  %v1786 = vmul.f32 %v1782, %v697
  %v1787 = vmul.f32 %v1785, %v697
  %v1788 = vadd.f32 %v1786, 1e-05
  %v1789 = vadd.f32 %v1787, 1e-05
  %v1790 = vrsqrt.pop %v1788
  %v1791 = vrsqrt.pop %v1789
  %v1792 = vmul.f32 %v1776, %v1790
  %v1793 = vmul.f32 %v1777, %v1791
  %v1794 = vlaneseq
  %v1795 = vshrl.u32 %v1794, 7
  %v1796 = vsub.s32 6, %v1795
  %v1797 = vrot.slane %v974, %v1796
  %v1798 = vmul.f32 %v1792, %v1797
  %v1799 = vmul.f32 %v1793, %v1797
  %v1800 = vlaneseq
  %v1801 = vshrl.u32 %v1800, 7
  %v1802 = vsub.s32 7, %v1801
  %v1803 = vrot.slane %v974, %v1802
  %v1804 = vadd.f32 %v1798, %v1803
  %v1805 = vadd.f32 %v1799, %v1803
  %v1806 = vmul.f32 %v1804, %v733
  %v1807 = vmul.f32 %v1805, %v738
  %1808 = vst.msk [vmem:[%s11] sm:$0xff] %vm83, %v1806
  %1809 = vst.msk [vmem:[%s11 + $0x8] sm:$0xff] %vm83, %v1807
  %v1810 = vld [vmem:[%s10] sm:$0x7f]
  %v1811 = vld [vmem:[%s8] sm:$0xff]
  %v1812 = vld [vmem:[%s8 + $0x8] sm:$0xff]
  %v1813 = vld [vmem:[%s8 + $0x10] sm:$0xff]
  %v1814 = vld [vmem:[%s8 + $0x18] sm:$0xff]
  %v1815 = vld [vmem:[%s8 + $0x20] sm:$0xff]
  %v1816 = vld [vmem:[%s8 + $0x28] sm:$0xff]
  %v1817 = vld [vmem:[%s8 + $0x30] sm:$0xff]
  %v1818 = vld [vmem:[%s8 + $0x38] sm:$0xff]
  %v1819 = vld [vmem:[%s8 + $0x40] sm:$0xff]
  %v1820 = vld [vmem:[%s8 + $0x48] sm:$0xff]
  %v1821 = vld [vmem:[%s8 + $0x50] sm:$0xff]
  %v1822 = vld [vmem:[%s8 + $0x58] sm:$0xff]
  %v1825 = vrot.slane %v1806, 7
  %v1826 = vrot.slane %v1807, 7
  %v1829 = vsel %vm748, 0.0, %v1825
  %v1830 = vsel %vm748, 0.0, %v1826
  %v1831 = vsel %vm748, %v1825, 0.0
  %v1832 = vsel %vm748, %v1826, 0.0
  %v1837 = vrot.slane %v1829, 1
  %v1838 = vrot.slane %v1831, 1
  %v1839 = vsel %vm757, %v1837, %v1838
  %v1840 = vrot.slane %v1830, 1
  %v1841 = vrot.slane %v1832, 1
  %v1842 = vsel %vm757, %v1840, %v1841
  %1843 = vrot.lane.b32.xlu0 %v1839, 32
  %v1844 = vpop.permute.xlu0 %1843
  %1845 = vrot.lane.b32.xlu0 %v1842, 32
  %v1846 = vpop.permute.xlu0 %1845
  %v1849 = vrot.slane %v1829, 2
  %v1850 = vrot.slane %v1831, 2
  %v1851 = vsel %vm770, %v1849, %v1850
  %v1852 = vrot.slane %v1830, 2
  %v1853 = vrot.slane %v1832, 2
  %v1854 = vsel %vm770, %v1852, %v1853
  %1855 = vrot.lane.b32.xlu0 %v1851, 64
  %v1856 = vpop.permute.xlu0 %1855
  %1857 = vrot.lane.b32.xlu0 %v1854, 64
  %v1858 = vpop.permute.xlu0 %1857
  %v1861 = vsel %vm83, %v1829, %v1844
  %v1862 = vsel %vm83, %v1830, %v1846
  %v1863 = vsel %vm785, %v1861, %v1856
  %v1864 = vsel %vm785, %v1862, %v1858
  %v1865 = vpack.c.bf16 %v1864, %v1863
  %v1866 = vpack.c.bf16 %v1812, %v1811
  %v1867 = vpack.c.bf16 %v1814, %v1813
  %v1868 = vpack.c.bf16 %v1816, %v1815
  %v1869 = vpack.c.bf16 %v1818, %v1817
  %v1870 = vpack.c.bf16 %v1820, %v1819
  %v1871 = vpack.c.bf16 %v1822, %v1821
  %v1872 = vlaneseq
  %v1873 = vshrl.u32 %v1872, 7
  %v1874 = vsub.s32 0, %v1873
  %v1875 = vrot.slane %v1810, %v1874
  %v1877 = vsel %vm799, %v1865, 0
  %1879 = vmatprep.subr.bf16.mxu0 0
  %1880 = vmatpush1.bf16.msra.mxu0 0
  %1881 = vmatprep.subr.bf16.mxu0 0
  %1882 = vmatpush1.bf16.msra.mxu0 0
  %1883 = vmatprep.subr.bf16.mxu0 0
  %1884 = vmatpush1.bf16.msra.mxu0 %v1871
  %1885 = vmatprep.subr.bf16.mxu0 0
  %1886 = vmatpush1.bf16.msra.mxu0 %v1870
  %1887 = vmatprep.subr.bf16.mxu0 0
  %1888 = vmatpush1.bf16.msra.mxu0 %v1869
  %1889 = vmatprep.subr.bf16.mxu0 0
  %1890 = vmatpush1.bf16.msra.mxu0 %v1868
  %1891 = vmatprep.subr.bf16.mxu0 0
  %1892 = vmatpush1.bf16.msra.mxu0 %v1867
  %1893 = vmatprep.subr.bf16.mxu0 0
  %1894 = vmatpush1.bf16.msra.mxu0 %v1866
  %1895 = vmatprep.subr.bf16.mxu0 0
  %1896 = vmatpush2.bf16.msra.mxu0 0
  %1897 = vmatprep.subr.bf16.mxu0 0
  %1898 = vmatpush2.bf16.msra.mxu0 0
  %1899 = vmatprep.subr.bf16.mxu0 0
  %1900 = vmatpush2.bf16.msra.mxu0 0
  %1901 = vmatprep.subr.bf16.mxu0 0
  %1902 = vmatpush2.bf16.msra.mxu0 0
  %1903 = vmatprep.subr.bf16.mxu0 0
  %1904 = vmatpush2.bf16.msra.mxu0 0
  %1905 = vmatprep.subr.bf16.mxu0 0
  %1906 = vmatpush2.bf16.msra.mxu0 0
  %1907 = vmatprep.subr.bf16.mxu0 0
  %1908 = vmatpush2.bf16.msra.mxu0 0
  %1909 = vmatprep.subr.bf16.mxu0 0
  %1910 = vmatpush2.bf16.msra.mxu0 0
  %1911 = vmatprep.mubr.bf16.mxu0 0
  %1912 = vmatmul.mubr.bf16.gmra.mxu0 %v1877
  %v1913 = vpop.f32.mrf.mxu0
  %v1914 = vadd.f32 %v1875, %v1913
  %v1915 = vpop.f32.mrf.mxu0
  %v1916 = vpop.f32.mrf.mxu0
  %v1917 = vadd.f32 %v1875, %v1916
  %v1918 = vpop.f32.mrf.mxu0
  %1919 = vdwg.mxu0
  %v1920 = vmax.f32 %v1914, 0.0
  %v1921 = vmax.f32 %v1917, 0.0
  %v1922 = vsel %vm83, %v1920, 0.0
  %1923 = vadd.xlane.f32.xlu0 %v1922
  %v1924 = vpop.xlane.xlu0 %1923
  %v1925 = vsel %vm83, %v1921, 0.0
  %1926 = vadd.xlane.f32.xlu0 %v1925
  %v1927 = vpop.xlane.xlu0 %1926
  %v1928 = vmul.f32 %v1924, %v697
  %v1929 = vmul.f32 %v1927, %v697
  %v1930 = vsub.f32 %v1920, %v1928
  %v1931 = vsub.f32 %v1921, %v1929
  %v1932 = vmul.f32 %v1930, %v1930
  %v1933 = vmul.f32 %v1931, %v1931
  %v1934 = vsel %vm83, %v1932, 0.0
  %1935 = vadd.xlane.f32.xlu0 %v1934
  %v1936 = vpop.xlane.xlu0 %1935
  %v1937 = vsel %vm83, %v1933, 0.0
  %1938 = vadd.xlane.f32.xlu0 %v1937
  %v1939 = vpop.xlane.xlu0 %1938
  %v1940 = vmul.f32 %v1936, %v697
  %v1941 = vmul.f32 %v1939, %v697
  %v1942 = vadd.f32 %v1940, 1e-05
  %v1943 = vadd.f32 %v1941, 1e-05
  %v1944 = vrsqrt.pop %v1942
  %v1945 = vrsqrt.pop %v1943
  %v1946 = vmul.f32 %v1930, %v1944
  %v1947 = vmul.f32 %v1931, %v1945
  %v1948 = vlaneseq
  %v1949 = vshrl.u32 %v1948, 7
  %v1950 = vsub.s32 1, %v1949
  %v1951 = vrot.slane %v1810, %v1950
  %v1952 = vmul.f32 %v1946, %v1951
  %v1953 = vmul.f32 %v1947, %v1951
  %v1954 = vlaneseq
  %v1955 = vshrl.u32 %v1954, 7
  %v1956 = vsub.s32 2, %v1955
  %v1957 = vrot.slane %v1810, %v1956
  %v1958 = vadd.f32 %v1952, %v1957
  %v1959 = vadd.f32 %v1953, %v1957
  %s1960 = scalar_lea.vmem %s8, 96
  %v1961 = vld [vmem:[%s1960] sm:$0xff]
  %v1962 = vld [vmem:[%s1960 + $0x8] sm:$0xff]
  %v1963 = vld [vmem:[%s1960 + $0x10] sm:$0xff]
  %v1964 = vld [vmem:[%s1960 + $0x18] sm:$0xff]
  %v1965 = vld [vmem:[%s1960 + $0x20] sm:$0xff]
  %v1966 = vld [vmem:[%s1960 + $0x28] sm:$0xff]
  %v1967 = vld [vmem:[%s1960 + $0x30] sm:$0xff]
  %v1968 = vld [vmem:[%s1960 + $0x38] sm:$0xff]
  %v1969 = vld [vmem:[%s1960 + $0x40] sm:$0xff]
  %v1970 = vld [vmem:[%s1960 + $0x48] sm:$0xff]
  %v1971 = vld [vmem:[%s1960 + $0x50] sm:$0xff]
  %v1972 = vld [vmem:[%s1960 + $0x58] sm:$0xff]
  %v1975 = vrot.slane %v1958, 7
  %v1976 = vrot.slane %v1959, 7
  %v1979 = vsel %vm748, 0.0, %v1975
  %v1980 = vsel %vm748, 0.0, %v1976
  %v1981 = vsel %vm748, %v1975, 0.0
  %v1982 = vsel %vm748, %v1976, 0.0
  %v1987 = vrot.slane %v1979, 1
  %v1988 = vrot.slane %v1981, 1
  %v1989 = vsel %vm757, %v1987, %v1988
  %v1990 = vrot.slane %v1980, 1
  %v1991 = vrot.slane %v1982, 1
  %v1992 = vsel %vm757, %v1990, %v1991
  %1993 = vrot.lane.b32.xlu0 %v1989, 32
  %v1994 = vpop.permute.xlu0 %1993
  %1995 = vrot.lane.b32.xlu0 %v1992, 32
  %v1996 = vpop.permute.xlu0 %1995
  %v1999 = vrot.slane %v1979, 2
  %v2000 = vrot.slane %v1981, 2
  %v2001 = vsel %vm770, %v1999, %v2000
  %v2002 = vrot.slane %v1980, 2
  %v2003 = vrot.slane %v1982, 2
  %v2004 = vsel %vm770, %v2002, %v2003
  %2005 = vrot.lane.b32.xlu0 %v2001, 64
  %v2006 = vpop.permute.xlu0 %2005
  %2007 = vrot.lane.b32.xlu0 %v2004, 64
  %v2008 = vpop.permute.xlu0 %2007
  %v2011 = vsel %vm83, %v1979, %v1994
  %v2012 = vsel %vm83, %v1980, %v1996
  %v2013 = vsel %vm785, %v2011, %v2006
  %v2014 = vsel %vm785, %v2012, %v2008
  %v2015 = vpack.c.bf16 %v2014, %v2013
  %v2016 = vpack.c.bf16 %v1962, %v1961
  %v2017 = vpack.c.bf16 %v1964, %v1963
  %v2018 = vpack.c.bf16 %v1966, %v1965
  %v2019 = vpack.c.bf16 %v1968, %v1967
  %v2020 = vpack.c.bf16 %v1970, %v1969
  %v2021 = vpack.c.bf16 %v1972, %v1971
  %v2022 = vlaneseq
  %v2023 = vshrl.u32 %v2022, 7
  %v2024 = vsub.s32 3, %v2023
  %v2025 = vrot.slane %v1810, %v2024
  %v2027 = vsel %vm799, %v2015, 0
  %2029 = vmatprep.subr.bf16.mxu0 0
  %2030 = vmatpush1.bf16.msra.mxu0 0
  %2031 = vmatprep.subr.bf16.mxu0 0
  %2032 = vmatpush1.bf16.msra.mxu0 0
  %2033 = vmatprep.subr.bf16.mxu0 0
  %2034 = vmatpush1.bf16.msra.mxu0 %v2021
  %2035 = vmatprep.subr.bf16.mxu0 0
  %2036 = vmatpush1.bf16.msra.mxu0 %v2020
  %2037 = vmatprep.subr.bf16.mxu0 0
  %2038 = vmatpush1.bf16.msra.mxu0 %v2019
  %2039 = vmatprep.subr.bf16.mxu0 0
  %2040 = vmatpush1.bf16.msra.mxu0 %v2018
  %2041 = vmatprep.subr.bf16.mxu0 0
  %2042 = vmatpush1.bf16.msra.mxu0 %v2017
  %2043 = vmatprep.subr.bf16.mxu0 0
  %2044 = vmatpush1.bf16.msra.mxu0 %v2016
  %2045 = vmatprep.subr.bf16.mxu0 0
  %2046 = vmatpush2.bf16.msra.mxu0 0
  %2047 = vmatprep.subr.bf16.mxu0 0
  %2048 = vmatpush2.bf16.msra.mxu0 0
  %2049 = vmatprep.subr.bf16.mxu0 0
  %2050 = vmatpush2.bf16.msra.mxu0 0
  %2051 = vmatprep.subr.bf16.mxu0 0
  %2052 = vmatpush2.bf16.msra.mxu0 0
  %2053 = vmatprep.subr.bf16.mxu0 0
  %2054 = vmatpush2.bf16.msra.mxu0 0
  %2055 = vmatprep.subr.bf16.mxu0 0
  %2056 = vmatpush2.bf16.msra.mxu0 0
  %2057 = vmatprep.subr.bf16.mxu0 0
  %2058 = vmatpush2.bf16.msra.mxu0 0
  %2059 = vmatprep.subr.bf16.mxu0 0
  %2060 = vmatpush2.bf16.msra.mxu0 0
  %2061 = vmatprep.mubr.bf16.mxu0 0
  %2062 = vmatmul.mubr.bf16.gmra.mxu0 %v2027
  %v2063 = vpop.f32.mrf.mxu0
  %v2064 = vadd.f32 %v2025, %v2063
  %v2065 = vpop.f32.mrf.mxu0
  %v2066 = vpop.f32.mrf.mxu0
  %v2067 = vadd.f32 %v2025, %v2066
  %v2068 = vpop.f32.mrf.mxu0
  %2069 = vdwg.mxu0
  %v2070 = vmax.f32 %v2064, 0.0
  %v2071 = vmax.f32 %v2067, 0.0
  %v2072 = vsel %vm83, %v2070, 0.0
  %2073 = vadd.xlane.f32.xlu0 %v2072
  %v2074 = vpop.xlane.xlu0 %2073
  %v2075 = vsel %vm83, %v2071, 0.0
  %2076 = vadd.xlane.f32.xlu0 %v2075
  %v2077 = vpop.xlane.xlu0 %2076
  %v2078 = vmul.f32 %v2074, %v697
  %v2079 = vmul.f32 %v2077, %v697
  %v2080 = vsub.f32 %v2070, %v2078
  %v2081 = vsub.f32 %v2071, %v2079
  %v2082 = vmul.f32 %v2080, %v2080
  %v2083 = vmul.f32 %v2081, %v2081
  %v2084 = vsel %vm83, %v2082, 0.0
  %2085 = vadd.xlane.f32.xlu0 %v2084
  %v2086 = vpop.xlane.xlu0 %2085
  %v2087 = vsel %vm83, %v2083, 0.0
  %2088 = vadd.xlane.f32.xlu0 %v2087
  %v2089 = vpop.xlane.xlu0 %2088
  %v2090 = vmul.f32 %v2086, %v697
  %v2091 = vmul.f32 %v2089, %v697
  %v2092 = vadd.f32 %v2090, 1e-05
  %v2093 = vadd.f32 %v2091, 1e-05
  %v2094 = vrsqrt.pop %v2092
  %v2095 = vrsqrt.pop %v2093
  %v2096 = vmul.f32 %v2080, %v2094
  %v2097 = vmul.f32 %v2081, %v2095
  %v2098 = vlaneseq
  %v2099 = vshrl.u32 %v2098, 7
  %v2100 = vsub.s32 4, %v2099
  %v2101 = vrot.slane %v1810, %v2100
  %v2102 = vmul.f32 %v2096, %v2101
  %v2103 = vmul.f32 %v2097, %v2101
  %v2104 = vlaneseq
  %v2105 = vshrl.u32 %v2104, 7
  %v2106 = vsub.s32 5, %v2105
  %v2107 = vrot.slane %v1810, %v2106
  %v2108 = vadd.f32 %v2102, %v2107
  %v2109 = vadd.f32 %v2103, %v2107
  %v2110 = vld [vmem:[%s9] sm:$0x1]
  %2111 = vxpose.xlu0.b32.start [1/16] %v2108, 128
  %2112 = vxpose.xlu0.b32.cont [2/16] %v2109, 128
  %2113 = vxpose.xlu0.b32.cont [3/16] 0.0, 128
  %2114 = vxpose.xlu0.b32.cont [4/16] 0.0, 128
  %2115 = vxpose.xlu0.b32.cont [5/16] 0.0, 128
  %2116 = vxpose.xlu0.b32.cont [6/16] 0.0, 128
  %2117 = vxpose.xlu0.b32.cont [7/16] 0.0, 128
  %2118 = vxpose.xlu0.b32.cont [8/16] 0.0, 128
  %2119 = vxpose.xlu0.b32.cont [9/16] 0.0, 128
  %2120 = vxpose.xlu0.b32.cont [10/16] 0.0, 128
  %2121 = vxpose.xlu0.b32.cont [11/16] 0.0, 128
  %2122 = vxpose.xlu0.b32.cont [12/16] 0.0, 128
  %2123 = vxpose.xlu0.b32.cont [13/16] 0.0, 128
  %2124 = vxpose.xlu0.b32.cont [14/16] 0.0, 128
  %2125 = vxpose.xlu0.b32.cont [15/16] 0.0, 128
  %2126 = vxpose.xlu0.b32.end [16/16] 0.0, 128
  %v2127 = vpop.trf.xlu0
  %v2128 = vpop.trf.xlu0
  %v2129 = vpop.trf.xlu0
  %v2130 = vpop.trf.xlu0
  %v2131 = vpop.trf.xlu0
  %v2132 = vpop.trf.xlu0
  %v2133 = vpop.trf.xlu0
  %v2134 = vpop.trf.xlu0
  %v2135 = vpop.trf.xlu0
  %v2136 = vpop.trf.xlu0
  %v2137 = vpop.trf.xlu0
  %v2138 = vpop.trf.xlu0
  %v2139 = vpop.trf.xlu0
  %v2140 = vpop.trf.xlu0
  %v2141 = vpop.trf.xlu0
  %v2142 = vpop.trf.xlu0
  %v2143 = vpack.c.bf16 %v2110, %v2110
  %v2144 = vpack.c.bf16 %v2128, %v2127
  %v2145 = vpack.c.bf16 %v2130, %v2129
  %2147 = vset.pattern.permute.xlu0 0
  %2148 = vperm.xlu0 %2147, %v1810
  %v2149 = vpop.permute.xlu0 %2148
  %v2150 = vrot.slane %v2149, 6
  %v2153 = vsel %vm83, %v2143, 0
  %2155 = vmatprep.subr.bf16.mxu0 0
  %2156 = vmatpush1.bf16.msra.mxu0 0
  %2157 = vmatprep.subr.bf16.mxu0 0
  %2158 = vmatpush1.bf16.msra.mxu0 0
  %2159 = vmatprep.subr.bf16.mxu0 0
  %2160 = vmatpush1.bf16.msra.mxu0 0
  %2161 = vmatprep.subr.bf16.mxu0 0
  %2162 = vmatpush1.bf16.msra.mxu0 0
  %2163 = vmatprep.subr.bf16.mxu0 0
  %2164 = vmatpush1.bf16.msra.mxu0 0
  %2165 = vmatprep.subr.bf16.mxu0 0
  %2166 = vmatpush1.bf16.msra.mxu0 0
  %2167 = vmatprep.subr.bf16.mxu0 0
  %2168 = vmatpush1.bf16.msra.mxu0 %v2145
  %2169 = vmatprep.subr.bf16.mxu0 0
  %2170 = vmatpush1.bf16.msra.mxu0 %v2144
  %2171 = vmatprep.subr.bf16.mxu0 0
  %2172 = vmatpush2.bf16.msra.mxu0 0
  %2173 = vmatprep.subr.bf16.mxu0 0
  %2174 = vmatpush2.bf16.msra.mxu0 0
  %2175 = vmatprep.subr.bf16.mxu0 0
  %2176 = vmatpush2.bf16.msra.mxu0 0
  %2177 = vmatprep.subr.bf16.mxu0 0
  %2178 = vmatpush2.bf16.msra.mxu0 0
  %2179 = vmatprep.subr.bf16.mxu0 0
  %2180 = vmatpush2.bf16.msra.mxu0 0
  %2181 = vmatprep.subr.bf16.mxu0 0
  %2182 = vmatpush2.bf16.msra.mxu0 0
  %2183 = vmatprep.subr.bf16.mxu0 0
  %2184 = vmatpush2.bf16.msra.mxu0 0
  %2185 = vmatprep.subr.bf16.mxu0 0
  %2186 = vmatpush2.bf16.msra.mxu0 0
  %2187 = vmatprep.mubr.bf16.mxu0 0
  %2188 = vmatmul.mubr.bf16.gmra.mxu0 %v2153
  %v2189 = vpop.f32.mrf.mxu0
  %v2190 = vadd.f32 %v2150, %v2189
  %v2191 = vpop.f32.mrf.mxu0
  %v2192 = vpop.f32.mrf.mxu0
  %v2193 = vpop.f32.mrf.mxu0
  %2194 = vdwg.mxu0
  %v2195 = vmax.f32 %v2190, 0.0
  %vm2196 = vcmask 122880
  %2197 = vst.msk [vmem:[%s12] sm:$0x1] %vm2196, %v2195
  // Predicated region
  $region46: #{fastspeech_forward.3} parent=0 // pred_check
    _
  $region47: #{fastspeech_forward.3} parent=0 // pred_check_branch
    %2199 = sbr.rel (0) target = $region49
  $region48: #{fastspeech_forward.3} parent=0 // pred_region
    _
  $region49: #{fastspeech_forward.3} parent=0 // pred_fallthru
    _
  // Predicated region
  $region50: #{fastspeech_forward.3} parent=0 // pred_check
    _
  $region51: #{fastspeech_forward.3} parent=0 // pred_check_branch
    %2201 = sbr.rel (0) target = $region53
  $region52: #{fastspeech_forward.3} parent=0 // pred_region
    _
  $region53: #{fastspeech_forward.3} parent=0 // pred_fallthru
    _
  // Predicated region
  $region54: #{fastspeech_forward.3} parent=0 // pred_check
    _
  $region55: #{fastspeech_forward.3} parent=0 // pred_check_branch
    %2203 = sbr.rel (0) target = $region57
  $region56: #{fastspeech_forward.3} parent=0 // pred_region
    _
  $region57: #{fastspeech_forward.3} parent=0 // pred_fallthru
    _
  // Predicated region
  $region58: #{fastspeech_forward.3} parent=0 // pred_check
    _
  $region59: #{fastspeech_forward.3} parent=0 // pred_check_branch
    %2205 = sbr.rel (0) target = $region61
  $region60: #{fastspeech_forward.3} parent=0 // pred_region
    _
  $region61: #{fastspeech_forward.3} parent=0 // pred_fallthru
    _

// kernel: fastspeech_forward.5
$region0: #{fastspeech_forward.5}
  #allocation0 [shape = 'u32[]', space=smem, size = 0x4, offset = 0x4, fixed_abs, tag = 'smem constant byte address 0x4 - core index']
  #allocation1 [shape = 'u32[144,128]{1,0:T(1,128)}', space=vmem, size = 0x12000, scoped, tag = 'internal scratch']
  #allocation2 [shape = 'f32[16,2,96]{2,1,0:T(2,128)}', space=vmem, size = 0x4000, scoped, tag = 'scratch operand']
  #allocation3 [shape = 'f32[16,2,16]{2,1,0:T(2,128)}', space=vmem, size = 0x4000, scoped, tag = 'scratch operand']
  #allocation4 [shape = 'f32[16,2,16]{2,1,0:T(2,128)}', space=vmem, size = 0x4000, scoped, tag = 'scratch operand']
  %s0 = inlined_call_operand.vmem [shape: f32[16,2,32], index: 0, kind: input, shape index: {}]
  %s1 = inlined_call_operand.vmem [shape: f32[32,1], index: 1, kind: input, shape index: {}]
  %s2 = inlined_call_operand.vmem [shape: f32[2,32,16], index: 2, kind: input, shape index: {}]
  %s3 = inlined_call_operand.vmem [shape: f32[128,128], index: 3, kind: input, shape index: {}]
  %s4 = inlined_call_operand.vmem [shape: f32[384,32], index: 4, kind: input, shape index: {}]
  %s5 = inlined_call_operand.vmem [shape: f32[96,16], index: 5, kind: input, shape index: {}]
  %s6 = inlined_call_operand.vmem [shape: f32[4,16,32], index: 6, kind: input, shape index: {}]
  %s7 = inlined_call_operand.vmem [shape: f32[16,96], index: 7, kind: input, shape index: {}]
  %s8 = inlined_call_operand.vmem [shape: f32[2,16,48], index: 8, kind: input, shape index: {}]
  %s9 = inlined_call_operand.vmem [shape: f32[14,128], index: 9, kind: input, shape index: {}]
  %s10 = inlined_call_operand.vmem [shape: f32[32,16], index: 10, kind: output, shape index: {0}]
  %s11 = inlined_call_operand.vmem [shape: f32[32,16], index: 11, kind: output, shape index: {1}]
  %12 = xla_tuple %s10, %s11
  %s13 = sld [smem:[#allocation0]]
  $region65: #{fastspeech_forward.5} parent=0
    _
  %s15 = ssub.s32 1, %s13
  %s16 = scalar_select 0, %s15, %s13
  // Predicated region
  $region2: #{fastspeech_forward.5} parent=0 // pred_check
    _
  $region3: #{fastspeech_forward.5} parent=0 // pred_check_branch
    %18 = sbr.rel (0) target = $region5
  $region4: #{fastspeech_forward.5} parent=0 // pred_region
    _
  $region5: #{fastspeech_forward.5} parent=0 // pred_fallthru
    _
  // Predicated region
  $region6: #{fastspeech_forward.5} parent=0 // pred_check
    _
  $region7: #{fastspeech_forward.5} parent=0 // pred_check_branch
    %20 = sbr.rel (0) target = $region9
  $region8: #{fastspeech_forward.5} parent=0 // pred_region
    _
  $region9: #{fastspeech_forward.5} parent=0 // pred_fallthru
    _
  // Predicated region
  $region10: #{fastspeech_forward.5} parent=0 // pred_check
    _
  $region11: #{fastspeech_forward.5} parent=0 // pred_check_branch
    %22 = sbr.rel (0) target = $region13
  $region12: #{fastspeech_forward.5} parent=0 // pred_region
    _
  $region13: #{fastspeech_forward.5} parent=0 // pred_fallthru
    _
  // Predicated region
  $region14: #{fastspeech_forward.5} parent=0 // pred_check
    _
  $region15: #{fastspeech_forward.5} parent=0 // pred_check_branch
    %24 = sbr.rel (0) target = $region17
  $region16: #{fastspeech_forward.5} parent=0 // pred_region
    _
  $region17: #{fastspeech_forward.5} parent=0 // pred_fallthru
    _
  // Predicated region
  $region18: #{fastspeech_forward.5} parent=0 // pred_check
    _
  $region19: #{fastspeech_forward.5} parent=0 // pred_check_branch
    %26 = sbr.rel (0) target = $region21
  $region20: #{fastspeech_forward.5} parent=0 // pred_region
    _
  $region21: #{fastspeech_forward.5} parent=0 // pred_fallthru
    _
  // Predicated region
  $region22: #{fastspeech_forward.5} parent=0 // pred_check
    _
  $region23: #{fastspeech_forward.5} parent=0 // pred_check_branch
    %28 = sbr.rel (0) target = $region25
  $region24: #{fastspeech_forward.5} parent=0 // pred_region
    _
  $region25: #{fastspeech_forward.5} parent=0 // pred_fallthru
    _
  // Predicated region
  $region26: #{fastspeech_forward.5} parent=0 // pred_check
    _
  $region27: #{fastspeech_forward.5} parent=0 // pred_check_branch
    %30 = sbr.rel (0) target = $region29
  $region28: #{fastspeech_forward.5} parent=0 // pred_region
    _
  $region29: #{fastspeech_forward.5} parent=0 // pred_fallthru
    _
  // Predicated region
  $region30: #{fastspeech_forward.5} parent=0 // pred_check
    _
  $region31: #{fastspeech_forward.5} parent=0 // pred_check_branch
    %32 = sbr.rel (0) target = $region33
  $region32: #{fastspeech_forward.5} parent=0 // pred_region
    _
  $region33: #{fastspeech_forward.5} parent=0 // pred_fallthru
    _
  // Predicated region
  $region34: #{fastspeech_forward.5} parent=0 // pred_check
    _
  $region35: #{fastspeech_forward.5} parent=0 // pred_check_branch
    %34 = sbr.rel (0) target = $region37
  $region36: #{fastspeech_forward.5} parent=0 // pred_region
    _
  $region37: #{fastspeech_forward.5} parent=0 // pred_fallthru
    _
  // Predicated region
  $region38: #{fastspeech_forward.5} parent=0 // pred_check
    _
  $region39: #{fastspeech_forward.5} parent=0 // pred_check_branch
    %36 = sbr.rel (0) target = $region41
  $region40: #{fastspeech_forward.5} parent=0 // pred_region
    _
  $region41: #{fastspeech_forward.5} parent=0 // pred_fallthru
    _
  %v38 = vld [vmem:[%s9] sm:$0xff]
  %v39 = vld [vmem:[%s9 + $0x8] sm:$0x3f]
  %v40 = vld [vmem:[%s1] sm:$0xff]
  %v41 = vld [vmem:[%s1 + $0x8] sm:$0xff]
  %v42 = vld [vmem:[%s1 + $0x10] sm:$0xff]
  %v43 = vld [vmem:[%s1 + $0x18] sm:$0xff]
  %v44 = vld [vmem:[%s0] sm:$0x3]
  %v45 = vld [vmem:[%s0 + $0x2] sm:$0x3]
  %v46 = vld [vmem:[%s0 + $0x4] sm:$0x3]
  %v47 = vld [vmem:[%s0 + $0x6] sm:$0x3]
  %v48 = vld [vmem:[%s0 + $0x8] sm:$0x3]
  %v49 = vld [vmem:[%s0 + $0xa] sm:$0x3]
  %v50 = vld [vmem:[%s0 + $0xc] sm:$0x3]
  %v51 = vld [vmem:[%s0 + $0xe] sm:$0x3]
  %v52 = vld [vmem:[%s0 + $0x10] sm:$0x3]
  %v53 = vld [vmem:[%s0 + $0x12] sm:$0x3]
  %v54 = vld [vmem:[%s0 + $0x14] sm:$0x3]
  %v55 = vld [vmem:[%s0 + $0x16] sm:$0x3]
  %v56 = vld [vmem:[%s0 + $0x18] sm:$0x3]
  %v57 = vld [vmem:[%s0 + $0x1a] sm:$0x3]
  %v58 = vld [vmem:[%s0 + $0x1c] sm:$0x3]
  %v59 = vld [vmem:[%s0 + $0x1e] sm:$0x3]
  %v60 = vld [vmem:[%s2] sm:$0xff]
  %v61 = vld [vmem:[%s2 + $0x8] sm:$0xff]
  %v62 = vld [vmem:[%s2 + $0x10] sm:$0xff]
  %v63 = vld [vmem:[%s2 + $0x18] sm:$0xff]
  %v80 = vcombine.low %v44, %v45
  %v81 = vcombine.low %v46, %v47
  %v83 = vunpack.c.l.s4 1983009808
  %v84 = vunpack.c.0.s8 %v83
  %v85 = vlaneseq
  %v86 = vshrl.u32 %v85, 7
  %v87 = vsub.s32 %v84, %v86
  %v88 = vrot.slane %v80, %v87
  %v90 = vunpack.c.l.s4 1983009808
  %v91 = vunpack.c.0.s8 %v90
  %v92 = vlaneseq
  %v93 = vshrl.u32 %v92, 7
  %v94 = vsub.s32 %v91, %v93
  %v95 = vrot.slane %v81, %v94
  %v96 = vcombine.low %v88, %v95
  %v97 = vcombine.low %v48, %v49
  %v98 = vcombine.low %v50, %v51
  %v100 = vunpack.c.l.s4 1983009808
  %v101 = vunpack.c.0.s8 %v100
  %v102 = vlaneseq
  %v103 = vshrl.u32 %v102, 7
  %v104 = vsub.s32 %v101, %v103
  %v105 = vrot.slane %v97, %v104
  %v107 = vunpack.c.l.s4 1983009808
  %v108 = vunpack.c.0.s8 %v107
  %v109 = vlaneseq
  %v110 = vshrl.u32 %v109, 7
  %v111 = vsub.s32 %v108, %v110
  %v112 = vrot.slane %v98, %v111
  %v113 = vcombine.low %v105, %v112
  %v114 = vcombine.low %v52, %v53
  %v115 = vcombine.low %v54, %v55
  %v117 = vunpack.c.l.s4 1983009808
  %v118 = vunpack.c.0.s8 %v117
  %v119 = vlaneseq
  %v120 = vshrl.u32 %v119, 7
  %v121 = vsub.s32 %v118, %v120
  %v122 = vrot.slane %v114, %v121
  %v124 = vunpack.c.l.s4 1983009808
  %v125 = vunpack.c.0.s8 %v124
  %v126 = vlaneseq
  %v127 = vshrl.u32 %v126, 7
  %v128 = vsub.s32 %v125, %v127
  %v129 = vrot.slane %v115, %v128
  %v130 = vcombine.low %v122, %v129
  %v131 = vcombine.low %v56, %v57
  %v132 = vcombine.low %v58, %v59
  %v134 = vunpack.c.l.s4 1983009808
  %v135 = vunpack.c.0.s8 %v134
  %v136 = vlaneseq
  %v137 = vshrl.u32 %v136, 7
  %v138 = vsub.s32 %v135, %v137
  %v139 = vrot.slane %v131, %v138
  %v141 = vunpack.c.l.s4 1983009808
  %v142 = vunpack.c.0.s8 %v141
  %v143 = vlaneseq
  %v144 = vshrl.u32 %v143, 7
  %v145 = vsub.s32 %v142, %v144
  %v146 = vrot.slane %v132, %v145
  %v147 = vcombine.low %v139, %v146
  %v152 = vpack.c.bf16 %v113, %v96
  %v153 = vpack.c.bf16 %v147, %v130
  %v154 = vpack.c.bf16 %v61, %v60
  %v155 = vpack.c.bf16 %v63, %v62
  %v156 = vlaneseq
  %v157 = vshrl.u32 %v156, 7
  %v158 = vsub.s32 0, %v157
  %v159 = vrot.slane %v38, %v158
  %vm160 = vcmask 261120
  %v162 = vsel %vm160, %v152, 0
  %v165 = vsel %vm160, %v153, 0
  %167 = vmatprep.subr.bf16.mxu0 0
  %168 = vmatpush1.bf16.msra.mxu0 0
  %169 = vmatprep.subr.bf16.mxu0 0
  %170 = vmatpush1.bf16.msra.mxu0 0
  %171 = vmatprep.subr.bf16.mxu0 0
  %172 = vmatpush1.bf16.msra.mxu0 0
  %173 = vmatprep.subr.bf16.mxu0 0
  %174 = vmatpush1.bf16.msra.mxu0 0
  %175 = vmatprep.subr.bf16.mxu0 0
  %176 = vmatpush1.bf16.msra.mxu0 0
  %177 = vmatprep.subr.bf16.mxu0 0
  %178 = vmatpush1.bf16.msra.mxu0 0
  %179 = vmatprep.subr.bf16.mxu0 0
  %180 = vmatpush1.bf16.msra.mxu0 %v155
  %181 = vmatprep.subr.bf16.mxu0 0
  %182 = vmatpush1.bf16.msra.mxu0 %v154
  %183 = vmatprep.subr.bf16.mxu0 0
  %184 = vmatpush2.bf16.msra.mxu0 0
  %185 = vmatprep.subr.bf16.mxu0 0
  %186 = vmatpush2.bf16.msra.mxu0 0
  %187 = vmatprep.subr.bf16.mxu0 0
  %188 = vmatpush2.bf16.msra.mxu0 0
  %189 = vmatprep.subr.bf16.mxu0 0
  %190 = vmatpush2.bf16.msra.mxu0 0
  %191 = vmatprep.subr.bf16.mxu0 0
  %192 = vmatpush2.bf16.msra.mxu0 0
  %193 = vmatprep.subr.bf16.mxu0 0
  %194 = vmatpush2.bf16.msra.mxu0 0
  %195 = vmatprep.subr.bf16.mxu0 0
  %196 = vmatpush2.bf16.msra.mxu0 0
  %197 = vmatprep.subr.bf16.mxu0 0
  %198 = vmatpush2.bf16.msra.mxu0 0
  %199 = vmatprep.mubr.bf16.mxu0 0
  %200 = vmatmul.mubr.bf16.gmra.mxu0 %v162
  %v201 = vpop.f32.mrf.mxu0
  %v202 = vadd.f32 %v159, %v201
  %v203 = vpop.f32.mrf.mxu0
  %v204 = vpop.f32.mrf.mxu0
  %v205 = vadd.f32 %v159, %v204
  %v206 = vpop.f32.mrf.mxu0
  %207 = vmatprep.mubr.bf16.mxu0 0
  %208 = vmatmul.mubr.bf16.gmra.mxu0 %v165
  %v209 = vpop.f32.mrf.mxu0
  %v210 = vadd.f32 %v159, %v209
  %v211 = vpop.f32.mrf.mxu0
  %v212 = vpop.f32.mrf.mxu0
  %v213 = vadd.f32 %v159, %v212
  %v214 = vpop.f32.mrf.mxu0
  %215 = vdwg.mxu0
  %217 = vset.pattern.permute.xlu0 0
  %218 = vperm.xlu0 %217, %v40
  %v219 = vpop.permute.xlu0 %218
  %222 = vset.pattern.permute.xlu0 0
  %223 = vperm.xlu0 %222, %v41
  %v224 = vpop.permute.xlu0 %223
  %227 = vset.pattern.permute.xlu0 0
  %228 = vperm.xlu0 %227, %v42
  %v229 = vpop.permute.xlu0 %228
  %232 = vset.pattern.permute.xlu0 0
  %233 = vperm.xlu0 %232, %v43
  %v234 = vpop.permute.xlu0 %233
  %v236 = vmul.f32 %v202, %v219
  %v237 = vmul.f32 %v205, %v224
  %v238 = vmul.f32 %v210, %v229
  %v239 = vmul.f32 %v213, %v234
  %vm240 = vcmask 130048
  %241 = vst.msk [vmem:[%s10] sm:$0xff] %vm240, %v236
  %242 = vst.msk [vmem:[%s10 + $0x8] sm:$0xff] %vm240, %v237
  %243 = vst.msk [vmem:[%s10 + $0x10] sm:$0xff] %vm240, %v238
  %244 = vst.msk [vmem:[%s10 + $0x18] sm:$0xff] %vm240, %v239
  %v249 = vcombine.high %v236, %v236
  %v251 = vunpack.c.l.s4 1983009808
  %v252 = vunpack.c.0.s8 %v251
  %v253 = vlaneseq
  %v254 = vshrl.u32 %v253, 7
  %v255 = vsub.s32 %v252, %v254
  %v256 = vrot.slane %v236, %v255
  %v258 = vunpack.c.l.s4 1983009808
  %v259 = vunpack.c.0.s8 %v258
  %v260 = vlaneseq
  %v261 = vshrl.u32 %v260, 7
  %v262 = vsub.s32 %v259, %v261
  %v263 = vrot.slane %v249, %v262
  %v264 = vcombine.high %v256, %v256
  %v265 = vcombine.high %v263, %v263
  %v266 = vcombine.high %v237, %v237
  %v268 = vunpack.c.l.s4 1983009808
  %v269 = vunpack.c.0.s8 %v268
  %v270 = vlaneseq
  %v271 = vshrl.u32 %v270, 7
  %v272 = vsub.s32 %v269, %v271
  %v273 = vrot.slane %v237, %v272
  %v275 = vunpack.c.l.s4 1983009808
  %v276 = vunpack.c.0.s8 %v275
  %v277 = vlaneseq
  %v278 = vshrl.u32 %v277, 7
  %v279 = vsub.s32 %v276, %v278
  %v280 = vrot.slane %v266, %v279
  %v281 = vcombine.high %v273, %v273
  %v282 = vcombine.high %v280, %v280
  %v283 = vcombine.high %v238, %v238
  %v285 = vunpack.c.l.s4 1983009808
  %v286 = vunpack.c.0.s8 %v285
  %v287 = vlaneseq
  %v288 = vshrl.u32 %v287, 7
  %v289 = vsub.s32 %v286, %v288
  %v290 = vrot.slane %v238, %v289
  %v292 = vunpack.c.l.s4 1983009808
  %v293 = vunpack.c.0.s8 %v292
  %v294 = vlaneseq
  %v295 = vshrl.u32 %v294, 7
  %v296 = vsub.s32 %v293, %v295
  %v297 = vrot.slane %v283, %v296
  %v298 = vcombine.high %v290, %v290
  %v299 = vcombine.high %v297, %v297
  %v300 = vcombine.high %v239, %v239
  %v302 = vunpack.c.l.s4 1983009808
  %v303 = vunpack.c.0.s8 %v302
  %v304 = vlaneseq
  %v305 = vshrl.u32 %v304, 7
  %v306 = vsub.s32 %v303, %v305
  %v307 = vrot.slane %v239, %v306
  %v309 = vunpack.c.l.s4 1983009808
  %v310 = vunpack.c.0.s8 %v309
  %v311 = vlaneseq
  %v312 = vshrl.u32 %v311, 7
  %v313 = vsub.s32 %v310, %v312
  %v314 = vrot.slane %v300, %v313
  %v315 = vcombine.high %v307, %v307
  %v316 = vcombine.high %v314, %v314
  %v329 = vld [vmem:[%s3] sm:$0xff]
  %v330 = vld [vmem:[%s3 + $0x8] sm:$0xff]
  %v331 = vld [vmem:[%s3 + $0x10] sm:$0xff]
  %v332 = vld [vmem:[%s3 + $0x18] sm:$0xff]
  %v333 = vld [vmem:[%s3 + $0x20] sm:$0xff]
  %v334 = vld [vmem:[%s3 + $0x28] sm:$0xff]
  %v335 = vld [vmem:[%s3 + $0x30] sm:$0xff]
  %v336 = vld [vmem:[%s3 + $0x38] sm:$0xff]
  %v337 = vld [vmem:[%s3 + $0x40] sm:$0xff]
  %v338 = vld [vmem:[%s3 + $0x48] sm:$0xff]
  %v339 = vld [vmem:[%s3 + $0x50] sm:$0xff]
  %v340 = vld [vmem:[%s3 + $0x58] sm:$0xff]
  %v341 = vld [vmem:[%s3 + $0x60] sm:$0xff]
  %v342 = vld [vmem:[%s3 + $0x68] sm:$0xff]
  %v343 = vld [vmem:[%s3 + $0x70] sm:$0xff]
  %v344 = vld [vmem:[%s3 + $0x78] sm:$0xff]
  %346 = vrot.lane.b32.xlu0 0.0, 16
  %v347 = vpop.permute.xlu0 %346
  %348 = vrot.lane.b32.xlu0 %v256, 16
  %v349 = vpop.permute.xlu0 %348
  %350 = vrot.lane.b32.xlu0 %v264, 16
  %v351 = vpop.permute.xlu0 %350
  %352 = vrot.lane.b32.xlu0 %v263, 16
  %v353 = vpop.permute.xlu0 %352
  %354 = vrot.lane.b32.xlu0 %v265, 16
  %v355 = vpop.permute.xlu0 %354
  %356 = vrot.lane.b32.xlu0 %v273, 16
  %v357 = vpop.permute.xlu0 %356
  %358 = vrot.lane.b32.xlu0 %v281, 16
  %v359 = vpop.permute.xlu0 %358
  %360 = vrot.lane.b32.xlu0 %v280, 16
  %v361 = vpop.permute.xlu0 %360
  %362 = vrot.lane.b32.xlu0 %v282, 16
  %v363 = vpop.permute.xlu0 %362
  %364 = vrot.lane.b32.xlu0 %v290, 16
  %v365 = vpop.permute.xlu0 %364
  %366 = vrot.lane.b32.xlu0 %v298, 16
  %v367 = vpop.permute.xlu0 %366
  %368 = vrot.lane.b32.xlu0 %v297, 16
  %v369 = vpop.permute.xlu0 %368
  %370 = vrot.lane.b32.xlu0 %v299, 16
  %v371 = vpop.permute.xlu0 %370
  %372 = vrot.lane.b32.xlu0 %v307, 16
  %v373 = vpop.permute.xlu0 %372
  %388 = vrot.lane.b32.xlu0 0.0, 32
  %v389 = vpop.permute.xlu0 %388
  %390 = vrot.lane.b32.xlu0 %v256, 32
  %v391 = vpop.permute.xlu0 %390
  %392 = vrot.lane.b32.xlu0 %v264, 32
  %v393 = vpop.permute.xlu0 %392
  %394 = vrot.lane.b32.xlu0 %v263, 32
  %v395 = vpop.permute.xlu0 %394
  %396 = vrot.lane.b32.xlu0 %v265, 32
  %v397 = vpop.permute.xlu0 %396
  %398 = vrot.lane.b32.xlu0 %v273, 32
  %v399 = vpop.permute.xlu0 %398
  %400 = vrot.lane.b32.xlu0 %v281, 32
  %v401 = vpop.permute.xlu0 %400
  %402 = vrot.lane.b32.xlu0 %v280, 32
  %v403 = vpop.permute.xlu0 %402
  %404 = vrot.lane.b32.xlu0 %v282, 32
  %v405 = vpop.permute.xlu0 %404
  %406 = vrot.lane.b32.xlu0 %v290, 32
  %v407 = vpop.permute.xlu0 %406
  %408 = vrot.lane.b32.xlu0 %v298, 32
  %v409 = vpop.permute.xlu0 %408
  %410 = vrot.lane.b32.xlu0 %v297, 32
  %v411 = vpop.permute.xlu0 %410
  %412 = vrot.lane.b32.xlu0 %v299, 32
  %v413 = vpop.permute.xlu0 %412
  %414 = vrot.lane.b32.xlu0 %v307, 32
  %v415 = vpop.permute.xlu0 %414
  %416 = vrot.lane.b32.xlu0 %v315, 32
  %v417 = vpop.permute.xlu0 %416
  %433 = vrot.lane.b32.xlu0 0.0, 48
  %v434 = vpop.permute.xlu0 %433
  %435 = vrot.lane.b32.xlu0 %v256, 48
  %v436 = vpop.permute.xlu0 %435
  %437 = vrot.lane.b32.xlu0 %v264, 48
  %v438 = vpop.permute.xlu0 %437
  %439 = vrot.lane.b32.xlu0 %v263, 48
  %v440 = vpop.permute.xlu0 %439
  %441 = vrot.lane.b32.xlu0 %v265, 48
  %v442 = vpop.permute.xlu0 %441
  %443 = vrot.lane.b32.xlu0 %v273, 48
  %v444 = vpop.permute.xlu0 %443
  %445 = vrot.lane.b32.xlu0 %v281, 48
  %v446 = vpop.permute.xlu0 %445
  %447 = vrot.lane.b32.xlu0 %v280, 48
  %v448 = vpop.permute.xlu0 %447
  %449 = vrot.lane.b32.xlu0 %v282, 48
  %v450 = vpop.permute.xlu0 %449
  %451 = vrot.lane.b32.xlu0 %v290, 48
  %v452 = vpop.permute.xlu0 %451
  %453 = vrot.lane.b32.xlu0 %v298, 48
  %v454 = vpop.permute.xlu0 %453
  %455 = vrot.lane.b32.xlu0 %v297, 48
  %v456 = vpop.permute.xlu0 %455
  %457 = vrot.lane.b32.xlu0 %v299, 48
  %v458 = vpop.permute.xlu0 %457
  %459 = vrot.lane.b32.xlu0 %v307, 48
  %v460 = vpop.permute.xlu0 %459
  %461 = vrot.lane.b32.xlu0 %v315, 48
  %v462 = vpop.permute.xlu0 %461
  %463 = vrot.lane.b32.xlu0 %v314, 48
  %v464 = vpop.permute.xlu0 %463
  %481 = vrot.lane.b32.xlu0 %v256, 64
  %v482 = vpop.permute.xlu0 %481
  %483 = vrot.lane.b32.xlu0 %v264, 64
  %v484 = vpop.permute.xlu0 %483
  %485 = vrot.lane.b32.xlu0 %v263, 64
  %v486 = vpop.permute.xlu0 %485
  %487 = vrot.lane.b32.xlu0 %v265, 64
  %v488 = vpop.permute.xlu0 %487
  %489 = vrot.lane.b32.xlu0 %v273, 64
  %v490 = vpop.permute.xlu0 %489
  %491 = vrot.lane.b32.xlu0 %v281, 64
  %v492 = vpop.permute.xlu0 %491
  %493 = vrot.lane.b32.xlu0 %v280, 64
  %v494 = vpop.permute.xlu0 %493
  %495 = vrot.lane.b32.xlu0 %v282, 64
  %v496 = vpop.permute.xlu0 %495
  %497 = vrot.lane.b32.xlu0 %v290, 64
  %v498 = vpop.permute.xlu0 %497
  %499 = vrot.lane.b32.xlu0 %v298, 64
  %v500 = vpop.permute.xlu0 %499
  %501 = vrot.lane.b32.xlu0 %v297, 64
  %v502 = vpop.permute.xlu0 %501
  %503 = vrot.lane.b32.xlu0 %v299, 64
  %v504 = vpop.permute.xlu0 %503
  %505 = vrot.lane.b32.xlu0 %v307, 64
  %v506 = vpop.permute.xlu0 %505
  %507 = vrot.lane.b32.xlu0 %v315, 64
  %v508 = vpop.permute.xlu0 %507
  %509 = vrot.lane.b32.xlu0 %v314, 64
  %v510 = vpop.permute.xlu0 %509
  %511 = vrot.lane.b32.xlu0 %v316, 64
  %v512 = vpop.permute.xlu0 %511
  %529 = vrot.lane.b32.xlu0 %v264, 80
  %v530 = vpop.permute.xlu0 %529
  %531 = vrot.lane.b32.xlu0 %v263, 80
  %v532 = vpop.permute.xlu0 %531
  %533 = vrot.lane.b32.xlu0 %v265, 80
  %v534 = vpop.permute.xlu0 %533
  %535 = vrot.lane.b32.xlu0 %v273, 80
  %v536 = vpop.permute.xlu0 %535
  %537 = vrot.lane.b32.xlu0 %v281, 80
  %v538 = vpop.permute.xlu0 %537
  %539 = vrot.lane.b32.xlu0 %v280, 80
  %v540 = vpop.permute.xlu0 %539
  %541 = vrot.lane.b32.xlu0 %v282, 80
  %v542 = vpop.permute.xlu0 %541
  %543 = vrot.lane.b32.xlu0 %v290, 80
  %v544 = vpop.permute.xlu0 %543
  %545 = vrot.lane.b32.xlu0 %v298, 80
  %v546 = vpop.permute.xlu0 %545
  %547 = vrot.lane.b32.xlu0 %v297, 80
  %v548 = vpop.permute.xlu0 %547
  %549 = vrot.lane.b32.xlu0 %v299, 80
  %v550 = vpop.permute.xlu0 %549
  %551 = vrot.lane.b32.xlu0 %v307, 80
  %v552 = vpop.permute.xlu0 %551
  %553 = vrot.lane.b32.xlu0 %v315, 80
  %v554 = vpop.permute.xlu0 %553
  %555 = vrot.lane.b32.xlu0 %v314, 80
  %v556 = vpop.permute.xlu0 %555
  %557 = vrot.lane.b32.xlu0 %v316, 80
  %v558 = vpop.permute.xlu0 %557
  %559 = vrot.lane.b32.xlu0 0.0, 80
  %v560 = vpop.permute.xlu0 %559
  %577 = vrot.lane.b32.xlu0 %v263, 96
  %v578 = vpop.permute.xlu0 %577
  %579 = vrot.lane.b32.xlu0 %v265, 96
  %v580 = vpop.permute.xlu0 %579
  %581 = vrot.lane.b32.xlu0 %v273, 96
  %v582 = vpop.permute.xlu0 %581
  %583 = vrot.lane.b32.xlu0 %v281, 96
  %v584 = vpop.permute.xlu0 %583
  %585 = vrot.lane.b32.xlu0 %v280, 96
  %v586 = vpop.permute.xlu0 %585
  %587 = vrot.lane.b32.xlu0 %v282, 96
  %v588 = vpop.permute.xlu0 %587
  %589 = vrot.lane.b32.xlu0 %v290, 96
  %v590 = vpop.permute.xlu0 %589
  %591 = vrot.lane.b32.xlu0 %v298, 96
  %v592 = vpop.permute.xlu0 %591
  %593 = vrot.lane.b32.xlu0 %v297, 96
  %v594 = vpop.permute.xlu0 %593
  %595 = vrot.lane.b32.xlu0 %v299, 96
  %v596 = vpop.permute.xlu0 %595
  %597 = vrot.lane.b32.xlu0 %v307, 96
  %v598 = vpop.permute.xlu0 %597
  %599 = vrot.lane.b32.xlu0 %v315, 96
  %v600 = vpop.permute.xlu0 %599
  %601 = vrot.lane.b32.xlu0 %v314, 96
  %v602 = vpop.permute.xlu0 %601
  %603 = vrot.lane.b32.xlu0 %v316, 96
  %v604 = vpop.permute.xlu0 %603
  %605 = vrot.lane.b32.xlu0 0.0, 96
  %v606 = vpop.permute.xlu0 %605
  %622 = vrot.lane.b32.xlu0 %v265, 112
  %v623 = vpop.permute.xlu0 %622
  %624 = vrot.lane.b32.xlu0 %v273, 112
  %v625 = vpop.permute.xlu0 %624
  %626 = vrot.lane.b32.xlu0 %v281, 112
  %v627 = vpop.permute.xlu0 %626
  %628 = vrot.lane.b32.xlu0 %v280, 112
  %v629 = vpop.permute.xlu0 %628
  %630 = vrot.lane.b32.xlu0 %v282, 112
  %v631 = vpop.permute.xlu0 %630
  %632 = vrot.lane.b32.xlu0 %v290, 112
  %v633 = vpop.permute.xlu0 %632
  %634 = vrot.lane.b32.xlu0 %v298, 112
  %v635 = vpop.permute.xlu0 %634
  %636 = vrot.lane.b32.xlu0 %v297, 112
  %v637 = vpop.permute.xlu0 %636
  %638 = vrot.lane.b32.xlu0 %v299, 112
  %v639 = vpop.permute.xlu0 %638
  %640 = vrot.lane.b32.xlu0 %v307, 112
  %v641 = vpop.permute.xlu0 %640
  %642 = vrot.lane.b32.xlu0 %v315, 112
  %v643 = vpop.permute.xlu0 %642
  %644 = vrot.lane.b32.xlu0 %v314, 112
  %v645 = vpop.permute.xlu0 %644
  %646 = vrot.lane.b32.xlu0 %v316, 112
  %v647 = vpop.permute.xlu0 %646
  %648 = vrot.lane.b32.xlu0 0.0, 112
  %v649 = vpop.permute.xlu0 %648
  %v664 = vsel %vm240, 0.0, %v347
  %v665 = vsel %vm240, 0.0, %v349
  %v666 = vsel %vm240, %v256, %v351
  %v667 = vsel %vm240, %v264, %v353
  %v668 = vsel %vm240, %v263, %v355
  %v669 = vsel %vm240, %v265, %v357
  %v670 = vsel %vm240, %v273, %v359
  %v671 = vsel %vm240, %v281, %v361
  %v672 = vsel %vm240, %v280, %v363
  %v673 = vsel %vm240, %v282, %v365
  %v674 = vsel %vm240, %v290, %v367
  %v675 = vsel %vm240, %v298, %v369
  %v676 = vsel %vm240, %v297, %v371
  %v677 = vsel %vm240, %v299, %v373
  %v678 = vsel %vm160, %v664, %v389
  %v679 = vsel %vm160, %v664, %v391
  %v680 = vsel %vm160, %v665, %v393
  %v681 = vsel %vm160, %v666, %v395
  %v682 = vsel %vm160, %v667, %v397
  %v683 = vsel %vm160, %v668, %v399
  %v684 = vsel %vm160, %v669, %v401
  %v685 = vsel %vm160, %v670, %v403
  %v686 = vsel %vm160, %v671, %v405
  %v687 = vsel %vm160, %v672, %v407
  %v688 = vsel %vm160, %v673, %v409
  %v689 = vsel %vm160, %v674, %v411
  %v690 = vsel %vm160, %v675, %v413
  %v691 = vsel %vm160, %v676, %v415
  %v692 = vsel %vm160, %v677, %v417
  %vm693 = vcmask 392192
  %v694 = vsel %vm693, %v678, %v434
  %v695 = vsel %vm693, %v678, %v436
  %v696 = vsel %vm693, %v679, %v438
  %v697 = vsel %vm693, %v680, %v440
  %v698 = vsel %vm693, %v681, %v442
  %v699 = vsel %vm693, %v682, %v444
  %v700 = vsel %vm693, %v683, %v446
  %v701 = vsel %vm693, %v684, %v448
  %v702 = vsel %vm693, %v685, %v450
  %v703 = vsel %vm693, %v686, %v452
  %v704 = vsel %vm693, %v687, %v454
  %v705 = vsel %vm693, %v688, %v456
  %v706 = vsel %vm693, %v689, %v458
  %v707 = vsel %vm693, %v690, %v460
  %v708 = vsel %vm693, %v691, %v462
  %v709 = vsel %vm693, %v692, %v464
  %vm710 = vcmask 523264
  %v711 = vsel %vm710, %v694, %v482
  %v712 = vsel %vm710, %v695, %v484
  %v713 = vsel %vm710, %v696, %v486
  %v714 = vsel %vm710, %v697, %v488
  %v715 = vsel %vm710, %v698, %v490
  %v716 = vsel %vm710, %v699, %v492
  %v717 = vsel %vm710, %v700, %v494
  %v718 = vsel %vm710, %v701, %v496
  %v719 = vsel %vm710, %v702, %v498
  %v720 = vsel %vm710, %v703, %v500
  %v721 = vsel %vm710, %v704, %v502
  %v722 = vsel %vm710, %v705, %v504
  %v723 = vsel %vm710, %v706, %v506
  %v724 = vsel %vm710, %v707, %v508
  %v725 = vsel %vm710, %v708, %v510
  %v726 = vsel %vm710, %v709, %v512
  %vm727 = vcmask 654336
  %v728 = vsel %vm727, %v711, %v530
  %v729 = vsel %vm727, %v712, %v532
  %v730 = vsel %vm727, %v713, %v534
  %v731 = vsel %vm727, %v714, %v536
  %v732 = vsel %vm727, %v715, %v538
  %v733 = vsel %vm727, %v716, %v540
  %v734 = vsel %vm727, %v717, %v542
  %v735 = vsel %vm727, %v718, %v544
  %v736 = vsel %vm727, %v719, %v546
  %v737 = vsel %vm727, %v720, %v548
  %v738 = vsel %vm727, %v721, %v550
  %v739 = vsel %vm727, %v722, %v552
  %v740 = vsel %vm727, %v723, %v554
  %v741 = vsel %vm727, %v724, %v556
  %v742 = vsel %vm727, %v725, %v558
  %v743 = vsel %vm727, %v726, %v560
  %vm744 = vcmask 785408
  %v745 = vsel %vm744, %v728, %v578
  %v746 = vsel %vm744, %v729, %v580
  %v747 = vsel %vm744, %v730, %v582
  %v748 = vsel %vm744, %v731, %v584
  %v749 = vsel %vm744, %v732, %v586
  %v750 = vsel %vm744, %v733, %v588
  %v751 = vsel %vm744, %v734, %v590
  %v752 = vsel %vm744, %v735, %v592
  %v753 = vsel %vm744, %v736, %v594
  %v754 = vsel %vm744, %v737, %v596
  %v755 = vsel %vm744, %v738, %v598
  %v756 = vsel %vm744, %v739, %v600
  %v757 = vsel %vm744, %v740, %v602
  %v758 = vsel %vm744, %v741, %v604
  %v759 = vsel %vm744, %v742, %v606
  %v760 = vsel %vm744, %v743, %v606
  %vm761 = vcmask 916480
  %v762 = vsel %vm761, %v745, %v623
  %v763 = vsel %vm761, %v746, %v625
  %v764 = vsel %vm761, %v747, %v627
  %v765 = vsel %vm761, %v748, %v629
  %v766 = vsel %vm761, %v749, %v631
  %v767 = vsel %vm761, %v750, %v633
  %v768 = vsel %vm761, %v751, %v635
  %v769 = vsel %vm761, %v752, %v637
  %v770 = vsel %vm761, %v753, %v639
  %v771 = vsel %vm761, %v754, %v641
  %v772 = vsel %vm761, %v755, %v643
  %v773 = vsel %vm761, %v756, %v645
  %v774 = vsel %vm761, %v757, %v647
  %v775 = vsel %vm761, %v758, %v649
  %v776 = vsel %vm761, %v759, %v649
  %v777 = vsel %vm761, %v760, %v649
  %v794 = vcombine.low %v762, %v763
  %v795 = vcombine.low %v764, %v765
  %v797 = vunpack.c.l.s4 1983009808
  %v798 = vunpack.c.0.s8 %v797
  %v799 = vlaneseq
  %v800 = vshrl.u32 %v799, 7
  %v801 = vsub.s32 %v798, %v800
  %v802 = vrot.slane %v794, %v801
  %v804 = vunpack.c.l.s4 1983009808
  %v805 = vunpack.c.0.s8 %v804
  %v806 = vlaneseq
  %v807 = vshrl.u32 %v806, 7
  %v808 = vsub.s32 %v805, %v807
  %v809 = vrot.slane %v795, %v808
  %v810 = vcombine.low %v802, %v809
  %v811 = vcombine.low %v766, %v767
  %v812 = vcombine.low %v768, %v769
  %v814 = vunpack.c.l.s4 1983009808
  %v815 = vunpack.c.0.s8 %v814
  %v816 = vlaneseq
  %v817 = vshrl.u32 %v816, 7
  %v818 = vsub.s32 %v815, %v817
  %v819 = vrot.slane %v811, %v818
  %v821 = vunpack.c.l.s4 1983009808
  %v822 = vunpack.c.0.s8 %v821
  %v823 = vlaneseq
  %v824 = vshrl.u32 %v823, 7
  %v825 = vsub.s32 %v822, %v824
  %v826 = vrot.slane %v812, %v825
  %v827 = vcombine.low %v819, %v826
  %v828 = vcombine.low %v770, %v771
  %v829 = vcombine.low %v772, %v773
  %v831 = vunpack.c.l.s4 1983009808
  %v832 = vunpack.c.0.s8 %v831
  %v833 = vlaneseq
  %v834 = vshrl.u32 %v833, 7
  %v835 = vsub.s32 %v832, %v834
  %v836 = vrot.slane %v828, %v835
  %v838 = vunpack.c.l.s4 1983009808
  %v839 = vunpack.c.0.s8 %v838
  %v840 = vlaneseq
  %v841 = vshrl.u32 %v840, 7
  %v842 = vsub.s32 %v839, %v841
  %v843 = vrot.slane %v829, %v842
  %v844 = vcombine.low %v836, %v843
  %v845 = vcombine.low %v774, %v775
  %v846 = vcombine.low %v776, %v777
  %v848 = vunpack.c.l.s4 1983009808
  %v849 = vunpack.c.0.s8 %v848
  %v850 = vlaneseq
  %v851 = vshrl.u32 %v850, 7
  %v852 = vsub.s32 %v849, %v851
  %v853 = vrot.slane %v845, %v852
  %v855 = vunpack.c.l.s4 1983009808
  %v856 = vunpack.c.0.s8 %v855
  %v857 = vlaneseq
  %v858 = vshrl.u32 %v857, 7
  %v859 = vsub.s32 %v856, %v858
  %v860 = vrot.slane %v846, %v859
  %v861 = vcombine.low %v853, %v860
  %v866 = vpack.c.bf16 %v827, %v810
  %v867 = vpack.c.bf16 %v861, %v844
  %v868 = vpack.c.bf16 %v330, %v329
  %v869 = vpack.c.bf16 %v332, %v331
  %v870 = vpack.c.bf16 %v334, %v333
  %v871 = vpack.c.bf16 %v336, %v335
  %v872 = vpack.c.bf16 %v338, %v337
  %v873 = vpack.c.bf16 %v340, %v339
  %v874 = vpack.c.bf16 %v342, %v341
  %v875 = vpack.c.bf16 %v344, %v343
  %876 = vmatprep.subr.bf16.mxu0 0
  %877 = vmatpush1.bf16.msra.mxu0 %v875
  %878 = vmatprep.subr.bf16.mxu0 0
  %879 = vmatpush1.bf16.msra.mxu0 %v874
  %880 = vmatprep.subr.bf16.mxu0 0
  %881 = vmatpush1.bf16.msra.mxu0 %v873
  %882 = vmatprep.subr.bf16.mxu0 0
  %883 = vmatpush1.bf16.msra.mxu0 %v872
  %884 = vmatprep.subr.bf16.mxu0 0
  %885 = vmatpush1.bf16.msra.mxu0 %v871
  %886 = vmatprep.subr.bf16.mxu0 0
  %887 = vmatpush1.bf16.msra.mxu0 %v870
  %888 = vmatprep.subr.bf16.mxu0 0
  %889 = vmatpush1.bf16.msra.mxu0 %v869
  %890 = vmatprep.subr.bf16.mxu0 0
  %891 = vmatpush1.bf16.msra.mxu0 %v868
  %892 = vmatprep.subr.bf16.mxu0 0
  %893 = vmatpush2.bf16.msra.mxu0 0
  %894 = vmatprep.subr.bf16.mxu0 0
  %895 = vmatpush2.bf16.msra.mxu0 0
  %896 = vmatprep.subr.bf16.mxu0 0
  %897 = vmatpush2.bf16.msra.mxu0 0
  %898 = vmatprep.subr.bf16.mxu0 0
  %899 = vmatpush2.bf16.msra.mxu0 0
  %900 = vmatprep.subr.bf16.mxu0 0
  %901 = vmatpush2.bf16.msra.mxu0 0
  %902 = vmatprep.subr.bf16.mxu0 0
  %903 = vmatpush2.bf16.msra.mxu0 0
  %904 = vmatprep.subr.bf16.mxu0 0
  %905 = vmatpush2.bf16.msra.mxu0 0
  %906 = vmatprep.subr.bf16.mxu0 0
  %907 = vmatpush2.bf16.msra.mxu0 0
  %908 = vmatprep.mubr.bf16.mxu0 0
  %909 = vmatmul.mubr.bf16.gmra.mxu0 %v866
  %v910 = vpop.f32.mrf.mxu0
  %v911 = vadd.f32 0.0, %v910
  %v912 = vpop.f32.mrf.mxu0
  %v913 = vpop.f32.mrf.mxu0
  %v914 = vadd.f32 0.0, %v913
  %v915 = vpop.f32.mrf.mxu0
  %916 = vmatprep.mubr.bf16.mxu0 0
  %917 = vmatmul.mubr.bf16.gmra.mxu0 %v867
  %v918 = vpop.f32.mrf.mxu0
  %v919 = vadd.f32 0.0, %v918
  %v920 = vpop.f32.mrf.mxu0
  %v921 = vpop.f32.mrf.mxu0
  %v922 = vadd.f32 0.0, %v921
  %v923 = vpop.f32.mrf.mxu0
  %924 = vdwg.mxu0
  %v925 = vadd.f32 %v911, %v914
  %v926 = vadd.f32 %v925, %v919
  %v927 = vadd.f32 %v926, %v922
  %v928 = vrot.slane %v927, 4
  %v929 = vadd.f32 %v927, %v928
  %v930 = vrot.slane %v929, 2
  %v931 = vadd.f32 %v929, %v930
  %v932 = vrot.slane %v931, 1
  %v933 = vadd.f32 %v931, %v932
  %v934 = vrcp.pop 32.0
  %v935 = vmul.f32 %v933, %v934
  %v936 = vsub.f32 %v911, %v935
  %v937 = vsub.f32 %v914, %v935
  %v938 = vsub.f32 %v919, %v935
  %v939 = vsub.f32 %v922, %v935
  %v940 = vmul.f32 %v936, %v936
  %v941 = vmul.f32 %v937, %v937
  %v942 = vmul.f32 %v938, %v938
  %v943 = vmul.f32 %v939, %v939
  %v944 = vadd.f32 %v940, %v941
  %v945 = vadd.f32 %v944, %v942
  %v946 = vadd.f32 %v945, %v943
  %v947 = vrot.slane %v946, 4
  %v948 = vadd.f32 %v946, %v947
  %v949 = vrot.slane %v948, 2
  %v950 = vadd.f32 %v948, %v949
  %v951 = vrot.slane %v950, 1
  %v952 = vadd.f32 %v950, %v951
  %v953 = vmul.f32 %v952, %v934
  %v954 = vadd.f32 %v953, 1e-05
  %v955 = vrsqrt.pop %v954
  %v956 = vmul.f32 %v936, %v955
  %v957 = vmul.f32 %v937, %v955
  %v958 = vmul.f32 %v938, %v955
  %v959 = vmul.f32 %v939, %v955
  %v960 = vlaneseq
  %v961 = vshrl.u32 %v960, 7
  %v962 = vsub.s32 1, %v961
  %v963 = vrot.slane %v38, %v962
  %v964 = vmul.f32 %v956, %v963
  %v965 = vmul.f32 %v957, %v963
  %v966 = vmul.f32 %v958, %v963
  %v967 = vmul.f32 %v959, %v963
  %v968 = vlaneseq
  %v969 = vshrl.u32 %v968, 7
  %v970 = vsub.s32 2, %v969
  %v971 = vrot.slane %v38, %v970
  %v972 = vadd.f32 %v964, %v971
  %v973 = vadd.f32 %v965, %v971
  %v974 = vadd.f32 %v966, %v971
  %v975 = vadd.f32 %v967, %v971
  %v976 = vmax.f32 %v972, 0.0
  %v977 = vmax.f32 %v973, 0.0
  %v978 = vmax.f32 %v974, 0.0
  %v979 = vmax.f32 %v975, 0.0
  %v984 = vcombine.high %v976, %v976
  %v986 = vunpack.c.l.s4 1983009808
  %v987 = vunpack.c.0.s8 %v986
  %v988 = vlaneseq
  %v989 = vshrl.u32 %v988, 7
  %v990 = vsub.s32 %v987, %v989
  %v991 = vrot.slane %v976, %v990
  %v993 = vunpack.c.l.s4 1983009808
  %v994 = vunpack.c.0.s8 %v993
  %v995 = vlaneseq
  %v996 = vshrl.u32 %v995, 7
  %v997 = vsub.s32 %v994, %v996
  %v998 = vrot.slane %v984, %v997
  %v999 = vcombine.high %v991, %v991
  %v1000 = vcombine.high %v998, %v998
  %v1001 = vcombine.high %v977, %v977
  %v1003 = vunpack.c.l.s4 1983009808
  %v1004 = vunpack.c.0.s8 %v1003
  %v1005 = vlaneseq
  %v1006 = vshrl.u32 %v1005, 7
  %v1007 = vsub.s32 %v1004, %v1006
  %v1008 = vrot.slane %v977, %v1007
  %v1010 = vunpack.c.l.s4 1983009808
  %v1011 = vunpack.c.0.s8 %v1010
  %v1012 = vlaneseq
  %v1013 = vshrl.u32 %v1012, 7
  %v1014 = vsub.s32 %v1011, %v1013
  %v1015 = vrot.slane %v1001, %v1014
  %v1016 = vcombine.high %v1008, %v1008
  %v1017 = vcombine.high %v1015, %v1015
  %v1018 = vcombine.high %v978, %v978
  %v1020 = vunpack.c.l.s4 1983009808
  %v1021 = vunpack.c.0.s8 %v1020
  %v1022 = vlaneseq
  %v1023 = vshrl.u32 %v1022, 7
  %v1024 = vsub.s32 %v1021, %v1023
  %v1025 = vrot.slane %v978, %v1024
  %v1027 = vunpack.c.l.s4 1983009808
  %v1028 = vunpack.c.0.s8 %v1027
  %v1029 = vlaneseq
  %v1030 = vshrl.u32 %v1029, 7
  %v1031 = vsub.s32 %v1028, %v1030
  %v1032 = vrot.slane %v1018, %v1031
  %v1033 = vcombine.high %v1025, %v1025
  %v1034 = vcombine.high %v1032, %v1032
  %v1035 = vcombine.high %v979, %v979
  %v1037 = vunpack.c.l.s4 1983009808
  %v1038 = vunpack.c.0.s8 %v1037
  %v1039 = vlaneseq
  %v1040 = vshrl.u32 %v1039, 7
  %v1041 = vsub.s32 %v1038, %v1040
  %v1042 = vrot.slane %v979, %v1041
  %v1044 = vunpack.c.l.s4 1983009808
  %v1045 = vunpack.c.0.s8 %v1044
  %v1046 = vlaneseq
  %v1047 = vshrl.u32 %v1046, 7
  %v1048 = vsub.s32 %v1045, %v1047
  %v1049 = vrot.slane %v1035, %v1048
  %v1050 = vcombine.high %v1042, %v1042
  %v1051 = vcombine.high %v1049, %v1049
  %v1068 = vmax.f32 %v991, 0.0
  %v1069 = vmax.f32 %v991, %v999
  %v1070 = vmax.f32 %v999, %v998
  %v1071 = vmax.f32 %v998, %v1000
  %v1072 = vmax.f32 %v1000, %v1008
  %v1073 = vmax.f32 %v1008, %v1016
  %v1074 = vmax.f32 %v1016, %v1015
  %v1075 = vmax.f32 %v1015, %v1017
  %v1076 = vmax.f32 %v1017, %v1025
  %v1077 = vmax.f32 %v1025, %v1033
  %v1078 = vmax.f32 %v1033, %v1032
  %v1079 = vmax.f32 %v1032, %v1034
  %v1080 = vmax.f32 %v1034, %v1042
  %v1081 = vmax.f32 %v1042, %v1050
  %v1082 = vmax.f32 %v1050, %v1049
  %v1083 = vmax.f32 %v1049, %v1051
  %v1084 = vld [vmem:[%s4] sm:$0xff]
  %v1085 = vld [vmem:[%s4 + $0x8] sm:$0xff]
  %v1086 = vld [vmem:[%s4 + $0x10] sm:$0xff]
  %v1087 = vld [vmem:[%s4 + $0x18] sm:$0xff]
  %v1088 = vld [vmem:[%s4 + $0x20] sm:$0xff]
  %v1089 = vld [vmem:[%s4 + $0x28] sm:$0xff]
  %v1090 = vld [vmem:[%s4 + $0x30] sm:$0xff]
  %v1091 = vld [vmem:[%s4 + $0x38] sm:$0xff]
  %v1092 = vld [vmem:[%s4 + $0x40] sm:$0xff]
  %v1093 = vld [vmem:[%s4 + $0x48] sm:$0xff]
  %v1094 = vld [vmem:[%s4 + $0x50] sm:$0xff]
  %v1095 = vld [vmem:[%s4 + $0x58] sm:$0xff]
  %v1096 = vld [vmem:[%s4 + $0x60] sm:$0xff]
  %v1097 = vld [vmem:[%s4 + $0x68] sm:$0xff]
  %v1098 = vld [vmem:[%s4 + $0x70] sm:$0xff]
  %v1099 = vld [vmem:[%s4 + $0x78] sm:$0xff]
  %v1100 = vld [vmem:[%s4 + $0x80] sm:$0xff]
  %v1101 = vld [vmem:[%s4 + $0x88] sm:$0xff]
  %v1102 = vld [vmem:[%s4 + $0x90] sm:$0xff]
  %v1103 = vld [vmem:[%s4 + $0x98] sm:$0xff]
  %v1104 = vld [vmem:[%s4 + $0xa0] sm:$0xff]
  %v1105 = vld [vmem:[%s4 + $0xa8] sm:$0xff]
  %v1106 = vld [vmem:[%s4 + $0xb0] sm:$0xff]
  %v1107 = vld [vmem:[%s4 + $0xb8] sm:$0xff]
  %v1108 = vld [vmem:[%s4 + $0xc0] sm:$0xff]
  %v1109 = vld [vmem:[%s4 + $0xc8] sm:$0xff]
  %v1110 = vld [vmem:[%s4 + $0xd0] sm:$0xff]
  %v1111 = vld [vmem:[%s4 + $0xd8] sm:$0xff]
  %v1112 = vld [vmem:[%s4 + $0xe0] sm:$0xff]
  %v1113 = vld [vmem:[%s4 + $0xe8] sm:$0xff]
  %v1114 = vld [vmem:[%s4 + $0xf0] sm:$0xff]
  %v1115 = vld [vmem:[%s4 + $0xf8] sm:$0xff]
  %v1116 = vld [vmem:[%s4 + $0x100] sm:$0xff]
  %v1117 = vld [vmem:[%s4 + $0x108] sm:$0xff]
  %v1118 = vld [vmem:[%s4 + $0x110] sm:$0xff]
  %v1119 = vld [vmem:[%s4 + $0x118] sm:$0xff]
  %v1120 = vld [vmem:[%s4 + $0x120] sm:$0xff]
  %v1121 = vld [vmem:[%s4 + $0x128] sm:$0xff]
  %v1122 = vld [vmem:[%s4 + $0x130] sm:$0xff]
  %v1123 = vld [vmem:[%s4 + $0x138] sm:$0xff]
  %v1124 = vld [vmem:[%s4 + $0x140] sm:$0xff]
  %v1125 = vld [vmem:[%s4 + $0x148] sm:$0xff]
  %v1126 = vld [vmem:[%s4 + $0x150] sm:$0xff]
  %v1127 = vld [vmem:[%s4 + $0x158] sm:$0xff]
  %v1128 = vld [vmem:[%s4 + $0x160] sm:$0xff]
  %v1129 = vld [vmem:[%s4 + $0x168] sm:$0xff]
  %v1130 = vld [vmem:[%s4 + $0x170] sm:$0xff]
  %v1131 = vld [vmem:[%s4 + $0x178] sm:$0xff]
  %v1148 = vcombine.low 0.0, %v1068
  %v1150 = vunpack.c.l.s4 1983009808
  %v1151 = vunpack.c.0.s8 %v1150
  %v1152 = vlaneseq
  %v1153 = vshrl.u32 %v1152, 7
  %v1154 = vsub.s32 %v1151, %v1153
  %v1155 = vrot.slane %v1148, %v1154
  %v1157 = vunpack.c.l.s4 1983009808
  %v1158 = vunpack.c.0.s8 %v1157
  %v1159 = vlaneseq
  %v1160 = vshrl.u32 %v1159, 7
  %v1161 = vsub.s32 %v1158, %v1160
  %v1162 = vrot.slane %v1069, %v1161
  %v1163 = vcombine.low %v1155, %v1162
  %v1164 = vcombine.low %v1068, %v1069
  %v1166 = vunpack.c.l.s4 1983009808
  %v1167 = vunpack.c.0.s8 %v1166
  %v1168 = vlaneseq
  %v1169 = vshrl.u32 %v1168, 7
  %v1170 = vsub.s32 %v1167, %v1169
  %v1171 = vrot.slane %v1164, %v1170
  %v1173 = vunpack.c.l.s4 1983009808
  %v1174 = vunpack.c.0.s8 %v1173
  %v1175 = vlaneseq
  %v1176 = vshrl.u32 %v1175, 7
  %v1177 = vsub.s32 %v1174, %v1176
  %v1178 = vrot.slane %v1070, %v1177
  %v1179 = vcombine.low %v1171, %v1178
  %v1180 = vcombine.low %v1069, %v1070
  %v1182 = vunpack.c.l.s4 1983009808
  %v1183 = vunpack.c.0.s8 %v1182
  %v1184 = vlaneseq
  %v1185 = vshrl.u32 %v1184, 7
  %v1186 = vsub.s32 %v1183, %v1185
  %v1187 = vrot.slane %v1180, %v1186
  %v1189 = vunpack.c.l.s4 1983009808
  %v1190 = vunpack.c.0.s8 %v1189
  %v1191 = vlaneseq
  %v1192 = vshrl.u32 %v1191, 7
  %v1193 = vsub.s32 %v1190, %v1192
  %v1194 = vrot.slane %v1071, %v1193
  %v1195 = vcombine.low %v1187, %v1194
  %v1196 = vcombine.low %v1070, %v1071
  %v1198 = vunpack.c.l.s4 1983009808
  %v1199 = vunpack.c.0.s8 %v1198
  %v1200 = vlaneseq
  %v1201 = vshrl.u32 %v1200, 7
  %v1202 = vsub.s32 %v1199, %v1201
  %v1203 = vrot.slane %v1196, %v1202
  %v1205 = vunpack.c.l.s4 1983009808
  %v1206 = vunpack.c.0.s8 %v1205
  %v1207 = vlaneseq
  %v1208 = vshrl.u32 %v1207, 7
  %v1209 = vsub.s32 %v1206, %v1208
  %v1210 = vrot.slane %v1072, %v1209
  %v1211 = vcombine.low %v1203, %v1210
  %v1212 = vcombine.low %v1071, %v1072
  %v1214 = vunpack.c.l.s4 1983009808
  %v1215 = vunpack.c.0.s8 %v1214
  %v1216 = vlaneseq
  %v1217 = vshrl.u32 %v1216, 7
  %v1218 = vsub.s32 %v1215, %v1217
  %v1219 = vrot.slane %v1212, %v1218
  %v1221 = vunpack.c.l.s4 1983009808
  %v1222 = vunpack.c.0.s8 %v1221
  %v1223 = vlaneseq
  %v1224 = vshrl.u32 %v1223, 7
  %v1225 = vsub.s32 %v1222, %v1224
  %v1226 = vrot.slane %v1073, %v1225
  %v1227 = vcombine.low %v1219, %v1226
  %v1228 = vcombine.low %v1072, %v1073
  %v1230 = vunpack.c.l.s4 1983009808
  %v1231 = vunpack.c.0.s8 %v1230
  %v1232 = vlaneseq
  %v1233 = vshrl.u32 %v1232, 7
  %v1234 = vsub.s32 %v1231, %v1233
  %v1235 = vrot.slane %v1228, %v1234
  %v1237 = vunpack.c.l.s4 1983009808
  %v1238 = vunpack.c.0.s8 %v1237
  %v1239 = vlaneseq
  %v1240 = vshrl.u32 %v1239, 7
  %v1241 = vsub.s32 %v1238, %v1240
  %v1242 = vrot.slane %v1074, %v1241
  %v1243 = vcombine.low %v1235, %v1242
  %v1244 = vcombine.low %v1073, %v1074
  %v1246 = vunpack.c.l.s4 1983009808
  %v1247 = vunpack.c.0.s8 %v1246
  %v1248 = vlaneseq
  %v1249 = vshrl.u32 %v1248, 7
  %v1250 = vsub.s32 %v1247, %v1249
  %v1251 = vrot.slane %v1244, %v1250
  %v1253 = vunpack.c.l.s4 1983009808
  %v1254 = vunpack.c.0.s8 %v1253
  %v1255 = vlaneseq
  %v1256 = vshrl.u32 %v1255, 7
  %v1257 = vsub.s32 %v1254, %v1256
  %v1258 = vrot.slane %v1075, %v1257
  %v1259 = vcombine.low %v1251, %v1258
  %v1260 = vcombine.low %v1074, %v1075
  %v1262 = vunpack.c.l.s4 1983009808
  %v1263 = vunpack.c.0.s8 %v1262
  %v1264 = vlaneseq
  %v1265 = vshrl.u32 %v1264, 7
  %v1266 = vsub.s32 %v1263, %v1265
  %v1267 = vrot.slane %v1260, %v1266
  %v1269 = vunpack.c.l.s4 1983009808
  %v1270 = vunpack.c.0.s8 %v1269
  %v1271 = vlaneseq
  %v1272 = vshrl.u32 %v1271, 7
  %v1273 = vsub.s32 %v1270, %v1272
  %v1274 = vrot.slane %v1076, %v1273
  %v1275 = vcombine.low %v1267, %v1274
  %v1276 = vcombine.low %v1075, %v1076
  %v1278 = vunpack.c.l.s4 1983009808
  %v1279 = vunpack.c.0.s8 %v1278
  %v1280 = vlaneseq
  %v1281 = vshrl.u32 %v1280, 7
  %v1282 = vsub.s32 %v1279, %v1281
  %v1283 = vrot.slane %v1276, %v1282
  %v1285 = vunpack.c.l.s4 1983009808
  %v1286 = vunpack.c.0.s8 %v1285
  %v1287 = vlaneseq
  %v1288 = vshrl.u32 %v1287, 7
  %v1289 = vsub.s32 %v1286, %v1288
  %v1290 = vrot.slane %v1077, %v1289
  %v1291 = vcombine.low %v1283, %v1290
  %v1292 = vcombine.low %v1076, %v1077
  %v1294 = vunpack.c.l.s4 1983009808
  %v1295 = vunpack.c.0.s8 %v1294
  %v1296 = vlaneseq
  %v1297 = vshrl.u32 %v1296, 7
  %v1298 = vsub.s32 %v1295, %v1297
  %v1299 = vrot.slane %v1292, %v1298
  %v1301 = vunpack.c.l.s4 1983009808
  %v1302 = vunpack.c.0.s8 %v1301
  %v1303 = vlaneseq
  %v1304 = vshrl.u32 %v1303, 7
  %v1305 = vsub.s32 %v1302, %v1304
  %v1306 = vrot.slane %v1078, %v1305
  %v1307 = vcombine.low %v1299, %v1306
  %v1308 = vcombine.low %v1077, %v1078
  %v1310 = vunpack.c.l.s4 1983009808
  %v1311 = vunpack.c.0.s8 %v1310
  %v1312 = vlaneseq
  %v1313 = vshrl.u32 %v1312, 7
  %v1314 = vsub.s32 %v1311, %v1313
  %v1315 = vrot.slane %v1308, %v1314
  %v1317 = vunpack.c.l.s4 1983009808
  %v1318 = vunpack.c.0.s8 %v1317
  %v1319 = vlaneseq
  %v1320 = vshrl.u32 %v1319, 7
  %v1321 = vsub.s32 %v1318, %v1320
  %v1322 = vrot.slane %v1079, %v1321
  %v1323 = vcombine.low %v1315, %v1322
  %v1324 = vcombine.low %v1078, %v1079
  %v1326 = vunpack.c.l.s4 1983009808
  %v1327 = vunpack.c.0.s8 %v1326
  %v1328 = vlaneseq
  %v1329 = vshrl.u32 %v1328, 7
  %v1330 = vsub.s32 %v1327, %v1329
  %v1331 = vrot.slane %v1324, %v1330
  %v1333 = vunpack.c.l.s4 1983009808
  %v1334 = vunpack.c.0.s8 %v1333
  %v1335 = vlaneseq
  %v1336 = vshrl.u32 %v1335, 7
  %v1337 = vsub.s32 %v1334, %v1336
  %v1338 = vrot.slane %v1080, %v1337
  %v1339 = vcombine.low %v1331, %v1338
  %v1340 = vcombine.low %v1079, %v1080
  %v1342 = vunpack.c.l.s4 1983009808
  %v1343 = vunpack.c.0.s8 %v1342
  %v1344 = vlaneseq
  %v1345 = vshrl.u32 %v1344, 7
  %v1346 = vsub.s32 %v1343, %v1345
  %v1347 = vrot.slane %v1340, %v1346
  %v1349 = vunpack.c.l.s4 1983009808
  %v1350 = vunpack.c.0.s8 %v1349
  %v1351 = vlaneseq
  %v1352 = vshrl.u32 %v1351, 7
  %v1353 = vsub.s32 %v1350, %v1352
  %v1354 = vrot.slane %v1081, %v1353
  %v1355 = vcombine.low %v1347, %v1354
  %v1356 = vcombine.low %v1080, %v1081
  %v1358 = vunpack.c.l.s4 1983009808
  %v1359 = vunpack.c.0.s8 %v1358
  %v1360 = vlaneseq
  %v1361 = vshrl.u32 %v1360, 7
  %v1362 = vsub.s32 %v1359, %v1361
  %v1363 = vrot.slane %v1356, %v1362
  %v1365 = vunpack.c.l.s4 1983009808
  %v1366 = vunpack.c.0.s8 %v1365
  %v1367 = vlaneseq
  %v1368 = vshrl.u32 %v1367, 7
  %v1369 = vsub.s32 %v1366, %v1368
  %v1370 = vrot.slane %v1082, %v1369
  %v1371 = vcombine.low %v1363, %v1370
  %v1372 = vcombine.low %v1081, %v1082
  %v1374 = vunpack.c.l.s4 1983009808
  %v1375 = vunpack.c.0.s8 %v1374
  %v1376 = vlaneseq
  %v1377 = vshrl.u32 %v1376, 7
  %v1378 = vsub.s32 %v1375, %v1377
  %v1379 = vrot.slane %v1372, %v1378
  %v1381 = vunpack.c.l.s4 1983009808
  %v1382 = vunpack.c.0.s8 %v1381
  %v1383 = vlaneseq
  %v1384 = vshrl.u32 %v1383, 7
  %v1385 = vsub.s32 %v1382, %v1384
  %v1386 = vrot.slane %v1083, %v1385
  %v1387 = vcombine.low %v1379, %v1386
  %v1388 = vcombine.low %v1082, %v1083
  %v1390 = vunpack.c.l.s4 1983009808
  %v1391 = vunpack.c.0.s8 %v1390
  %v1392 = vlaneseq
  %v1393 = vshrl.u32 %v1392, 7
  %v1394 = vsub.s32 %v1391, %v1393
  %v1395 = vrot.slane %v1388, %v1394
  %v1397 = vunpack.c.l.s4 1983009808
  %v1398 = vunpack.c.0.s8 %v1397
  %v1399 = vlaneseq
  %v1400 = vshrl.u32 %v1399, 7
  %v1401 = vsub.s32 %v1398, %v1400
  %v1402 = vrot.slane 0.0, %v1401
  %v1403 = vcombine.low %v1395, %v1402
  %v1404 = vcombine.low %v1163, %v1179
  %v1405 = vcombine.high %v1163, %v1179
  %v1406 = vcombine.low %v1195, %v1211
  %v1407 = vcombine.high %v1195, %v1211
  %v1409 = vunpack.c.l.s4 1983009808
  %v1410 = vunpack.c.0.s8 %v1409
  %v1411 = vlaneseq
  %v1412 = vshrl.u32 %v1411, 7
  %v1413 = vsub.s32 %v1410, %v1412
  %v1414 = vrot.slane %v1404, %v1413
  %v1416 = vunpack.c.l.s4 1983009808
  %v1417 = vunpack.c.0.s8 %v1416
  %v1418 = vlaneseq
  %v1419 = vshrl.u32 %v1418, 7
  %v1420 = vsub.s32 %v1417, %v1419
  %v1421 = vrot.slane %v1405, %v1420
  %v1423 = vunpack.c.l.s4 1983009808
  %v1424 = vunpack.c.0.s8 %v1423
  %v1425 = vlaneseq
  %v1426 = vshrl.u32 %v1425, 7
  %v1427 = vsub.s32 %v1424, %v1426
  %v1428 = vrot.slane %v1406, %v1427
  %v1430 = vunpack.c.l.s4 1983009808
  %v1431 = vunpack.c.0.s8 %v1430
  %v1432 = vlaneseq
  %v1433 = vshrl.u32 %v1432, 7
  %v1434 = vsub.s32 %v1431, %v1433
  %v1435 = vrot.slane %v1407, %v1434
  %v1436 = vcombine.low %v1414, %v1428
  %v1437 = vcombine.high %v1414, %v1428
  %v1438 = vcombine.low %v1421, %v1435
  %v1439 = vcombine.low %v1227, %v1243
  %v1440 = vcombine.high %v1227, %v1243
  %v1441 = vcombine.low %v1259, %v1275
  %v1442 = vcombine.high %v1259, %v1275
  %v1444 = vunpack.c.l.s4 1983009808
  %v1445 = vunpack.c.0.s8 %v1444
  %v1446 = vlaneseq
  %v1447 = vshrl.u32 %v1446, 7
  %v1448 = vsub.s32 %v1445, %v1447
  %v1449 = vrot.slane %v1439, %v1448
  %v1451 = vunpack.c.l.s4 1983009808
  %v1452 = vunpack.c.0.s8 %v1451
  %v1453 = vlaneseq
  %v1454 = vshrl.u32 %v1453, 7
  %v1455 = vsub.s32 %v1452, %v1454
  %v1456 = vrot.slane %v1440, %v1455
  %v1458 = vunpack.c.l.s4 1983009808
  %v1459 = vunpack.c.0.s8 %v1458
  %v1460 = vlaneseq
  %v1461 = vshrl.u32 %v1460, 7
  %v1462 = vsub.s32 %v1459, %v1461
  %v1463 = vrot.slane %v1441, %v1462
  %v1465 = vunpack.c.l.s4 1983009808
  %v1466 = vunpack.c.0.s8 %v1465
  %v1467 = vlaneseq
  %v1468 = vshrl.u32 %v1467, 7
  %v1469 = vsub.s32 %v1466, %v1468
  %v1470 = vrot.slane %v1442, %v1469
  %v1471 = vcombine.low %v1449, %v1463
  %v1472 = vcombine.high %v1449, %v1463
  %v1473 = vcombine.low %v1456, %v1470
  %v1474 = vcombine.low %v1291, %v1307
  %v1475 = vcombine.high %v1291, %v1307
  %v1476 = vcombine.low %v1323, %v1339
  %v1477 = vcombine.high %v1323, %v1339
  %v1479 = vunpack.c.l.s4 1983009808
  %v1480 = vunpack.c.0.s8 %v1479
  %v1481 = vlaneseq
  %v1482 = vshrl.u32 %v1481, 7
  %v1483 = vsub.s32 %v1480, %v1482
  %v1484 = vrot.slane %v1474, %v1483
  %v1486 = vunpack.c.l.s4 1983009808
  %v1487 = vunpack.c.0.s8 %v1486
  %v1488 = vlaneseq
  %v1489 = vshrl.u32 %v1488, 7
  %v1490 = vsub.s32 %v1487, %v1489
  %v1491 = vrot.slane %v1475, %v1490
  %v1493 = vunpack.c.l.s4 1983009808
  %v1494 = vunpack.c.0.s8 %v1493
  %v1495 = vlaneseq
  %v1496 = vshrl.u32 %v1495, 7
  %v1497 = vsub.s32 %v1494, %v1496
  %v1498 = vrot.slane %v1476, %v1497
  %v1500 = vunpack.c.l.s4 1983009808
  %v1501 = vunpack.c.0.s8 %v1500
  %v1502 = vlaneseq
  %v1503 = vshrl.u32 %v1502, 7
  %v1504 = vsub.s32 %v1501, %v1503
  %v1505 = vrot.slane %v1477, %v1504
  %v1506 = vcombine.low %v1484, %v1498
  %v1507 = vcombine.high %v1484, %v1498
  %v1508 = vcombine.low %v1491, %v1505
  %v1509 = vcombine.low %v1355, %v1371
  %v1510 = vcombine.high %v1355, %v1371
  %v1511 = vcombine.low %v1387, %v1403
  %v1512 = vcombine.high %v1387, %v1403
  %v1514 = vunpack.c.l.s4 1983009808
  %v1515 = vunpack.c.0.s8 %v1514
  %v1516 = vlaneseq
  %v1517 = vshrl.u32 %v1516, 7
  %v1518 = vsub.s32 %v1515, %v1517
  %v1519 = vrot.slane %v1509, %v1518
  %v1521 = vunpack.c.l.s4 1983009808
  %v1522 = vunpack.c.0.s8 %v1521
  %v1523 = vlaneseq
  %v1524 = vshrl.u32 %v1523, 7
  %v1525 = vsub.s32 %v1522, %v1524
  %v1526 = vrot.slane %v1510, %v1525
  %v1528 = vunpack.c.l.s4 1983009808
  %v1529 = vunpack.c.0.s8 %v1528
  %v1530 = vlaneseq
  %v1531 = vshrl.u32 %v1530, 7
  %v1532 = vsub.s32 %v1529, %v1531
  %v1533 = vrot.slane %v1511, %v1532
  %v1535 = vunpack.c.l.s4 1983009808
  %v1536 = vunpack.c.0.s8 %v1535
  %v1537 = vlaneseq
  %v1538 = vshrl.u32 %v1537, 7
  %v1539 = vsub.s32 %v1536, %v1538
  %v1540 = vrot.slane %v1512, %v1539
  %v1541 = vcombine.low %v1519, %v1533
  %v1542 = vcombine.high %v1519, %v1533
  %v1543 = vcombine.low %v1526, %v1540
  %v1556 = vpack.c.bf16 %v1471, %v1436
  %v1557 = vpack.c.bf16 %v1472, %v1437
  %v1558 = vpack.c.bf16 %v1473, %v1438
  %v1559 = vpack.c.bf16 %v1541, %v1506
  %v1560 = vpack.c.bf16 %v1542, %v1507
  %v1561 = vpack.c.bf16 %v1543, %v1508
  %v1562 = vpack.c.bf16 %v1085, %v1084
  %v1563 = vpack.c.bf16 %v1087, %v1086
  %v1564 = vpack.c.bf16 %v1089, %v1088
  %v1565 = vpack.c.bf16 %v1091, %v1090
  %v1566 = vpack.c.bf16 %v1093, %v1092
  %v1567 = vpack.c.bf16 %v1095, %v1094
  %v1568 = vpack.c.bf16 %v1097, %v1096
  %v1569 = vpack.c.bf16 %v1099, %v1098
  %v1570 = vpack.c.bf16 %v1101, %v1100
  %v1571 = vpack.c.bf16 %v1103, %v1102
  %v1572 = vpack.c.bf16 %v1105, %v1104
  %v1573 = vpack.c.bf16 %v1107, %v1106
  %v1574 = vpack.c.bf16 %v1109, %v1108
  %v1575 = vpack.c.bf16 %v1111, %v1110
  %v1576 = vpack.c.bf16 %v1113, %v1112
  %v1577 = vpack.c.bf16 %v1115, %v1114
  %v1578 = vpack.c.bf16 %v1117, %v1116
  %v1579 = vpack.c.bf16 %v1119, %v1118
  %v1580 = vpack.c.bf16 %v1121, %v1120
  %v1581 = vpack.c.bf16 %v1123, %v1122
  %v1582 = vpack.c.bf16 %v1125, %v1124
  %v1583 = vpack.c.bf16 %v1127, %v1126
  %v1584 = vpack.c.bf16 %v1129, %v1128
  %v1585 = vpack.c.bf16 %v1131, %v1130
  %1586 = vmatprep.subr.bf16.mxu0 0
  %1587 = vmatpush1.bf16.msra.mxu0 %v1569
  %1588 = vmatprep.subr.bf16.mxu0 0
  %1589 = vmatpush1.bf16.msra.mxu0 %v1568
  %1590 = vmatprep.subr.bf16.mxu0 0
  %1591 = vmatpush1.bf16.msra.mxu0 %v1567
  %1592 = vmatprep.subr.bf16.mxu0 0
  %1593 = vmatpush1.bf16.msra.mxu0 %v1566
  %1594 = vmatprep.subr.bf16.mxu0 0
  %1595 = vmatpush1.bf16.msra.mxu0 %v1565
  %1596 = vmatprep.subr.bf16.mxu0 0
  %1597 = vmatpush1.bf16.msra.mxu0 %v1564
  %1598 = vmatprep.subr.bf16.mxu0 0
  %1599 = vmatpush1.bf16.msra.mxu0 %v1563
  %1600 = vmatprep.subr.bf16.mxu0 0
  %1601 = vmatpush1.bf16.msra.mxu0 %v1562
  %1602 = vmatprep.subr.bf16.mxu0 0
  %1603 = vmatpush2.bf16.msra.mxu0 %v1577
  %1604 = vmatprep.subr.bf16.mxu0 0
  %1605 = vmatpush2.bf16.msra.mxu0 %v1576
  %1606 = vmatprep.subr.bf16.mxu0 0
  %1607 = vmatpush2.bf16.msra.mxu0 %v1575
  %1608 = vmatprep.subr.bf16.mxu0 0
  %1609 = vmatpush2.bf16.msra.mxu0 %v1574
  %1610 = vmatprep.subr.bf16.mxu0 0
  %1611 = vmatpush2.bf16.msra.mxu0 %v1573
  %1612 = vmatprep.subr.bf16.mxu0 0
  %1613 = vmatpush2.bf16.msra.mxu0 %v1572
  %1614 = vmatprep.subr.bf16.mxu0 0
  %1615 = vmatpush2.bf16.msra.mxu0 %v1571
  %1616 = vmatprep.subr.bf16.mxu0 0
  %1617 = vmatpush2.bf16.msra.mxu0 %v1570
  %1618 = vmatprep.mubr.bf16.mxu0 %v1557
  %1619 = vmatmul.mubr.bf16.gmra.mxu0 %v1556
  %v1620 = vpop.f32.mrf.mxu0
  %v1621 = vadd.f32 0.0, %v1620
  %v1622 = vpop.f32.mrf.mxu0
  %v1623 = vpop.f32.mrf.mxu0
  %v1624 = vadd.f32 0.0, %v1623
  %v1625 = vpop.f32.mrf.mxu0
  %1626 = vmatprep.mubr.bf16.mxu0 %v1560
  %1627 = vmatmul.mubr.bf16.gmra.mxu0 %v1559
  %v1628 = vpop.f32.mrf.mxu0
  %v1629 = vadd.f32 0.0, %v1628
  %v1630 = vpop.f32.mrf.mxu0
  %v1631 = vpop.f32.mrf.mxu0
  %v1632 = vadd.f32 0.0, %v1631
  %v1633 = vpop.f32.mrf.mxu0
  %1634 = vdwg.mxu0
  %1635 = vmatprep.subr.bf16.mxu0 0
  %1636 = vmatpush1.bf16.msra.mxu0 %v1585
  %1637 = vmatprep.subr.bf16.mxu0 0
  %1638 = vmatpush1.bf16.msra.mxu0 %v1584
  %1639 = vmatprep.subr.bf16.mxu0 0
  %1640 = vmatpush1.bf16.msra.mxu0 %v1583
  %1641 = vmatprep.subr.bf16.mxu0 0
  %1642 = vmatpush1.bf16.msra.mxu0 %v1582
  %1643 = vmatprep.subr.bf16.mxu0 0
  %1644 = vmatpush1.bf16.msra.mxu0 %v1581
  %1645 = vmatprep.subr.bf16.mxu0 0
  %1646 = vmatpush1.bf16.msra.mxu0 %v1580
  %1647 = vmatprep.subr.bf16.mxu0 0
  %1648 = vmatpush1.bf16.msra.mxu0 %v1579
  %1649 = vmatprep.subr.bf16.mxu0 0
  %1650 = vmatpush1.bf16.msra.mxu0 %v1578
  %1651 = vmatprep.subr.bf16.mxu0 0
  %1652 = vmatpush2.bf16.msra.mxu0 0
  %1653 = vmatprep.subr.bf16.mxu0 0
  %1654 = vmatpush2.bf16.msra.mxu0 0
  %1655 = vmatprep.subr.bf16.mxu0 0
  %1656 = vmatpush2.bf16.msra.mxu0 0
  %1657 = vmatprep.subr.bf16.mxu0 0
  %1658 = vmatpush2.bf16.msra.mxu0 0
  %1659 = vmatprep.subr.bf16.mxu0 0
  %1660 = vmatpush2.bf16.msra.mxu0 0
  %1661 = vmatprep.subr.bf16.mxu0 0
  %1662 = vmatpush2.bf16.msra.mxu0 0
  %1663 = vmatprep.subr.bf16.mxu0 0
  %1664 = vmatpush2.bf16.msra.mxu0 0
  %1665 = vmatprep.subr.bf16.mxu0 0
  %1666 = vmatpush2.bf16.msra.mxu0 0
  %1667 = vmatprep.mubr.bf16.mxu0 0
  %1668 = vmatmul.mubr.bf16.gmra.mxu0 %v1558
  %v1669 = vpop.f32.mrf.mxu0
  %v1670 = vadd.f32 %v1621, %v1669
  %v1671 = vpop.f32.mrf.mxu0
  %v1672 = vpop.f32.mrf.mxu0
  %v1673 = vadd.f32 %v1624, %v1672
  %v1674 = vpop.f32.mrf.mxu0
  %1675 = vmatprep.mubr.bf16.mxu0 0
  %1676 = vmatmul.mubr.bf16.gmra.mxu0 %v1561
  %v1677 = vpop.f32.mrf.mxu0
  %v1678 = vadd.f32 %v1629, %v1677
  %v1679 = vpop.f32.mrf.mxu0
  %v1680 = vpop.f32.mrf.mxu0
  %v1681 = vadd.f32 %v1632, %v1680
  %v1682 = vpop.f32.mrf.mxu0
  %1683 = vdwg.mxu0
  %v1684 = vsel %vm160, %v1670, 0.0
  %v1685 = vsel %vm160, %v1673, 0.0
  %v1686 = vadd.f32 %v1684, %v1685
  %v1687 = vsel %vm160, %v1678, 0.0
  %v1688 = vadd.f32 %v1686, %v1687
  %v1689 = vsel %vm160, %v1681, 0.0
  %v1690 = vadd.f32 %v1688, %v1689
  %v1691 = vrot.slane %v1690, 4
  %v1692 = vadd.f32 %v1690, %v1691
  %v1693 = vrot.slane %v1692, 2
  %v1694 = vadd.f32 %v1692, %v1693
  %v1695 = vrot.slane %v1694, 1
  %v1696 = vadd.f32 %v1694, %v1695
  %v1697 = vmul.f32 %v1696, %v934
  %v1698 = vsub.f32 %v1670, %v1697
  %v1699 = vsub.f32 %v1673, %v1697
  %v1700 = vsub.f32 %v1678, %v1697
  %v1701 = vsub.f32 %v1681, %v1697
  %v1702 = vmul.f32 %v1698, %v1698
  %v1703 = vmul.f32 %v1699, %v1699
  %v1704 = vmul.f32 %v1700, %v1700
  %v1705 = vmul.f32 %v1701, %v1701
  %v1706 = vsel %vm160, %v1702, 0.0
  %v1707 = vsel %vm160, %v1703, 0.0
  %v1708 = vadd.f32 %v1706, %v1707
  %v1709 = vsel %vm160, %v1704, 0.0
  %v1710 = vadd.f32 %v1708, %v1709
  %v1711 = vsel %vm160, %v1705, 0.0
  %v1712 = vadd.f32 %v1710, %v1711
  %v1713 = vrot.slane %v1712, 4
  %v1714 = vadd.f32 %v1712, %v1713
  %v1715 = vrot.slane %v1714, 2
  %v1716 = vadd.f32 %v1714, %v1715
  %v1717 = vrot.slane %v1716, 1
  %v1718 = vadd.f32 %v1716, %v1717
  %v1719 = vmul.f32 %v1718, %v934
  %v1720 = vadd.f32 %v1719, 1e-05
  %v1721 = vrsqrt.pop %v1720
  %v1722 = vmul.f32 %v1698, %v1721
  %v1723 = vmul.f32 %v1699, %v1721
  %v1724 = vmul.f32 %v1700, %v1721
  %v1725 = vmul.f32 %v1701, %v1721
  %v1726 = vlaneseq
  %v1727 = vshrl.u32 %v1726, 7
  %v1728 = vsub.s32 3, %v1727
  %v1729 = vrot.slane %v38, %v1728
  %v1730 = vmul.f32 %v1722, %v1729
  %v1731 = vmul.f32 %v1723, %v1729
  %v1732 = vmul.f32 %v1724, %v1729
  %v1733 = vmul.f32 %v1725, %v1729
  %v1734 = vlaneseq
  %v1735 = vshrl.u32 %v1734, 7
  %v1736 = vsub.s32 4, %v1735
  %v1737 = vrot.slane %v38, %v1736
  %v1738 = vadd.f32 %v1730, %v1737
  %v1739 = vadd.f32 %v1731, %v1737
  %v1740 = vadd.f32 %v1732, %v1737
  %v1741 = vadd.f32 %v1733, %v1737
  %v1742 = vmax.f32 %v1738, 0.0
  %v1743 = vmax.f32 %v1739, 0.0
  %v1744 = vmax.f32 %v1740, 0.0
  %v1745 = vmax.f32 %v1741, 0.0
  %v1750 = vcombine.high %v1742, %v1742
  %v1752 = vunpack.c.l.s4 1983009808
  %v1753 = vunpack.c.0.s8 %v1752
  %v1754 = vlaneseq
  %v1755 = vshrl.u32 %v1754, 7
  %v1756 = vsub.s32 %v1753, %v1755
  %v1757 = vrot.slane %v1742, %v1756
  %v1759 = vunpack.c.l.s4 1983009808
  %v1760 = vunpack.c.0.s8 %v1759
  %v1761 = vlaneseq
  %v1762 = vshrl.u32 %v1761, 7
  %v1763 = vsub.s32 %v1760, %v1762
  %v1764 = vrot.slane %v1750, %v1763
  %v1765 = vcombine.high %v1757, %v1757
  %v1766 = vcombine.high %v1764, %v1764
  %v1767 = vcombine.high %v1743, %v1743
  %v1769 = vunpack.c.l.s4 1983009808
  %v1770 = vunpack.c.0.s8 %v1769
  %v1771 = vlaneseq
  %v1772 = vshrl.u32 %v1771, 7
  %v1773 = vsub.s32 %v1770, %v1772
  %v1774 = vrot.slane %v1743, %v1773
  %v1776 = vunpack.c.l.s4 1983009808
  %v1777 = vunpack.c.0.s8 %v1776
  %v1778 = vlaneseq
  %v1779 = vshrl.u32 %v1778, 7
  %v1780 = vsub.s32 %v1777, %v1779
  %v1781 = vrot.slane %v1767, %v1780
  %v1782 = vcombine.high %v1774, %v1774
  %v1783 = vcombine.high %v1781, %v1781
  %v1784 = vcombine.high %v1744, %v1744
  %v1786 = vunpack.c.l.s4 1983009808
  %v1787 = vunpack.c.0.s8 %v1786
  %v1788 = vlaneseq
  %v1789 = vshrl.u32 %v1788, 7
  %v1790 = vsub.s32 %v1787, %v1789
  %v1791 = vrot.slane %v1744, %v1790
  %v1793 = vunpack.c.l.s4 1983009808
  %v1794 = vunpack.c.0.s8 %v1793
  %v1795 = vlaneseq
  %v1796 = vshrl.u32 %v1795, 7
  %v1797 = vsub.s32 %v1794, %v1796
  %v1798 = vrot.slane %v1784, %v1797
  %v1799 = vcombine.high %v1791, %v1791
  %v1800 = vcombine.high %v1798, %v1798
  %v1801 = vcombine.high %v1745, %v1745
  %v1803 = vunpack.c.l.s4 1983009808
  %v1804 = vunpack.c.0.s8 %v1803
  %v1805 = vlaneseq
  %v1806 = vshrl.u32 %v1805, 7
  %v1807 = vsub.s32 %v1804, %v1806
  %v1808 = vrot.slane %v1745, %v1807
  %v1810 = vunpack.c.l.s4 1983009808
  %v1811 = vunpack.c.0.s8 %v1810
  %v1812 = vlaneseq
  %v1813 = vshrl.u32 %v1812, 7
  %v1814 = vsub.s32 %v1811, %v1813
  %v1815 = vrot.slane %v1801, %v1814
  %v1816 = vcombine.high %v1808, %v1808
  %v1817 = vcombine.high %v1815, %v1815
  %v1833 = vld [vmem:[%s5] sm:$0xff]
  %v1834 = vld [vmem:[%s5 + $0x8] sm:$0xff]
  %v1835 = vld [vmem:[%s5 + $0x10] sm:$0xff]
  %v1836 = vld [vmem:[%s5 + $0x18] sm:$0xff]
  %v1837 = vld [vmem:[%s5 + $0x20] sm:$0xff]
  %v1838 = vld [vmem:[%s5 + $0x28] sm:$0xff]
  %v1839 = vld [vmem:[%s5 + $0x30] sm:$0xff]
  %v1840 = vld [vmem:[%s5 + $0x38] sm:$0xff]
  %v1841 = vld [vmem:[%s5 + $0x40] sm:$0xff]
  %v1842 = vld [vmem:[%s5 + $0x48] sm:$0xff]
  %v1843 = vld [vmem:[%s5 + $0x50] sm:$0xff]
  %v1844 = vld [vmem:[%s5 + $0x58] sm:$0xff]
  %1845 = vrot.lane.b32.xlu0 %v1757, 32
  %v1846 = vpop.permute.xlu0 %1845
  %1847 = vrot.lane.b32.xlu0 %v1765, 32
  %v1848 = vpop.permute.xlu0 %1847
  %1849 = vrot.lane.b32.xlu0 %v1764, 32
  %v1850 = vpop.permute.xlu0 %1849
  %1851 = vrot.lane.b32.xlu0 %v1766, 32
  %v1852 = vpop.permute.xlu0 %1851
  %1853 = vrot.lane.b32.xlu0 %v1774, 32
  %v1854 = vpop.permute.xlu0 %1853
  %1855 = vrot.lane.b32.xlu0 %v1782, 32
  %v1856 = vpop.permute.xlu0 %1855
  %1857 = vrot.lane.b32.xlu0 %v1781, 32
  %v1858 = vpop.permute.xlu0 %1857
  %1859 = vrot.lane.b32.xlu0 %v1783, 32
  %v1860 = vpop.permute.xlu0 %1859
  %1861 = vrot.lane.b32.xlu0 %v1791, 32
  %v1862 = vpop.permute.xlu0 %1861
  %1863 = vrot.lane.b32.xlu0 %v1799, 32
  %v1864 = vpop.permute.xlu0 %1863
  %1865 = vrot.lane.b32.xlu0 %v1798, 32
  %v1866 = vpop.permute.xlu0 %1865
  %1867 = vrot.lane.b32.xlu0 %v1800, 32
  %v1868 = vpop.permute.xlu0 %1867
  %1869 = vrot.lane.b32.xlu0 %v1808, 32
  %v1870 = vpop.permute.xlu0 %1869
  %1871 = vrot.lane.b32.xlu0 %v1816, 32
  %v1872 = vpop.permute.xlu0 %1871
  %1873 = vrot.lane.b32.xlu0 %v1815, 32
  %v1874 = vpop.permute.xlu0 %1873
  %1875 = vrot.lane.b32.xlu0 %v1817, 32
  %v1876 = vpop.permute.xlu0 %1875
  %1893 = vrot.lane.b32.xlu0 %v1765, 64
  %v1894 = vpop.permute.xlu0 %1893
  %1895 = vrot.lane.b32.xlu0 %v1764, 64
  %v1896 = vpop.permute.xlu0 %1895
  %1897 = vrot.lane.b32.xlu0 %v1766, 64
  %v1898 = vpop.permute.xlu0 %1897
  %1899 = vrot.lane.b32.xlu0 %v1774, 64
  %v1900 = vpop.permute.xlu0 %1899
  %1901 = vrot.lane.b32.xlu0 %v1782, 64
  %v1902 = vpop.permute.xlu0 %1901
  %1903 = vrot.lane.b32.xlu0 %v1781, 64
  %v1904 = vpop.permute.xlu0 %1903
  %1905 = vrot.lane.b32.xlu0 %v1783, 64
  %v1906 = vpop.permute.xlu0 %1905
  %1907 = vrot.lane.b32.xlu0 %v1791, 64
  %v1908 = vpop.permute.xlu0 %1907
  %1909 = vrot.lane.b32.xlu0 %v1799, 64
  %v1910 = vpop.permute.xlu0 %1909
  %1911 = vrot.lane.b32.xlu0 %v1798, 64
  %v1912 = vpop.permute.xlu0 %1911
  %1913 = vrot.lane.b32.xlu0 %v1800, 64
  %v1914 = vpop.permute.xlu0 %1913
  %1915 = vrot.lane.b32.xlu0 %v1808, 64
  %v1916 = vpop.permute.xlu0 %1915
  %1917 = vrot.lane.b32.xlu0 %v1816, 64
  %v1918 = vpop.permute.xlu0 %1917
  %1919 = vrot.lane.b32.xlu0 %v1815, 64
  %v1920 = vpop.permute.xlu0 %1919
  %1921 = vrot.lane.b32.xlu0 %v1817, 64
  %v1922 = vpop.permute.xlu0 %1921
  %1923 = vrot.lane.b32.xlu0 0.0, 64
  %v1924 = vpop.permute.xlu0 %1923
  %v1941 = vsel %vm160, 0.0, %v1846
  %v1942 = vsel %vm160, %v1757, %v1848
  %v1943 = vsel %vm160, %v1765, %v1850
  %v1944 = vsel %vm160, %v1764, %v1852
  %v1945 = vsel %vm160, %v1766, %v1854
  %v1946 = vsel %vm160, %v1774, %v1856
  %v1947 = vsel %vm160, %v1782, %v1858
  %v1948 = vsel %vm160, %v1781, %v1860
  %v1949 = vsel %vm160, %v1783, %v1862
  %v1950 = vsel %vm160, %v1791, %v1864
  %v1951 = vsel %vm160, %v1799, %v1866
  %v1952 = vsel %vm160, %v1798, %v1868
  %v1953 = vsel %vm160, %v1800, %v1870
  %v1954 = vsel %vm160, %v1808, %v1872
  %v1955 = vsel %vm160, %v1816, %v1874
  %v1956 = vsel %vm160, %v1815, %v1876
  %v1957 = vsel %vm710, %v1941, %v1894
  %v1958 = vsel %vm710, %v1942, %v1896
  %v1959 = vsel %vm710, %v1943, %v1898
  %v1960 = vsel %vm710, %v1944, %v1900
  %v1961 = vsel %vm710, %v1945, %v1902
  %v1962 = vsel %vm710, %v1946, %v1904
  %v1963 = vsel %vm710, %v1947, %v1906
  %v1964 = vsel %vm710, %v1948, %v1908
  %v1965 = vsel %vm710, %v1949, %v1910
  %v1966 = vsel %vm710, %v1950, %v1912
  %v1967 = vsel %vm710, %v1951, %v1914
  %v1968 = vsel %vm710, %v1952, %v1916
  %v1969 = vsel %vm710, %v1953, %v1918
  %v1970 = vsel %vm710, %v1954, %v1920
  %v1971 = vsel %vm710, %v1955, %v1922
  %v1972 = vsel %vm710, %v1956, %v1924
  %v1989 = vcombine.low %v1957, %v1958
  %v1990 = vcombine.low %v1959, %v1960
  %v1992 = vunpack.c.l.s4 1983009808
  %v1993 = vunpack.c.0.s8 %v1992
  %v1994 = vlaneseq
  %v1995 = vshrl.u32 %v1994, 7
  %v1996 = vsub.s32 %v1993, %v1995
  %v1997 = vrot.slane %v1989, %v1996
  %v1999 = vunpack.c.l.s4 1983009808
  %v2000 = vunpack.c.0.s8 %v1999
  %v2001 = vlaneseq
  %v2002 = vshrl.u32 %v2001, 7
  %v2003 = vsub.s32 %v2000, %v2002
  %v2004 = vrot.slane %v1990, %v2003
  %v2005 = vcombine.low %v1997, %v2004
  %v2006 = vcombine.low %v1961, %v1962
  %v2007 = vcombine.low %v1963, %v1964
  %v2009 = vunpack.c.l.s4 1983009808
  %v2010 = vunpack.c.0.s8 %v2009
  %v2011 = vlaneseq
  %v2012 = vshrl.u32 %v2011, 7
  %v2013 = vsub.s32 %v2010, %v2012
  %v2014 = vrot.slane %v2006, %v2013
  %v2016 = vunpack.c.l.s4 1983009808
  %v2017 = vunpack.c.0.s8 %v2016
  %v2018 = vlaneseq
  %v2019 = vshrl.u32 %v2018, 7
  %v2020 = vsub.s32 %v2017, %v2019
  %v2021 = vrot.slane %v2007, %v2020
  %v2022 = vcombine.low %v2014, %v2021
  %v2023 = vcombine.low %v1965, %v1966
  %v2024 = vcombine.low %v1967, %v1968
  %v2026 = vunpack.c.l.s4 1983009808
  %v2027 = vunpack.c.0.s8 %v2026
  %v2028 = vlaneseq
  %v2029 = vshrl.u32 %v2028, 7
  %v2030 = vsub.s32 %v2027, %v2029
  %v2031 = vrot.slane %v2023, %v2030
  %v2033 = vunpack.c.l.s4 1983009808
  %v2034 = vunpack.c.0.s8 %v2033
  %v2035 = vlaneseq
  %v2036 = vshrl.u32 %v2035, 7
  %v2037 = vsub.s32 %v2034, %v2036
  %v2038 = vrot.slane %v2024, %v2037
  %v2039 = vcombine.low %v2031, %v2038
  %v2040 = vcombine.low %v1969, %v1970
  %v2041 = vcombine.low %v1971, %v1972
  %v2043 = vunpack.c.l.s4 1983009808
  %v2044 = vunpack.c.0.s8 %v2043
  %v2045 = vlaneseq
  %v2046 = vshrl.u32 %v2045, 7
  %v2047 = vsub.s32 %v2044, %v2046
  %v2048 = vrot.slane %v2040, %v2047
  %v2050 = vunpack.c.l.s4 1983009808
  %v2051 = vunpack.c.0.s8 %v2050
  %v2052 = vlaneseq
  %v2053 = vshrl.u32 %v2052, 7
  %v2054 = vsub.s32 %v2051, %v2053
  %v2055 = vrot.slane %v2041, %v2054
  %v2056 = vcombine.low %v2048, %v2055
  %v2061 = vpack.c.bf16 %v2022, %v2005
  %v2062 = vpack.c.bf16 %v2056, %v2039
  %v2063 = vpack.c.bf16 %v1834, %v1833
  %v2064 = vpack.c.bf16 %v1836, %v1835
  %v2065 = vpack.c.bf16 %v1838, %v1837
  %v2066 = vpack.c.bf16 %v1840, %v1839
  %v2067 = vpack.c.bf16 %v1842, %v1841
  %v2068 = vpack.c.bf16 %v1844, %v1843
  %v2070 = vsel %vm744, %v2061, 0
  %v2073 = vsel %vm744, %v2062, 0
  %2075 = vmatprep.subr.bf16.mxu0 0
  %2076 = vmatpush1.bf16.msra.mxu0 0
  %2077 = vmatprep.subr.bf16.mxu0 0
  %2078 = vmatpush1.bf16.msra.mxu0 0
  %2079 = vmatprep.subr.bf16.mxu0 0
  %2080 = vmatpush1.bf16.msra.mxu0 %v2068
  %2081 = vmatprep.subr.bf16.mxu0 0
  %2082 = vmatpush1.bf16.msra.mxu0 %v2067
  %2083 = vmatprep.subr.bf16.mxu0 0
  %2084 = vmatpush1.bf16.msra.mxu0 %v2066
  %2085 = vmatprep.subr.bf16.mxu0 0
  %2086 = vmatpush1.bf16.msra.mxu0 %v2065
  %2087 = vmatprep.subr.bf16.mxu0 0
  %2088 = vmatpush1.bf16.msra.mxu0 %v2064
  %2089 = vmatprep.subr.bf16.mxu0 0
  %2090 = vmatpush1.bf16.msra.mxu0 %v2063
  %2091 = vmatprep.subr.bf16.mxu0 0
  %2092 = vmatpush2.bf16.msra.mxu0 0
  %2093 = vmatprep.subr.bf16.mxu0 0
  %2094 = vmatpush2.bf16.msra.mxu0 0
  %2095 = vmatprep.subr.bf16.mxu0 0
  %2096 = vmatpush2.bf16.msra.mxu0 0
  %2097 = vmatprep.subr.bf16.mxu0 0
  %2098 = vmatpush2.bf16.msra.mxu0 0
  %2099 = vmatprep.subr.bf16.mxu0 0
  %2100 = vmatpush2.bf16.msra.mxu0 0
  %2101 = vmatprep.subr.bf16.mxu0 0
  %2102 = vmatpush2.bf16.msra.mxu0 0
  %2103 = vmatprep.subr.bf16.mxu0 0
  %2104 = vmatpush2.bf16.msra.mxu0 0
  %2105 = vmatprep.subr.bf16.mxu0 0
  %2106 = vmatpush2.bf16.msra.mxu0 0
  %2107 = vmatprep.mubr.bf16.mxu0 0
  %2108 = vmatmul.mubr.bf16.gmra.mxu0 %v2070
  %v2109 = vpop.f32.mrf.mxu0
  %v2110 = vadd.f32 0.0, %v2109
  %v2111 = vpop.f32.mrf.mxu0
  %v2112 = vpop.f32.mrf.mxu0
  %v2113 = vadd.f32 0.0, %v2112
  %v2114 = vpop.f32.mrf.mxu0
  %2115 = vmatprep.mubr.bf16.mxu0 0
  %2116 = vmatmul.mubr.bf16.gmra.mxu0 %v2073
  %v2117 = vpop.f32.mrf.mxu0
  %v2118 = vadd.f32 0.0, %v2117
  %v2119 = vpop.f32.mrf.mxu0
  %v2120 = vpop.f32.mrf.mxu0
  %v2121 = vadd.f32 0.0, %v2120
  %v2122 = vpop.f32.mrf.mxu0
  %2123 = vdwg.mxu0
  %v2124 = vsel %vm240, %v2110, 0.0
  %v2125 = vsel %vm240, %v2113, 0.0
  %v2126 = vadd.f32 %v2124, %v2125
  %v2127 = vsel %vm240, %v2118, 0.0
  %v2128 = vadd.f32 %v2126, %v2127
  %v2129 = vsel %vm240, %v2121, 0.0
  %v2130 = vadd.f32 %v2128, %v2129
  %v2131 = vrot.slane %v2130, 4
  %v2132 = vadd.f32 %v2130, %v2131
  %v2133 = vrot.slane %v2132, 2
  %v2134 = vadd.f32 %v2132, %v2133
  %v2135 = vrot.slane %v2134, 1
  %v2136 = vadd.f32 %v2134, %v2135
  %v2137 = vmul.f32 %v2136, %v934
  %v2138 = vsub.f32 %v2110, %v2137
  %v2139 = vsub.f32 %v2113, %v2137
  %v2140 = vsub.f32 %v2118, %v2137
  %v2141 = vsub.f32 %v2121, %v2137
  %v2142 = vmul.f32 %v2138, %v2138
  %v2143 = vmul.f32 %v2139, %v2139
  %v2144 = vmul.f32 %v2140, %v2140
  %v2145 = vmul.f32 %v2141, %v2141
  %v2146 = vsel %vm240, %v2142, 0.0
  %v2147 = vsel %vm240, %v2143, 0.0
  %v2148 = vadd.f32 %v2146, %v2147
  %v2149 = vsel %vm240, %v2144, 0.0
  %v2150 = vadd.f32 %v2148, %v2149
  %v2151 = vsel %vm240, %v2145, 0.0
  %v2152 = vadd.f32 %v2150, %v2151
  %v2153 = vrot.slane %v2152, 4
  %v2154 = vadd.f32 %v2152, %v2153
  %v2155 = vrot.slane %v2154, 2
  %v2156 = vadd.f32 %v2154, %v2155
  %v2157 = vrot.slane %v2156, 1
  %v2158 = vadd.f32 %v2156, %v2157
  %v2159 = vmul.f32 %v2158, %v934
  %v2160 = vadd.f32 %v2159, 1e-05
  %v2161 = vrsqrt.pop %v2160
  %v2162 = vmul.f32 %v2138, %v2161
  %v2163 = vmul.f32 %v2139, %v2161
  %v2164 = vmul.f32 %v2140, %v2161
  %v2165 = vmul.f32 %v2141, %v2161
  %v2166 = vlaneseq
  %v2167 = vshrl.u32 %v2166, 7
  %v2168 = vsub.s32 5, %v2167
  %v2169 = vrot.slane %v38, %v2168
  %v2170 = vmul.f32 %v2162, %v2169
  %v2171 = vmul.f32 %v2163, %v2169
  %v2172 = vmul.f32 %v2164, %v2169
  %v2173 = vmul.f32 %v2165, %v2169
  %v2174 = vlaneseq
  %v2175 = vshrl.u32 %v2174, 7
  %v2176 = vsub.s32 6, %v2175
  %v2177 = vrot.slane %v38, %v2176
  %v2178 = vadd.f32 %v2170, %v2177
  %v2179 = vadd.f32 %v2171, %v2177
  %v2180 = vadd.f32 %v2172, %v2177
  %v2181 = vadd.f32 %v2173, %v2177
  %v2182 = vadd.f32 %v2178, %v236
  %v2183 = vadd.f32 %v2179, %v237
  %v2184 = vadd.f32 %v2180, %v238
  %v2185 = vadd.f32 %v2181, %v239
  %v2186 = vld [vmem:[%s6] sm:$0xff]
  %v2187 = vld [vmem:[%s6 + $0x8] sm:$0xff]
  %v2188 = vpack.c.bf16 %v2183, %v2182
  %v2189 = vpack.c.bf16 %v2185, %v2184
  %v2190 = vpack.c.bf16 %v2187, %v2186
  %v2191 = vlaneseq
  %v2192 = vshrl.u32 %v2191, 7
  %v2193 = vsub.s32 7, %v2192
  %v2194 = vrot.slane %v38, %v2193
  %v2196 = vsel %vm240, %v2188, 0
  %v2199 = vsel %vm240, %v2189, 0
  %2201 = vmatprep.subr.bf16.mxu0 0
  %2202 = vmatpush1.bf16.msra.mxu0 0
  %2203 = vmatprep.subr.bf16.mxu0 0
  %2204 = vmatpush1.bf16.msra.mxu0 0
  %2205 = vmatprep.subr.bf16.mxu0 0
  %2206 = vmatpush1.bf16.msra.mxu0 0
  %2207 = vmatprep.subr.bf16.mxu0 0
  %2208 = vmatpush1.bf16.msra.mxu0 0
  %2209 = vmatprep.subr.bf16.mxu0 0
  %2210 = vmatpush1.bf16.msra.mxu0 0
  %2211 = vmatprep.subr.bf16.mxu0 0
  %2212 = vmatpush1.bf16.msra.mxu0 0
  %2213 = vmatprep.subr.bf16.mxu0 0
  %2214 = vmatpush1.bf16.msra.mxu0 0
  %2215 = vmatprep.subr.bf16.mxu0 0
  %2216 = vmatpush1.bf16.msra.mxu0 %v2190
  %2217 = vmatprep.subr.bf16.mxu0 0
  %2218 = vmatpush2.bf16.msra.mxu0 0
  %2219 = vmatprep.subr.bf16.mxu0 0
  %2220 = vmatpush2.bf16.msra.mxu0 0
  %2221 = vmatprep.subr.bf16.mxu0 0
  %2222 = vmatpush2.bf16.msra.mxu0 0
  %2223 = vmatprep.subr.bf16.mxu0 0
  %2224 = vmatpush2.bf16.msra.mxu0 0
  %2225 = vmatprep.subr.bf16.mxu0 0
  %2226 = vmatpush2.bf16.msra.mxu0 0
  %2227 = vmatprep.subr.bf16.mxu0 0
  %2228 = vmatpush2.bf16.msra.mxu0 0
  %2229 = vmatprep.subr.bf16.mxu0 0
  %2230 = vmatpush2.bf16.msra.mxu0 0
  %2231 = vmatprep.subr.bf16.mxu0 0
  %2232 = vmatpush2.bf16.msra.mxu0 0
  %2233 = vmatprep.mubr.bf16.mxu0 0
  %2234 = vmatmul.mubr.bf16.gmra.mxu0 %v2196
  %v2235 = vpop.f32.mrf.mxu0
  %v2236 = vadd.f32 %v2194, %v2235
  %v2237 = vpop.f32.mrf.mxu0
  %v2238 = vpop.f32.mrf.mxu0
  %v2239 = vadd.f32 %v2194, %v2238
  %v2240 = vpop.f32.mrf.mxu0
  %2241 = vmatprep.mubr.bf16.mxu0 0
  %2242 = vmatmul.mubr.bf16.gmra.mxu0 %v2199
  %v2243 = vpop.f32.mrf.mxu0
  %v2244 = vadd.f32 %v2194, %v2243
  %v2245 = vpop.f32.mrf.mxu0
  %v2246 = vpop.f32.mrf.mxu0
  %v2247 = vadd.f32 %v2194, %v2246
  %v2248 = vpop.f32.mrf.mxu0
  %2249 = vdwg.mxu0
  %v2250 = vmax.f32 %v2236, 0.0
  %v2251 = vmax.f32 %v2239, 0.0
  %v2252 = vmax.f32 %v2244, 0.0
  %v2253 = vmax.f32 %v2247, 0.0
  %v2254 = vxor.u32 %v2236, 2147483648
  %v2255 = vxor.u32 %v2239, 2147483648
  %v2256 = vxor.u32 %v2244, 2147483648
  %v2257 = vxor.u32 %v2247, 2147483648
  %v2258 = vmul.f32 %v2254, 1.442695
  %v2259 = vpow.pop %v2258
  %v2260 = vmul.f32 %v2255, 1.442695
  %v2261 = vpow.pop %v2260
  %v2262 = vmul.f32 %v2256, 1.442695
  %v2263 = vpow.pop %v2262
  %v2264 = vmul.f32 %v2257, 1.442695
  %v2265 = vpow.pop %v2264
  %v2266 = vadd.f32 %v2259, 1.0
  %v2267 = vadd.f32 %v2261, 1.0
  %v2268 = vadd.f32 %v2263, 1.0
  %v2269 = vadd.f32 %v2265, 1.0
  %v2270 = vrcp.pop %v2266
  %v2271 = vmul.f32 1.0, %v2270
  %v2272 = vrcp.pop %v2267
  %v2273 = vmul.f32 1.0, %v2272
  %v2274 = vrcp.pop %v2268
  %v2275 = vmul.f32 1.0, %v2274
  %v2276 = vrcp.pop %v2269
  %v2277 = vmul.f32 1.0, %v2276
  %2282 = vrot.lane.b32.xlu0 %v2271, 112
  %v2283 = vpop.permute.xlu0 %2282
  %2284 = vrot.lane.b32.xlu0 %v2273, 112
  %v2285 = vpop.permute.xlu0 %2284
  %2286 = vrot.lane.b32.xlu0 %v2275, 112
  %v2287 = vpop.permute.xlu0 %2286
  %2288 = vrot.lane.b32.xlu0 %v2277, 112
  %v2289 = vpop.permute.xlu0 %2288
  %v2294 = vmul.f32 %v2250, %v2283
  %v2295 = vmul.f32 %v2251, %v2285
  %v2296 = vmul.f32 %v2252, %v2287
  %v2297 = vmul.f32 %v2253, %v2289
  %v2298 = vsub.f32 1.0, %v2271
  %v2299 = vsub.f32 1.0, %v2273
  %v2300 = vsub.f32 1.0, %v2275
  %v2301 = vsub.f32 1.0, %v2277
  %2306 = vrot.lane.b32.xlu0 %v2298, 112
  %v2307 = vpop.permute.xlu0 %2306
  %2308 = vrot.lane.b32.xlu0 %v2299, 112
  %v2309 = vpop.permute.xlu0 %2308
  %2310 = vrot.lane.b32.xlu0 %v2300, 112
  %v2311 = vpop.permute.xlu0 %2310
  %2312 = vrot.lane.b32.xlu0 %v2301, 112
  %v2313 = vpop.permute.xlu0 %2312
  %v2318 = vmul.f32 %v2182, %v2307
  %v2319 = vmul.f32 %v2183, %v2309
  %v2320 = vmul.f32 %v2184, %v2311
  %v2321 = vmul.f32 %v2185, %v2313
  %v2322 = vadd.f32 %v2294, %v2318
  %v2323 = vadd.f32 %v2295, %v2319
  %v2324 = vadd.f32 %v2296, %v2320
  %v2325 = vadd.f32 %v2297, %v2321
  %s2326 = scalar_lea.vmem %s6, 16
  %v2327 = vld [vmem:[%s2326] sm:$0xff]
  %v2328 = vld [vmem:[%s2326 + $0x8] sm:$0xff]
  %v2329 = vpack.c.bf16 %v2323, %v2322
  %v2330 = vpack.c.bf16 %v2325, %v2324
  %v2331 = vpack.c.bf16 %v2328, %v2327
  %v2332 = vlaneseq
  %v2333 = vshrl.u32 %v2332, 7
  %v2334 = vsub.s32 0, %v2333
  %v2335 = vrot.slane %v39, %v2334
  %v2337 = vsel %vm240, %v2329, 0
  %v2340 = vsel %vm240, %v2330, 0
  %2342 = vmatprep.subr.bf16.mxu0 0
  %2343 = vmatpush1.bf16.msra.mxu0 0
  %2344 = vmatprep.subr.bf16.mxu0 0
  %2345 = vmatpush1.bf16.msra.mxu0 0
  %2346 = vmatprep.subr.bf16.mxu0 0
  %2347 = vmatpush1.bf16.msra.mxu0 0
  %2348 = vmatprep.subr.bf16.mxu0 0
  %2349 = vmatpush1.bf16.msra.mxu0 0
  %2350 = vmatprep.subr.bf16.mxu0 0
  %2351 = vmatpush1.bf16.msra.mxu0 0
  %2352 = vmatprep.subr.bf16.mxu0 0
  %2353 = vmatpush1.bf16.msra.mxu0 0
  %2354 = vmatprep.subr.bf16.mxu0 0
  %2355 = vmatpush1.bf16.msra.mxu0 0
  %2356 = vmatprep.subr.bf16.mxu0 0
  %2357 = vmatpush1.bf16.msra.mxu0 %v2331
  %2358 = vmatprep.subr.bf16.mxu0 0
  %2359 = vmatpush2.bf16.msra.mxu0 0
  %2360 = vmatprep.subr.bf16.mxu0 0
  %2361 = vmatpush2.bf16.msra.mxu0 0
  %2362 = vmatprep.subr.bf16.mxu0 0
  %2363 = vmatpush2.bf16.msra.mxu0 0
  %2364 = vmatprep.subr.bf16.mxu0 0
  %2365 = vmatpush2.bf16.msra.mxu0 0
  %2366 = vmatprep.subr.bf16.mxu0 0
  %2367 = vmatpush2.bf16.msra.mxu0 0
  %2368 = vmatprep.subr.bf16.mxu0 0
  %2369 = vmatpush2.bf16.msra.mxu0 0
  %2370 = vmatprep.subr.bf16.mxu0 0
  %2371 = vmatpush2.bf16.msra.mxu0 0
  %2372 = vmatprep.subr.bf16.mxu0 0
  %2373 = vmatpush2.bf16.msra.mxu0 0
  %2374 = vmatprep.mubr.bf16.mxu0 0
  %2375 = vmatmul.mubr.bf16.gmra.mxu0 %v2337
  %v2376 = vpop.f32.mrf.mxu0
  %v2377 = vadd.f32 %v2335, %v2376
  %v2378 = vpop.f32.mrf.mxu0
  %v2379 = vpop.f32.mrf.mxu0
  %v2380 = vadd.f32 %v2335, %v2379
  %v2381 = vpop.f32.mrf.mxu0
  %2382 = vmatprep.mubr.bf16.mxu0 0
  %2383 = vmatmul.mubr.bf16.gmra.mxu0 %v2340
  %v2384 = vpop.f32.mrf.mxu0
  %v2385 = vadd.f32 %v2335, %v2384
  %v2386 = vpop.f32.mrf.mxu0
  %v2387 = vpop.f32.mrf.mxu0
  %v2388 = vadd.f32 %v2335, %v2387
  %v2389 = vpop.f32.mrf.mxu0
  %2390 = vdwg.mxu0
  %v2391 = vmax.f32 %v2377, 0.0
  %v2392 = vmax.f32 %v2380, 0.0
  %v2393 = vmax.f32 %v2385, 0.0
  %v2394 = vmax.f32 %v2388, 0.0
  %v2395 = vxor.u32 %v2377, 2147483648
  %v2396 = vxor.u32 %v2380, 2147483648
  %v2397 = vxor.u32 %v2385, 2147483648
  %v2398 = vxor.u32 %v2388, 2147483648
  %v2399 = vmul.f32 %v2395, 1.442695
  %v2400 = vpow.pop %v2399
  %v2401 = vmul.f32 %v2396, 1.442695
  %v2402 = vpow.pop %v2401
  %v2403 = vmul.f32 %v2397, 1.442695
  %v2404 = vpow.pop %v2403
  %v2405 = vmul.f32 %v2398, 1.442695
  %v2406 = vpow.pop %v2405
  %v2407 = vadd.f32 %v2400, 1.0
  %v2408 = vadd.f32 %v2402, 1.0
  %v2409 = vadd.f32 %v2404, 1.0
  %v2410 = vadd.f32 %v2406, 1.0
  %v2411 = vrcp.pop %v2407
  %v2412 = vmul.f32 1.0, %v2411
  %v2413 = vrcp.pop %v2408
  %v2414 = vmul.f32 1.0, %v2413
  %v2415 = vrcp.pop %v2409
  %v2416 = vmul.f32 1.0, %v2415
  %v2417 = vrcp.pop %v2410
  %v2418 = vmul.f32 1.0, %v2417
  %2423 = vrot.lane.b32.xlu0 %v2412, 112
  %v2424 = vpop.permute.xlu0 %2423
  %2425 = vrot.lane.b32.xlu0 %v2414, 112
  %v2426 = vpop.permute.xlu0 %2425
  %2427 = vrot.lane.b32.xlu0 %v2416, 112
  %v2428 = vpop.permute.xlu0 %2427
  %2429 = vrot.lane.b32.xlu0 %v2418, 112
  %v2430 = vpop.permute.xlu0 %2429
  %v2435 = vmul.f32 %v2391, %v2424
  %v2436 = vmul.f32 %v2392, %v2426
  %v2437 = vmul.f32 %v2393, %v2428
  %v2438 = vmul.f32 %v2394, %v2430
  %v2439 = vsub.f32 1.0, %v2412
  %v2440 = vsub.f32 1.0, %v2414
  %v2441 = vsub.f32 1.0, %v2416
  %v2442 = vsub.f32 1.0, %v2418
  %2447 = vrot.lane.b32.xlu0 %v2439, 112
  %v2448 = vpop.permute.xlu0 %2447
  %2449 = vrot.lane.b32.xlu0 %v2440, 112
  %v2450 = vpop.permute.xlu0 %2449
  %2451 = vrot.lane.b32.xlu0 %v2441, 112
  %v2452 = vpop.permute.xlu0 %2451
  %2453 = vrot.lane.b32.xlu0 %v2442, 112
  %v2454 = vpop.permute.xlu0 %2453
  %v2459 = vmul.f32 %v2322, %v2448
  %v2460 = vmul.f32 %v2323, %v2450
  %v2461 = vmul.f32 %v2324, %v2452
  %v2462 = vmul.f32 %v2325, %v2454
  %v2463 = vadd.f32 %v2435, %v2459
  %v2464 = vadd.f32 %v2436, %v2460
  %v2465 = vadd.f32 %v2437, %v2461
  %v2466 = vadd.f32 %v2438, %v2462
  %s2467 = scalar_lea.vmem %s6, 32
  %v2468 = vld [vmem:[%s2467] sm:$0xff]
  %v2469 = vld [vmem:[%s2467 + $0x8] sm:$0xff]
  %v2470 = vpack.c.bf16 %v2464, %v2463
  %v2471 = vpack.c.bf16 %v2466, %v2465
  %v2472 = vpack.c.bf16 %v2469, %v2468
  %v2473 = vlaneseq
  %v2474 = vshrl.u32 %v2473, 7
  %v2475 = vsub.s32 1, %v2474
  %v2476 = vrot.slane %v39, %v2475
  %v2478 = vsel %vm240, %v2470, 0
  %v2481 = vsel %vm240, %v2471, 0
  %2483 = vmatprep.subr.bf16.mxu0 0
  %2484 = vmatpush1.bf16.msra.mxu0 0
  %2485 = vmatprep.subr.bf16.mxu0 0
  %2486 = vmatpush1.bf16.msra.mxu0 0
  %2487 = vmatprep.subr.bf16.mxu0 0
  %2488 = vmatpush1.bf16.msra.mxu0 0
  %2489 = vmatprep.subr.bf16.mxu0 0
  %2490 = vmatpush1.bf16.msra.mxu0 0
  %2491 = vmatprep.subr.bf16.mxu0 0
  %2492 = vmatpush1.bf16.msra.mxu0 0
  %2493 = vmatprep.subr.bf16.mxu0 0
  %2494 = vmatpush1.bf16.msra.mxu0 0
  %2495 = vmatprep.subr.bf16.mxu0 0
  %2496 = vmatpush1.bf16.msra.mxu0 0
  %2497 = vmatprep.subr.bf16.mxu0 0
  %2498 = vmatpush1.bf16.msra.mxu0 %v2472
  %2499 = vmatprep.subr.bf16.mxu0 0
  %2500 = vmatpush2.bf16.msra.mxu0 0
  %2501 = vmatprep.subr.bf16.mxu0 0
  %2502 = vmatpush2.bf16.msra.mxu0 0
  %2503 = vmatprep.subr.bf16.mxu0 0
  %2504 = vmatpush2.bf16.msra.mxu0 0
  %2505 = vmatprep.subr.bf16.mxu0 0
  %2506 = vmatpush2.bf16.msra.mxu0 0
  %2507 = vmatprep.subr.bf16.mxu0 0
  %2508 = vmatpush2.bf16.msra.mxu0 0
  %2509 = vmatprep.subr.bf16.mxu0 0
  %2510 = vmatpush2.bf16.msra.mxu0 0
  %2511 = vmatprep.subr.bf16.mxu0 0
  %2512 = vmatpush2.bf16.msra.mxu0 0
  %2513 = vmatprep.subr.bf16.mxu0 0
  %2514 = vmatpush2.bf16.msra.mxu0 0
  %2515 = vmatprep.mubr.bf16.mxu0 0
  %2516 = vmatmul.mubr.bf16.gmra.mxu0 %v2478
  %v2517 = vpop.f32.mrf.mxu0
  %v2518 = vadd.f32 %v2476, %v2517
  %v2519 = vpop.f32.mrf.mxu0
  %v2520 = vpop.f32.mrf.mxu0
  %v2521 = vadd.f32 %v2476, %v2520
  %v2522 = vpop.f32.mrf.mxu0
  %2523 = vmatprep.mubr.bf16.mxu0 0
  %2524 = vmatmul.mubr.bf16.gmra.mxu0 %v2481
  %v2525 = vpop.f32.mrf.mxu0
  %v2526 = vadd.f32 %v2476, %v2525
  %v2527 = vpop.f32.mrf.mxu0
  %v2528 = vpop.f32.mrf.mxu0
  %v2529 = vadd.f32 %v2476, %v2528
  %v2530 = vpop.f32.mrf.mxu0
  %2531 = vdwg.mxu0
  %v2532 = vmax.f32 %v2518, 0.0
  %v2533 = vmax.f32 %v2521, 0.0
  %v2534 = vmax.f32 %v2526, 0.0
  %v2535 = vmax.f32 %v2529, 0.0
  %v2536 = vxor.u32 %v2518, 2147483648
  %v2537 = vxor.u32 %v2521, 2147483648
  %v2538 = vxor.u32 %v2526, 2147483648
  %v2539 = vxor.u32 %v2529, 2147483648
  %v2540 = vmul.f32 %v2536, 1.442695
  %v2541 = vpow.pop %v2540
  %v2542 = vmul.f32 %v2537, 1.442695
  %v2543 = vpow.pop %v2542
  %v2544 = vmul.f32 %v2538, 1.442695
  %v2545 = vpow.pop %v2544
  %v2546 = vmul.f32 %v2539, 1.442695
  %v2547 = vpow.pop %v2546
  %v2548 = vadd.f32 %v2541, 1.0
  %v2549 = vadd.f32 %v2543, 1.0
  %v2550 = vadd.f32 %v2545, 1.0
  %v2551 = vadd.f32 %v2547, 1.0
  %v2552 = vrcp.pop %v2548
  %v2553 = vmul.f32 1.0, %v2552
  %v2554 = vrcp.pop %v2549
  %v2555 = vmul.f32 1.0, %v2554
  %v2556 = vrcp.pop %v2550
  %v2557 = vmul.f32 1.0, %v2556
  %v2558 = vrcp.pop %v2551
  %v2559 = vmul.f32 1.0, %v2558
  %2564 = vrot.lane.b32.xlu0 %v2553, 112
  %v2565 = vpop.permute.xlu0 %2564
  %2566 = vrot.lane.b32.xlu0 %v2555, 112
  %v2567 = vpop.permute.xlu0 %2566
  %2568 = vrot.lane.b32.xlu0 %v2557, 112
  %v2569 = vpop.permute.xlu0 %2568
  %2570 = vrot.lane.b32.xlu0 %v2559, 112
  %v2571 = vpop.permute.xlu0 %2570
  %v2576 = vmul.f32 %v2532, %v2565
  %v2577 = vmul.f32 %v2533, %v2567
  %v2578 = vmul.f32 %v2534, %v2569
  %v2579 = vmul.f32 %v2535, %v2571
  %v2580 = vsub.f32 1.0, %v2553
  %v2581 = vsub.f32 1.0, %v2555
  %v2582 = vsub.f32 1.0, %v2557
  %v2583 = vsub.f32 1.0, %v2559
  %2588 = vrot.lane.b32.xlu0 %v2580, 112
  %v2589 = vpop.permute.xlu0 %2588
  %2590 = vrot.lane.b32.xlu0 %v2581, 112
  %v2591 = vpop.permute.xlu0 %2590
  %2592 = vrot.lane.b32.xlu0 %v2582, 112
  %v2593 = vpop.permute.xlu0 %2592
  %2594 = vrot.lane.b32.xlu0 %v2583, 112
  %v2595 = vpop.permute.xlu0 %2594
  %v2600 = vmul.f32 %v2463, %v2589
  %v2601 = vmul.f32 %v2464, %v2591
  %v2602 = vmul.f32 %v2465, %v2593
  %v2603 = vmul.f32 %v2466, %v2595
  %v2604 = vadd.f32 %v2576, %v2600
  %v2605 = vadd.f32 %v2577, %v2601
  %v2606 = vadd.f32 %v2578, %v2602
  %v2607 = vadd.f32 %v2579, %v2603
  %s2608 = scalar_lea.vmem %s6, 48
  %v2609 = vld [vmem:[%s2608] sm:$0xff]
  %v2610 = vld [vmem:[%s2608 + $0x8] sm:$0xff]
  %v2611 = vpack.c.bf16 %v2605, %v2604
  %v2612 = vpack.c.bf16 %v2607, %v2606
  %v2613 = vpack.c.bf16 %v2610, %v2609
  %v2614 = vlaneseq
  %v2615 = vshrl.u32 %v2614, 7
  %v2616 = vsub.s32 2, %v2615
  %v2617 = vrot.slane %v39, %v2616
  %v2619 = vsel %vm240, %v2611, 0
  %v2622 = vsel %vm240, %v2612, 0
  %2624 = vmatprep.subr.bf16.mxu0 0
  %2625 = vmatpush1.bf16.msra.mxu0 0
  %2626 = vmatprep.subr.bf16.mxu0 0
  %2627 = vmatpush1.bf16.msra.mxu0 0
  %2628 = vmatprep.subr.bf16.mxu0 0
  %2629 = vmatpush1.bf16.msra.mxu0 0
  %2630 = vmatprep.subr.bf16.mxu0 0
  %2631 = vmatpush1.bf16.msra.mxu0 0
  %2632 = vmatprep.subr.bf16.mxu0 0
  %2633 = vmatpush1.bf16.msra.mxu0 0
  %2634 = vmatprep.subr.bf16.mxu0 0
  %2635 = vmatpush1.bf16.msra.mxu0 0
  %2636 = vmatprep.subr.bf16.mxu0 0
  %2637 = vmatpush1.bf16.msra.mxu0 0
  %2638 = vmatprep.subr.bf16.mxu0 0
  %2639 = vmatpush1.bf16.msra.mxu0 %v2613
  %2640 = vmatprep.subr.bf16.mxu0 0
  %2641 = vmatpush2.bf16.msra.mxu0 0
  %2642 = vmatprep.subr.bf16.mxu0 0
  %2643 = vmatpush2.bf16.msra.mxu0 0
  %2644 = vmatprep.subr.bf16.mxu0 0
  %2645 = vmatpush2.bf16.msra.mxu0 0
  %2646 = vmatprep.subr.bf16.mxu0 0
  %2647 = vmatpush2.bf16.msra.mxu0 0
  %2648 = vmatprep.subr.bf16.mxu0 0
  %2649 = vmatpush2.bf16.msra.mxu0 0
  %2650 = vmatprep.subr.bf16.mxu0 0
  %2651 = vmatpush2.bf16.msra.mxu0 0
  %2652 = vmatprep.subr.bf16.mxu0 0
  %2653 = vmatpush2.bf16.msra.mxu0 0
  %2654 = vmatprep.subr.bf16.mxu0 0
  %2655 = vmatpush2.bf16.msra.mxu0 0
  %2656 = vmatprep.mubr.bf16.mxu0 0
  %2657 = vmatmul.mubr.bf16.gmra.mxu0 %v2619
  %v2658 = vpop.f32.mrf.mxu0
  %v2659 = vadd.f32 %v2617, %v2658
  %v2660 = vpop.f32.mrf.mxu0
  %v2661 = vpop.f32.mrf.mxu0
  %v2662 = vadd.f32 %v2617, %v2661
  %v2663 = vpop.f32.mrf.mxu0
  %2664 = vmatprep.mubr.bf16.mxu0 0
  %2665 = vmatmul.mubr.bf16.gmra.mxu0 %v2622
  %v2666 = vpop.f32.mrf.mxu0
  %v2667 = vadd.f32 %v2617, %v2666
  %v2668 = vpop.f32.mrf.mxu0
  %v2669 = vpop.f32.mrf.mxu0
  %v2670 = vadd.f32 %v2617, %v2669
  %v2671 = vpop.f32.mrf.mxu0
  %2672 = vdwg.mxu0
  %v2673 = vmax.f32 %v2659, 0.0
  %v2674 = vmax.f32 %v2662, 0.0
  %v2675 = vmax.f32 %v2667, 0.0
  %v2676 = vmax.f32 %v2670, 0.0
  %v2677 = vxor.u32 %v2659, 2147483648
  %v2678 = vxor.u32 %v2662, 2147483648
  %v2679 = vxor.u32 %v2667, 2147483648
  %v2680 = vxor.u32 %v2670, 2147483648
  %v2681 = vmul.f32 %v2677, 1.442695
  %v2682 = vpow.pop %v2681
  %v2683 = vmul.f32 %v2678, 1.442695
  %v2684 = vpow.pop %v2683
  %v2685 = vmul.f32 %v2679, 1.442695
  %v2686 = vpow.pop %v2685
  %v2687 = vmul.f32 %v2680, 1.442695
  %v2688 = vpow.pop %v2687
  %v2689 = vadd.f32 %v2682, 1.0
  %v2690 = vadd.f32 %v2684, 1.0
  %v2691 = vadd.f32 %v2686, 1.0
  %v2692 = vadd.f32 %v2688, 1.0
  %v2693 = vrcp.pop %v2689
  %v2694 = vmul.f32 1.0, %v2693
  %v2695 = vrcp.pop %v2690
  %v2696 = vmul.f32 1.0, %v2695
  %v2697 = vrcp.pop %v2691
  %v2698 = vmul.f32 1.0, %v2697
  %v2699 = vrcp.pop %v2692
  %v2700 = vmul.f32 1.0, %v2699
  %2705 = vrot.lane.b32.xlu0 %v2694, 112
  %v2706 = vpop.permute.xlu0 %2705
  %2707 = vrot.lane.b32.xlu0 %v2696, 112
  %v2708 = vpop.permute.xlu0 %2707
  %2709 = vrot.lane.b32.xlu0 %v2698, 112
  %v2710 = vpop.permute.xlu0 %2709
  %2711 = vrot.lane.b32.xlu0 %v2700, 112
  %v2712 = vpop.permute.xlu0 %2711
  %v2717 = vmul.f32 %v2673, %v2706
  %v2718 = vmul.f32 %v2674, %v2708
  %v2719 = vmul.f32 %v2675, %v2710
  %v2720 = vmul.f32 %v2676, %v2712
  %v2721 = vsub.f32 1.0, %v2694
  %v2722 = vsub.f32 1.0, %v2696
  %v2723 = vsub.f32 1.0, %v2698
  %v2724 = vsub.f32 1.0, %v2700
  %2729 = vrot.lane.b32.xlu0 %v2721, 112
  %v2730 = vpop.permute.xlu0 %2729
  %2731 = vrot.lane.b32.xlu0 %v2722, 112
  %v2732 = vpop.permute.xlu0 %2731
  %2733 = vrot.lane.b32.xlu0 %v2723, 112
  %v2734 = vpop.permute.xlu0 %2733
  %2735 = vrot.lane.b32.xlu0 %v2724, 112
  %v2736 = vpop.permute.xlu0 %2735
  %v2741 = vmul.f32 %v2604, %v2730
  %v2742 = vmul.f32 %v2605, %v2732
  %v2743 = vmul.f32 %v2606, %v2734
  %v2744 = vmul.f32 %v2607, %v2736
  %v2745 = vadd.f32 %v2717, %v2741
  %v2746 = vadd.f32 %v2718, %v2742
  %v2747 = vadd.f32 %v2719, %v2743
  %v2748 = vadd.f32 %v2720, %v2744
  %v2749 = vld [vmem:[%s7] sm:$0xff]
  %v2750 = vld [vmem:[%s7 + $0x8] sm:$0xff]
  %v2751 = vpack.c.bf16 %v2746, %v2745
  %v2752 = vpack.c.bf16 %v2748, %v2747
  %v2753 = vpack.c.bf16 %v2750, %v2749
  %v2754 = vlaneseq
  %v2755 = vshrl.u32 %v2754, 7
  %v2756 = vsub.s32 3, %v2755
  %v2757 = vrot.slane %v39, %v2756
  %v2759 = vsel %vm240, %v2751, 0
  %v2762 = vsel %vm240, %v2752, 0
  %2764 = vmatprep.subr.bf16.mxu0 0
  %2765 = vmatpush1.bf16.msra.mxu0 0
  %2766 = vmatprep.subr.bf16.mxu0 0
  %2767 = vmatpush1.bf16.msra.mxu0 0
  %2768 = vmatprep.subr.bf16.mxu0 0
  %2769 = vmatpush1.bf16.msra.mxu0 0
  %2770 = vmatprep.subr.bf16.mxu0 0
  %2771 = vmatpush1.bf16.msra.mxu0 0
  %2772 = vmatprep.subr.bf16.mxu0 0
  %2773 = vmatpush1.bf16.msra.mxu0 0
  %2774 = vmatprep.subr.bf16.mxu0 0
  %2775 = vmatpush1.bf16.msra.mxu0 0
  %2776 = vmatprep.subr.bf16.mxu0 0
  %2777 = vmatpush1.bf16.msra.mxu0 0
  %2778 = vmatprep.subr.bf16.mxu0 0
  %2779 = vmatpush1.bf16.msra.mxu0 %v2753
  %2780 = vmatprep.subr.bf16.mxu0 0
  %2781 = vmatpush2.bf16.msra.mxu0 0
  %2782 = vmatprep.subr.bf16.mxu0 0
  %2783 = vmatpush2.bf16.msra.mxu0 0
  %2784 = vmatprep.subr.bf16.mxu0 0
  %2785 = vmatpush2.bf16.msra.mxu0 0
  %2786 = vmatprep.subr.bf16.mxu0 0
  %2787 = vmatpush2.bf16.msra.mxu0 0
  %2788 = vmatprep.subr.bf16.mxu0 0
  %2789 = vmatpush2.bf16.msra.mxu0 0
  %2790 = vmatprep.subr.bf16.mxu0 0
  %2791 = vmatpush2.bf16.msra.mxu0 0
  %2792 = vmatprep.subr.bf16.mxu0 0
  %2793 = vmatpush2.bf16.msra.mxu0 0
  %2794 = vmatprep.subr.bf16.mxu0 0
  %2795 = vmatpush2.bf16.msra.mxu0 0
  %2796 = vmatprep.mubr.bf16.mxu0 0
  %2797 = vmatmul.mubr.bf16.gmra.mxu0 %v2759
  %v2798 = vpop.f32.mrf.mxu0
  %v2799 = vadd.f32 %v2757, %v2798
  %v2800 = vpop.f32.mrf.mxu0
  %v2801 = vpop.f32.mrf.mxu0
  %v2802 = vadd.f32 %v2757, %v2801
  %v2803 = vpop.f32.mrf.mxu0
  %2804 = vmatprep.mubr.bf16.mxu0 0
  %2805 = vmatmul.mubr.bf16.gmra.mxu0 %v2762
  %v2806 = vpop.f32.mrf.mxu0
  %v2807 = vadd.f32 %v2757, %v2806
  %v2808 = vpop.f32.mrf.mxu0
  %v2809 = vpop.f32.mrf.mxu0
  %v2810 = vadd.f32 %v2757, %v2809
  %v2811 = vpop.f32.mrf.mxu0
  %2812 = vdwg.mxu0
  %v2817 = vcombine.high %v2799, %v2799
  %v2819 = vunpack.c.l.s4 1983009808
  %v2820 = vunpack.c.0.s8 %v2819
  %v2821 = vlaneseq
  %v2822 = vshrl.u32 %v2821, 7
  %v2823 = vsub.s32 %v2820, %v2822
  %v2824 = vrot.slane %v2799, %v2823
  %v2826 = vunpack.c.l.s4 1983009808
  %v2827 = vunpack.c.0.s8 %v2826
  %v2828 = vlaneseq
  %v2829 = vshrl.u32 %v2828, 7
  %v2830 = vsub.s32 %v2827, %v2829
  %v2831 = vrot.slane %v2817, %v2830
  %v2832 = vcombine.high %v2824, %v2824
  %v2833 = vcombine.high %v2831, %v2831
  %v2834 = vcombine.high %v2802, %v2802
  %v2836 = vunpack.c.l.s4 1983009808
  %v2837 = vunpack.c.0.s8 %v2836
  %v2838 = vlaneseq
  %v2839 = vshrl.u32 %v2838, 7
  %v2840 = vsub.s32 %v2837, %v2839
  %v2841 = vrot.slane %v2802, %v2840
  %v2843 = vunpack.c.l.s4 1983009808
  %v2844 = vunpack.c.0.s8 %v2843
  %v2845 = vlaneseq
  %v2846 = vshrl.u32 %v2845, 7
  %v2847 = vsub.s32 %v2844, %v2846
  %v2848 = vrot.slane %v2834, %v2847
  %v2849 = vcombine.high %v2841, %v2841
  %v2850 = vcombine.high %v2848, %v2848
  %v2851 = vcombine.high %v2807, %v2807
  %v2853 = vunpack.c.l.s4 1983009808
  %v2854 = vunpack.c.0.s8 %v2853
  %v2855 = vlaneseq
  %v2856 = vshrl.u32 %v2855, 7
  %v2857 = vsub.s32 %v2854, %v2856
  %v2858 = vrot.slane %v2807, %v2857
  %v2860 = vunpack.c.l.s4 1983009808
  %v2861 = vunpack.c.0.s8 %v2860
  %v2862 = vlaneseq
  %v2863 = vshrl.u32 %v2862, 7
  %v2864 = vsub.s32 %v2861, %v2863
  %v2865 = vrot.slane %v2851, %v2864
  %v2866 = vcombine.high %v2858, %v2858
  %v2867 = vcombine.high %v2865, %v2865
  %v2868 = vcombine.high %v2810, %v2810
  %v2870 = vunpack.c.l.s4 1983009808
  %v2871 = vunpack.c.0.s8 %v2870
  %v2872 = vlaneseq
  %v2873 = vshrl.u32 %v2872, 7
  %v2874 = vsub.s32 %v2871, %v2873
  %v2875 = vrot.slane %v2810, %v2874
  %v2877 = vunpack.c.l.s4 1983009808
  %v2878 = vunpack.c.0.s8 %v2877
  %v2879 = vlaneseq
  %v2880 = vshrl.u32 %v2879, 7
  %v2881 = vsub.s32 %v2878, %v2880
  %v2882 = vrot.slane %v2868, %v2881
  %v2883 = vcombine.high %v2875, %v2875
  %v2884 = vcombine.high %v2882, %v2882
  %vm2901 = vcmask 779264
  %2902 = vst.msk [vmem:[#allocation2] sm:$0x3] %vm2901, %v2824
  %2903 = vst.msk [vmem:[#allocation2 + $0x2] sm:$0x3] %vm2901, %v2832
  %2904 = vst.msk [vmem:[#allocation2 + $0x4] sm:$0x3] %vm2901, %v2831
  %2905 = vst.msk [vmem:[#allocation2 + $0x6] sm:$0x3] %vm2901, %v2833
  %2906 = vst.msk [vmem:[#allocation2 + $0x8] sm:$0x3] %vm2901, %v2841
  %2907 = vst.msk [vmem:[#allocation2 + $0xa] sm:$0x3] %vm2901, %v2849
  %2908 = vst.msk [vmem:[#allocation2 + $0xc] sm:$0x3] %vm2901, %v2848
  %2909 = vst.msk [vmem:[#allocation2 + $0xe] sm:$0x3] %vm2901, %v2850
  %2910 = vst.msk [vmem:[#allocation2 + $0x10] sm:$0x3] %vm2901, %v2858
  %2911 = vst.msk [vmem:[#allocation2 + $0x12] sm:$0x3] %vm2901, %v2866
  %2912 = vst.msk [vmem:[#allocation2 + $0x14] sm:$0x3] %vm2901, %v2865
  %2913 = vst.msk [vmem:[#allocation2 + $0x16] sm:$0x3] %vm2901, %v2867
  %2914 = vst.msk [vmem:[#allocation2 + $0x18] sm:$0x3] %vm2901, %v2875
  %2915 = vst.msk [vmem:[#allocation2 + $0x1a] sm:$0x3] %vm2901, %v2883
  %2916 = vst.msk [vmem:[#allocation2 + $0x1c] sm:$0x3] %vm2901, %v2882
  %2917 = vst.msk [vmem:[#allocation2 + $0x1e] sm:$0x3] %vm2901, %v2884
  %v2918 = vld [vmem:[%s8] sm:$0xff]
  %v2919 = vld [vmem:[%s8 + $0x8] sm:$0xff]
  %s2920 = scalar_lea.vmem %s8, 16
  %v2921 = vld [vmem:[%s2920] sm:$0xff]
  %v2922 = vld [vmem:[%s2920 + $0x8] sm:$0xff]
  loop: start=0, step=1, limit=16
  $region42: #{fastspeech_forward.5} parent=0 // loop_pre_header
    _
  $region43: #{fastspeech_forward.5} parent=0 // loop_header
    %s2924 = sphi 0, %s2928
    %p2925 = scmp.ge.s32.totalorder %s2924, 16
    %v2929 = vphi 0.0, %v3088
    %v2930 = vphi 0.0, %v3096
  $region44: #{fastspeech_forward.5} parent=0 // loop_header_branch
    %2927 = sbr.rel (%p2925) target = $region48
  $region45: #{fastspeech_forward.5} parent=0 // loop_body
    %s2931 = smul.u32 %s2924, 2
    %s2932 = scalar_lea.vmem [#allocation2], %s2931
    %v2933 = vld [vmem:[%s2932] sm:$0x3]
    %s2934 = ssub.s32 15, %s2924
    %s2935 = smul.u32 %s2934, 2
    %s2936 = scalar_lea.vmem [#allocation2], %s2935
    %v2937 = vld [vmem:[%s2936] sm:$0x3]
    %v2938 = vpack.c.bf16 %v2929, %v2929
    %v2939 = vpack.c.bf16 %v2919, %v2918
    %v2940 = vlaneseq
    %v2941 = vshrl.u32 %v2940, 7
    %v2942 = vsub.s32 4, %v2941
    %v2943 = vrot.slane %v39, %v2942
    %2945 = vrot.lane.b32.xlu0 %v2938, 112
    %v2946 = vpop.permute.xlu0 %2945
    %v2948 = vsel %vm240, %v2946, 0
    %2950 = vmatprep.subr.bf16.mxu0 0
    %2951 = vmatpush1.bf16.msra.mxu0 0
    %2952 = vmatprep.subr.bf16.mxu0 0
    %2953 = vmatpush1.bf16.msra.mxu0 0
    %2954 = vmatprep.subr.bf16.mxu0 0
    %2955 = vmatpush1.bf16.msra.mxu0 0
    %2956 = vmatprep.subr.bf16.mxu0 0
    %2957 = vmatpush1.bf16.msra.mxu0 0
    %2958 = vmatprep.subr.bf16.mxu0 0
    %2959 = vmatpush1.bf16.msra.mxu0 0
    %2960 = vmatprep.subr.bf16.mxu0 0
    %2961 = vmatpush1.bf16.msra.mxu0 0
    %2962 = vmatprep.subr.bf16.mxu0 0
    %2963 = vmatpush1.bf16.msra.mxu0 0
    %2964 = vmatprep.subr.bf16.mxu0 0
    %2965 = vmatpush1.bf16.msra.mxu0 %v2939
    %2966 = vmatprep.subr.bf16.mxu0 0
    %2967 = vmatpush2.bf16.msra.mxu0 0
    %2968 = vmatprep.subr.bf16.mxu0 0
    %2969 = vmatpush2.bf16.msra.mxu0 0
    %2970 = vmatprep.subr.bf16.mxu0 0
    %2971 = vmatpush2.bf16.msra.mxu0 0
    %2972 = vmatprep.subr.bf16.mxu0 0
    %2973 = vmatpush2.bf16.msra.mxu0 0
    %2974 = vmatprep.subr.bf16.mxu0 0
    %2975 = vmatpush2.bf16.msra.mxu0 0
    %2976 = vmatprep.subr.bf16.mxu0 0
    %2977 = vmatpush2.bf16.msra.mxu0 0
    %2978 = vmatprep.subr.bf16.mxu0 0
    %2979 = vmatpush2.bf16.msra.mxu0 0
    %2980 = vmatprep.subr.bf16.mxu0 0
    %2981 = vmatpush2.bf16.msra.mxu0 0
    %2982 = vmatprep.mubr.bf16.mxu0 0
    %2983 = vmatmul.mubr.bf16.gmra.mxu0 %v2948
    %v2984 = vpop.f32.mrf.mxu0
    %v2985 = vadd.f32 %v2943, %v2984
    %v2986 = vpop.f32.mrf.mxu0
    %v2987 = vpop.f32.mrf.mxu0
    %v2988 = vpop.f32.mrf.mxu0
    %2989 = vdwg.mxu0
    %v2990 = vpack.c.bf16 %v2930, %v2930
    %v2991 = vpack.c.bf16 %v2922, %v2921
    %2993 = vrot.lane.b32.xlu0 %v2990, 64
    %v2994 = vpop.permute.xlu0 %2993
    %2996 = vrot.lane.b32.xlu0 %v2943, 80
    %v2997 = vpop.permute.xlu0 %2996
    %v3000 = vsel %vm240, %v2994, 0
    %3002 = vmatprep.subr.bf16.mxu0 0
    %3003 = vmatpush1.bf16.msra.mxu0 0
    %3004 = vmatprep.subr.bf16.mxu0 0
    %3005 = vmatpush1.bf16.msra.mxu0 0
    %3006 = vmatprep.subr.bf16.mxu0 0
    %3007 = vmatpush1.bf16.msra.mxu0 0
    %3008 = vmatprep.subr.bf16.mxu0 0
    %3009 = vmatpush1.bf16.msra.mxu0 0
    %3010 = vmatprep.subr.bf16.mxu0 0
    %3011 = vmatpush1.bf16.msra.mxu0 0
    %3012 = vmatprep.subr.bf16.mxu0 0
    %3013 = vmatpush1.bf16.msra.mxu0 0
    %3014 = vmatprep.subr.bf16.mxu0 0
    %3015 = vmatpush1.bf16.msra.mxu0 0
    %3016 = vmatprep.subr.bf16.mxu0 0
    %3017 = vmatpush1.bf16.msra.mxu0 %v2991
    %3018 = vmatprep.subr.bf16.mxu0 0
    %3019 = vmatpush2.bf16.msra.mxu0 0
    %3020 = vmatprep.subr.bf16.mxu0 0
    %3021 = vmatpush2.bf16.msra.mxu0 0
    %3022 = vmatprep.subr.bf16.mxu0 0
    %3023 = vmatpush2.bf16.msra.mxu0 0
    %3024 = vmatprep.subr.bf16.mxu0 0
    %3025 = vmatpush2.bf16.msra.mxu0 0
    %3026 = vmatprep.subr.bf16.mxu0 0
    %3027 = vmatpush2.bf16.msra.mxu0 0
    %3028 = vmatprep.subr.bf16.mxu0 0
    %3029 = vmatpush2.bf16.msra.mxu0 0
    %3030 = vmatprep.subr.bf16.mxu0 0
    %3031 = vmatpush2.bf16.msra.mxu0 0
    %3032 = vmatprep.subr.bf16.mxu0 0
    %3033 = vmatpush2.bf16.msra.mxu0 0
    %3034 = vmatprep.mubr.bf16.mxu0 0
    %3035 = vmatmul.mubr.bf16.gmra.mxu0 %v3000
    %v3036 = vpop.f32.mrf.mxu0
    %v3037 = vadd.f32 %v2997, %v3036
    %v3038 = vpop.f32.mrf.mxu0
    %v3039 = vpop.f32.mrf.mxu0
    %v3040 = vpop.f32.mrf.mxu0
    %3041 = vdwg.mxu0
    %v3042 = vadd.f32 %v2933, %v2985
    %v3043 = vxor.u32 %v3042, 2147483648
    %v3044 = vmul.f32 %v3043, 1.442695
    %v3045 = vpow.pop %v3044
    %v3046 = vadd.f32 %v3045, 1.0
    %v3047 = vrcp.pop %v3046
    %v3048 = vmul.f32 1.0, %v3047
    %3050 = vrot.lane.b32.xlu0 %v2985, 96
    %v3051 = vpop.permute.xlu0 %3050
    %v3053 = vmul.f32 %v3048, %v3051
    %3055 = vrot.lane.b32.xlu0 %v3053, 32
    %v3056 = vpop.permute.xlu0 %3055
    %v3058 = vadd.f32 %v2933, %v3056
    %v3059 = vtanh.pop %v3058
    %3061 = vrot.lane.b32.xlu0 %v3037, 48
    %v3062 = vpop.permute.xlu0 %3061
    %v3064 = vadd.f32 %v2937, %v3062
    %v3065 = vxor.u32 %v3064, 2147483648
    %v3066 = vmul.f32 %v3065, 1.442695
    %v3067 = vpow.pop %v3066
    %v3068 = vadd.f32 %v3067, 1.0
    %v3069 = vrcp.pop %v3068
    %v3070 = vmul.f32 1.0, %v3069
    %3071 = vrot.lane.b32.xlu0 %v3037, 16
    %v3072 = vpop.permute.xlu0 %3071
    %v3074 = vmul.f32 %v3070, %v3072
    %3076 = vrot.lane.b32.xlu0 %v3074, 32
    %v3077 = vpop.permute.xlu0 %3076
    %v3079 = vadd.f32 %v2937, %v3077
    %v3080 = vtanh.pop %v3079
    %v3081 = vsub.f32 1.0, %v3048
    %3083 = vrot.lane.b32.xlu0 %v3059, 112
    %v3084 = vpop.permute.xlu0 %3083
    %v3086 = vmul.f32 %v3081, %v3084
    %v3087 = vmul.f32 %v3048, %v2929
    %v3088 = vadd.f32 %v3086, %v3087
    %v3089 = vsub.f32 1.0, %v3070
    %3091 = vrot.lane.b32.xlu0 %v3080, 112
    %v3092 = vpop.permute.xlu0 %3091
    %v3094 = vmul.f32 %v3089, %v3092
    %v3095 = vmul.f32 %v3070, %v2930
    %v3096 = vadd.f32 %v3094, %v3095
    %3098 = vrot.lane.b32.xlu0 %v3088, 112
    %v3099 = vpop.permute.xlu0 %3098
    %s3101 = scalar_lea.vmem [#allocation3], %s2931
    %vm3102 = vcmask 123904
    %3103 = vst.msk [vmem:[%s3101] sm:$0x3] %vm3102, %v3099
    %3105 = vrot.lane.b32.xlu0 %v3096, 64
    %v3106 = vpop.permute.xlu0 %3105
    %s3108 = scalar_lea.vmem [#allocation4], %s2935
    %3109 = vst.msk [vmem:[%s3108] sm:$0x3] %vm3102, %v3106
  $region46: #{fastspeech_forward.5} parent=0 // loop_footer
    %s2928 = sadd.s32 1, %s2924
  $region47: #{fastspeech_forward.5} parent=0 // loop_footer_branch
    %2923 = sbr.rel target = $region43
  $region48: #{fastspeech_forward.5} parent=0 // loop_exit
    _
  %s3110 = scalar_lea.vmem %s2, 32
  %v3111 = vld [vmem:[%s3110] sm:$0xff]
  %v3112 = vld [vmem:[%s3110 + $0x8] sm:$0xff]
  %v3113 = vld [vmem:[%s3110 + $0x10] sm:$0xff]
  %v3114 = vld [vmem:[%s3110 + $0x18] sm:$0xff]
  %v3115 = vld [vmem:[#allocation3] sm:$0x3]
  %v3116 = vld [vmem:[#allocation3 + $0x2] sm:$0x3]
  %v3117 = vld [vmem:[#allocation3 + $0x4] sm:$0x3]
  %v3118 = vld [vmem:[#allocation3 + $0x6] sm:$0x3]
  %v3119 = vld [vmem:[#allocation3 + $0x8] sm:$0x3]
  %v3120 = vld [vmem:[#allocation3 + $0xa] sm:$0x3]
  %v3121 = vld [vmem:[#allocation3 + $0xc] sm:$0x3]
  %v3122 = vld [vmem:[#allocation3 + $0xe] sm:$0x3]
  %v3123 = vld [vmem:[#allocation3 + $0x10] sm:$0x3]
  %v3124 = vld [vmem:[#allocation3 + $0x12] sm:$0x3]
  %v3125 = vld [vmem:[#allocation3 + $0x14] sm:$0x3]
  %v3126 = vld [vmem:[#allocation3 + $0x16] sm:$0x3]
  %v3127 = vld [vmem:[#allocation3 + $0x18] sm:$0x3]
  %v3128 = vld [vmem:[#allocation3 + $0x1a] sm:$0x3]
  %v3129 = vld [vmem:[#allocation3 + $0x1c] sm:$0x3]
  %v3130 = vld [vmem:[#allocation3 + $0x1e] sm:$0x3]
  %v3147 = vcombine.low %v3115, %v3116
  %v3148 = vcombine.low %v3117, %v3118
  %v3150 = vunpack.c.l.s4 1983009808
  %v3151 = vunpack.c.0.s8 %v3150
  %v3152 = vlaneseq
  %v3153 = vshrl.u32 %v3152, 7
  %v3154 = vsub.s32 %v3151, %v3153
  %v3155 = vrot.slane %v3147, %v3154
  %v3157 = vunpack.c.l.s4 1983009808
  %v3158 = vunpack.c.0.s8 %v3157
  %v3159 = vlaneseq
  %v3160 = vshrl.u32 %v3159, 7
  %v3161 = vsub.s32 %v3158, %v3160
  %v3162 = vrot.slane %v3148, %v3161
  %v3163 = vcombine.low %v3155, %v3162
  %v3164 = vcombine.low %v3119, %v3120
  %v3165 = vcombine.low %v3121, %v3122
  %v3167 = vunpack.c.l.s4 1983009808
  %v3168 = vunpack.c.0.s8 %v3167
  %v3169 = vlaneseq
  %v3170 = vshrl.u32 %v3169, 7
  %v3171 = vsub.s32 %v3168, %v3170
  %v3172 = vrot.slane %v3164, %v3171
  %v3174 = vunpack.c.l.s4 1983009808
  %v3175 = vunpack.c.0.s8 %v3174
  %v3176 = vlaneseq
  %v3177 = vshrl.u32 %v3176, 7
  %v3178 = vsub.s32 %v3175, %v3177
  %v3179 = vrot.slane %v3165, %v3178
  %v3180 = vcombine.low %v3172, %v3179
  %v3181 = vcombine.low %v3123, %v3124
  %v3182 = vcombine.low %v3125, %v3126
  %v3184 = vunpack.c.l.s4 1983009808
  %v3185 = vunpack.c.0.s8 %v3184
  %v3186 = vlaneseq
  %v3187 = vshrl.u32 %v3186, 7
  %v3188 = vsub.s32 %v3185, %v3187
  %v3189 = vrot.slane %v3181, %v3188
  %v3191 = vunpack.c.l.s4 1983009808
  %v3192 = vunpack.c.0.s8 %v3191
  %v3193 = vlaneseq
  %v3194 = vshrl.u32 %v3193, 7
  %v3195 = vsub.s32 %v3192, %v3194
  %v3196 = vrot.slane %v3182, %v3195
  %v3197 = vcombine.low %v3189, %v3196
  %v3198 = vcombine.low %v3127, %v3128
  %v3199 = vcombine.low %v3129, %v3130
  %v3201 = vunpack.c.l.s4 1983009808
  %v3202 = vunpack.c.0.s8 %v3201
  %v3203 = vlaneseq
  %v3204 = vshrl.u32 %v3203, 7
  %v3205 = vsub.s32 %v3202, %v3204
  %v3206 = vrot.slane %v3198, %v3205
  %v3208 = vunpack.c.l.s4 1983009808
  %v3209 = vunpack.c.0.s8 %v3208
  %v3210 = vlaneseq
  %v3211 = vshrl.u32 %v3210, 7
  %v3212 = vsub.s32 %v3209, %v3211
  %v3213 = vrot.slane %v3199, %v3212
  %v3214 = vcombine.low %v3206, %v3213
  %v3219 = vpack.c.bf16 %v3180, %v3163
  %v3220 = vpack.c.bf16 %v3214, %v3197
  %v3221 = vpack.c.bf16 %v3112, %v3111
  %v3222 = vld [vmem:[#allocation4] sm:$0x3]
  %v3223 = vld [vmem:[#allocation4 + $0x2] sm:$0x3]
  %v3224 = vld [vmem:[#allocation4 + $0x4] sm:$0x3]
  %v3225 = vld [vmem:[#allocation4 + $0x6] sm:$0x3]
  %v3226 = vld [vmem:[#allocation4 + $0x8] sm:$0x3]
  %v3227 = vld [vmem:[#allocation4 + $0xa] sm:$0x3]
  %v3228 = vld [vmem:[#allocation4 + $0xc] sm:$0x3]
  %v3229 = vld [vmem:[#allocation4 + $0xe] sm:$0x3]
  %v3230 = vld [vmem:[#allocation4 + $0x10] sm:$0x3]
  %v3231 = vld [vmem:[#allocation4 + $0x12] sm:$0x3]
  %v3232 = vld [vmem:[#allocation4 + $0x14] sm:$0x3]
  %v3233 = vld [vmem:[#allocation4 + $0x16] sm:$0x3]
  %v3234 = vld [vmem:[#allocation4 + $0x18] sm:$0x3]
  %v3235 = vld [vmem:[#allocation4 + $0x1a] sm:$0x3]
  %v3236 = vld [vmem:[#allocation4 + $0x1c] sm:$0x3]
  %v3237 = vld [vmem:[#allocation4 + $0x1e] sm:$0x3]
  %v3254 = vcombine.low %v3222, %v3223
  %v3255 = vcombine.low %v3224, %v3225
  %v3257 = vunpack.c.l.s4 1983009808
  %v3258 = vunpack.c.0.s8 %v3257
  %v3259 = vlaneseq
  %v3260 = vshrl.u32 %v3259, 7
  %v3261 = vsub.s32 %v3258, %v3260
  %v3262 = vrot.slane %v3254, %v3261
  %v3264 = vunpack.c.l.s4 1983009808
  %v3265 = vunpack.c.0.s8 %v3264
  %v3266 = vlaneseq
  %v3267 = vshrl.u32 %v3266, 7
  %v3268 = vsub.s32 %v3265, %v3267
  %v3269 = vrot.slane %v3255, %v3268
  %v3270 = vcombine.low %v3262, %v3269
  %v3271 = vcombine.low %v3226, %v3227
  %v3272 = vcombine.low %v3228, %v3229
  %v3274 = vunpack.c.l.s4 1983009808
  %v3275 = vunpack.c.0.s8 %v3274
  %v3276 = vlaneseq
  %v3277 = vshrl.u32 %v3276, 7
  %v3278 = vsub.s32 %v3275, %v3277
  %v3279 = vrot.slane %v3271, %v3278
  %v3281 = vunpack.c.l.s4 1983009808
  %v3282 = vunpack.c.0.s8 %v3281
  %v3283 = vlaneseq
  %v3284 = vshrl.u32 %v3283, 7
  %v3285 = vsub.s32 %v3282, %v3284
  %v3286 = vrot.slane %v3272, %v3285
  %v3287 = vcombine.low %v3279, %v3286
  %v3288 = vcombine.low %v3230, %v3231
  %v3289 = vcombine.low %v3232, %v3233
  %v3291 = vunpack.c.l.s4 1983009808
  %v3292 = vunpack.c.0.s8 %v3291
  %v3293 = vlaneseq
  %v3294 = vshrl.u32 %v3293, 7
  %v3295 = vsub.s32 %v3292, %v3294
  %v3296 = vrot.slane %v3288, %v3295
  %v3298 = vunpack.c.l.s4 1983009808
  %v3299 = vunpack.c.0.s8 %v3298
  %v3300 = vlaneseq
  %v3301 = vshrl.u32 %v3300, 7
  %v3302 = vsub.s32 %v3299, %v3301
  %v3303 = vrot.slane %v3289, %v3302
  %v3304 = vcombine.low %v3296, %v3303
  %v3305 = vcombine.low %v3234, %v3235
  %v3306 = vcombine.low %v3236, %v3237
  %v3308 = vunpack.c.l.s4 1983009808
  %v3309 = vunpack.c.0.s8 %v3308
  %v3310 = vlaneseq
  %v3311 = vshrl.u32 %v3310, 7
  %v3312 = vsub.s32 %v3309, %v3311
  %v3313 = vrot.slane %v3305, %v3312
  %v3315 = vunpack.c.l.s4 1983009808
  %v3316 = vunpack.c.0.s8 %v3315
  %v3317 = vlaneseq
  %v3318 = vshrl.u32 %v3317, 7
  %v3319 = vsub.s32 %v3316, %v3318
  %v3320 = vrot.slane %v3306, %v3319
  %v3321 = vcombine.low %v3313, %v3320
  %v3326 = vpack.c.bf16 %v3287, %v3270
  %v3327 = vpack.c.bf16 %v3321, %v3304
  %v3328 = vpack.c.bf16 %v3114, %v3113
  %v3330 = vsel %vm240, %v3326, 0
  %v3333 = vsel %vm240, %v3327, 0
  %3335 = vmatprep.subr.bf16.mxu0 0
  %3336 = vmatpush1.bf16.msra.mxu0 0
  %3337 = vmatprep.subr.bf16.mxu0 0
  %3338 = vmatpush1.bf16.msra.mxu0 0
  %3339 = vmatprep.subr.bf16.mxu0 0
  %3340 = vmatpush1.bf16.msra.mxu0 0
  %3341 = vmatprep.subr.bf16.mxu0 0
  %3342 = vmatpush1.bf16.msra.mxu0 0
  %3343 = vmatprep.subr.bf16.mxu0 0
  %3344 = vmatpush1.bf16.msra.mxu0 0
  %3345 = vmatprep.subr.bf16.mxu0 0
  %3346 = vmatpush1.bf16.msra.mxu0 0
  %3347 = vmatprep.subr.bf16.mxu0 0
  %3348 = vmatpush1.bf16.msra.mxu0 0
  %3349 = vmatprep.subr.bf16.mxu0 0
  %3350 = vmatpush1.bf16.msra.mxu0 %v3328
  %3351 = vmatprep.subr.bf16.mxu0 0
  %3352 = vmatpush2.bf16.msra.mxu0 0
  %3353 = vmatprep.subr.bf16.mxu0 0
  %3354 = vmatpush2.bf16.msra.mxu0 0
  %3355 = vmatprep.subr.bf16.mxu0 0
  %3356 = vmatpush2.bf16.msra.mxu0 0
  %3357 = vmatprep.subr.bf16.mxu0 0
  %3358 = vmatpush2.bf16.msra.mxu0 0
  %3359 = vmatprep.subr.bf16.mxu0 0
  %3360 = vmatpush2.bf16.msra.mxu0 0
  %3361 = vmatprep.subr.bf16.mxu0 0
  %3362 = vmatpush2.bf16.msra.mxu0 0
  %3363 = vmatprep.subr.bf16.mxu0 0
  %3364 = vmatpush2.bf16.msra.mxu0 0
  %3365 = vmatprep.subr.bf16.mxu0 0
  %3366 = vmatpush2.bf16.msra.mxu0 0
  %3367 = vmatprep.mubr.bf16.mxu0 0
  %3368 = vmatmul.mubr.bf16.gmra.mxu0 %v3330
  %v3369 = vpop.f32.mrf.mxu0
  %v3370 = vadd.f32 0.0, %v3369
  %v3371 = vpop.f32.mrf.mxu0
  %v3372 = vpop.f32.mrf.mxu0
  %v3373 = vadd.f32 0.0, %v3372
  %v3374 = vpop.f32.mrf.mxu0
  %3375 = vmatprep.mubr.bf16.mxu0 0
  %3376 = vmatmul.mubr.bf16.gmra.mxu0 %v3333
  %v3377 = vpop.f32.mrf.mxu0
  %v3378 = vadd.f32 0.0, %v3377
  %v3379 = vpop.f32.mrf.mxu0
  %v3380 = vpop.f32.mrf.mxu0
  %v3381 = vadd.f32 0.0, %v3380
  %v3382 = vpop.f32.mrf.mxu0
  %3383 = vdwg.mxu0
  %v3385 = vsel %vm240, %v3219, 0
  %v3388 = vsel %vm240, %v3220, 0
  %3390 = vmatprep.subr.bf16.mxu0 0
  %3391 = vmatpush1.bf16.msra.mxu0 0
  %3392 = vmatprep.subr.bf16.mxu0 0
  %3393 = vmatpush1.bf16.msra.mxu0 0
  %3394 = vmatprep.subr.bf16.mxu0 0
  %3395 = vmatpush1.bf16.msra.mxu0 0
  %3396 = vmatprep.subr.bf16.mxu0 0
  %3397 = vmatpush1.bf16.msra.mxu0 0
  %3398 = vmatprep.subr.bf16.mxu0 0
  %3399 = vmatpush1.bf16.msra.mxu0 0
  %3400 = vmatprep.subr.bf16.mxu0 0
  %3401 = vmatpush1.bf16.msra.mxu0 0
  %3402 = vmatprep.subr.bf16.mxu0 0
  %3403 = vmatpush1.bf16.msra.mxu0 0
  %3404 = vmatprep.subr.bf16.mxu0 0
  %3405 = vmatpush1.bf16.msra.mxu0 %v3221
  %3406 = vmatprep.subr.bf16.mxu0 0
  %3407 = vmatpush2.bf16.msra.mxu0 0
  %3408 = vmatprep.subr.bf16.mxu0 0
  %3409 = vmatpush2.bf16.msra.mxu0 0
  %3410 = vmatprep.subr.bf16.mxu0 0
  %3411 = vmatpush2.bf16.msra.mxu0 0
  %3412 = vmatprep.subr.bf16.mxu0 0
  %3413 = vmatpush2.bf16.msra.mxu0 0
  %3414 = vmatprep.subr.bf16.mxu0 0
  %3415 = vmatpush2.bf16.msra.mxu0 0
  %3416 = vmatprep.subr.bf16.mxu0 0
  %3417 = vmatpush2.bf16.msra.mxu0 0
  %3418 = vmatprep.subr.bf16.mxu0 0
  %3419 = vmatpush2.bf16.msra.mxu0 0
  %3420 = vmatprep.subr.bf16.mxu0 0
  %3421 = vmatpush2.bf16.msra.mxu0 0
  %3422 = vmatprep.mubr.bf16.mxu0 0
  %3423 = vmatmul.mubr.bf16.gmra.mxu0 %v3385
  %v3424 = vpop.f32.mrf.mxu0
  %v3425 = vadd.f32 %v3370, %v3424
  %v3426 = vpop.f32.mrf.mxu0
  %v3427 = vpop.f32.mrf.mxu0
  %v3428 = vadd.f32 %v3373, %v3427
  %v3429 = vpop.f32.mrf.mxu0
  %3430 = vmatprep.mubr.bf16.mxu0 0
  %3431 = vmatmul.mubr.bf16.gmra.mxu0 %v3388
  %v3432 = vpop.f32.mrf.mxu0
  %v3433 = vadd.f32 %v3378, %v3432
  %v3434 = vpop.f32.mrf.mxu0
  %v3435 = vpop.f32.mrf.mxu0
  %v3436 = vadd.f32 %v3381, %v3435
  %v3437 = vpop.f32.mrf.mxu0
  %3438 = vdwg.mxu0
  %v3439 = vlaneseq
  %v3440 = vshrl.u32 %v3439, 7
  %v3441 = vsub.s32 5, %v3440
  %v3442 = vrot.slane %v39, %v3441
  %v3443 = vadd.f32 %v3425, %v3442
  %v3444 = vadd.f32 %v3428, %v3442
  %v3445 = vadd.f32 %v3433, %v3442
  %v3446 = vadd.f32 %v3436, %v3442
  %v3447 = vadd.f32 %v236, %v3443
  %v3448 = vadd.f32 %v237, %v3444
  %v3449 = vadd.f32 %v238, %v3445
  %v3450 = vadd.f32 %v239, %v3446
  %v3451 = vmul.f32 %v3447, %v219
  %v3452 = vmul.f32 %v3448, %v224
  %v3453 = vmul.f32 %v3449, %v229
  %v3454 = vmul.f32 %v3450, %v234
  %3455 = vst.msk [vmem:[%s11] sm:$0xff] %vm240, %v3451
  %3456 = vst.msk [vmem:[%s11 + $0x8] sm:$0xff] %vm240, %v3452
  %3457 = vst.msk [vmem:[%s11 + $0x10] sm:$0xff] %vm240, %v3453
  %3458 = vst.msk [vmem:[%s11 + $0x18] sm:$0xff] %vm240, %v3454
  // Predicated region
  $region49: #{fastspeech_forward.5} parent=0 // pred_check
    _
  $region50: #{fastspeech_forward.5} parent=0 // pred_check_branch
    %3460 = sbr.rel (0) target = $region52
  $region51: #{fastspeech_forward.5} parent=0 // pred_region
    _
  $region52: #{fastspeech_forward.5} parent=0 // pred_fallthru
    _
  // Predicated region
  $region53: #{fastspeech_forward.5} parent=0 // pred_check
    _
  $region54: #{fastspeech_forward.5} parent=0 // pred_check_branch
    %3462 = sbr.rel (0) target = $region56
  $region55: #{fastspeech_forward.5} parent=0 // pred_region
    _
  $region56: #{fastspeech_forward.5} parent=0 // pred_fallthru
    _
  // Predicated region
  $region57: #{fastspeech_forward.5} parent=0 // pred_check
    _
  $region58: #{fastspeech_forward.5} parent=0 // pred_check_branch
    %3464 = sbr.rel (0) target = $region60
  $region59: #{fastspeech_forward.5} parent=0 // pred_region
    _
  $region60: #{fastspeech_forward.5} parent=0 // pred_fallthru
    _
  // Predicated region
  $region61: #{fastspeech_forward.5} parent=0 // pred_check
    _
  $region62: #{fastspeech_forward.5} parent=0 // pred_check_branch
    %3466 = sbr.rel (0) target = $region64
  $region63: #{fastspeech_forward.5} parent=0 // pred_region
    _
  $region64: #{fastspeech_forward.5} parent=0 // pred_fallthru
    _

</llo_original>
